<compile_context>
chip_gen: v7x
topology: tpu7x:2x2x1
jax: 0.10.0
libtpu: 0.0.40
codegen_flags: <defaults>
</compile_context>

<pallas_src>
import functools

import numpy as np
import jax
import jax.numpy as jnp
from jax import lax
from jax.experimental import pallas as pl
from jax.experimental.pallas import tpu as pltpu

Z_S_DIM = 27        # 3 + 3*2*4 (positional encoding with num_encoding_functions=4)
DF_DIM = 32
NUM_LAYERS = 2
STEP_SIZE = 0.2
LEAKY_SLOPE = 0.2   # explicit in the reference: F.leaky_relu(..., 0.2)
TILE_N = 1024       # points per kernel tile (lane axis, multiple of 128)


# ---------------------------------------------------------------------------
# Fused kernel: one (batch, point-tile) block runs all N Euler steps.
# Layout is (feature, point): x (3,t), grid slab (W*Cpad, D*H), out (4,t).
# ---------------------------------------------------------------------------
def _flow_kernel(pts_ref, gstack_ref, w1_ref, b1_ref, wm_ref, bm_ref,
                 wo_ref, bo_ref, out_ref, *,
                 num_layers, n_steps, fac, h, dims, c_dim, c_pad, freqs,
                 training):
    D, H, W = dims
    DH = D * H
    tile = pts_ref.shape[-1]
    nf = len(freqs)

    # ---- loop-invariant operands, hoisted above the Euler loop ----
    x0 = pts_ref[0]                           # (3, tile) f32
    gstack = gstack_ref[0]                    # (W*c_pad, DH), f32 or bf16
    w1 = w1_ref[...]
    b1 = b1_ref[...]
    wms = [wm_ref[i] for i in range(num_layers)]
    bms = [bm_ref[i] for i in range(num_layers)]
    wo = wo_ref[...]
    bo = bo_ref[...]

    # Loop-invariant cell-index planes (tiny; built from sublane iotas, no
    # integer div needed: the +0.5 makes the float floor robust for any H).
    r_zy = lax.broadcasted_iota(jnp.int32, (DH, tile), 0).astype(jnp.float32)
    iz = jnp.floor((r_zy + 0.5) * (1.0 / H))          # z index of row z*H+y
    iy = r_zy - iz * H                                # y index of row z*H+y
    ix = lax.broadcasted_iota(jnp.int32, (W, tile), 0).astype(jnp.float32)

    def unnorm(coord, size):
        # grid_sample(align_corners=True, padding_mode='border') 1-D coordinate.
        return jnp.clip((coord + 1.0) * (0.5 * (size - 1)), 0.0, float(size - 1))

    def tent(idx_plane, g):
        # 1-D linear interpolation weights: max(0, 1 - |i - g|).
        return jnp.maximum(1.0 - jnp.abs(idx_plane - g), 0.0)

    def leaky(v):
        return jnp.maximum(v, LEAKY_SLOPE * v)

    def body(_, carry):
        x, gm = carry                                  # (3, t), (1, t)

        # --- trilinear grid_sample, factorized: matmul over (z,y), combine over x
        gx = unnorm(x[0:1, :], W)
        gy = unnorm(x[1:2, :], H)
        gz = unnorm(x[2:3, :], D)
        wzy = tent(iz, gz) * tent(iy, gy)              # (DH, t) small
        wx = tent(ix, gx)                              # (W, t)  small

        t_all = jnp.dot(gstack, wzy.astype(gstack.dtype),
                        preferred_element_type=jnp.float32)   # (W*c_pad, t)

        z = t_all[0:c_pad, :] * wx[0:1, :]
        for xi in range(1, W):
            z = z + t_all[xi * c_pad:(xi + 1) * c_pad, :] * wx[xi:xi + 1, :]
        # rows c_dim..c_pad-1 of z are exact zeros (zero-padded grid channels)

        # --- positional encoding * z, kernel feature order [id | sin f* | cos f*]
        xs = jnp.concatenate([x * f for f in freqs], axis=0)          # (3nf, t)
        feat = jnp.concatenate(
            [x * z[0:3, :],
             jnp.sin(xs) * z[3:3 + 3 * nf, :],
             jnp.cos(xs) * z[3 + 3 * nf:3 + 6 * nf, :]], axis=0)      # (c_dim, t)

        # --- deform() MLP ---
        hdn = leaky(jnp.dot(w1, feat, preferred_element_type=jnp.float32) + b1)
        for wm_i, bm_i in zip(wms, bms):
            hdn = leaky(jnp.dot(wm_i, hdn,
                                preferred_element_type=jnp.float32) + bm_i)
        dx = jnp.dot(wo, hdn, preferred_element_type=jnp.float32) + bo  # (3, t)

        # --- Euler update + grad_mag accumulation (stays in vregs/VMEM) ---
        x_new = x + (fac * h) * dx
        if training:
            gm = gm + (dx[0:1, :] * dx[0:1, :] + dx[1:2, :] * dx[1:2, :]
                       + dx[2:3, :] * dx[2:3, :]) * (1.0 / 3.0)
        return x_new, gm

    gm0 = jnp.zeros_like(x0[0:1, :])
    x_fin, gm_fin = lax.fori_loop(0, n_steps, body, (x0, gm0))
    out_ref[0] = jnp.concatenate([x_fin, gm_fin], axis=0)             # (4, t)


def shape_decoder_forward(params, points, type_vec, shape_grid, *,
                          inverse=False, step_size=STEP_SIZE, training=True,
                          tile=TILE_N, sample_dtype=jnp.float32):
    """Mirrors SHAPEDecoder.forward (ins_norm=False, div_loss=False)."""
    del type_vec  # unused by deform() in the reference code
    B, P, _ = points.shape
    Bg, C, D, H, W = shape_grid.shape
    assert Bg == B and (C - 3) % 6 == 0
    nf = (C - 3) // 6
    n_steps = int(round(1.0 / step_size))
    fac = -1.0 if inverse else 1.0
    c_pad = ((C + 7) // 8) * 8           # sublane-aligned channel count

    w1, b1, wm, bm, wo, bo = params      # torch (out, in) layout
    df = w1.shape[0]
    L = wm.shape[0]

    # Permute the C-feature axis (reference order: x, then [sin,cos] per freq,
    # 3 coords per block) into the kernel order [id(3) | sin(3*nf) | cos(3*nf)].
    # Applying the same permutation to the grid channels and to w1's input
    # columns keeps pe*z and w1 @ (pe*z) exactly equal to the reference.
    perm = np.asarray(
        [0, 1, 2]
        + [3 + 6 * i + k for i in range(nf) for k in range(3)]
        + [6 + 6 * i + k for i in range(nf) for k in range(3)], np.int32)
    w1_k = w1[:, perm]                                        # (df, C)

    # Grid slab for the factorized sample matmul:
    #   gstack[b, x*c_pad + c, z*H + y] = grid_perm[b, c, z, y, x]  (0 for c>=C)
    g_perm = shape_grid[:, perm]                              # (B, C, D, H, W)
    g_t = jnp.transpose(g_perm, (0, 4, 1, 2, 3))              # (B, W, C, D, H)
    g_pad = jnp.pad(g_t, ((0, 0), (0, 0), (0, c_pad - C), (0, 0), (0, 0)))
    gstack = g_pad.reshape(B, W * c_pad, D * H).astype(sample_dtype)

    pts_t = jnp.transpose(points, (0, 2, 1))                  # (B, 3, P)
    pad = (-P) % tile
    if pad:
        pts_t = jnp.pad(pts_t, ((0, 0), (0, 0), (0, pad)))
    Pp = P + pad

    kernel = functools.partial(
        _flow_kernel, num_layers=L, n_steps=n_steps, fac=fac,
        h=float(step_size), dims=(D, H, W), c_dim=C, c_pad=c_pad,
        freqs=tuple(float(2 ** i) for i in range(nf)), training=training)

    out = pl.pallas_call(
        kernel,
        out_shape=jax.ShapeDtypeStruct((B, 4, Pp), jnp.float32),
        grid_spec=pltpu.PrefetchScalarGridSpec(
            num_scalar_prefetch=0,
            grid=(B, Pp // tile),
            in_specs=[
                pl.BlockSpec((1, 3, tile), lambda b, i: (b, 0, i)),       # points
                pl.BlockSpec((1, W * c_pad, D * H), lambda b, i: (b, 0, 0)),  # grid slab
                pl.BlockSpec((df, C), lambda b, i: (0, 0)),               # fc1 W
                pl.BlockSpec((df, 1), lambda b, i: (0, 0)),               # fc1 b
                pl.BlockSpec((L, df, df), lambda b, i: (0, 0, 0)),        # shape_mlp W
                pl.BlockSpec((L, df, 1), lambda b, i: (0, 0, 0)),         # shape_mlp b
                pl.BlockSpec((3, df), lambda b, i: (0, 0)),               # fc_out W
                pl.BlockSpec((3, 1), lambda b, i: (0, 0)),                # fc_out b
            ],
            out_specs=pl.BlockSpec((1, 4, tile), lambda b, i: (b, 0, i)),
        ),
        compiler_params=pltpu.CompilerParams(
            dimension_semantics=("parallel", "parallel"),
            vmem_limit_bytes=32 * 1024 * 1024),
    )(pts_t, gstack, w1_k, b1, wm, bm, wo, bo)

    x_out = jnp.transpose(out[:, 0:3, :P], (0, 2, 1))         # (B, P, 3)
    grad_mag = out[:, 3, :P] if training else 0.0             # reference returns 0.0 in eval
    # TODO(synk): div_loss central-difference branch and the ins_norm
    # InstanceNorm3d branch are not implemented; default module construction
    # has div_loss=False / ins_norm=False so div_integral == 0.0.
    div_integral = 0.0
    return x_out, div_integral, grad_mag


# ---------------------------------------------------------------------------
# Parameter init (PyTorch Linear-style uniform(-1/sqrt(fan_in), 1/sqrt(fan_in)),
# weights kept in the torch (out, in) layout, biases as (out, 1)).
# ---------------------------------------------------------------------------
def init_params(key, z_s_dim=Z_S_DIM, df_dim=DF_DIM, num_layers=NUM_LAYERS):
    ks = jax.random.split(key, 2 * num_layers + 4)

    def linear(kw, kb, fan_in, fan_out):
        bound = 1.0 / np.sqrt(fan_in)
        w = jax.random.uniform(kw, (fan_out, fan_in), jnp.float32, -bound, bound)
        b = jax.random.uniform(kb, (fan_out, 1), jnp.float32, -bound, bound)
        return w, b

    w1, b1 = linear(ks[0], ks[1], z_s_dim, df_dim)
    wms, bms = [], []
    for i in range(num_layers):
        w, b = linear(ks[2 + 2 * i], ks[3 + 2 * i], df_dim, df_dim)
        wms.append(w)
        bms.append(b)
    wm = jnp.stack(wms)                    # (L, df, df)
    bm = jnp.stack(bms)                    # (L, df, 1)
    wo, bo = linear(ks[2 + 2 * num_layers], ks[3 + 2 * num_layers], df_dim, 3)
    return (w1, b1, wm, bm, wo, bo)


# ---------------------------------------------------------------------------
# Pure-JAX reference (gather-based grid_sample + MLP), used only to verify the
# fused kernel numerically.
# ---------------------------------------------------------------------------
def grid_sample_3d_border_align(grid, pts):
    B, C, D, H, W = grid.shape
    x = jnp.clip((pts[..., 0] + 1.0) * 0.5 * (W - 1), 0.0, W - 1)
    y = jnp.clip((pts[..., 1] + 1.0) * 0.5 * (H - 1), 0.0, H - 1)
    z = jnp.clip((pts[..., 2] + 1.0) * 0.5 * (D - 1), 0.0, D - 1)
    x0f, y0f, z0f = jnp.floor(x), jnp.floor(y), jnp.floor(z)
    wx, wy, wz = x - x0f, y - y0f, z - z0f
    x0, y0, z0 = x0f.astype(jnp.int32), y0f.astype(jnp.int32), z0f.astype(jnp.int32)
    x1 = jnp.minimum(x0 + 1, W - 1)
    y1 = jnp.minimum(y0 + 1, H - 1)
    z1 = jnp.minimum(z0 + 1, D - 1)
    bidx = jnp.arange(B)[:, None]

    def g(iz, iy, ix):
        return grid[bidx, :, iz, iy, ix]          # (B, P, C)

    wx, wy, wz = wx[..., None], wy[..., None], wz[..., None]
    c00 = g(z0, y0, x0) * (1 - wx) + g(z0, y0, x1) * wx
    c01 = g(z0, y1, x0) * (1 - wx) + g(z0, y1, x1) * wx
    c10 = g(z1, y0, x0) * (1 - wx) + g(z1, y0, x1) * wx
    c11 = g(z1, y1, x0) * (1 - wx) + g(z1, y1, x1) * wx
    c0 = c00 * (1 - wy) + c01 * wy
    c1 = c10 * (1 - wy) + c11 * wy
    return c0 * (1 - wz) + c1 * wz


def _positional_encoding_ref(x, num_encoding_functions=4):
    enc = [x]
    for i in range(num_encoding_functions):
        f = 2.0 ** i
        enc.append(jnp.sin(x * f))
        enc.append(jnp.cos(x * f))
    return jnp.concatenate(enc, axis=-1)


def _leaky_ref(v):
    return jnp.where(v > 0, v, LEAKY_SLOPE * v)


def reference_forward(params, points, shape_grid, *, inverse=False,
                      step_size=STEP_SIZE):
    w1, b1, wm, bm, wo, bo = params
    nf = (shape_grid.shape[1] - 3) // 6
    n = int(round(1.0 / step_size))
    fac = -1.0 if inverse else 1.0
    x = points
    gm = jnp.zeros(points.shape[:2], jnp.float32)
    for _ in range(n):
        z = grid_sample_3d_border_align(shape_grid, x)
        feat = _positional_encoding_ref(x, nf) * z
        hdn = _leaky_ref(feat @ w1.T + b1[:, 0])
        for i in range(wm.shape[0]):
            hdn = _leaky_ref(hdn @ wm[i].T + bm[i, :, 0])
        dx = hdn @ wo.T + bo[:, 0]
        x = x + fac * step_size * dx
        gm = gm + jnp.mean(dx * dx, axis=-1)
    return x, gm


if __name__ == "__main__":
    key = jax.random.PRNGKey(0)
    kp, kg, kparam = jax.random.split(key, 3)

    B, P, D = 2, 2048, 8        # grid = (B=2, P/tile=2): 4 parallel programs
    points = jax.random.uniform(kp, (B, P, 3), jnp.float32, -1.0, 1.0)
    shape_grid = jax.random.normal(kg, (B, Z_S_DIM, D, D, D), jnp.float32)
    type_vec = jnp.zeros((B,), jnp.float32)   # unused, kept for signature parity
    params = init_params(kparam)

    # f32 sample matmul (default)
    x_out, div_integral, grad_mag = shape_decoder_forward(
        params, points, type_vec, shape_grid, inverse=False)
    jax.block_until_ready((x_out, grad_mag))
    assert x_out.shape == (B, P, 3)
    assert grad_mag.shape == (B, P)

    # Numerical check against a pure-JAX (gather-based) reference.
    x_ref, gm_ref = reference_forward(params, points, shape_grid)
    np.testing.assert_allclose(np.asarray(x_out), np.asarray(x_ref),
                               rtol=2e-3, atol=2e-3)
    np.testing.assert_allclose(np.asarray(grad_mag), np.asarray(gm_ref),
                               rtol=2e-3, atol=2e-3)

    # bf16 MXU operands for the sample matmul (v6e/v7x suggestion) — looser tol.
    x_bf, _, gm_bf = shape_decoder_forward(
        params, points, type_vec, shape_grid, inverse=False,
        sample_dtype=jnp.bfloat16)
    jax.block_until_ready((x_bf, gm_bf))
    np.testing.assert_allclose(np.asarray(x_bf), np.asarray(x_ref),
                               rtol=2e-2, atol=2e-2)
    np.testing.assert_allclose(np.asarray(gm_bf), np.asarray(gm_ref),
                               rtol=2e-2, atol=2e-2)

    print("KERNEL_OK")
</pallas_src>

<mosaic_0001>
module attributes {stable_mosaic.version = 11 : i64} {
  func.func @_flow_kernel(%arg0: i32, %arg1: i32, %arg2: memref<1x3x1024xf32, #tpu.memory_space<vmem>>, %arg3: memref<1x256x64xf32, #tpu.memory_space<vmem>>, %arg4: memref<32x27xf32, #tpu.memory_space<vmem>>, %arg5: memref<32x1xf32, #tpu.memory_space<vmem>>, %arg6: memref<2x32x32xf32, #tpu.memory_space<vmem>>, %arg7: memref<2x32x1xf32, #tpu.memory_space<vmem>>, %arg8: memref<3x32xf32, #tpu.memory_space<vmem>>, %arg9: memref<3x1xf32, #tpu.memory_space<vmem>>, %arg10: memref<1x4x1024xf32, #tpu.memory_space<vmem>>) attributes {dimension_semantics = [#tpu.dimension_semantics<parallel>, #tpu.dimension_semantics<parallel>], iteration_bounds = array<i64: 2, 2>, scalar_prefetch = 0 : i64, scratch_operands = 0 : i64, tpu.core_type = #tpu.core_type<tc>, window_params = [{transform_indices = @transform_0, window_bounds = array<i64: 1, 3, 1024>}, {transform_indices = @transform_1, window_bounds = array<i64: 1, 256, 64>}, {pipeline_mode = #tpu.pipeline_mode<synchronous>, transform_indices = @transform_2, window_bounds = array<i64: 32, 27>}, {pipeline_mode = #tpu.pipeline_mode<synchronous>, transform_indices = @transform_3, window_bounds = array<i64: 32, 1>}, {pipeline_mode = #tpu.pipeline_mode<synchronous>, transform_indices = @transform_4, window_bounds = array<i64: 2, 32, 32>}, {pipeline_mode = #tpu.pipeline_mode<synchronous>, transform_indices = @transform_5, window_bounds = array<i64: 2, 32, 1>}, {pipeline_mode = #tpu.pipeline_mode<synchronous>, transform_indices = @transform_6, window_bounds = array<i64: 3, 32>}, {pipeline_mode = #tpu.pipeline_mode<synchronous>, transform_indices = @transform_7, window_bounds = array<i64: 3, 1>}, {transform_indices = @transform_8, window_bounds = array<i64: 1, 4, 1024>}]} {
    %c0 = arith.constant 0 : index
    %c0_0 = arith.constant 0 : index
    %c0_1 = arith.constant 0 : index
    %0 = vector.load %arg2[%c0, %c0_0, %c0_1] : memref<1x3x1024xf32, #tpu.memory_space<vmem>>, vector<1x3x1024xf32>
    %1 = vector.shape_cast %0 : vector<1x3x1024xf32> to vector<3x1024xf32>
    %c0_2 = arith.constant 0 : index
    %c0_3 = arith.constant 0 : index
    %c0_4 = arith.constant 0 : index
    %2 = vector.load %arg3[%c0_2, %c0_3, %c0_4] : memref<1x256x64xf32, #tpu.memory_space<vmem>>, vector<1x256x64xf32>
    %3 = vector.shape_cast %2 : vector<1x256x64xf32> to vector<256x64xf32>
    %c0_5 = arith.constant 0 : index
    %c0_6 = arith.constant 0 : index
    %4 = vector.load %arg4[%c0_5, %c0_6] : memref<32x27xf32, #tpu.memory_space<vmem>>, vector<32x27xf32>
    %c0_7 = arith.constant 0 : index
    %c0_8 = arith.constant 0 : index
    %5 = vector.load %arg5[%c0_7, %c0_8] : memref<32x1xf32, #tpu.memory_space<vmem>>, vector<32x1xf32>
    %c0_9 = arith.constant 0 : index
    %c0_10 = arith.constant 0 : index
    %c0_11 = arith.constant 0 : index
    %6 = vector.load %arg6[%c0_9, %c0_10, %c0_11] : memref<2x32x32xf32, #tpu.memory_space<vmem>>, vector<1x32x32xf32>
    %7 = vector.shape_cast %6 : vector<1x32x32xf32> to vector<32x32xf32>
    %c1 = arith.constant 1 : index
    %c0_12 = arith.constant 0 : index
    %c0_13 = arith.constant 0 : index
    %8 = vector.load %arg6[%c1, %c0_12, %c0_13] : memref<2x32x32xf32, #tpu.memory_space<vmem>>, vector<1x32x32xf32>
    %9 = vector.shape_cast %8 : vector<1x32x32xf32> to vector<32x32xf32>
    %c0_14 = arith.constant 0 : index
    %c0_15 = arith.constant 0 : index
    %c0_16 = arith.constant 0 : index
    %10 = vector.load %arg7[%c0_14, %c0_15, %c0_16] : memref<2x32x1xf32, #tpu.memory_space<vmem>>, vector<1x32x1xf32>
    %11 = vector.shape_cast %10 : vector<1x32x1xf32> to vector<32x1xf32>
    %c1_17 = arith.constant 1 : index
    %c0_18 = arith.constant 0 : index
    %c0_19 = arith.constant 0 : index
    %12 = vector.load %arg7[%c1_17, %c0_18, %c0_19] : memref<2x32x1xf32, #tpu.memory_space<vmem>>, vector<1x32x1xf32>
    %13 = vector.shape_cast %12 : vector<1x32x1xf32> to vector<32x1xf32>
    %c0_20 = arith.constant 0 : index
    %c0_21 = arith.constant 0 : index
    %14 = vector.load %arg8[%c0_20, %c0_21] : memref<3x32xf32, #tpu.memory_space<vmem>>, vector<3x32xf32>
    %c0_22 = arith.constant 0 : index
    %c0_23 = arith.constant 0 : index
    %15 = vector.load %arg9[%c0_22, %c0_23] : memref<3x1xf32, #tpu.memory_space<vmem>>, vector<3x1xf32>
    %16 = tpu.iota {dimensions = array<i32: 0>} : vector<64x1024xi32>
    %17 = arith.sitofp %16 : vector<64x1024xi32> to vector<64x1024xf32>
    %cst = arith.constant 5.000000e-01 : f32
    %18 = vector.broadcast %cst : f32 to vector<64x1024xf32>
    %19 = arith.addf %17, %18 : vector<64x1024xf32>
    %cst_24 = arith.constant 1.250000e-01 : f32
    %20 = vector.broadcast %cst_24 : f32 to vector<64x1024xf32>
    %21 = arith.mulf %19, %20 : vector<64x1024xf32>
    %22 = math.floor %21 : vector<64x1024xf32>
    %cst_25 = arith.constant 8.000000e+00 : f32
    %23 = vector.broadcast %cst_25 : f32 to vector<64x1024xf32>
    %24 = arith.mulf %22, %23 : vector<64x1024xf32>
    %25 = arith.subf %17, %24 : vector<64x1024xf32>
    %26 = tpu.iota {dimensions = array<i32: 0>} : vector<8x1024xi32>
    %27 = arith.sitofp %26 : vector<8x1024xi32> to vector<8x1024xf32>
    %cst_26 = arith.constant 0.000000e+00 : f32
    %28 = vector.broadcast %cst_26 : f32 to vector<1x1024xf32>
    %c0_i32 = arith.constant 0 : i32
    %c5_i32 = arith.constant 5 : i32
    %29 = arith.addi %c0_i32, %c5_i32 : i32
    %c1_i32 = arith.constant 1 : i32
    %30:2 = scf.for %arg11 = %c0_i32 to %29 step %c1_i32 iter_args(%arg12 = %1, %arg13 = %28) -> (vector<3x1024xf32>, vector<1x1024xf32>)  : i32 {
      %35 = vector.extract_strided_slice %arg12 {offsets = [0, 0], sizes = [1, 1024], strides = [1, 1]} : vector<3x1024xf32> to vector<1x1024xf32>
      %cst_30 = arith.constant 1.000000e+00 : f32
      %36 = vector.broadcast %cst_30 : f32 to vector<1x1024xf32>
      %37 = arith.addf %35, %36 : vector<1x1024xf32>
      %cst_31 = arith.constant 3.500000e+00 : f32
      %38 = vector.broadcast %cst_31 : f32 to vector<1x1024xf32>
      %39 = arith.mulf %37, %38 : vector<1x1024xf32>
      %cst_32 = arith.constant 0.000000e+00 : f32
      %cst_33 = arith.constant 7.000000e+00 : f32
      %40 = vector.broadcast %cst_32 : f32 to vector<1x1024xf32>
      %41 = arith.maximumf %40, %39 : vector<1x1024xf32>
      %42 = vector.broadcast %cst_33 : f32 to vector<1x1024xf32>
      %43 = arith.minimumf %42, %41 : vector<1x1024xf32>
      %44 = vector.extract_strided_slice %arg12 {offsets = [1, 0], sizes = [1, 1024], strides = [1, 1]} : vector<3x1024xf32> to vector<1x1024xf32>
      %cst_34 = arith.constant 1.000000e+00 : f32
      %45 = vector.broadcast %cst_34 : f32 to vector<1x1024xf32>
      %46 = arith.addf %44, %45 : vector<1x1024xf32>
      %cst_35 = arith.constant 3.500000e+00 : f32
      %47 = vector.broadcast %cst_35 : f32 to vector<1x1024xf32>
      %48 = arith.mulf %46, %47 : vector<1x1024xf32>
      %cst_36 = arith.constant 0.000000e+00 : f32
      %cst_37 = arith.constant 7.000000e+00 : f32
      %49 = vector.broadcast %cst_36 : f32 to vector<1x1024xf32>
      %50 = arith.maximumf %49, %48 : vector<1x1024xf32>
      %51 = vector.broadcast %cst_37 : f32 to vector<1x1024xf32>
      %52 = arith.minimumf %51, %50 : vector<1x1024xf32>
      %53 = vector.extract_strided_slice %arg12 {offsets = [2, 0], sizes = [1, 1024], strides = [1, 1]} : vector<3x1024xf32> to vector<1x1024xf32>
      %cst_38 = arith.constant 1.000000e+00 : f32
      %54 = vector.broadcast %cst_38 : f32 to vector<1x1024xf32>
      %55 = arith.addf %53, %54 : vector<1x1024xf32>
      %cst_39 = arith.constant 3.500000e+00 : f32
      %56 = vector.broadcast %cst_39 : f32 to vector<1x1024xf32>
      %57 = arith.mulf %55, %56 : vector<1x1024xf32>
      %cst_40 = arith.constant 0.000000e+00 : f32
      %cst_41 = arith.constant 7.000000e+00 : f32
      %58 = vector.broadcast %cst_40 : f32 to vector<1x1024xf32>
      %59 = arith.maximumf %58, %57 : vector<1x1024xf32>
      %60 = vector.broadcast %cst_41 : f32 to vector<1x1024xf32>
      %61 = arith.minimumf %60, %59 : vector<1x1024xf32>
      %62 = vector.broadcast %61 : vector<1x1024xf32> to vector<64x1024xf32>
      %63 = arith.subf %22, %62 : vector<64x1024xf32>
      %64 = math.absf %63 : vector<64x1024xf32>
      %cst_42 = arith.constant 1.000000e+00 : f32
      %65 = vector.broadcast %cst_42 : f32 to vector<64x1024xf32>
      %66 = arith.subf %65, %64 : vector<64x1024xf32>
      %cst_43 = arith.constant 0.000000e+00 : f32
      %67 = vector.broadcast %cst_43 : f32 to vector<64x1024xf32>
      %68 = arith.maximumf %66, %67 : vector<64x1024xf32>
      %69 = vector.broadcast %52 : vector<1x1024xf32> to vector<64x1024xf32>
      %70 = arith.subf %25, %69 : vector<64x1024xf32>
      %71 = math.absf %70 : vector<64x1024xf32>
      %cst_44 = arith.constant 1.000000e+00 : f32
      %72 = vector.broadcast %cst_44 : f32 to vector<64x1024xf32>
      %73 = arith.subf %72, %71 : vector<64x1024xf32>
      %cst_45 = arith.constant 0.000000e+00 : f32
      %74 = vector.broadcast %cst_45 : f32 to vector<64x1024xf32>
      %75 = arith.maximumf %73, %74 : vector<64x1024xf32>
      %76 = arith.mulf %68, %75 : vector<64x1024xf32>
      %77 = vector.broadcast %43 : vector<1x1024xf32> to vector<8x1024xf32>
      %78 = arith.subf %27, %77 : vector<8x1024xf32>
      %79 = math.absf %78 : vector<8x1024xf32>
      %cst_46 = arith.constant 1.000000e+00 : f32
      %80 = vector.broadcast %cst_46 : f32 to vector<8x1024xf32>
      %81 = arith.subf %80, %79 : vector<8x1024xf32>
      %cst_47 = arith.constant 0.000000e+00 : f32
      %82 = vector.broadcast %cst_47 : f32 to vector<8x1024xf32>
      %83 = arith.maximumf %81, %82 : vector<8x1024xf32>
      %cst_48 = arith.constant dense<0.000000e+00> : vector<256x1024xf32>
      %84 = tpu.matmul %3, %76, %cst_48 {dimension_numbers = #tpu.dot_dimension_numbers<[1], [0], [0], [1], [0, 0, 1, 1], [], []>} : vector<256x64xf32>, vector<64x1024xf32>, vector<256x1024xf32> -> vector<256x1024xf32>
      %85 = vector.extract_strided_slice %84 {offsets = [0, 0], sizes = [32, 1024], strides = [1, 1]} : vector<256x1024xf32> to vector<32x1024xf32>
      %86 = vector.extract_strided_slice %83 {offsets = [0, 0], sizes = [1, 1024], strides = [1, 1]} : vector<8x1024xf32> to vector<1x1024xf32>
      %87 = vector.broadcast %86 : vector<1x1024xf32> to vector<32x1024xf32>
      %88 = arith.mulf %85, %87 : vector<32x1024xf32>
      %89 = vector.extract_strided_slice %84 {offsets = [32, 0], sizes = [32, 1024], strides = [1, 1]} : vector<256x1024xf32> to vector<32x1024xf32>
      %90 = vector.extract_strided_slice %83 {offsets = [1, 0], sizes = [1, 1024], strides = [1, 1]} : vector<8x1024xf32> to vector<1x1024xf32>
      %91 = vector.broadcast %90 : vector<1x1024xf32> to vector<32x1024xf32>
      %92 = arith.mulf %89, %91 : vector<32x1024xf32>
      %93 = arith.addf %88, %92 : vector<32x1024xf32>
      %94 = vector.extract_strided_slice %84 {offsets = [64, 0], sizes = [32, 1024], strides = [1, 1]} : vector<256x1024xf32> to vector<32x1024xf32>
      %95 = vector.extract_strided_slice %83 {offsets = [2, 0], sizes = [1, 1024], strides = [1, 1]} : vector<8x1024xf32> to vector<1x1024xf32>
      %96 = vector.broadcast %95 : vector<1x1024xf32> to vector<32x1024xf32>
      %97 = arith.mulf %94, %96 : vector<32x1024xf32>
      %98 = arith.addf %93, %97 : vector<32x1024xf32>
      %99 = vector.extract_strided_slice %84 {offsets = [96, 0], sizes = [32, 1024], strides = [1, 1]} : vector<256x1024xf32> to vector<32x1024xf32>
      %100 = vector.extract_strided_slice %83 {offsets = [3, 0], sizes = [1, 1024], strides = [1, 1]} : vector<8x1024xf32> to vector<1x1024xf32>
      %101 = vector.broadcast %100 : vector<1x1024xf32> to vector<32x1024xf32>
      %102 = arith.mulf %99, %101 : vector<32x1024xf32>
      %103 = arith.addf %98, %102 : vector<32x1024xf32>
      %104 = vector.extract_strided_slice %84 {offsets = [128, 0], sizes = [32, 1024], strides = [1, 1]} : vector<256x1024xf32> to vector<32x1024xf32>
      %105 = vector.extract_strided_slice %83 {offsets = [4, 0], sizes = [1, 1024], strides = [1, 1]} : vector<8x1024xf32> to vector<1x1024xf32>
      %106 = vector.broadcast %105 : vector<1x1024xf32> to vector<32x1024xf32>
      %107 = arith.mulf %104, %106 : vector<32x1024xf32>
      %108 = arith.addf %103, %107 : vector<32x1024xf32>
      %109 = vector.extract_strided_slice %84 {offsets = [160, 0], sizes = [32, 1024], strides = [1, 1]} : vector<256x1024xf32> to vector<32x1024xf32>
      %110 = vector.extract_strided_slice %83 {offsets = [5, 0], sizes = [1, 1024], strides = [1, 1]} : vector<8x1024xf32> to vector<1x1024xf32>
      %111 = vector.broadcast %110 : vector<1x1024xf32> to vector<32x1024xf32>
      %112 = arith.mulf %109, %111 : vector<32x1024xf32>
      %113 = arith.addf %108, %112 : vector<32x1024xf32>
      %114 = vector.extract_strided_slice %84 {offsets = [192, 0], sizes = [32, 1024], strides = [1, 1]} : vector<256x1024xf32> to vector<32x1024xf32>
      %115 = vector.extract_strided_slice %83 {offsets = [6, 0], sizes = [1, 1024], strides = [1, 1]} : vector<8x1024xf32> to vector<1x1024xf32>
      %116 = vector.broadcast %115 : vector<1x1024xf32> to vector<32x1024xf32>
      %117 = arith.mulf %114, %116 : vector<32x1024xf32>
      %118 = arith.addf %113, %117 : vector<32x1024xf32>
      %119 = vector.extract_strided_slice %84 {offsets = [224, 0], sizes = [32, 1024], strides = [1, 1]} : vector<256x1024xf32> to vector<32x1024xf32>
      %120 = vector.extract_strided_slice %83 {offsets = [7, 0], sizes = [1, 1024], strides = [1, 1]} : vector<8x1024xf32> to vector<1x1024xf32>
      %121 = vector.broadcast %120 : vector<1x1024xf32> to vector<32x1024xf32>
      %122 = arith.mulf %119, %121 : vector<32x1024xf32>
      %123 = arith.addf %118, %122 : vector<32x1024xf32>
      %cst_49 = arith.constant 1.000000e+00 : f32
      %124 = vector.broadcast %cst_49 : f32 to vector<3x1024xf32>
      %125 = arith.mulf %arg12, %124 : vector<3x1024xf32>
      %cst_50 = arith.constant 2.000000e+00 : f32
      %126 = vector.broadcast %cst_50 : f32 to vector<3x1024xf32>
      %127 = arith.mulf %arg12, %126 : vector<3x1024xf32>
      %cst_51 = arith.constant 4.000000e+00 : f32
      %128 = vector.broadcast %cst_51 : f32 to vector<3x1024xf32>
      %129 = arith.mulf %arg12, %128 : vector<3x1024xf32>
      %cst_52 = arith.constant 8.000000e+00 : f32
      %130 = vector.broadcast %cst_52 : f32 to vector<3x1024xf32>
      %131 = arith.mulf %arg12, %130 : vector<3x1024xf32>
      %132 = tpu.concatenate %125, %127, %129, %131 in 0 : vector<3x1024xf32>, vector<3x1024xf32>, vector<3x1024xf32>, vector<3x1024xf32> -> vector<12x1024xf32>
      %133 = vector.extract_strided_slice %123 {offsets = [0, 0], sizes = [3, 1024], strides = [1, 1]} : vector<32x1024xf32> to vector<3x1024xf32>
      %134 = arith.mulf %arg12, %133 : vector<3x1024xf32>
      %135 = math.sin %132 : vector<12x1024xf32>
      %136 = vector.extract_strided_slice %123 {offsets = [3, 0], sizes = [12, 1024], strides = [1, 1]} : vector<32x1024xf32> to vector<12x1024xf32>
      %137 = arith.mulf %135, %136 : vector<12x1024xf32>
      %138 = math.cos %132 : vector<12x1024xf32>
      %139 = vector.extract_strided_slice %123 {offsets = [15, 0], sizes = [12, 1024], strides = [1, 1]} : vector<32x1024xf32> to vector<12x1024xf32>
      %140 = arith.mulf %138, %139 : vector<12x1024xf32>
      %141 = tpu.concatenate %134, %137, %140 in 0 : vector<3x1024xf32>, vector<12x1024xf32>, vector<12x1024xf32> -> vector<27x1024xf32>
      %cst_53 = arith.constant dense<0.000000e+00> : vector<32x1024xf32>
      %142 = tpu.matmul %4, %141, %cst_53 {dimension_numbers = #tpu.dot_dimension_numbers<[1], [0], [0], [1], [0, 0, 1, 1], [], []>} : vector<32x27xf32>, vector<27x1024xf32>, vector<32x1024xf32> -> vector<32x1024xf32>
      %143 = vector.broadcast %5 : vector<32x1xf32> to vector<32x1024xf32>
      %144 = arith.addf %142, %143 : vector<32x1024xf32>
      %cst_54 = arith.constant 2.000000e-01 : f32
      %145 = vector.broadcast %cst_54 : f32 to vector<32x1024xf32>
      %146 = arith.mulf %145, %144 : vector<32x1024xf32>
      %147 = arith.maximumf %144, %146 : vector<32x1024xf32>
      %cst_55 = arith.constant dense<0.000000e+00> : vector<32x1024xf32>
      %148 = tpu.matmul %7, %147, %cst_55 {dimension_numbers = #tpu.dot_dimension_numbers<[1], [0], [0], [1], [0, 0, 1, 1], [], []>} : vector<32x32xf32>, vector<32x1024xf32>, vector<32x1024xf32> -> vector<32x1024xf32>
      %149 = vector.broadcast %11 : vector<32x1xf32> to vector<32x1024xf32>
      %150 = arith.addf %148, %149 : vector<32x1024xf32>
      %cst_56 = arith.constant 2.000000e-01 : f32
      %151 = vector.broadcast %cst_56 : f32 to vector<32x1024xf32>
      %152 = arith.mulf %151, %150 : vector<32x1024xf32>
      %153 = arith.maximumf %150, %152 : vector<32x1024xf32>
      %cst_57 = arith.constant dense<0.000000e+00> : vector<32x1024xf32>
      %154 = tpu.matmul %9, %153, %cst_57 {dimension_numbers = #tpu.dot_dimension_numbers<[1], [0], [0], [1], [0, 0, 1, 1], [], []>} : vector<32x32xf32>, vector<32x1024xf32>, vector<32x1024xf32> -> vector<32x1024xf32>
      %155 = vector.broadcast %13 : vector<32x1xf32> to vector<32x1024xf32>
      %156 = arith.addf %154, %155 : vector<32x1024xf32>
      %cst_58 = arith.constant 2.000000e-01 : f32
      %157 = vector.broadcast %cst_58 : f32 to vector<32x1024xf32>
      %158 = arith.mulf %157, %156 : vector<32x1024xf32>
      %159 = arith.maximumf %156, %158 : vector<32x1024xf32>
      %cst_59 = arith.constant dense<0.000000e+00> : vector<3x1024xf32>
      %160 = tpu.matmul %14, %159, %cst_59 {dimension_numbers = #tpu.dot_dimension_numbers<[1], [0], [0], [1], [0, 0, 1, 1], [], []>} : vector<3x32xf32>, vector<32x1024xf32>, vector<3x1024xf32> -> vector<3x1024xf32>
      %161 = vector.broadcast %15 : vector<3x1xf32> to vector<3x1024xf32>
      %162 = arith.addf %160, %161 : vector<3x1024xf32>
      %cst_60 = arith.constant 2.000000e-01 : f32
      %163 = vector.broadcast %cst_60 : f32 to vector<3x1024xf32>
      %164 = arith.mulf %163, %162 : vector<3x1024xf32>
      %165 = arith.addf %arg12, %164 : vector<3x1024xf32>
      %166 = vector.extract_strided_slice %162 {offsets = [0, 0], sizes = [1, 1024], strides = [1, 1]} : vector<3x1024xf32> to vector<1x1024xf32>
      %167 = vector.extract_strided_slice %162 {offsets = [0, 0], sizes = [1, 1024], strides = [1, 1]} : vector<3x1024xf32> to vector<1x1024xf32>
      %168 = arith.mulf %166, %167 : vector<1x1024xf32>
      %169 = vector.extract_strided_slice %162 {offsets = [1, 0], sizes = [1, 1024], strides = [1, 1]} : vector<3x1024xf32> to vector<1x1024xf32>
      %170 = vector.extract_strided_slice %162 {offsets = [1, 0], sizes = [1, 1024], strides = [1, 1]} : vector<3x1024xf32> to vector<1x1024xf32>
      %171 = arith.mulf %169, %170 : vector<1x1024xf32>
      %172 = arith.addf %168, %171 : vector<1x1024xf32>
      %173 = vector.extract_strided_slice %162 {offsets = [2, 0], sizes = [1, 1024], strides = [1, 1]} : vector<3x1024xf32> to vector<1x1024xf32>
      %174 = vector.extract_strided_slice %162 {offsets = [2, 0], sizes = [1, 1024], strides = [1, 1]} : vector<3x1024xf32> to vector<1x1024xf32>
      %175 = arith.mulf %173, %174 : vector<1x1024xf32>
      %176 = arith.addf %172, %175 : vector<1x1024xf32>
      %cst_61 = arith.constant 0.333333343 : f32
      %177 = vector.broadcast %cst_61 : f32 to vector<1x1024xf32>
      %178 = arith.mulf %176, %177 : vector<1x1024xf32>
      %179 = arith.addf %arg13, %178 : vector<1x1024xf32>
      scf.yield %165, %179 : vector<3x1024xf32>, vector<1x1024xf32>
    }
    %31 = tpu.concatenate %30#0, %30#1 in 0 : vector<3x1024xf32>, vector<1x1024xf32> -> vector<4x1024xf32>
    %c0_27 = arith.constant 0 : index
    %c0_28 = arith.constant 0 : index
    %c0_29 = arith.constant 0 : index
    %32 = vector.load %arg10[%c0_27, %c0_28, %c0_29] : memref<1x4x1024xf32, #tpu.memory_space<vmem>>, vector<1x4x1024xf32>
    %33 = vector.shape_cast %32 : vector<1x4x1024xf32> to vector<4x1024xf32>
    %34 = vector.shape_cast %31 : vector<4x1024xf32> to vector<1x4x1024xf32>
    tpu.vector_store %arg10[%c0_27, %c0_28, %c0_29], %34 {strides = array<i32>} : memref<1x4x1024xf32, #tpu.memory_space<vmem>>, vector<1x4x1024xf32>,
    return
  }
  func.func @transform_0(%arg0: i32, %arg1: i32) -> (i32, i32, i32) {
    %c0_i32 = arith.constant 0 : i32
    %c0_i32_0 = arith.constant 0 : i32
    return %arg0, %c0_i32, %arg1 : i32, i32, i32
  }
  func.func @transform_1(%arg0: i32, %arg1: i32) -> (i32, i32, i32) {
    %c0_i32 = arith.constant 0 : i32
    %c0_i32_0 = arith.constant 0 : i32
    %c0_i32_1 = arith.constant 0 : i32
    return %arg0, %c0_i32, %c0_i32_0 : i32, i32, i32
  }
  func.func @transform_2(%arg0: i32, %arg1: i32) -> (i32, i32) {
    %c0_i32 = arith.constant 0 : i32
    %c0_i32_0 = arith.constant 0 : i32
    %c0_i32_1 = arith.constant 0 : i32
    return %c0_i32, %c0_i32_0 : i32, i32
  }
  func.func @transform_3(%arg0: i32, %arg1: i32) -> (i32, i32) {
    %c0_i32 = arith.constant 0 : i32
    %c0_i32_0 = arith.constant 0 : i32
    %c0_i32_1 = arith.constant 0 : i32
    return %c0_i32, %c0_i32_0 : i32, i32
  }
  func.func @transform_4(%arg0: i32, %arg1: i32) -> (i32, i32, i32) {
    %c0_i32 = arith.constant 0 : i32
    %c0_i32_0 = arith.constant 0 : i32
    %c0_i32_1 = arith.constant 0 : i32
    %c0_i32_2 = arith.constant 0 : i32
    return %c0_i32, %c0_i32_0, %c0_i32_1 : i32, i32, i32
  }
  func.func @transform_5(%arg0: i32, %arg1: i32) -> (i32, i32, i32) {
    %c0_i32 = arith.constant 0 : i32
    %c0_i32_0 = arith.constant 0 : i32
    %c0_i32_1 = arith.constant 0 : i32
    %c0_i32_2 = arith.constant 0 : i32
    return %c0_i32, %c0_i32_0, %c0_i32_1 : i32, i32, i32
  }
  func.func @transform_6(%arg0: i32, %arg1: i32) -> (i32, i32) {
    %c0_i32 = arith.constant 0 : i32
    %c0_i32_0 = arith.constant 0 : i32
    %c0_i32_1 = arith.constant 0 : i32
    return %c0_i32, %c0_i32_0 : i32, i32
  }
  func.func @transform_7(%arg0: i32, %arg1: i32) -> (i32, i32) {
    %c0_i32 = arith.constant 0 : i32
    %c0_i32_0 = arith.constant 0 : i32
    %c0_i32_1 = arith.constant 0 : i32
    return %c0_i32, %c0_i32_0 : i32, i32
  }
  func.func @transform_8(%arg0: i32, %arg1: i32) -> (i32, i32, i32) {
    %c0_i32 = arith.constant 0 : i32
    %c0_i32_0 = arith.constant 0 : i32
    return %arg0, %c0_i32, %arg1 : i32, i32, i32
  }
}

</mosaic_0001>

<llo_original>
// kernel: tpu_custom_call.1
$region0: #{tpu_custom_call.1}
  #allocation0 [shape = 'u32[]', space=smem, size = 0x4, offset = 0x4, fixed_abs, tag = 'smem constant byte address 0x4 - core index']
  #allocation1 [shape = 'u32[144,128]{1,0:T(1,128)}', space=vmem, size = 0x12000, scoped, tag = 'internal scratch']
  %s0 = inlined_call_operand.vmem [shape: f32[2,3,2048], index: 0, kind: input, shape index: {}]
  %s1 = inlined_call_operand.vmem [shape: f32[2,256,64], index: 1, kind: input, shape index: {}]
  %s2 = inlined_call_operand.vmem [shape: f32[32,27], index: 2, kind: input, shape index: {}]
  %s3 = inlined_call_operand.vmem [shape: f32[32,1], index: 3, kind: input, shape index: {}]
  %s4 = inlined_call_operand.vmem [shape: f32[2,32,32], index: 4, kind: input, shape index: {}]
  %s5 = inlined_call_operand.vmem [shape: f32[2,32,1], index: 5, kind: input, shape index: {}]
  %s6 = inlined_call_operand.vmem [shape: f32[3,32], index: 6, kind: input, shape index: {}]
  %s7 = inlined_call_operand.vmem [shape: f32[3,1], index: 7, kind: input, shape index: {}]
  %s8 = inlined_call_operand.hbm [shape: f32[2,4,2048], index: 8, kind: output, shape index: {}]
  %s9 = sld [smem:[#allocation0]]
  $region72: #{tpu_custom_call.1} parent=0
    _
  %s11 = ssub.s32 1, %s9
  %s12 = scalar_select 0, %s11, %s9
  $region1: #{tpu_custom_call.1} parent=0
    #allocation2 [shape = 'u8[32768]{0}', space=vmem, size = 0x8000, scoped, tag = 'output window, operand 0']
    #allocation3 [shape = 's32[2]{0}', space=sflag, size = 0x8, scoped, tag = 'scoped memory for tpu_custom_call.1']
    %13 = vsyncpa [#allocation3], 0
    %s14 = scalar_lea.sflag [#allocation3], 1
    %15 = vsyncpa %s14, 0
    loop: start=0, step=1, limit=6
    $region2: #{tpu_custom_call.1} parent=1 // loop_pre_header
      _
    $region3: #{tpu_custom_call.1} parent=1 // loop_header
      %s17 = sphi 0, %s21
      %p18 = scmp.ge.s32.totalorder %s17, 6
      %s24 = sphi 0, %s36
      %s25 = sphi 0, %s32
      %s26 = sphi 0, %s24
      %s27 = sphi 0, %s25
      %s28 = sphi 0, %s26
      %s29 = sphi 0, %s27
      %s41 = sphi 0, %s43
      %s44 = sphi 0, %s41
      %s45 = sphi 0, %s44
      %s61 = sphi 0, %s45
      %s67 = sphi 0, %s69
      %s70 = sphi 0, %s67
      %s71 = sphi 0, %s70
      %s87 = sphi 0, %s71
      %s91 = sphi 0, %s91
      %s93 = sphi 0, %s91
      %s94 = sphi 0, %s93
      %s108 = sphi 0, %s94
      %s112 = sphi 0, %s112
      %s114 = sphi 0, %s112
      %s115 = sphi 0, %s114
      %s129 = sphi 0, %s115
      %s133 = sphi 0, %s133
      %s135 = sphi 0, %s133
      %s136 = sphi 0, %s135
      %s150 = sphi 0, %s136
      %s154 = sphi 0, %s154
      %s156 = sphi 0, %s154
      %s157 = sphi 0, %s156
      %s171 = sphi 0, %s157
      %s175 = sphi 0, %s175
      %s177 = sphi 0, %s175
      %s178 = sphi 0, %s177
      %s192 = sphi 0, %s178
      %s196 = sphi 0, %s196
      %s198 = sphi 0, %s196
      %s199 = sphi 0, %s198
      %s213 = sphi 0, %s199
      %s221 = sphi 0, %s223
      %s224 = sphi 0, %s221
      %s225 = sphi 0, %s224
      %s241 = sphi 0, %s225
    $region4: #{tpu_custom_call.1} parent=1 // loop_header_branch
      %20 = sbr.rel (%p18) target = $region8
    $region5: #{tpu_custom_call.1} parent=1 // loop_body
      %s22 = ssub.s32 %s17, 1
      %s23 = ssub.s32 %s17, 2
      %s30 = sadd.s32 1, %s25
      %p31 = scmp.ge.s32.totalorder %s30, 2
      %s32 = scalar_select %p31, 0, %s30
      %s33 = sadd.s32 1, %s24
      %s34 = scalar_select %p31, %s33, %s24
      %p35 = scmp.ge.s32.totalorder %s34, 2
      %s36 = scalar_select %p35, 0, %s34
      %s37 = ssub.s32 %s24, %s36
      %s38 = ssub.s32 %s25, %s32
      %s39 = sor.u32 %s37, %s38
      %p40 = scmp.eq.s32.totalorder %s39, 0
      %s42 = sadd.s32 %s41, 1
      %s43 = scalar_select %p40, %s41, %s42
      %p46 = pneg %p40
      %p47 = scmp.eq.s32.totalorder %s17, 3
      %p48 = por %p46, %p47
      %p49 = scmp.ne.s32.totalorder %s41, %s44
      %p50 = scmp.eq.s32.totalorder %s17, 0
      %p51 = por %p49, %p50
      %p52 = scmp.ne.s32.totalorder %s41, %s44
      %p53 = scmp.eq.s32.totalorder %s22, 3
      %p54 = por %p52, %p53
      %p55 = scmp.ne.s32.totalorder %s44, %s45
      %p56 = scmp.eq.s32.totalorder %s22, 0
      %p57 = por %p55, %p56
      %p58 = scmp.ne.s32.totalorder %s44, %s45
      %p59 = scmp.eq.s32.totalorder %s23, 3
      %p60 = por %p58, %p59
      %p62 = scmp.ne.s32.totalorder %s45, %s61
      %p63 = scmp.eq.s32.totalorder %s23, 0
      %p64 = por %p62, %p63
      %s65 = ssub.s32 %s24, %s36
      %p66 = scmp.eq.s32.totalorder %s65, 0
      %s68 = sadd.s32 %s67, 1
      %s69 = scalar_select %p66, %s67, %s68
      %p72 = pneg %p66
      %p73 = scmp.eq.s32.totalorder %s17, 3
      %p74 = por %p72, %p73
      %p75 = scmp.ne.s32.totalorder %s67, %s70
      %p76 = scmp.eq.s32.totalorder %s17, 0
      %p77 = por %p75, %p76
      %p78 = scmp.ne.s32.totalorder %s67, %s70
      %p79 = scmp.eq.s32.totalorder %s22, 3
      %p80 = por %p78, %p79
      %p81 = scmp.ne.s32.totalorder %s70, %s71
      %p82 = scmp.eq.s32.totalorder %s22, 0
      %p83 = por %p81, %p82
      %p84 = scmp.ne.s32.totalorder %s70, %s71
      %p85 = scmp.eq.s32.totalorder %s23, 3
      %p86 = por %p84, %p85
      %p88 = scmp.ne.s32.totalorder %s71, %s87
      %p89 = scmp.eq.s32.totalorder %s23, 0
      %p90 = por %p88, %p89
      %s92 = sadd.s32 %s91, 1
      %p95 = scmp.eq.s32.totalorder %s17, 3
      %p96 = scmp.ne.s32.totalorder %s91, %s93
      %p97 = scmp.eq.s32.totalorder %s17, 0
      %p98 = por %p96, %p97
      %p99 = scmp.ne.s32.totalorder %s91, %s93
      %p100 = scmp.eq.s32.totalorder %s22, 3
      %p101 = por %p99, %p100
      %p102 = scmp.ne.s32.totalorder %s93, %s94
      %p103 = scmp.eq.s32.totalorder %s22, 0
      %p104 = por %p102, %p103
      %p105 = scmp.ne.s32.totalorder %s93, %s94
      %p106 = scmp.eq.s32.totalorder %s23, 3
      %p107 = por %p105, %p106
      %p109 = scmp.ne.s32.totalorder %s94, %s108
      %p110 = scmp.eq.s32.totalorder %s23, 0
      %p111 = por %p109, %p110
      %s113 = sadd.s32 %s112, 1
      %p116 = scmp.eq.s32.totalorder %s17, 3
      %p117 = scmp.ne.s32.totalorder %s112, %s114
      %p118 = scmp.eq.s32.totalorder %s17, 0
      %p119 = por %p117, %p118
      %p120 = scmp.ne.s32.totalorder %s112, %s114
      %p121 = scmp.eq.s32.totalorder %s22, 3
      %p122 = por %p120, %p121
      %p123 = scmp.ne.s32.totalorder %s114, %s115
      %p124 = scmp.eq.s32.totalorder %s22, 0
      %p125 = por %p123, %p124
      %p126 = scmp.ne.s32.totalorder %s114, %s115
      %p127 = scmp.eq.s32.totalorder %s23, 3
      %p128 = por %p126, %p127
      %p130 = scmp.ne.s32.totalorder %s115, %s129
      %p131 = scmp.eq.s32.totalorder %s23, 0
      %p132 = por %p130, %p131
      %s134 = sadd.s32 %s133, 1
      %p137 = scmp.eq.s32.totalorder %s17, 3
      %p138 = scmp.ne.s32.totalorder %s133, %s135
      %p139 = scmp.eq.s32.totalorder %s17, 0
      %p140 = por %p138, %p139
      %p141 = scmp.ne.s32.totalorder %s133, %s135
      %p142 = scmp.eq.s32.totalorder %s22, 3
      %p143 = por %p141, %p142
      %p144 = scmp.ne.s32.totalorder %s135, %s136
      %p145 = scmp.eq.s32.totalorder %s22, 0
      %p146 = por %p144, %p145
      %p147 = scmp.ne.s32.totalorder %s135, %s136
      %p148 = scmp.eq.s32.totalorder %s23, 3
      %p149 = por %p147, %p148
      %p151 = scmp.ne.s32.totalorder %s136, %s150
      %p152 = scmp.eq.s32.totalorder %s23, 0
      %p153 = por %p151, %p152
      %s155 = sadd.s32 %s154, 1
      %p158 = scmp.eq.s32.totalorder %s17, 3
      %p159 = scmp.ne.s32.totalorder %s154, %s156
      %p160 = scmp.eq.s32.totalorder %s17, 0
      %p161 = por %p159, %p160
      %p162 = scmp.ne.s32.totalorder %s154, %s156
      %p163 = scmp.eq.s32.totalorder %s22, 3
      %p164 = por %p162, %p163
      %p165 = scmp.ne.s32.totalorder %s156, %s157
      %p166 = scmp.eq.s32.totalorder %s22, 0
      %p167 = por %p165, %p166
      %p168 = scmp.ne.s32.totalorder %s156, %s157
      %p169 = scmp.eq.s32.totalorder %s23, 3
      %p170 = por %p168, %p169
      %p172 = scmp.ne.s32.totalorder %s157, %s171
      %p173 = scmp.eq.s32.totalorder %s23, 0
      %p174 = por %p172, %p173
      %s176 = sadd.s32 %s175, 1
      %p179 = scmp.eq.s32.totalorder %s17, 3
      %p180 = scmp.ne.s32.totalorder %s175, %s177
      %p181 = scmp.eq.s32.totalorder %s17, 0
      %p182 = por %p180, %p181
      %p183 = scmp.ne.s32.totalorder %s175, %s177
      %p184 = scmp.eq.s32.totalorder %s22, 3
      %p185 = por %p183, %p184
      %p186 = scmp.ne.s32.totalorder %s177, %s178
      %p187 = scmp.eq.s32.totalorder %s22, 0
      %p188 = por %p186, %p187
      %p189 = scmp.ne.s32.totalorder %s177, %s178
      %p190 = scmp.eq.s32.totalorder %s23, 3
      %p191 = por %p189, %p190
      %p193 = scmp.ne.s32.totalorder %s178, %s192
      %p194 = scmp.eq.s32.totalorder %s23, 0
      %p195 = por %p193, %p194
      %s197 = sadd.s32 %s196, 1
      %p200 = scmp.eq.s32.totalorder %s17, 3
      %p201 = scmp.ne.s32.totalorder %s196, %s198
      %p202 = scmp.eq.s32.totalorder %s17, 0
      %p203 = por %p201, %p202
      %p204 = scmp.ne.s32.totalorder %s196, %s198
      %p205 = scmp.eq.s32.totalorder %s22, 3
      %p206 = por %p204, %p205
      %p207 = scmp.ne.s32.totalorder %s198, %s199
      %p208 = scmp.eq.s32.totalorder %s22, 0
      %p209 = por %p207, %p208
      %p210 = scmp.ne.s32.totalorder %s198, %s199
      %p211 = scmp.eq.s32.totalorder %s23, 3
      %p212 = por %p210, %p211
      %p214 = scmp.ne.s32.totalorder %s199, %s213
      %p215 = scmp.eq.s32.totalorder %s23, 0
      %p216 = por %p214, %p215
      %s217 = ssub.s32 %s24, %s36
      %s218 = ssub.s32 %s25, %s32
      %s219 = sor.u32 %s217, %s218
      %p220 = scmp.eq.s32.totalorder %s219, 0
      %s222 = sadd.s32 %s221, 1
      %s223 = scalar_select %p220, %s221, %s222
      %p226 = pneg %p220
      %p227 = scmp.eq.s32.totalorder %s17, 3
      %p228 = por %p226, %p227
      %p229 = scmp.ne.s32.totalorder %s221, %s224
      %p230 = scmp.eq.s32.totalorder %s17, 0
      %p231 = por %p229, %p230
      %p232 = scmp.ne.s32.totalorder %s221, %s224
      %p233 = scmp.eq.s32.totalorder %s22, 3
      %p234 = por %p232, %p233
      %p235 = scmp.ne.s32.totalorder %s224, %s225
      %p236 = scmp.eq.s32.totalorder %s22, 0
      %p237 = por %p235, %p236
      %p238 = scmp.ne.s32.totalorder %s224, %s225
      %p239 = scmp.eq.s32.totalorder %s23, 3
      %p240 = por %p238, %p239
      %p242 = scmp.ne.s32.totalorder %s225, %s241
      %p243 = scmp.eq.s32.totalorder %s23, 0
      %p244 = por %p242, %p243
      %p245 = scmp.le.s32.totalorder 1, %s17
      %p246 = scmp.lt.s32.totalorder %s17, 5
      %p247 = pnand %p245, %p246
      %p248 = pneg %p247
      // Predicated region
      $region9: #{tpu_custom_call.1} parent=5 // pred_check
        _
      $region10: #{tpu_custom_call.1} parent=5 // pred_check_branch
        %250 = sbr.rel (%p247) target = $region12
      $region11: #{tpu_custom_call.1} parent=5 // pred_region
        %s251 = ssub.s32 %s17, 1
        // Predicated region
        $region13: #{tpu_custom_call.1} parent=11 // pred_check
          %p252 = pneg %p104
        $region14: #{tpu_custom_call.1} parent=11 // pred_check_branch
          %254 = sbr.rel (%p252) target = $region16
        $region15: #{tpu_custom_call.1} parent=11 // pred_region
          _
        $region16: #{tpu_custom_call.1} parent=11 // pred_fallthru
          _
        // Predicated region
        $region17: #{tpu_custom_call.1} parent=11 // pred_check
          %p255 = pneg %p125
        $region18: #{tpu_custom_call.1} parent=11 // pred_check_branch
          %257 = sbr.rel (%p255) target = $region20
        $region19: #{tpu_custom_call.1} parent=11 // pred_region
          _
        $region20: #{tpu_custom_call.1} parent=11 // pred_fallthru
          _
        // Predicated region
        $region21: #{tpu_custom_call.1} parent=11 // pred_check
          %p258 = pneg %p146
        $region22: #{tpu_custom_call.1} parent=11 // pred_check_branch
          %260 = sbr.rel (%p258) target = $region24
        $region23: #{tpu_custom_call.1} parent=11 // pred_region
          _
        $region24: #{tpu_custom_call.1} parent=11 // pred_fallthru
          _
        // Predicated region
        $region25: #{tpu_custom_call.1} parent=11 // pred_check
          %p261 = pneg %p167
        $region26: #{tpu_custom_call.1} parent=11 // pred_check_branch
          %263 = sbr.rel (%p261) target = $region28
        $region27: #{tpu_custom_call.1} parent=11 // pred_region
          _
        $region28: #{tpu_custom_call.1} parent=11 // pred_fallthru
          _
        // Predicated region
        $region29: #{tpu_custom_call.1} parent=11 // pred_check
          %p264 = pneg %p188
        $region30: #{tpu_custom_call.1} parent=11 // pred_check_branch
          %266 = sbr.rel (%p264) target = $region32
        $region31: #{tpu_custom_call.1} parent=11 // pred_region
          _
        $region32: #{tpu_custom_call.1} parent=11 // pred_fallthru
          _
        // Predicated region
        $region33: #{tpu_custom_call.1} parent=11 // pred_check
          %p267 = pneg %p209
        $region34: #{tpu_custom_call.1} parent=11 // pred_check_branch
          %269 = sbr.rel (%p267) target = $region36
        $region35: #{tpu_custom_call.1} parent=11 // pred_region
          _
        $region36: #{tpu_custom_call.1} parent=11 // pred_fallthru
          _
      $region12: #{tpu_custom_call.1} parent=5 // pred_fallthru
        _
      %p270 = scmp.lt.s32.totalorder %s17, 4
      // Predicated region
      $region37: #{tpu_custom_call.1} parent=5 // pred_check
        %p271 = pneg %p270
      $region38: #{tpu_custom_call.1} parent=5 // pred_check_branch
        %273 = sbr.rel (%p271) target = $region40
      $region39: #{tpu_custom_call.1} parent=5 // pred_region
        // Predicated region
        $region41: #{tpu_custom_call.1} parent=39 // pred_check
          %p274 = pneg %p51
        $region42: #{tpu_custom_call.1} parent=39 // pred_check_branch
          %276 = sbr.rel (%p274) target = $region44
        $region43: #{tpu_custom_call.1} parent=39 // pred_region
          %s277 = smul.u32 8, %s25
          %p278 = scmp.lt.s32.totalorder %s24, 1
          %s279 = scalar_select %p278, %s24, 1
          %p280 = scmp.lt.s32.totalorder %s277, 15
          %s281 = scalar_select %p280, %s277, 15
          %s282 = smul.addr %s279, 16
          %s283 = sadd.s32 %s281, %s282
          %s284 = smul.addr %s283, 4
          %s285 = scalar_lea.vmem %s0, %s284
          %s286 = smul.u32 8, %s25
        $region44: #{tpu_custom_call.1} parent=39 // pred_fallthru
          _
        // Predicated region
        $region45: #{tpu_custom_call.1} parent=39 // pred_check
          %p287 = pneg %p77
        $region46: #{tpu_custom_call.1} parent=39 // pred_check_branch
          %289 = sbr.rel (%p287) target = $region48
        $region47: #{tpu_custom_call.1} parent=39 // pred_region
          %p290 = scmp.lt.s32.totalorder %s24, 1
          %s291 = scalar_select %p290, %s24, 1
          %s292 = smul.addr %s291, 32
          %s293 = smul.addr %s292, 8
          %s294 = scalar_lea.vmem %s1, %s293
        $region48: #{tpu_custom_call.1} parent=39 // pred_fallthru
          _
      $region40: #{tpu_custom_call.1} parent=5 // pred_fallthru
        _
      %p295 = scmp.le.s32.totalorder 1, %s17
      %p296 = scmp.lt.s32.totalorder %s17, 5
      %p297 = pnand %p295, %p296
      %p298 = pneg %p297
      // Predicated region
      $region49: #{tpu_custom_call.1} parent=5 // pred_check
        _
      $region50: #{tpu_custom_call.1} parent=5 // pred_check_branch
        %300 = sbr.rel (%p297) target = $region52
      $region51: #{tpu_custom_call.1} parent=5 // pred_region
        %s301 = ssub.s32 %s17, 1
        %s302 = smul.u32 8, %s27
        %p303 = scmp.lt.s32.totalorder %s26, 1
        %s304 = scalar_select %p303, %s26, 1
        %p305 = scmp.lt.s32.totalorder %s302, 15
        %s306 = scalar_select %p305, %s302, 15
        %s307 = smul.addr %s304, 16
        %s308 = sadd.s32 %s306, %s307
        %s309 = smul.addr %s308, 4
        %s310 = scalar_lea.vmem %s0, %s309
        %p311 = pneg %p57
        %p312 = pneg %p54
        %p313 = scmp.lt.s32.totalorder %s26, 1
        %s314 = scalar_select %p313, %s26, 1
        %s315 = smul.addr %s314, 32
        %s316 = smul.addr %s315, 8
        %s317 = scalar_lea.vmem %s1, %s316
        %p318 = pneg %p83
        %p319 = pneg %p80
        %p320 = pneg %p104
        %p321 = pneg %p101
        %p322 = pneg %p125
        %p323 = pneg %p122
        %p324 = pneg %p146
        %p325 = pneg %p143
        %p326 = pneg %p167
        %p327 = pneg %p164
        %p328 = pneg %p188
        %p329 = pneg %p185
        %p330 = pneg %p209
        %p331 = pneg %p206
        %p332 = pneg %p237
        %p333 = pneg %p234
        %s334 = sand.u32 %s224, 1
        %s335 = scalar_lea.sflag [#allocation3], %s334
        %s336 = sand.u32 %s224, 1
        %s337 = smul.addr %s336, 32
        %s338 = scalar_lea.vmem [#allocation2], %s337
        %s339 = smul.u32 8, %s27
        %p340 = scmp.lt.s32.totalorder %s26, 1
        %s341 = scalar_select %p340, %s26, 1
        %p342 = scmp.lt.s32.totalorder %s339, 15
        %s343 = scalar_select %p342, %s339, 15
        %s344 = smul.addr %s341, 16
        %s345 = sadd.s32 %s343, %s344
        %s346 = smul.addr %s345, 4
        %s347 = scalar_lea.vmem %s0, %s346
        %s348 = smul.u32 8, %s27
        %p349 = scmp.lt.s32.totalorder %s26, 1
        %s350 = scalar_select %p349, %s26, 1
        %s351 = smul.addr %s350, 32
        %s352 = smul.addr %s351, 8
        %s353 = scalar_lea.vmem %s1, %s352
        %s354 = smul.u32 8, %s27
        %v355 = vld [vmem:[%s347] sm:$0x77]
        %v356 = vld [vmem:[%s347 + $0x8] sm:$0x77]
        %v357 = vld [vmem:[%s347 + $0x10] sm:$0x77]
        %v358 = vld [vmem:[%s347 + $0x18] sm:$0x77]
        %v359 = vld [vmem:[%s353] sm:$0xff]
        %v360 = vld [vmem:[%s353 + $0x8] sm:$0xff]
        %v361 = vld [vmem:[%s353 + $0x10] sm:$0xff]
        %v362 = vld [vmem:[%s353 + $0x18] sm:$0xff]
        %v363 = vld [vmem:[%s353 + $0x20] sm:$0xff]
        %v364 = vld [vmem:[%s353 + $0x28] sm:$0xff]
        %v365 = vld [vmem:[%s353 + $0x30] sm:$0xff]
        %v366 = vld [vmem:[%s353 + $0x38] sm:$0xff]
        %v367 = vld [vmem:[%s353 + $0x40] sm:$0xff]
        %v368 = vld [vmem:[%s353 + $0x48] sm:$0xff]
        %v369 = vld [vmem:[%s353 + $0x50] sm:$0xff]
        %v370 = vld [vmem:[%s353 + $0x58] sm:$0xff]
        %v371 = vld [vmem:[%s353 + $0x60] sm:$0xff]
        %v372 = vld [vmem:[%s353 + $0x68] sm:$0xff]
        %v373 = vld [vmem:[%s353 + $0x70] sm:$0xff]
        %v374 = vld [vmem:[%s353 + $0x78] sm:$0xff]
        %v375 = vld [vmem:[%s353 + $0x80] sm:$0xff]
        %v376 = vld [vmem:[%s353 + $0x88] sm:$0xff]
        %v377 = vld [vmem:[%s353 + $0x90] sm:$0xff]
        %v378 = vld [vmem:[%s353 + $0x98] sm:$0xff]
        %v379 = vld [vmem:[%s353 + $0xa0] sm:$0xff]
        %v380 = vld [vmem:[%s353 + $0xa8] sm:$0xff]
        %v381 = vld [vmem:[%s353 + $0xb0] sm:$0xff]
        %v382 = vld [vmem:[%s353 + $0xb8] sm:$0xff]
        %v383 = vld [vmem:[%s353 + $0xc0] sm:$0xff]
        %v384 = vld [vmem:[%s353 + $0xc8] sm:$0xff]
        %v385 = vld [vmem:[%s353 + $0xd0] sm:$0xff]
        %v386 = vld [vmem:[%s353 + $0xd8] sm:$0xff]
        %v387 = vld [vmem:[%s353 + $0xe0] sm:$0xff]
        %v388 = vld [vmem:[%s353 + $0xe8] sm:$0xff]
        %v389 = vld [vmem:[%s353 + $0xf0] sm:$0xff]
        %v390 = vld [vmem:[%s353 + $0xf8] sm:$0xff]
        %v391 = vld [vmem:[%s2] sm:$0xff]
        %v392 = vld [vmem:[%s2 + $0x8] sm:$0xff]
        %v393 = vld [vmem:[%s2 + $0x10] sm:$0xff]
        %v394 = vld [vmem:[%s2 + $0x18] sm:$0xff]
        %v395 = vld [vmem:[%s3] sm:$0xff]
        %v396 = vld [vmem:[%s3 + $0x8] sm:$0xff]
        %v397 = vld [vmem:[%s3 + $0x10] sm:$0xff]
        %v398 = vld [vmem:[%s3 + $0x18] sm:$0xff]
        %v399 = vld [vmem:[%s4] sm:$0xff]
        %v400 = vld [vmem:[%s4 + $0x8] sm:$0xff]
        %v401 = vld [vmem:[%s4 + $0x10] sm:$0xff]
        %v402 = vld [vmem:[%s4 + $0x18] sm:$0xff]
        %s403 = scalar_lea.vmem %s4, 32
        %v404 = vld [vmem:[%s403] sm:$0xff]
        %v405 = vld [vmem:[%s403 + $0x8] sm:$0xff]
        %v406 = vld [vmem:[%s403 + $0x10] sm:$0xff]
        %v407 = vld [vmem:[%s403 + $0x18] sm:$0xff]
        %v408 = vld [vmem:[%s5] sm:$0xff]
        %v409 = vld [vmem:[%s5 + $0x8] sm:$0xff]
        %v410 = vld [vmem:[%s5 + $0x10] sm:$0xff]
        %v411 = vld [vmem:[%s5 + $0x18] sm:$0xff]
        %s412 = scalar_lea.vmem %s5, 32
        %v413 = vld [vmem:[%s412] sm:$0xff]
        %v414 = vld [vmem:[%s412 + $0x8] sm:$0xff]
        %v415 = vld [vmem:[%s412 + $0x10] sm:$0xff]
        %v416 = vld [vmem:[%s412 + $0x18] sm:$0xff]
        %v417 = vld [vmem:[%s6] sm:$0x7]
        %v418 = vld [vmem:[%s7] sm:$0x7]
        %v419 = vlaneseq
        %v420 = vshrl.u32 %v419, 7
        %v421 = vadd.s32 %v420, 8
        %v422 = vadd.s32 %v420, 16
        %v423 = vadd.s32 %v420, 24
        %v424 = vadd.s32 %v420, 32
        %v425 = vadd.s32 %v420, 40
        %v426 = vadd.s32 %v420, 48
        %v427 = vadd.s32 %v420, 56
        %v428 = vcvt.s32.f32 %v420
        %v429 = vcvt.s32.f32 %v421
        %v430 = vcvt.s32.f32 %v422
        %v431 = vcvt.s32.f32 %v423
        %v432 = vcvt.s32.f32 %v424
        %v433 = vcvt.s32.f32 %v425
        %v434 = vcvt.s32.f32 %v426
        %v435 = vcvt.s32.f32 %v427
        %v436 = vadd.f32 %v428, 0.5
        %v437 = vadd.f32 %v429, 0.5
        %v438 = vadd.f32 %v430, 0.5
        %v439 = vadd.f32 %v431, 0.5
        %v440 = vadd.f32 %v432, 0.5
        %v441 = vadd.f32 %v433, 0.5
        %v442 = vadd.f32 %v434, 0.5
        %v443 = vadd.f32 %v435, 0.5
        %v444 = vmul.f32 %v436, 0.125
        %v445 = vmul.f32 %v437, 0.125
        %v446 = vmul.f32 %v438, 0.125
        %v447 = vmul.f32 %v439, 0.125
        %v448 = vmul.f32 %v440, 0.125
        %v449 = vmul.f32 %v441, 0.125
        %v450 = vmul.f32 %v442, 0.125
        %v451 = vmul.f32 %v443, 0.125
        %v452 = vfloor.f32 %v444
        %v453 = vfloor.f32 %v445
        %v454 = vfloor.f32 %v446
        %v455 = vfloor.f32 %v447
        %v456 = vfloor.f32 %v448
        %v457 = vfloor.f32 %v449
        %v458 = vfloor.f32 %v450
        %v459 = vfloor.f32 %v451
        %v460 = vmul.f32 %v452, 8.0
        %v461 = vmul.f32 %v453, 8.0
        %v462 = vmul.f32 %v454, 8.0
        %v463 = vmul.f32 %v455, 8.0
        %v464 = vmul.f32 %v456, 8.0
        %v465 = vmul.f32 %v457, 8.0
        %v466 = vmul.f32 %v458, 8.0
        %v467 = vmul.f32 %v459, 8.0
        %v468 = vsub.f32 %v428, %v460
        %v469 = vsub.f32 %v429, %v461
        %v470 = vsub.f32 %v430, %v462
        %v471 = vsub.f32 %v431, %v463
        %v472 = vsub.f32 %v432, %v464
        %v473 = vsub.f32 %v433, %v465
        %v474 = vsub.f32 %v434, %v466
        %v475 = vsub.f32 %v435, %v467
        loop: start=0, step=1, limit=5
        $region53: #{tpu_custom_call.1} parent=51 // loop_pre_header
          _
        $region54: #{tpu_custom_call.1} parent=51 // loop_header
          %s477 = sphi 0, %s481
          %p478 = scmp.ge.s32.totalorder %s477, 5
          %v482 = vphi %v355, %v8638
          %v483 = vphi %v356, %v8639
          %v484 = vphi %v357, %v8640
          %v485 = vphi %v358, %v8641
          %v486 = vphi 0.0, %v8714
          %v487 = vphi 0.0, %v8715
          %v488 = vphi 0.0, %v8716
          %v489 = vphi 0.0, %v8717
          %v490 = vphi 0.0, %v8718
          %v491 = vphi 0.0, %v8719
          %v492 = vphi 0.0, %v8720
          %v493 = vphi 0.0, %v8721
        $region55: #{tpu_custom_call.1} parent=51 // loop_header_branch
          %480 = sbr.rel (%p478) target = $region59
        $region56: #{tpu_custom_call.1} parent=51 // loop_body
          %v494 = vadd.f32 %v482, 1.0
          %v495 = vadd.f32 %v483, 1.0
          %v496 = vadd.f32 %v484, 1.0
          %v497 = vadd.f32 %v485, 1.0
          %v498 = vmul.f32 %v494, 3.5
          %v499 = vmul.f32 %v495, 3.5
          %v500 = vmul.f32 %v496, 3.5
          %v501 = vmul.f32 %v497, 3.5
          %v502 = vmax.f32 %v498, 0.0
          %v503 = vmax.f32 %v499, 0.0
          %v504 = vmax.f32 %v500, 0.0
          %v505 = vmax.f32 %v501, 0.0
          %v506 = vmin.f32 %v502, 7.0
          %v507 = vmin.f32 %v503, 7.0
          %v508 = vmin.f32 %v504, 7.0
          %v509 = vmin.f32 %v505, 7.0
          %v514 = vlaneseq
          %v515 = vshrl.u32 %v514, 7
          %v516 = vsub.s32 2, %v515
          %v517 = vrot.slane %v506, %v516
          %v518 = vlaneseq
          %v519 = vshrl.u32 %v518, 7
          %v520 = vsub.s32 6, %v519
          %v521 = vrot.slane %v506, %v520
          %v522 = vlaneseq
          %v523 = vshrl.u32 %v522, 7
          %v524 = vsub.s32 2, %v523
          %v525 = vrot.slane %v507, %v524
          %v526 = vlaneseq
          %v527 = vshrl.u32 %v526, 7
          %v528 = vsub.s32 6, %v527
          %v529 = vrot.slane %v507, %v528
          %v530 = vlaneseq
          %v531 = vshrl.u32 %v530, 7
          %v532 = vsub.s32 2, %v531
          %v533 = vrot.slane %v508, %v532
          %v534 = vlaneseq
          %v535 = vshrl.u32 %v534, 7
          %v536 = vsub.s32 6, %v535
          %v537 = vrot.slane %v508, %v536
          %v538 = vlaneseq
          %v539 = vshrl.u32 %v538, 7
          %v540 = vsub.s32 2, %v539
          %v541 = vrot.slane %v509, %v540
          %v542 = vlaneseq
          %v543 = vshrl.u32 %v542, 7
          %v544 = vsub.s32 6, %v543
          %v545 = vrot.slane %v509, %v544
          %v554 = vlaneseq
          %v555 = vshrl.u32 %v554, 7
          %v556 = vsub.s32 2, %v555
          %v557 = vrot.slane %v517, %v556
          %v558 = vlaneseq
          %v559 = vshrl.u32 %v558, 7
          %v560 = vsub.s32 2, %v559
          %v561 = vrot.slane %v521, %v560
          %v562 = vlaneseq
          %v563 = vshrl.u32 %v562, 7
          %v564 = vsub.s32 2, %v563
          %v565 = vrot.slane %v525, %v564
          %v566 = vlaneseq
          %v567 = vshrl.u32 %v566, 7
          %v568 = vsub.s32 2, %v567
          %v569 = vrot.slane %v529, %v568
          %v570 = vlaneseq
          %v571 = vshrl.u32 %v570, 7
          %v572 = vsub.s32 2, %v571
          %v573 = vrot.slane %v533, %v572
          %v574 = vlaneseq
          %v575 = vshrl.u32 %v574, 7
          %v576 = vsub.s32 2, %v575
          %v577 = vrot.slane %v537, %v576
          %v578 = vlaneseq
          %v579 = vshrl.u32 %v578, 7
          %v580 = vsub.s32 2, %v579
          %v581 = vrot.slane %v541, %v580
          %v582 = vlaneseq
          %v583 = vshrl.u32 %v582, 7
          %v584 = vsub.s32 2, %v583
          %v585 = vrot.slane %v545, %v584
          %v586 = vsub.f32 %v452, %v557
          %v587 = vsub.f32 %v452, %v561
          %v588 = vsub.f32 %v452, %v565
          %v589 = vsub.f32 %v452, %v569
          %v590 = vsub.f32 %v452, %v573
          %v591 = vsub.f32 %v452, %v577
          %v592 = vsub.f32 %v452, %v581
          %v593 = vsub.f32 %v452, %v585
          %v594 = vsub.f32 %v453, %v557
          %v595 = vsub.f32 %v453, %v561
          %v596 = vsub.f32 %v453, %v565
          %v597 = vsub.f32 %v453, %v569
          %v598 = vsub.f32 %v453, %v573
          %v599 = vsub.f32 %v453, %v577
          %v600 = vsub.f32 %v453, %v581
          %v601 = vsub.f32 %v453, %v585
          %v602 = vsub.f32 %v454, %v557
          %v603 = vsub.f32 %v454, %v561
          %v604 = vsub.f32 %v454, %v565
          %v605 = vsub.f32 %v454, %v569
          %v606 = vsub.f32 %v454, %v573
          %v607 = vsub.f32 %v454, %v577
          %v608 = vsub.f32 %v454, %v581
          %v609 = vsub.f32 %v454, %v585
          %v610 = vsub.f32 %v455, %v557
          %v611 = vsub.f32 %v455, %v561
          %v612 = vsub.f32 %v455, %v565
          %v613 = vsub.f32 %v455, %v569
          %v614 = vsub.f32 %v455, %v573
          %v615 = vsub.f32 %v455, %v577
          %v616 = vsub.f32 %v455, %v581
          %v617 = vsub.f32 %v455, %v585
          %v618 = vsub.f32 %v456, %v557
          %v619 = vsub.f32 %v456, %v561
          %v620 = vsub.f32 %v456, %v565
          %v621 = vsub.f32 %v456, %v569
          %v622 = vsub.f32 %v456, %v573
          %v623 = vsub.f32 %v456, %v577
          %v624 = vsub.f32 %v456, %v581
          %v625 = vsub.f32 %v456, %v585
          %v626 = vsub.f32 %v457, %v557
          %v627 = vsub.f32 %v457, %v561
          %v628 = vsub.f32 %v457, %v565
          %v629 = vsub.f32 %v457, %v569
          %v630 = vsub.f32 %v457, %v573
          %v631 = vsub.f32 %v457, %v577
          %v632 = vsub.f32 %v457, %v581
          %v633 = vsub.f32 %v457, %v585
          %v634 = vsub.f32 %v458, %v557
          %v635 = vsub.f32 %v458, %v561
          %v636 = vsub.f32 %v458, %v565
          %v637 = vsub.f32 %v458, %v569
          %v638 = vsub.f32 %v458, %v573
          %v639 = vsub.f32 %v458, %v577
          %v640 = vsub.f32 %v458, %v581
          %v641 = vsub.f32 %v458, %v585
          %v642 = vsub.f32 %v459, %v557
          %v643 = vsub.f32 %v459, %v561
          %v644 = vsub.f32 %v459, %v565
          %v645 = vsub.f32 %v459, %v569
          %v646 = vsub.f32 %v459, %v573
          %v647 = vsub.f32 %v459, %v577
          %v648 = vsub.f32 %v459, %v581
          %v649 = vsub.f32 %v459, %v585
          %v650 = vand.u32 2147483647, %v586
          %v651 = vand.u32 2147483647, %v587
          %v652 = vand.u32 2147483647, %v588
          %v653 = vand.u32 2147483647, %v589
          %v654 = vand.u32 2147483647, %v590
          %v655 = vand.u32 2147483647, %v591
          %v656 = vand.u32 2147483647, %v592
          %v657 = vand.u32 2147483647, %v593
          %v658 = vand.u32 2147483647, %v594
          %v659 = vand.u32 2147483647, %v595
          %v660 = vand.u32 2147483647, %v596
          %v661 = vand.u32 2147483647, %v597
          %v662 = vand.u32 2147483647, %v598
          %v663 = vand.u32 2147483647, %v599
          %v664 = vand.u32 2147483647, %v600
          %v665 = vand.u32 2147483647, %v601
          %v666 = vand.u32 2147483647, %v602
          %v667 = vand.u32 2147483647, %v603
          %v668 = vand.u32 2147483647, %v604
          %v669 = vand.u32 2147483647, %v605
          %v670 = vand.u32 2147483647, %v606
          %v671 = vand.u32 2147483647, %v607
          %v672 = vand.u32 2147483647, %v608
          %v673 = vand.u32 2147483647, %v609
          %v674 = vand.u32 2147483647, %v610
          %v675 = vand.u32 2147483647, %v611
          %v676 = vand.u32 2147483647, %v612
          %v677 = vand.u32 2147483647, %v613
          %v678 = vand.u32 2147483647, %v614
          %v679 = vand.u32 2147483647, %v615
          %v680 = vand.u32 2147483647, %v616
          %v681 = vand.u32 2147483647, %v617
          %v682 = vand.u32 2147483647, %v618
          %v683 = vand.u32 2147483647, %v619
          %v684 = vand.u32 2147483647, %v620
          %v685 = vand.u32 2147483647, %v621
          %v686 = vand.u32 2147483647, %v622
          %v687 = vand.u32 2147483647, %v623
          %v688 = vand.u32 2147483647, %v624
          %v689 = vand.u32 2147483647, %v625
          %v690 = vand.u32 2147483647, %v626
          %v691 = vand.u32 2147483647, %v627
          %v692 = vand.u32 2147483647, %v628
          %v693 = vand.u32 2147483647, %v629
          %v694 = vand.u32 2147483647, %v630
          %v695 = vand.u32 2147483647, %v631
          %v696 = vand.u32 2147483647, %v632
          %v697 = vand.u32 2147483647, %v633
          %v698 = vand.u32 2147483647, %v634
          %v699 = vand.u32 2147483647, %v635
          %v700 = vand.u32 2147483647, %v636
          %v701 = vand.u32 2147483647, %v637
          %v702 = vand.u32 2147483647, %v638
          %v703 = vand.u32 2147483647, %v639
          %v704 = vand.u32 2147483647, %v640
          %v705 = vand.u32 2147483647, %v641
          %v706 = vand.u32 2147483647, %v642
          %v707 = vand.u32 2147483647, %v643
          %v708 = vand.u32 2147483647, %v644
          %v709 = vand.u32 2147483647, %v645
          %v710 = vand.u32 2147483647, %v646
          %v711 = vand.u32 2147483647, %v647
          %v712 = vand.u32 2147483647, %v648
          %v713 = vand.u32 2147483647, %v649
          %v714 = vsub.f32 1.0, %v650
          %v715 = vsub.f32 1.0, %v651
          %v716 = vsub.f32 1.0, %v652
          %v717 = vsub.f32 1.0, %v653
          %v718 = vsub.f32 1.0, %v654
          %v719 = vsub.f32 1.0, %v655
          %v720 = vsub.f32 1.0, %v656
          %v721 = vsub.f32 1.0, %v657
          %v722 = vsub.f32 1.0, %v658
          %v723 = vsub.f32 1.0, %v659
          %v724 = vsub.f32 1.0, %v660
          %v725 = vsub.f32 1.0, %v661
          %v726 = vsub.f32 1.0, %v662
          %v727 = vsub.f32 1.0, %v663
          %v728 = vsub.f32 1.0, %v664
          %v729 = vsub.f32 1.0, %v665
          %v730 = vsub.f32 1.0, %v666
          %v731 = vsub.f32 1.0, %v667
          %v732 = vsub.f32 1.0, %v668
          %v733 = vsub.f32 1.0, %v669
          %v734 = vsub.f32 1.0, %v670
          %v735 = vsub.f32 1.0, %v671
          %v736 = vsub.f32 1.0, %v672
          %v737 = vsub.f32 1.0, %v673
          %v738 = vsub.f32 1.0, %v674
          %v739 = vsub.f32 1.0, %v675
          %v740 = vsub.f32 1.0, %v676
          %v741 = vsub.f32 1.0, %v677
          %v742 = vsub.f32 1.0, %v678
          %v743 = vsub.f32 1.0, %v679
          %v744 = vsub.f32 1.0, %v680
          %v745 = vsub.f32 1.0, %v681
          %v746 = vsub.f32 1.0, %v682
          %v747 = vsub.f32 1.0, %v683
          %v748 = vsub.f32 1.0, %v684
          %v749 = vsub.f32 1.0, %v685
          %v750 = vsub.f32 1.0, %v686
          %v751 = vsub.f32 1.0, %v687
          %v752 = vsub.f32 1.0, %v688
          %v753 = vsub.f32 1.0, %v689
          %v754 = vsub.f32 1.0, %v690
          %v755 = vsub.f32 1.0, %v691
          %v756 = vsub.f32 1.0, %v692
          %v757 = vsub.f32 1.0, %v693
          %v758 = vsub.f32 1.0, %v694
          %v759 = vsub.f32 1.0, %v695
          %v760 = vsub.f32 1.0, %v696
          %v761 = vsub.f32 1.0, %v697
          %v762 = vsub.f32 1.0, %v698
          %v763 = vsub.f32 1.0, %v699
          %v764 = vsub.f32 1.0, %v700
          %v765 = vsub.f32 1.0, %v701
          %v766 = vsub.f32 1.0, %v702
          %v767 = vsub.f32 1.0, %v703
          %v768 = vsub.f32 1.0, %v704
          %v769 = vsub.f32 1.0, %v705
          %v770 = vsub.f32 1.0, %v706
          %v771 = vsub.f32 1.0, %v707
          %v772 = vsub.f32 1.0, %v708
          %v773 = vsub.f32 1.0, %v709
          %v774 = vsub.f32 1.0, %v710
          %v775 = vsub.f32 1.0, %v711
          %v776 = vsub.f32 1.0, %v712
          %v777 = vsub.f32 1.0, %v713
          %v778 = vmax.f32 %v714, 0.0
          %v779 = vmax.f32 %v715, 0.0
          %v780 = vmax.f32 %v716, 0.0
          %v781 = vmax.f32 %v717, 0.0
          %v782 = vmax.f32 %v718, 0.0
          %v783 = vmax.f32 %v719, 0.0
          %v784 = vmax.f32 %v720, 0.0
          %v785 = vmax.f32 %v721, 0.0
          %v786 = vmax.f32 %v722, 0.0
          %v787 = vmax.f32 %v723, 0.0
          %v788 = vmax.f32 %v724, 0.0
          %v789 = vmax.f32 %v725, 0.0
          %v790 = vmax.f32 %v726, 0.0
          %v791 = vmax.f32 %v727, 0.0
          %v792 = vmax.f32 %v728, 0.0
          %v793 = vmax.f32 %v729, 0.0
          %v794 = vmax.f32 %v730, 0.0
          %v795 = vmax.f32 %v731, 0.0
          %v796 = vmax.f32 %v732, 0.0
          %v797 = vmax.f32 %v733, 0.0
          %v798 = vmax.f32 %v734, 0.0
          %v799 = vmax.f32 %v735, 0.0
          %v800 = vmax.f32 %v736, 0.0
          %v801 = vmax.f32 %v737, 0.0
          %v802 = vmax.f32 %v738, 0.0
          %v803 = vmax.f32 %v739, 0.0
          %v804 = vmax.f32 %v740, 0.0
          %v805 = vmax.f32 %v741, 0.0
          %v806 = vmax.f32 %v742, 0.0
          %v807 = vmax.f32 %v743, 0.0
          %v808 = vmax.f32 %v744, 0.0
          %v809 = vmax.f32 %v745, 0.0
          %v810 = vmax.f32 %v746, 0.0
          %v811 = vmax.f32 %v747, 0.0
          %v812 = vmax.f32 %v748, 0.0
          %v813 = vmax.f32 %v749, 0.0
          %v814 = vmax.f32 %v750, 0.0
          %v815 = vmax.f32 %v751, 0.0
          %v816 = vmax.f32 %v752, 0.0
          %v817 = vmax.f32 %v753, 0.0
          %v818 = vmax.f32 %v754, 0.0
          %v819 = vmax.f32 %v755, 0.0
          %v820 = vmax.f32 %v756, 0.0
          %v821 = vmax.f32 %v757, 0.0
          %v822 = vmax.f32 %v758, 0.0
          %v823 = vmax.f32 %v759, 0.0
          %v824 = vmax.f32 %v760, 0.0
          %v825 = vmax.f32 %v761, 0.0
          %v826 = vmax.f32 %v762, 0.0
          %v827 = vmax.f32 %v763, 0.0
          %v828 = vmax.f32 %v764, 0.0
          %v829 = vmax.f32 %v765, 0.0
          %v830 = vmax.f32 %v766, 0.0
          %v831 = vmax.f32 %v767, 0.0
          %v832 = vmax.f32 %v768, 0.0
          %v833 = vmax.f32 %v769, 0.0
          %v834 = vmax.f32 %v770, 0.0
          %v835 = vmax.f32 %v771, 0.0
          %v836 = vmax.f32 %v772, 0.0
          %v837 = vmax.f32 %v773, 0.0
          %v838 = vmax.f32 %v774, 0.0
          %v839 = vmax.f32 %v775, 0.0
          %v840 = vmax.f32 %v776, 0.0
          %v841 = vmax.f32 %v777, 0.0
          %v842 = vlaneseq
          %v843 = vshrl.u32 %v842, 7
          %v844 = vsub.s32 1, %v843
          %v845 = vrot.slane %v506, %v844
          %v846 = vlaneseq
          %v847 = vshrl.u32 %v846, 7
          %v848 = vsub.s32 5, %v847
          %v849 = vrot.slane %v506, %v848
          %v850 = vlaneseq
          %v851 = vshrl.u32 %v850, 7
          %v852 = vsub.s32 1, %v851
          %v853 = vrot.slane %v507, %v852
          %v854 = vlaneseq
          %v855 = vshrl.u32 %v854, 7
          %v856 = vsub.s32 5, %v855
          %v857 = vrot.slane %v507, %v856
          %v858 = vlaneseq
          %v859 = vshrl.u32 %v858, 7
          %v860 = vsub.s32 1, %v859
          %v861 = vrot.slane %v508, %v860
          %v862 = vlaneseq
          %v863 = vshrl.u32 %v862, 7
          %v864 = vsub.s32 5, %v863
          %v865 = vrot.slane %v508, %v864
          %v866 = vlaneseq
          %v867 = vshrl.u32 %v866, 7
          %v868 = vsub.s32 1, %v867
          %v869 = vrot.slane %v509, %v868
          %v870 = vlaneseq
          %v871 = vshrl.u32 %v870, 7
          %v872 = vsub.s32 5, %v871
          %v873 = vrot.slane %v509, %v872
          %v882 = vlaneseq
          %v883 = vshrl.u32 %v882, 7
          %v884 = vsub.s32 1, %v883
          %v885 = vrot.slane %v845, %v884
          %v886 = vlaneseq
          %v887 = vshrl.u32 %v886, 7
          %v888 = vsub.s32 1, %v887
          %v889 = vrot.slane %v849, %v888
          %v890 = vlaneseq
          %v891 = vshrl.u32 %v890, 7
          %v892 = vsub.s32 1, %v891
          %v893 = vrot.slane %v853, %v892
          %v894 = vlaneseq
          %v895 = vshrl.u32 %v894, 7
          %v896 = vsub.s32 1, %v895
          %v897 = vrot.slane %v857, %v896
          %v898 = vlaneseq
          %v899 = vshrl.u32 %v898, 7
          %v900 = vsub.s32 1, %v899
          %v901 = vrot.slane %v861, %v900
          %v902 = vlaneseq
          %v903 = vshrl.u32 %v902, 7
          %v904 = vsub.s32 1, %v903
          %v905 = vrot.slane %v865, %v904
          %v906 = vlaneseq
          %v907 = vshrl.u32 %v906, 7
          %v908 = vsub.s32 1, %v907
          %v909 = vrot.slane %v869, %v908
          %v910 = vlaneseq
          %v911 = vshrl.u32 %v910, 7
          %v912 = vsub.s32 1, %v911
          %v913 = vrot.slane %v873, %v912
          %v914 = vsub.f32 %v468, %v885
          %v915 = vsub.f32 %v468, %v889
          %v916 = vsub.f32 %v468, %v893
          %v917 = vsub.f32 %v468, %v897
          %v918 = vsub.f32 %v468, %v901
          %v919 = vsub.f32 %v468, %v905
          %v920 = vsub.f32 %v468, %v909
          %v921 = vsub.f32 %v468, %v913
          %v922 = vsub.f32 %v469, %v885
          %v923 = vsub.f32 %v469, %v889
          %v924 = vsub.f32 %v469, %v893
          %v925 = vsub.f32 %v469, %v897
          %v926 = vsub.f32 %v469, %v901
          %v927 = vsub.f32 %v469, %v905
          %v928 = vsub.f32 %v469, %v909
          %v929 = vsub.f32 %v469, %v913
          %v930 = vsub.f32 %v470, %v885
          %v931 = vsub.f32 %v470, %v889
          %v932 = vsub.f32 %v470, %v893
          %v933 = vsub.f32 %v470, %v897
          %v934 = vsub.f32 %v470, %v901
          %v935 = vsub.f32 %v470, %v905
          %v936 = vsub.f32 %v470, %v909
          %v937 = vsub.f32 %v470, %v913
          %v938 = vsub.f32 %v471, %v885
          %v939 = vsub.f32 %v471, %v889
          %v940 = vsub.f32 %v471, %v893
          %v941 = vsub.f32 %v471, %v897
          %v942 = vsub.f32 %v471, %v901
          %v943 = vsub.f32 %v471, %v905
          %v944 = vsub.f32 %v471, %v909
          %v945 = vsub.f32 %v471, %v913
          %v946 = vsub.f32 %v472, %v885
          %v947 = vsub.f32 %v472, %v889
          %v948 = vsub.f32 %v472, %v893
          %v949 = vsub.f32 %v472, %v897
          %v950 = vsub.f32 %v472, %v901
          %v951 = vsub.f32 %v472, %v905
          %v952 = vsub.f32 %v472, %v909
          %v953 = vsub.f32 %v472, %v913
          %v954 = vsub.f32 %v473, %v885
          %v955 = vsub.f32 %v473, %v889
          %v956 = vsub.f32 %v473, %v893
          %v957 = vsub.f32 %v473, %v897
          %v958 = vsub.f32 %v473, %v901
          %v959 = vsub.f32 %v473, %v905
          %v960 = vsub.f32 %v473, %v909
          %v961 = vsub.f32 %v473, %v913
          %v962 = vsub.f32 %v474, %v885
          %v963 = vsub.f32 %v474, %v889
          %v964 = vsub.f32 %v474, %v893
          %v965 = vsub.f32 %v474, %v897
          %v966 = vsub.f32 %v474, %v901
          %v967 = vsub.f32 %v474, %v905
          %v968 = vsub.f32 %v474, %v909
          %v969 = vsub.f32 %v474, %v913
          %v970 = vsub.f32 %v475, %v885
          %v971 = vsub.f32 %v475, %v889
          %v972 = vsub.f32 %v475, %v893
          %v973 = vsub.f32 %v475, %v897
          %v974 = vsub.f32 %v475, %v901
          %v975 = vsub.f32 %v475, %v905
          %v976 = vsub.f32 %v475, %v909
          %v977 = vsub.f32 %v475, %v913
          %v978 = vand.u32 2147483647, %v914
          %v979 = vand.u32 2147483647, %v915
          %v980 = vand.u32 2147483647, %v916
          %v981 = vand.u32 2147483647, %v917
          %v982 = vand.u32 2147483647, %v918
          %v983 = vand.u32 2147483647, %v919
          %v984 = vand.u32 2147483647, %v920
          %v985 = vand.u32 2147483647, %v921
          %v986 = vand.u32 2147483647, %v922
          %v987 = vand.u32 2147483647, %v923
          %v988 = vand.u32 2147483647, %v924
          %v989 = vand.u32 2147483647, %v925
          %v990 = vand.u32 2147483647, %v926
          %v991 = vand.u32 2147483647, %v927
          %v992 = vand.u32 2147483647, %v928
          %v993 = vand.u32 2147483647, %v929
          %v994 = vand.u32 2147483647, %v930
          %v995 = vand.u32 2147483647, %v931
          %v996 = vand.u32 2147483647, %v932
          %v997 = vand.u32 2147483647, %v933
          %v998 = vand.u32 2147483647, %v934
          %v999 = vand.u32 2147483647, %v935
          %v1000 = vand.u32 2147483647, %v936
          %v1001 = vand.u32 2147483647, %v937
          %v1002 = vand.u32 2147483647, %v938
          %v1003 = vand.u32 2147483647, %v939
          %v1004 = vand.u32 2147483647, %v940
          %v1005 = vand.u32 2147483647, %v941
          %v1006 = vand.u32 2147483647, %v942
          %v1007 = vand.u32 2147483647, %v943
          %v1008 = vand.u32 2147483647, %v944
          %v1009 = vand.u32 2147483647, %v945
          %v1010 = vand.u32 2147483647, %v946
          %v1011 = vand.u32 2147483647, %v947
          %v1012 = vand.u32 2147483647, %v948
          %v1013 = vand.u32 2147483647, %v949
          %v1014 = vand.u32 2147483647, %v950
          %v1015 = vand.u32 2147483647, %v951
          %v1016 = vand.u32 2147483647, %v952
          %v1017 = vand.u32 2147483647, %v953
          %v1018 = vand.u32 2147483647, %v954
          %v1019 = vand.u32 2147483647, %v955
          %v1020 = vand.u32 2147483647, %v956
          %v1021 = vand.u32 2147483647, %v957
          %v1022 = vand.u32 2147483647, %v958
          %v1023 = vand.u32 2147483647, %v959
          %v1024 = vand.u32 2147483647, %v960
          %v1025 = vand.u32 2147483647, %v961
          %v1026 = vand.u32 2147483647, %v962
          %v1027 = vand.u32 2147483647, %v963
          %v1028 = vand.u32 2147483647, %v964
          %v1029 = vand.u32 2147483647, %v965
          %v1030 = vand.u32 2147483647, %v966
          %v1031 = vand.u32 2147483647, %v967
          %v1032 = vand.u32 2147483647, %v968
          %v1033 = vand.u32 2147483647, %v969
          %v1034 = vand.u32 2147483647, %v970
          %v1035 = vand.u32 2147483647, %v971
          %v1036 = vand.u32 2147483647, %v972
          %v1037 = vand.u32 2147483647, %v973
          %v1038 = vand.u32 2147483647, %v974
          %v1039 = vand.u32 2147483647, %v975
          %v1040 = vand.u32 2147483647, %v976
          %v1041 = vand.u32 2147483647, %v977
          %v1042 = vsub.f32 1.0, %v978
          %v1043 = vsub.f32 1.0, %v979
          %v1044 = vsub.f32 1.0, %v980
          %v1045 = vsub.f32 1.0, %v981
          %v1046 = vsub.f32 1.0, %v982
          %v1047 = vsub.f32 1.0, %v983
          %v1048 = vsub.f32 1.0, %v984
          %v1049 = vsub.f32 1.0, %v985
          %v1050 = vsub.f32 1.0, %v986
          %v1051 = vsub.f32 1.0, %v987
          %v1052 = vsub.f32 1.0, %v988
          %v1053 = vsub.f32 1.0, %v989
          %v1054 = vsub.f32 1.0, %v990
          %v1055 = vsub.f32 1.0, %v991
          %v1056 = vsub.f32 1.0, %v992
          %v1057 = vsub.f32 1.0, %v993
          %v1058 = vsub.f32 1.0, %v994
          %v1059 = vsub.f32 1.0, %v995
          %v1060 = vsub.f32 1.0, %v996
          %v1061 = vsub.f32 1.0, %v997
          %v1062 = vsub.f32 1.0, %v998
          %v1063 = vsub.f32 1.0, %v999
          %v1064 = vsub.f32 1.0, %v1000
          %v1065 = vsub.f32 1.0, %v1001
          %v1066 = vsub.f32 1.0, %v1002
          %v1067 = vsub.f32 1.0, %v1003
          %v1068 = vsub.f32 1.0, %v1004
          %v1069 = vsub.f32 1.0, %v1005
          %v1070 = vsub.f32 1.0, %v1006
          %v1071 = vsub.f32 1.0, %v1007
          %v1072 = vsub.f32 1.0, %v1008
          %v1073 = vsub.f32 1.0, %v1009
          %v1074 = vsub.f32 1.0, %v1010
          %v1075 = vsub.f32 1.0, %v1011
          %v1076 = vsub.f32 1.0, %v1012
          %v1077 = vsub.f32 1.0, %v1013
          %v1078 = vsub.f32 1.0, %v1014
          %v1079 = vsub.f32 1.0, %v1015
          %v1080 = vsub.f32 1.0, %v1016
          %v1081 = vsub.f32 1.0, %v1017
          %v1082 = vsub.f32 1.0, %v1018
          %v1083 = vsub.f32 1.0, %v1019
          %v1084 = vsub.f32 1.0, %v1020
          %v1085 = vsub.f32 1.0, %v1021
          %v1086 = vsub.f32 1.0, %v1022
          %v1087 = vsub.f32 1.0, %v1023
          %v1088 = vsub.f32 1.0, %v1024
          %v1089 = vsub.f32 1.0, %v1025
          %v1090 = vsub.f32 1.0, %v1026
          %v1091 = vsub.f32 1.0, %v1027
          %v1092 = vsub.f32 1.0, %v1028
          %v1093 = vsub.f32 1.0, %v1029
          %v1094 = vsub.f32 1.0, %v1030
          %v1095 = vsub.f32 1.0, %v1031
          %v1096 = vsub.f32 1.0, %v1032
          %v1097 = vsub.f32 1.0, %v1033
          %v1098 = vsub.f32 1.0, %v1034
          %v1099 = vsub.f32 1.0, %v1035
          %v1100 = vsub.f32 1.0, %v1036
          %v1101 = vsub.f32 1.0, %v1037
          %v1102 = vsub.f32 1.0, %v1038
          %v1103 = vsub.f32 1.0, %v1039
          %v1104 = vsub.f32 1.0, %v1040
          %v1105 = vsub.f32 1.0, %v1041
          %v1106 = vmax.f32 %v1042, 0.0
          %v1107 = vmax.f32 %v1043, 0.0
          %v1108 = vmax.f32 %v1044, 0.0
          %v1109 = vmax.f32 %v1045, 0.0
          %v1110 = vmax.f32 %v1046, 0.0
          %v1111 = vmax.f32 %v1047, 0.0
          %v1112 = vmax.f32 %v1048, 0.0
          %v1113 = vmax.f32 %v1049, 0.0
          %v1114 = vmax.f32 %v1050, 0.0
          %v1115 = vmax.f32 %v1051, 0.0
          %v1116 = vmax.f32 %v1052, 0.0
          %v1117 = vmax.f32 %v1053, 0.0
          %v1118 = vmax.f32 %v1054, 0.0
          %v1119 = vmax.f32 %v1055, 0.0
          %v1120 = vmax.f32 %v1056, 0.0
          %v1121 = vmax.f32 %v1057, 0.0
          %v1122 = vmax.f32 %v1058, 0.0
          %v1123 = vmax.f32 %v1059, 0.0
          %v1124 = vmax.f32 %v1060, 0.0
          %v1125 = vmax.f32 %v1061, 0.0
          %v1126 = vmax.f32 %v1062, 0.0
          %v1127 = vmax.f32 %v1063, 0.0
          %v1128 = vmax.f32 %v1064, 0.0
          %v1129 = vmax.f32 %v1065, 0.0
          %v1130 = vmax.f32 %v1066, 0.0
          %v1131 = vmax.f32 %v1067, 0.0
          %v1132 = vmax.f32 %v1068, 0.0
          %v1133 = vmax.f32 %v1069, 0.0
          %v1134 = vmax.f32 %v1070, 0.0
          %v1135 = vmax.f32 %v1071, 0.0
          %v1136 = vmax.f32 %v1072, 0.0
          %v1137 = vmax.f32 %v1073, 0.0
          %v1138 = vmax.f32 %v1074, 0.0
          %v1139 = vmax.f32 %v1075, 0.0
          %v1140 = vmax.f32 %v1076, 0.0
          %v1141 = vmax.f32 %v1077, 0.0
          %v1142 = vmax.f32 %v1078, 0.0
          %v1143 = vmax.f32 %v1079, 0.0
          %v1144 = vmax.f32 %v1080, 0.0
          %v1145 = vmax.f32 %v1081, 0.0
          %v1146 = vmax.f32 %v1082, 0.0
          %v1147 = vmax.f32 %v1083, 0.0
          %v1148 = vmax.f32 %v1084, 0.0
          %v1149 = vmax.f32 %v1085, 0.0
          %v1150 = vmax.f32 %v1086, 0.0
          %v1151 = vmax.f32 %v1087, 0.0
          %v1152 = vmax.f32 %v1088, 0.0
          %v1153 = vmax.f32 %v1089, 0.0
          %v1154 = vmax.f32 %v1090, 0.0
          %v1155 = vmax.f32 %v1091, 0.0
          %v1156 = vmax.f32 %v1092, 0.0
          %v1157 = vmax.f32 %v1093, 0.0
          %v1158 = vmax.f32 %v1094, 0.0
          %v1159 = vmax.f32 %v1095, 0.0
          %v1160 = vmax.f32 %v1096, 0.0
          %v1161 = vmax.f32 %v1097, 0.0
          %v1162 = vmax.f32 %v1098, 0.0
          %v1163 = vmax.f32 %v1099, 0.0
          %v1164 = vmax.f32 %v1100, 0.0
          %v1165 = vmax.f32 %v1101, 0.0
          %v1166 = vmax.f32 %v1102, 0.0
          %v1167 = vmax.f32 %v1103, 0.0
          %v1168 = vmax.f32 %v1104, 0.0
          %v1169 = vmax.f32 %v1105, 0.0
          %v1170 = vmul.f32 %v778, %v1106
          %v1171 = vmul.f32 %v779, %v1107
          %v1172 = vmul.f32 %v780, %v1108
          %v1173 = vmul.f32 %v781, %v1109
          %v1174 = vmul.f32 %v782, %v1110
          %v1175 = vmul.f32 %v783, %v1111
          %v1176 = vmul.f32 %v784, %v1112
          %v1177 = vmul.f32 %v785, %v1113
          %v1178 = vmul.f32 %v786, %v1114
          %v1179 = vmul.f32 %v787, %v1115
          %v1180 = vmul.f32 %v788, %v1116
          %v1181 = vmul.f32 %v789, %v1117
          %v1182 = vmul.f32 %v790, %v1118
          %v1183 = vmul.f32 %v791, %v1119
          %v1184 = vmul.f32 %v792, %v1120
          %v1185 = vmul.f32 %v793, %v1121
          %v1186 = vmul.f32 %v794, %v1122
          %v1187 = vmul.f32 %v795, %v1123
          %v1188 = vmul.f32 %v796, %v1124
          %v1189 = vmul.f32 %v797, %v1125
          %v1190 = vmul.f32 %v798, %v1126
          %v1191 = vmul.f32 %v799, %v1127
          %v1192 = vmul.f32 %v800, %v1128
          %v1193 = vmul.f32 %v801, %v1129
          %v1194 = vmul.f32 %v802, %v1130
          %v1195 = vmul.f32 %v803, %v1131
          %v1196 = vmul.f32 %v804, %v1132
          %v1197 = vmul.f32 %v805, %v1133
          %v1198 = vmul.f32 %v806, %v1134
          %v1199 = vmul.f32 %v807, %v1135
          %v1200 = vmul.f32 %v808, %v1136
          %v1201 = vmul.f32 %v809, %v1137
          %v1202 = vmul.f32 %v810, %v1138
          %v1203 = vmul.f32 %v811, %v1139
          %v1204 = vmul.f32 %v812, %v1140
          %v1205 = vmul.f32 %v813, %v1141
          %v1206 = vmul.f32 %v814, %v1142
          %v1207 = vmul.f32 %v815, %v1143
          %v1208 = vmul.f32 %v816, %v1144
          %v1209 = vmul.f32 %v817, %v1145
          %v1210 = vmul.f32 %v818, %v1146
          %v1211 = vmul.f32 %v819, %v1147
          %v1212 = vmul.f32 %v820, %v1148
          %v1213 = vmul.f32 %v821, %v1149
          %v1214 = vmul.f32 %v822, %v1150
          %v1215 = vmul.f32 %v823, %v1151
          %v1216 = vmul.f32 %v824, %v1152
          %v1217 = vmul.f32 %v825, %v1153
          %v1218 = vmul.f32 %v826, %v1154
          %v1219 = vmul.f32 %v827, %v1155
          %v1220 = vmul.f32 %v828, %v1156
          %v1221 = vmul.f32 %v829, %v1157
          %v1222 = vmul.f32 %v830, %v1158
          %v1223 = vmul.f32 %v831, %v1159
          %v1224 = vmul.f32 %v832, %v1160
          %v1225 = vmul.f32 %v833, %v1161
          %v1226 = vmul.f32 %v834, %v1162
          %v1227 = vmul.f32 %v835, %v1163
          %v1228 = vmul.f32 %v836, %v1164
          %v1229 = vmul.f32 %v837, %v1165
          %v1230 = vmul.f32 %v838, %v1166
          %v1231 = vmul.f32 %v839, %v1167
          %v1232 = vmul.f32 %v840, %v1168
          %v1233 = vmul.f32 %v841, %v1169
          %v1234 = vlaneseq
          %v1235 = vshrl.u32 %v1234, 7
          %v1236 = vsub.s32 0, %v1235
          %v1237 = vrot.slane %v506, %v1236
          %v1238 = vlaneseq
          %v1239 = vshrl.u32 %v1238, 7
          %v1240 = vsub.s32 4, %v1239
          %v1241 = vrot.slane %v506, %v1240
          %v1242 = vlaneseq
          %v1243 = vshrl.u32 %v1242, 7
          %v1244 = vsub.s32 0, %v1243
          %v1245 = vrot.slane %v507, %v1244
          %v1246 = vlaneseq
          %v1247 = vshrl.u32 %v1246, 7
          %v1248 = vsub.s32 4, %v1247
          %v1249 = vrot.slane %v507, %v1248
          %v1250 = vlaneseq
          %v1251 = vshrl.u32 %v1250, 7
          %v1252 = vsub.s32 0, %v1251
          %v1253 = vrot.slane %v508, %v1252
          %v1254 = vlaneseq
          %v1255 = vshrl.u32 %v1254, 7
          %v1256 = vsub.s32 4, %v1255
          %v1257 = vrot.slane %v508, %v1256
          %v1258 = vlaneseq
          %v1259 = vshrl.u32 %v1258, 7
          %v1260 = vsub.s32 0, %v1259
          %v1261 = vrot.slane %v509, %v1260
          %v1262 = vlaneseq
          %v1263 = vshrl.u32 %v1262, 7
          %v1264 = vsub.s32 4, %v1263
          %v1265 = vrot.slane %v509, %v1264
          %v1274 = vlaneseq
          %v1275 = vshrl.u32 %v1274, 7
          %v1276 = vsub.s32 0, %v1275
          %v1277 = vrot.slane %v1237, %v1276
          %v1278 = vlaneseq
          %v1279 = vshrl.u32 %v1278, 7
          %v1280 = vsub.s32 0, %v1279
          %v1281 = vrot.slane %v1241, %v1280
          %v1282 = vlaneseq
          %v1283 = vshrl.u32 %v1282, 7
          %v1284 = vsub.s32 0, %v1283
          %v1285 = vrot.slane %v1245, %v1284
          %v1286 = vlaneseq
          %v1287 = vshrl.u32 %v1286, 7
          %v1288 = vsub.s32 0, %v1287
          %v1289 = vrot.slane %v1249, %v1288
          %v1290 = vlaneseq
          %v1291 = vshrl.u32 %v1290, 7
          %v1292 = vsub.s32 0, %v1291
          %v1293 = vrot.slane %v1253, %v1292
          %v1294 = vlaneseq
          %v1295 = vshrl.u32 %v1294, 7
          %v1296 = vsub.s32 0, %v1295
          %v1297 = vrot.slane %v1257, %v1296
          %v1298 = vlaneseq
          %v1299 = vshrl.u32 %v1298, 7
          %v1300 = vsub.s32 0, %v1299
          %v1301 = vrot.slane %v1261, %v1300
          %v1302 = vlaneseq
          %v1303 = vshrl.u32 %v1302, 7
          %v1304 = vsub.s32 0, %v1303
          %v1305 = vrot.slane %v1265, %v1304
          %v1306 = vsub.f32 %v428, %v1277
          %v1307 = vsub.f32 %v428, %v1281
          %v1308 = vsub.f32 %v428, %v1285
          %v1309 = vsub.f32 %v428, %v1289
          %v1310 = vsub.f32 %v428, %v1293
          %v1311 = vsub.f32 %v428, %v1297
          %v1312 = vsub.f32 %v428, %v1301
          %v1313 = vsub.f32 %v428, %v1305
          %v1314 = vand.u32 2147483647, %v1306
          %v1315 = vand.u32 2147483647, %v1307
          %v1316 = vand.u32 2147483647, %v1308
          %v1317 = vand.u32 2147483647, %v1309
          %v1318 = vand.u32 2147483647, %v1310
          %v1319 = vand.u32 2147483647, %v1311
          %v1320 = vand.u32 2147483647, %v1312
          %v1321 = vand.u32 2147483647, %v1313
          %v1322 = vsub.f32 1.0, %v1314
          %v1323 = vsub.f32 1.0, %v1315
          %v1324 = vsub.f32 1.0, %v1316
          %v1325 = vsub.f32 1.0, %v1317
          %v1326 = vsub.f32 1.0, %v1318
          %v1327 = vsub.f32 1.0, %v1319
          %v1328 = vsub.f32 1.0, %v1320
          %v1329 = vsub.f32 1.0, %v1321
          %v1330 = vmax.f32 %v1322, 0.0
          %v1331 = vmax.f32 %v1323, 0.0
          %v1332 = vmax.f32 %v1324, 0.0
          %v1333 = vmax.f32 %v1325, 0.0
          %v1334 = vmax.f32 %v1326, 0.0
          %v1335 = vmax.f32 %v1327, 0.0
          %v1336 = vmax.f32 %v1328, 0.0
          %v1337 = vmax.f32 %v1329, 0.0
          %vm1338 = vcmask 523264
          %v1340 = vsel %vm1338, %v359, 0
          %v1343 = vsel %vm1338, %v360, 0
          %v1346 = vsel %vm1338, %v361, 0
          %v1349 = vsel %vm1338, %v362, 0
          %v1352 = vsel %vm1338, %v363, 0
          %v1355 = vsel %vm1338, %v364, 0
          %v1358 = vsel %vm1338, %v365, 0
          %v1361 = vsel %vm1338, %v366, 0
          %v1364 = vsel %vm1338, %v367, 0
          %v1367 = vsel %vm1338, %v368, 0
          %v1370 = vsel %vm1338, %v369, 0
          %v1373 = vsel %vm1338, %v370, 0
          %v1376 = vsel %vm1338, %v371, 0
          %v1379 = vsel %vm1338, %v372, 0
          %v1382 = vsel %vm1338, %v373, 0
          %v1385 = vsel %vm1338, %v374, 0
          %v1388 = vsel %vm1338, %v375, 0
          %v1391 = vsel %vm1338, %v376, 0
          %v1394 = vsel %vm1338, %v377, 0
          %v1397 = vsel %vm1338, %v378, 0
          %v1400 = vsel %vm1338, %v379, 0
          %v1403 = vsel %vm1338, %v380, 0
          %v1406 = vsel %vm1338, %v381, 0
          %v1409 = vsel %vm1338, %v382, 0
          %v1412 = vsel %vm1338, %v383, 0
          %v1415 = vsel %vm1338, %v384, 0
          %v1418 = vsel %vm1338, %v385, 0
          %v1421 = vsel %vm1338, %v386, 0
          %v1424 = vsel %vm1338, %v387, 0
          %v1427 = vsel %vm1338, %v388, 0
          %v1430 = vsel %vm1338, %v389, 0
          %v1433 = vsel %vm1338, %v390, 0
          %1435 = vmatprep.subr.mxu0 %v1171
          %1436 = vmatpush1.msra.mxu0 %v1170
          %1437 = vmatprep.subr.mxu0 %v1179
          %1438 = vmatpush1.msra.mxu0 %v1178
          %1439 = vmatprep.subr.mxu0 %v1187
          %1440 = vmatpush1.msra.mxu0 %v1186
          %1441 = vmatprep.subr.mxu0 %v1195
          %1442 = vmatpush1.msra.mxu0 %v1194
          %1443 = vmatprep.subr.mxu0 %v1203
          %1444 = vmatpush1.msra.mxu0 %v1202
          %1445 = vmatprep.subr.mxu0 %v1211
          %1446 = vmatpush1.msra.mxu0 %v1210
          %1447 = vmatprep.subr.mxu0 %v1219
          %1448 = vmatpush1.msra.mxu0 %v1218
          %1449 = vmatprep.subr.mxu0 %v1227
          %1450 = vmatpush1.msra.mxu0 %v1226
          %1451 = vmatprep.subr.mxu0 0.0
          %1452 = vmatpush1.msra.mxu0 0.0
          %1453 = vmatprep.subr.mxu0 0.0
          %1454 = vmatpush1.msra.mxu0 0.0
          %1455 = vmatprep.subr.mxu0 0.0
          %1456 = vmatpush1.msra.mxu0 0.0
          %1457 = vmatprep.subr.mxu0 0.0
          %1458 = vmatpush1.msra.mxu0 0.0
          %1459 = vmatprep.subr.mxu0 0.0
          %1460 = vmatpush1.msra.mxu0 0.0
          %1461 = vmatprep.subr.mxu0 0.0
          %1462 = vmatpush1.msra.mxu0 0.0
          %1463 = vmatprep.subr.mxu0 0.0
          %1464 = vmatpush1.msra.mxu0 0.0
          %1465 = vmatprep.subr.mxu0 0.0
          %1466 = vmatpush1.msra.mxu0 0.0
          %1467 = vmatprep.subr.mxu0 0.0
          %1468 = vmatpush1.msra.mxu0 0.0
          %1469 = vmatprep.subr.mxu0 0.0
          %1470 = vmatpush1.msra.mxu0 0.0
          %1471 = vmatprep.subr.mxu0 0.0
          %1472 = vmatpush1.msra.mxu0 0.0
          %1473 = vmatprep.subr.mxu0 0.0
          %1474 = vmatpush1.msra.mxu0 0.0
          %1475 = vmatprep.subr.mxu0 0.0
          %1476 = vmatpush1.msra.mxu0 0.0
          %1477 = vmatprep.subr.mxu0 0.0
          %1478 = vmatpush1.msra.mxu0 0.0
          %1479 = vmatprep.subr.mxu0 0.0
          %1480 = vmatpush1.msra.mxu0 0.0
          %1481 = vmatprep.subr.mxu0 0.0
          %1482 = vmatpush1.msra.mxu0 0.0
          %1483 = vmatprep.subr.mxu0 0.0
          %1484 = vmatpush1.msra.mxu0 0.0
          %1485 = vmatprep.subr.mxu0 0.0
          %1486 = vmatpush1.msra.mxu0 0.0
          %1487 = vmatprep.subr.mxu0 0.0
          %1488 = vmatpush1.msra.mxu0 0.0
          %1489 = vmatprep.subr.mxu0 0.0
          %1490 = vmatpush1.msra.mxu0 0.0
          %1491 = vmatprep.subr.mxu0 0.0
          %1492 = vmatpush1.msra.mxu0 0.0
          %1493 = vmatprep.subr.mxu0 0.0
          %1494 = vmatpush1.msra.mxu0 0.0
          %1495 = vmatprep.subr.mxu0 0.0
          %1496 = vmatpush1.msra.mxu0 0.0
          %1497 = vmatprep.subr.mxu0 0.0
          %1498 = vmatpush1.msra.mxu0 0.0
          %1499 = vmatprep.mubr.f32.mxu0 0.0
          %1500 = vmatmul.mubr.f32.gmra.mrb[0].mxu0 %v1340
          %v1501 = vpop.f32.mrb[0].mxu0
          %v1502 = vadd.f32 0.0, %v1501
          %v1503 = vpop.f32.mrb[0].mxu0
          %v1504 = vadd.f32 0.0, %v1503
          %1505 = vmatprep.mubr.f32.mxu0 0.0
          %1506 = vmatmul.mubr.f32.gmra.mrb[0].mxu0 %v1343
          %v1507 = vpop.f32.mrb[0].mxu0
          %v1508 = vadd.f32 0.0, %v1507
          %v1509 = vpop.f32.mrb[0].mxu0
          %v1510 = vadd.f32 0.0, %v1509
          %1511 = vmatprep.mubr.f32.mxu0 0.0
          %1512 = vmatmul.mubr.f32.gmra.mrb[0].mxu0 %v1346
          %v1513 = vpop.f32.mrb[0].mxu0
          %v1514 = vadd.f32 0.0, %v1513
          %v1515 = vpop.f32.mrb[0].mxu0
          %v1516 = vadd.f32 0.0, %v1515
          %1517 = vmatprep.mubr.f32.mxu0 0.0
          %1518 = vmatmul.mubr.f32.gmra.mrb[0].mxu0 %v1349
          %v1519 = vpop.f32.mrb[0].mxu0
          %v1520 = vadd.f32 0.0, %v1519
          %v1521 = vpop.f32.mrb[0].mxu0
          %v1522 = vadd.f32 0.0, %v1521
          %1523 = vmatprep.mubr.f32.mxu0 0.0
          %1524 = vmatmul.mubr.f32.gmra.mrb[0].mxu0 %v1352
          %v1525 = vpop.f32.mrb[0].mxu0
          %v1526 = vadd.f32 0.0, %v1525
          %v1527 = vpop.f32.mrb[0].mxu0
          %v1528 = vadd.f32 0.0, %v1527
          %1529 = vmatprep.mubr.f32.mxu0 0.0
          %1530 = vmatmul.mubr.f32.gmra.mrb[0].mxu0 %v1355
          %v1531 = vpop.f32.mrb[0].mxu0
          %v1532 = vadd.f32 0.0, %v1531
          %v1533 = vpop.f32.mrb[0].mxu0
          %v1534 = vadd.f32 0.0, %v1533
          %1535 = vmatprep.mubr.f32.mxu0 0.0
          %1536 = vmatmul.mubr.f32.gmra.mrb[0].mxu0 %v1358
          %v1537 = vpop.f32.mrb[0].mxu0
          %v1538 = vadd.f32 0.0, %v1537
          %v1539 = vpop.f32.mrb[0].mxu0
          %v1540 = vadd.f32 0.0, %v1539
          %1541 = vmatprep.mubr.f32.mxu0 0.0
          %1542 = vmatmul.mubr.f32.gmra.mrb[0].mxu0 %v1361
          %v1543 = vpop.f32.mrb[0].mxu0
          %v1544 = vadd.f32 0.0, %v1543
          %v1545 = vpop.f32.mrb[0].mxu0
          %v1546 = vadd.f32 0.0, %v1545
          %1547 = vmatprep.mubr.f32.mxu0 0.0
          %1548 = vmatmul.mubr.f32.gmra.mrb[0].mxu0 %v1364
          %v1549 = vpop.f32.mrb[0].mxu0
          %v1550 = vadd.f32 0.0, %v1549
          %v1551 = vpop.f32.mrb[0].mxu0
          %v1552 = vadd.f32 0.0, %v1551
          %1553 = vmatprep.mubr.f32.mxu0 0.0
          %1554 = vmatmul.mubr.f32.gmra.mrb[0].mxu0 %v1367
          %v1555 = vpop.f32.mrb[0].mxu0
          %v1556 = vadd.f32 0.0, %v1555
          %v1557 = vpop.f32.mrb[0].mxu0
          %v1558 = vadd.f32 0.0, %v1557
          %1559 = vmatprep.mubr.f32.mxu0 0.0
          %1560 = vmatmul.mubr.f32.gmra.mrb[0].mxu0 %v1370
          %v1561 = vpop.f32.mrb[0].mxu0
          %v1562 = vadd.f32 0.0, %v1561
          %v1563 = vpop.f32.mrb[0].mxu0
          %v1564 = vadd.f32 0.0, %v1563
          %1565 = vmatprep.mubr.f32.mxu0 0.0
          %1566 = vmatmul.mubr.f32.gmra.mrb[0].mxu0 %v1373
          %v1567 = vpop.f32.mrb[0].mxu0
          %v1568 = vadd.f32 0.0, %v1567
          %v1569 = vpop.f32.mrb[0].mxu0
          %v1570 = vadd.f32 0.0, %v1569
          %1571 = vmatprep.mubr.f32.mxu0 0.0
          %1572 = vmatmul.mubr.f32.gmra.mrb[0].mxu0 %v1376
          %v1573 = vpop.f32.mrb[0].mxu0
          %v1574 = vadd.f32 0.0, %v1573
          %v1575 = vpop.f32.mrb[0].mxu0
          %v1576 = vadd.f32 0.0, %v1575
          %1577 = vmatprep.mubr.f32.mxu0 0.0
          %1578 = vmatmul.mubr.f32.gmra.mrb[0].mxu0 %v1379
          %v1579 = vpop.f32.mrb[0].mxu0
          %v1580 = vadd.f32 0.0, %v1579
          %v1581 = vpop.f32.mrb[0].mxu0
          %v1582 = vadd.f32 0.0, %v1581
          %1583 = vmatprep.mubr.f32.mxu0 0.0
          %1584 = vmatmul.mubr.f32.gmra.mrb[0].mxu0 %v1382
          %v1585 = vpop.f32.mrb[0].mxu0
          %v1586 = vadd.f32 0.0, %v1585
          %v1587 = vpop.f32.mrb[0].mxu0
          %v1588 = vadd.f32 0.0, %v1587
          %1589 = vmatprep.mubr.f32.mxu0 0.0
          %1590 = vmatmul.mubr.f32.gmra.mrb[0].mxu0 %v1385
          %v1591 = vpop.f32.mrb[0].mxu0
          %v1592 = vadd.f32 0.0, %v1591
          %v1593 = vpop.f32.mrb[0].mxu0
          %v1594 = vadd.f32 0.0, %v1593
          %1595 = vmatprep.mubr.f32.mxu0 0.0
          %1596 = vmatmul.mubr.f32.gmra.mrb[0].mxu0 %v1388
          %v1597 = vpop.f32.mrb[0].mxu0
          %v1598 = vadd.f32 0.0, %v1597
          %v1599 = vpop.f32.mrb[0].mxu0
          %v1600 = vadd.f32 0.0, %v1599
          %1601 = vmatprep.mubr.f32.mxu0 0.0
          %1602 = vmatmul.mubr.f32.gmra.mrb[0].mxu0 %v1391
          %v1603 = vpop.f32.mrb[0].mxu0
          %v1604 = vadd.f32 0.0, %v1603
          %v1605 = vpop.f32.mrb[0].mxu0
          %v1606 = vadd.f32 0.0, %v1605
          %1607 = vmatprep.mubr.f32.mxu0 0.0
          %1608 = vmatmul.mubr.f32.gmra.mrb[0].mxu0 %v1394
          %v1609 = vpop.f32.mrb[0].mxu0
          %v1610 = vadd.f32 0.0, %v1609
          %v1611 = vpop.f32.mrb[0].mxu0
          %v1612 = vadd.f32 0.0, %v1611
          %1613 = vmatprep.mubr.f32.mxu0 0.0
          %1614 = vmatmul.mubr.f32.gmra.mrb[0].mxu0 %v1397
          %v1615 = vpop.f32.mrb[0].mxu0
          %v1616 = vadd.f32 0.0, %v1615
          %v1617 = vpop.f32.mrb[0].mxu0
          %v1618 = vadd.f32 0.0, %v1617
          %1619 = vmatprep.mubr.f32.mxu0 0.0
          %1620 = vmatmul.mubr.f32.gmra.mrb[0].mxu0 %v1400
          %v1621 = vpop.f32.mrb[0].mxu0
          %v1622 = vadd.f32 0.0, %v1621
          %v1623 = vpop.f32.mrb[0].mxu0
          %v1624 = vadd.f32 0.0, %v1623
          %1625 = vmatprep.mubr.f32.mxu0 0.0
          %1626 = vmatmul.mubr.f32.gmra.mrb[0].mxu0 %v1403
          %v1627 = vpop.f32.mrb[0].mxu0
          %v1628 = vadd.f32 0.0, %v1627
          %v1629 = vpop.f32.mrb[0].mxu0
          %v1630 = vadd.f32 0.0, %v1629
          %1631 = vmatprep.mubr.f32.mxu0 0.0
          %1632 = vmatmul.mubr.f32.gmra.mrb[0].mxu0 %v1406
          %v1633 = vpop.f32.mrb[0].mxu0
          %v1634 = vadd.f32 0.0, %v1633
          %v1635 = vpop.f32.mrb[0].mxu0
          %v1636 = vadd.f32 0.0, %v1635
          %1637 = vmatprep.mubr.f32.mxu0 0.0
          %1638 = vmatmul.mubr.f32.gmra.mrb[0].mxu0 %v1409
          %v1639 = vpop.f32.mrb[0].mxu0
          %v1640 = vadd.f32 0.0, %v1639
          %v1641 = vpop.f32.mrb[0].mxu0
          %v1642 = vadd.f32 0.0, %v1641
          %1643 = vmatprep.mubr.f32.mxu0 0.0
          %1644 = vmatmul.mubr.f32.gmra.mrb[0].mxu0 %v1412
          %v1645 = vpop.f32.mrb[0].mxu0
          %v1646 = vadd.f32 0.0, %v1645
          %v1647 = vpop.f32.mrb[0].mxu0
          %v1648 = vadd.f32 0.0, %v1647
          %1649 = vmatprep.mubr.f32.mxu0 0.0
          %1650 = vmatmul.mubr.f32.gmra.mrb[0].mxu0 %v1415
          %v1651 = vpop.f32.mrb[0].mxu0
          %v1652 = vadd.f32 0.0, %v1651
          %v1653 = vpop.f32.mrb[0].mxu0
          %v1654 = vadd.f32 0.0, %v1653
          %1655 = vmatprep.mubr.f32.mxu0 0.0
          %1656 = vmatmul.mubr.f32.gmra.mrb[0].mxu0 %v1418
          %v1657 = vpop.f32.mrb[0].mxu0
          %v1658 = vadd.f32 0.0, %v1657
          %v1659 = vpop.f32.mrb[0].mxu0
          %v1660 = vadd.f32 0.0, %v1659
          %1661 = vmatprep.mubr.f32.mxu0 0.0
          %1662 = vmatmul.mubr.f32.gmra.mrb[0].mxu0 %v1421
          %v1663 = vpop.f32.mrb[0].mxu0
          %v1664 = vadd.f32 0.0, %v1663
          %v1665 = vpop.f32.mrb[0].mxu0
          %v1666 = vadd.f32 0.0, %v1665
          %1667 = vmatprep.mubr.f32.mxu0 0.0
          %1668 = vmatmul.mubr.f32.gmra.mrb[0].mxu0 %v1424
          %v1669 = vpop.f32.mrb[0].mxu0
          %v1670 = vadd.f32 0.0, %v1669
          %v1671 = vpop.f32.mrb[0].mxu0
          %v1672 = vadd.f32 0.0, %v1671
          %1673 = vmatprep.mubr.f32.mxu0 0.0
          %1674 = vmatmul.mubr.f32.gmra.mrb[0].mxu0 %v1427
          %v1675 = vpop.f32.mrb[0].mxu0
          %v1676 = vadd.f32 0.0, %v1675
          %v1677 = vpop.f32.mrb[0].mxu0
          %v1678 = vadd.f32 0.0, %v1677
          %1679 = vmatprep.mubr.f32.mxu0 0.0
          %1680 = vmatmul.mubr.f32.gmra.mrb[0].mxu0 %v1430
          %v1681 = vpop.f32.mrb[0].mxu0
          %v1682 = vadd.f32 0.0, %v1681
          %v1683 = vpop.f32.mrb[0].mxu0
          %v1684 = vadd.f32 0.0, %v1683
          %1685 = vmatprep.mubr.f32.mxu0 0.0
          %1686 = vmatmul.mubr.f32.gmra.mrb[0].mxu0 %v1433
          %v1687 = vpop.f32.mrb[0].mxu0
          %v1688 = vadd.f32 0.0, %v1687
          %v1689 = vpop.f32.mrb[0].mxu0
          %v1690 = vadd.f32 0.0, %v1689
          %1691 = vdwg.mxu0
          %1692 = vmatprep.subr.mxu0 %v1173
          %1693 = vmatpush1.msra.mxu0 %v1172
          %1694 = vmatprep.subr.mxu0 %v1181
          %1695 = vmatpush1.msra.mxu0 %v1180
          %1696 = vmatprep.subr.mxu0 %v1189
          %1697 = vmatpush1.msra.mxu0 %v1188
          %1698 = vmatprep.subr.mxu0 %v1197
          %1699 = vmatpush1.msra.mxu0 %v1196
          %1700 = vmatprep.subr.mxu0 %v1205
          %1701 = vmatpush1.msra.mxu0 %v1204
          %1702 = vmatprep.subr.mxu0 %v1213
          %1703 = vmatpush1.msra.mxu0 %v1212
          %1704 = vmatprep.subr.mxu0 %v1221
          %1705 = vmatpush1.msra.mxu0 %v1220
          %1706 = vmatprep.subr.mxu0 %v1229
          %1707 = vmatpush1.msra.mxu0 %v1228
          %1708 = vmatprep.subr.mxu0 0.0
          %1709 = vmatpush1.msra.mxu0 0.0
          %1710 = vmatprep.subr.mxu0 0.0
          %1711 = vmatpush1.msra.mxu0 0.0
          %1712 = vmatprep.subr.mxu0 0.0
          %1713 = vmatpush1.msra.mxu0 0.0
          %1714 = vmatprep.subr.mxu0 0.0
          %1715 = vmatpush1.msra.mxu0 0.0
          %1716 = vmatprep.subr.mxu0 0.0
          %1717 = vmatpush1.msra.mxu0 0.0
          %1718 = vmatprep.subr.mxu0 0.0
          %1719 = vmatpush1.msra.mxu0 0.0
          %1720 = vmatprep.subr.mxu0 0.0
          %1721 = vmatpush1.msra.mxu0 0.0
          %1722 = vmatprep.subr.mxu0 0.0
          %1723 = vmatpush1.msra.mxu0 0.0
          %1724 = vmatprep.subr.mxu0 0.0
          %1725 = vmatpush1.msra.mxu0 0.0
          %1726 = vmatprep.subr.mxu0 0.0
          %1727 = vmatpush1.msra.mxu0 0.0
          %1728 = vmatprep.subr.mxu0 0.0
          %1729 = vmatpush1.msra.mxu0 0.0
          %1730 = vmatprep.subr.mxu0 0.0
          %1731 = vmatpush1.msra.mxu0 0.0
          %1732 = vmatprep.subr.mxu0 0.0
          %1733 = vmatpush1.msra.mxu0 0.0
          %1734 = vmatprep.subr.mxu0 0.0
          %1735 = vmatpush1.msra.mxu0 0.0
          %1736 = vmatprep.subr.mxu0 0.0
          %1737 = vmatpush1.msra.mxu0 0.0
          %1738 = vmatprep.subr.mxu0 0.0
          %1739 = vmatpush1.msra.mxu0 0.0
          %1740 = vmatprep.subr.mxu0 0.0
          %1741 = vmatpush1.msra.mxu0 0.0
          %1742 = vmatprep.subr.mxu0 0.0
          %1743 = vmatpush1.msra.mxu0 0.0
          %1744 = vmatprep.subr.mxu0 0.0
          %1745 = vmatpush1.msra.mxu0 0.0
          %1746 = vmatprep.subr.mxu0 0.0
          %1747 = vmatpush1.msra.mxu0 0.0
          %1748 = vmatprep.subr.mxu0 0.0
          %1749 = vmatpush1.msra.mxu0 0.0
          %1750 = vmatprep.subr.mxu0 0.0
          %1751 = vmatpush1.msra.mxu0 0.0
          %1752 = vmatprep.subr.mxu0 0.0
          %1753 = vmatpush1.msra.mxu0 0.0
          %1754 = vmatprep.subr.mxu0 0.0
          %1755 = vmatpush1.msra.mxu0 0.0
          %1756 = vmatprep.mubr.f32.mxu0 0.0
          %1757 = vmatmul.mubr.f32.gmra.mrb[0].mxu0 %v1340
          %v1758 = vpop.f32.mrb[0].mxu0
          %v1759 = vadd.f32 0.0, %v1758
          %v1760 = vpop.f32.mrb[0].mxu0
          %v1761 = vadd.f32 0.0, %v1760
          %1762 = vmatprep.mubr.f32.mxu0 0.0
          %1763 = vmatmul.mubr.f32.gmra.mrb[0].mxu0 %v1343
          %v1764 = vpop.f32.mrb[0].mxu0
          %v1765 = vadd.f32 0.0, %v1764
          %v1766 = vpop.f32.mrb[0].mxu0
          %v1767 = vadd.f32 0.0, %v1766
          %1768 = vmatprep.mubr.f32.mxu0 0.0
          %1769 = vmatmul.mubr.f32.gmra.mrb[0].mxu0 %v1346
          %v1770 = vpop.f32.mrb[0].mxu0
          %v1771 = vadd.f32 0.0, %v1770
          %v1772 = vpop.f32.mrb[0].mxu0
          %v1773 = vadd.f32 0.0, %v1772
          %1774 = vmatprep.mubr.f32.mxu0 0.0
          %1775 = vmatmul.mubr.f32.gmra.mrb[0].mxu0 %v1349
          %v1776 = vpop.f32.mrb[0].mxu0
          %v1777 = vadd.f32 0.0, %v1776
          %v1778 = vpop.f32.mrb[0].mxu0
          %v1779 = vadd.f32 0.0, %v1778
          %1780 = vmatprep.mubr.f32.mxu0 0.0
          %1781 = vmatmul.mubr.f32.gmra.mrb[0].mxu0 %v1352
          %v1782 = vpop.f32.mrb[0].mxu0
          %v1783 = vadd.f32 0.0, %v1782
          %v1784 = vpop.f32.mrb[0].mxu0
          %v1785 = vadd.f32 0.0, %v1784
          %1786 = vmatprep.mubr.f32.mxu0 0.0
          %1787 = vmatmul.mubr.f32.gmra.mrb[0].mxu0 %v1355
          %v1788 = vpop.f32.mrb[0].mxu0
          %v1789 = vadd.f32 0.0, %v1788
          %v1790 = vpop.f32.mrb[0].mxu0
          %v1791 = vadd.f32 0.0, %v1790
          %1792 = vmatprep.mubr.f32.mxu0 0.0
          %1793 = vmatmul.mubr.f32.gmra.mrb[0].mxu0 %v1358
          %v1794 = vpop.f32.mrb[0].mxu0
          %v1795 = vadd.f32 0.0, %v1794
          %v1796 = vpop.f32.mrb[0].mxu0
          %v1797 = vadd.f32 0.0, %v1796
          %1798 = vmatprep.mubr.f32.mxu0 0.0
          %1799 = vmatmul.mubr.f32.gmra.mrb[0].mxu0 %v1361
          %v1800 = vpop.f32.mrb[0].mxu0
          %v1801 = vadd.f32 0.0, %v1800
          %v1802 = vpop.f32.mrb[0].mxu0
          %v1803 = vadd.f32 0.0, %v1802
          %1804 = vmatprep.mubr.f32.mxu0 0.0
          %1805 = vmatmul.mubr.f32.gmra.mrb[0].mxu0 %v1364
          %v1806 = vpop.f32.mrb[0].mxu0
          %v1807 = vadd.f32 0.0, %v1806
          %v1808 = vpop.f32.mrb[0].mxu0
          %v1809 = vadd.f32 0.0, %v1808
          %1810 = vmatprep.mubr.f32.mxu0 0.0
          %1811 = vmatmul.mubr.f32.gmra.mrb[0].mxu0 %v1367
          %v1812 = vpop.f32.mrb[0].mxu0
          %v1813 = vadd.f32 0.0, %v1812
          %v1814 = vpop.f32.mrb[0].mxu0
          %v1815 = vadd.f32 0.0, %v1814
          %1816 = vmatprep.mubr.f32.mxu0 0.0
          %1817 = vmatmul.mubr.f32.gmra.mrb[0].mxu0 %v1370
          %v1818 = vpop.f32.mrb[0].mxu0
          %v1819 = vadd.f32 0.0, %v1818
          %v1820 = vpop.f32.mrb[0].mxu0
          %v1821 = vadd.f32 0.0, %v1820
          %1822 = vmatprep.mubr.f32.mxu0 0.0
          %1823 = vmatmul.mubr.f32.gmra.mrb[0].mxu0 %v1373
          %v1824 = vpop.f32.mrb[0].mxu0
          %v1825 = vadd.f32 0.0, %v1824
          %v1826 = vpop.f32.mrb[0].mxu0
          %v1827 = vadd.f32 0.0, %v1826
          %1828 = vmatprep.mubr.f32.mxu0 0.0
          %1829 = vmatmul.mubr.f32.gmra.mrb[0].mxu0 %v1376
          %v1830 = vpop.f32.mrb[0].mxu0
          %v1831 = vadd.f32 0.0, %v1830
          %v1832 = vpop.f32.mrb[0].mxu0
          %v1833 = vadd.f32 0.0, %v1832
          %1834 = vmatprep.mubr.f32.mxu0 0.0
          %1835 = vmatmul.mubr.f32.gmra.mrb[0].mxu0 %v1379
          %v1836 = vpop.f32.mrb[0].mxu0
          %v1837 = vadd.f32 0.0, %v1836
          %v1838 = vpop.f32.mrb[0].mxu0
          %v1839 = vadd.f32 0.0, %v1838
          %1840 = vmatprep.mubr.f32.mxu0 0.0
          %1841 = vmatmul.mubr.f32.gmra.mrb[0].mxu0 %v1382
          %v1842 = vpop.f32.mrb[0].mxu0
          %v1843 = vadd.f32 0.0, %v1842
          %v1844 = vpop.f32.mrb[0].mxu0
          %v1845 = vadd.f32 0.0, %v1844
          %1846 = vmatprep.mubr.f32.mxu0 0.0
          %1847 = vmatmul.mubr.f32.gmra.mrb[0].mxu0 %v1385
          %v1848 = vpop.f32.mrb[0].mxu0
          %v1849 = vadd.f32 0.0, %v1848
          %v1850 = vpop.f32.mrb[0].mxu0
          %v1851 = vadd.f32 0.0, %v1850
          %1852 = vmatprep.mubr.f32.mxu0 0.0
          %1853 = vmatmul.mubr.f32.gmra.mrb[0].mxu0 %v1388
          %v1854 = vpop.f32.mrb[0].mxu0
          %v1855 = vadd.f32 0.0, %v1854
          %v1856 = vpop.f32.mrb[0].mxu0
          %v1857 = vadd.f32 0.0, %v1856
          %1858 = vmatprep.mubr.f32.mxu0 0.0
          %1859 = vmatmul.mubr.f32.gmra.mrb[0].mxu0 %v1391
          %v1860 = vpop.f32.mrb[0].mxu0
          %v1861 = vadd.f32 0.0, %v1860
          %v1862 = vpop.f32.mrb[0].mxu0
          %v1863 = vadd.f32 0.0, %v1862
          %1864 = vmatprep.mubr.f32.mxu0 0.0
          %1865 = vmatmul.mubr.f32.gmra.mrb[0].mxu0 %v1394
          %v1866 = vpop.f32.mrb[0].mxu0
          %v1867 = vadd.f32 0.0, %v1866
          %v1868 = vpop.f32.mrb[0].mxu0
          %v1869 = vadd.f32 0.0, %v1868
          %1870 = vmatprep.mubr.f32.mxu0 0.0
          %1871 = vmatmul.mubr.f32.gmra.mrb[0].mxu0 %v1397
          %v1872 = vpop.f32.mrb[0].mxu0
          %v1873 = vadd.f32 0.0, %v1872
          %v1874 = vpop.f32.mrb[0].mxu0
          %v1875 = vadd.f32 0.0, %v1874
          %1876 = vmatprep.mubr.f32.mxu0 0.0
          %1877 = vmatmul.mubr.f32.gmra.mrb[0].mxu0 %v1400
          %v1878 = vpop.f32.mrb[0].mxu0
          %v1879 = vadd.f32 0.0, %v1878
          %v1880 = vpop.f32.mrb[0].mxu0
          %v1881 = vadd.f32 0.0, %v1880
          %1882 = vmatprep.mubr.f32.mxu0 0.0
          %1883 = vmatmul.mubr.f32.gmra.mrb[0].mxu0 %v1403
          %v1884 = vpop.f32.mrb[0].mxu0
          %v1885 = vadd.f32 0.0, %v1884
          %v1886 = vpop.f32.mrb[0].mxu0
          %v1887 = vadd.f32 0.0, %v1886
          %1888 = vmatprep.mubr.f32.mxu0 0.0
          %1889 = vmatmul.mubr.f32.gmra.mrb[0].mxu0 %v1406
          %v1890 = vpop.f32.mrb[0].mxu0
          %v1891 = vadd.f32 0.0, %v1890
          %v1892 = vpop.f32.mrb[0].mxu0
          %v1893 = vadd.f32 0.0, %v1892
          %1894 = vmatprep.mubr.f32.mxu0 0.0
          %1895 = vmatmul.mubr.f32.gmra.mrb[0].mxu0 %v1409
          %v1896 = vpop.f32.mrb[0].mxu0
          %v1897 = vadd.f32 0.0, %v1896
          %v1898 = vpop.f32.mrb[0].mxu0
          %v1899 = vadd.f32 0.0, %v1898
          %1900 = vmatprep.mubr.f32.mxu0 0.0
          %1901 = vmatmul.mubr.f32.gmra.mrb[0].mxu0 %v1412
          %v1902 = vpop.f32.mrb[0].mxu0
          %v1903 = vadd.f32 0.0, %v1902
          %v1904 = vpop.f32.mrb[0].mxu0
          %v1905 = vadd.f32 0.0, %v1904
          %1906 = vmatprep.mubr.f32.mxu0 0.0
          %1907 = vmatmul.mubr.f32.gmra.mrb[0].mxu0 %v1415
          %v1908 = vpop.f32.mrb[0].mxu0
          %v1909 = vadd.f32 0.0, %v1908
          %v1910 = vpop.f32.mrb[0].mxu0
          %v1911 = vadd.f32 0.0, %v1910
          %1912 = vmatprep.mubr.f32.mxu0 0.0
          %1913 = vmatmul.mubr.f32.gmra.mrb[0].mxu0 %v1418
          %v1914 = vpop.f32.mrb[0].mxu0
          %v1915 = vadd.f32 0.0, %v1914
          %v1916 = vpop.f32.mrb[0].mxu0
          %v1917 = vadd.f32 0.0, %v1916
          %1918 = vmatprep.mubr.f32.mxu0 0.0
          %1919 = vmatmul.mubr.f32.gmra.mrb[0].mxu0 %v1421
          %v1920 = vpop.f32.mrb[0].mxu0
          %v1921 = vadd.f32 0.0, %v1920
          %v1922 = vpop.f32.mrb[0].mxu0
          %v1923 = vadd.f32 0.0, %v1922
          %1924 = vmatprep.mubr.f32.mxu0 0.0
          %1925 = vmatmul.mubr.f32.gmra.mrb[0].mxu0 %v1424
          %v1926 = vpop.f32.mrb[0].mxu0
          %v1927 = vadd.f32 0.0, %v1926
          %v1928 = vpop.f32.mrb[0].mxu0
          %v1929 = vadd.f32 0.0, %v1928
          %1930 = vmatprep.mubr.f32.mxu0 0.0
          %1931 = vmatmul.mubr.f32.gmra.mrb[0].mxu0 %v1427
          %v1932 = vpop.f32.mrb[0].mxu0
          %v1933 = vadd.f32 0.0, %v1932
          %v1934 = vpop.f32.mrb[0].mxu0
          %v1935 = vadd.f32 0.0, %v1934
          %1936 = vmatprep.mubr.f32.mxu0 0.0
          %1937 = vmatmul.mubr.f32.gmra.mrb[0].mxu0 %v1430
          %v1938 = vpop.f32.mrb[0].mxu0
          %v1939 = vadd.f32 0.0, %v1938
          %v1940 = vpop.f32.mrb[0].mxu0
          %v1941 = vadd.f32 0.0, %v1940
          %1942 = vmatprep.mubr.f32.mxu0 0.0
          %1943 = vmatmul.mubr.f32.gmra.mrb[0].mxu0 %v1433
          %v1944 = vpop.f32.mrb[0].mxu0
          %v1945 = vadd.f32 0.0, %v1944
          %v1946 = vpop.f32.mrb[0].mxu0
          %v1947 = vadd.f32 0.0, %v1946
          %1948 = vdwg.mxu0
          %1949 = vmatprep.subr.mxu0 %v1175
          %1950 = vmatpush1.msra.mxu0 %v1174
          %1951 = vmatprep.subr.mxu0 %v1183
          %1952 = vmatpush1.msra.mxu0 %v1182
          %1953 = vmatprep.subr.mxu0 %v1191
          %1954 = vmatpush1.msra.mxu0 %v1190
          %1955 = vmatprep.subr.mxu0 %v1199
          %1956 = vmatpush1.msra.mxu0 %v1198
          %1957 = vmatprep.subr.mxu0 %v1207
          %1958 = vmatpush1.msra.mxu0 %v1206
          %1959 = vmatprep.subr.mxu0 %v1215
          %1960 = vmatpush1.msra.mxu0 %v1214
          %1961 = vmatprep.subr.mxu0 %v1223
          %1962 = vmatpush1.msra.mxu0 %v1222
          %1963 = vmatprep.subr.mxu0 %v1231
          %1964 = vmatpush1.msra.mxu0 %v1230
          %1965 = vmatprep.subr.mxu0 0.0
          %1966 = vmatpush1.msra.mxu0 0.0
          %1967 = vmatprep.subr.mxu0 0.0
          %1968 = vmatpush1.msra.mxu0 0.0
          %1969 = vmatprep.subr.mxu0 0.0
          %1970 = vmatpush1.msra.mxu0 0.0
          %1971 = vmatprep.subr.mxu0 0.0
          %1972 = vmatpush1.msra.mxu0 0.0
          %1973 = vmatprep.subr.mxu0 0.0
          %1974 = vmatpush1.msra.mxu0 0.0
          %1975 = vmatprep.subr.mxu0 0.0
          %1976 = vmatpush1.msra.mxu0 0.0
          %1977 = vmatprep.subr.mxu0 0.0
          %1978 = vmatpush1.msra.mxu0 0.0
          %1979 = vmatprep.subr.mxu0 0.0
          %1980 = vmatpush1.msra.mxu0 0.0
          %1981 = vmatprep.subr.mxu0 0.0
          %1982 = vmatpush1.msra.mxu0 0.0
          %1983 = vmatprep.subr.mxu0 0.0
          %1984 = vmatpush1.msra.mxu0 0.0
          %1985 = vmatprep.subr.mxu0 0.0
          %1986 = vmatpush1.msra.mxu0 0.0
          %1987 = vmatprep.subr.mxu0 0.0
          %1988 = vmatpush1.msra.mxu0 0.0
          %1989 = vmatprep.subr.mxu0 0.0
          %1990 = vmatpush1.msra.mxu0 0.0
          %1991 = vmatprep.subr.mxu0 0.0
          %1992 = vmatpush1.msra.mxu0 0.0
          %1993 = vmatprep.subr.mxu0 0.0
          %1994 = vmatpush1.msra.mxu0 0.0
          %1995 = vmatprep.subr.mxu0 0.0
          %1996 = vmatpush1.msra.mxu0 0.0
          %1997 = vmatprep.subr.mxu0 0.0
          %1998 = vmatpush1.msra.mxu0 0.0
          %1999 = vmatprep.subr.mxu0 0.0
          %2000 = vmatpush1.msra.mxu0 0.0
          %2001 = vmatprep.subr.mxu0 0.0
          %2002 = vmatpush1.msra.mxu0 0.0
          %2003 = vmatprep.subr.mxu0 0.0
          %2004 = vmatpush1.msra.mxu0 0.0
          %2005 = vmatprep.subr.mxu0 0.0
          %2006 = vmatpush1.msra.mxu0 0.0
          %2007 = vmatprep.subr.mxu0 0.0
          %2008 = vmatpush1.msra.mxu0 0.0
          %2009 = vmatprep.subr.mxu0 0.0
          %2010 = vmatpush1.msra.mxu0 0.0
          %2011 = vmatprep.subr.mxu0 0.0
          %2012 = vmatpush1.msra.mxu0 0.0
          %2013 = vmatprep.mubr.f32.mxu0 0.0
          %2014 = vmatmul.mubr.f32.gmra.mrb[0].mxu0 %v1340
          %v2015 = vpop.f32.mrb[0].mxu0
          %v2016 = vadd.f32 0.0, %v2015
          %v2017 = vpop.f32.mrb[0].mxu0
          %v2018 = vadd.f32 0.0, %v2017
          %2019 = vmatprep.mubr.f32.mxu0 0.0
          %2020 = vmatmul.mubr.f32.gmra.mrb[0].mxu0 %v1343
          %v2021 = vpop.f32.mrb[0].mxu0
          %v2022 = vadd.f32 0.0, %v2021
          %v2023 = vpop.f32.mrb[0].mxu0
          %v2024 = vadd.f32 0.0, %v2023
          %2025 = vmatprep.mubr.f32.mxu0 0.0
          %2026 = vmatmul.mubr.f32.gmra.mrb[0].mxu0 %v1346
          %v2027 = vpop.f32.mrb[0].mxu0
          %v2028 = vadd.f32 0.0, %v2027
          %v2029 = vpop.f32.mrb[0].mxu0
          %v2030 = vadd.f32 0.0, %v2029
          %2031 = vmatprep.mubr.f32.mxu0 0.0
          %2032 = vmatmul.mubr.f32.gmra.mrb[0].mxu0 %v1349
          %v2033 = vpop.f32.mrb[0].mxu0
          %v2034 = vadd.f32 0.0, %v2033
          %v2035 = vpop.f32.mrb[0].mxu0
          %v2036 = vadd.f32 0.0, %v2035
          %2037 = vmatprep.mubr.f32.mxu0 0.0
          %2038 = vmatmul.mubr.f32.gmra.mrb[0].mxu0 %v1352
          %v2039 = vpop.f32.mrb[0].mxu0
          %v2040 = vadd.f32 0.0, %v2039
          %v2041 = vpop.f32.mrb[0].mxu0
          %v2042 = vadd.f32 0.0, %v2041
          %2043 = vmatprep.mubr.f32.mxu0 0.0
          %2044 = vmatmul.mubr.f32.gmra.mrb[0].mxu0 %v1355
          %v2045 = vpop.f32.mrb[0].mxu0
          %v2046 = vadd.f32 0.0, %v2045
          %v2047 = vpop.f32.mrb[0].mxu0
          %v2048 = vadd.f32 0.0, %v2047
          %2049 = vmatprep.mubr.f32.mxu0 0.0
          %2050 = vmatmul.mubr.f32.gmra.mrb[0].mxu0 %v1358
          %v2051 = vpop.f32.mrb[0].mxu0
          %v2052 = vadd.f32 0.0, %v2051
          %v2053 = vpop.f32.mrb[0].mxu0
          %v2054 = vadd.f32 0.0, %v2053
          %2055 = vmatprep.mubr.f32.mxu0 0.0
          %2056 = vmatmul.mubr.f32.gmra.mrb[0].mxu0 %v1361
          %v2057 = vpop.f32.mrb[0].mxu0
          %v2058 = vadd.f32 0.0, %v2057
          %v2059 = vpop.f32.mrb[0].mxu0
          %v2060 = vadd.f32 0.0, %v2059
          %2061 = vmatprep.mubr.f32.mxu0 0.0
          %2062 = vmatmul.mubr.f32.gmra.mrb[0].mxu0 %v1364
          %v2063 = vpop.f32.mrb[0].mxu0
          %v2064 = vadd.f32 0.0, %v2063
          %v2065 = vpop.f32.mrb[0].mxu0
          %v2066 = vadd.f32 0.0, %v2065
          %2067 = vmatprep.mubr.f32.mxu0 0.0
          %2068 = vmatmul.mubr.f32.gmra.mrb[0].mxu0 %v1367
          %v2069 = vpop.f32.mrb[0].mxu0
          %v2070 = vadd.f32 0.0, %v2069
          %v2071 = vpop.f32.mrb[0].mxu0
          %v2072 = vadd.f32 0.0, %v2071
          %2073 = vmatprep.mubr.f32.mxu0 0.0
          %2074 = vmatmul.mubr.f32.gmra.mrb[0].mxu0 %v1370
          %v2075 = vpop.f32.mrb[0].mxu0
          %v2076 = vadd.f32 0.0, %v2075
          %v2077 = vpop.f32.mrb[0].mxu0
          %v2078 = vadd.f32 0.0, %v2077
          %2079 = vmatprep.mubr.f32.mxu0 0.0
          %2080 = vmatmul.mubr.f32.gmra.mrb[0].mxu0 %v1373
          %v2081 = vpop.f32.mrb[0].mxu0
          %v2082 = vadd.f32 0.0, %v2081
          %v2083 = vpop.f32.mrb[0].mxu0
          %v2084 = vadd.f32 0.0, %v2083
          %2085 = vmatprep.mubr.f32.mxu0 0.0
          %2086 = vmatmul.mubr.f32.gmra.mrb[0].mxu0 %v1376
          %v2087 = vpop.f32.mrb[0].mxu0
          %v2088 = vadd.f32 0.0, %v2087
          %v2089 = vpop.f32.mrb[0].mxu0
          %v2090 = vadd.f32 0.0, %v2089
          %2091 = vmatprep.mubr.f32.mxu0 0.0
          %2092 = vmatmul.mubr.f32.gmra.mrb[0].mxu0 %v1379
          %v2093 = vpop.f32.mrb[0].mxu0
          %v2094 = vadd.f32 0.0, %v2093
          %v2095 = vpop.f32.mrb[0].mxu0
          %v2096 = vadd.f32 0.0, %v2095
          %2097 = vmatprep.mubr.f32.mxu0 0.0
          %2098 = vmatmul.mubr.f32.gmra.mrb[0].mxu0 %v1382
          %v2099 = vpop.f32.mrb[0].mxu0
          %v2100 = vadd.f32 0.0, %v2099
          %v2101 = vpop.f32.mrb[0].mxu0
          %v2102 = vadd.f32 0.0, %v2101
          %2103 = vmatprep.mubr.f32.mxu0 0.0
          %2104 = vmatmul.mubr.f32.gmra.mrb[0].mxu0 %v1385
          %v2105 = vpop.f32.mrb[0].mxu0
          %v2106 = vadd.f32 0.0, %v2105
          %v2107 = vpop.f32.mrb[0].mxu0
          %v2108 = vadd.f32 0.0, %v2107
          %2109 = vmatprep.mubr.f32.mxu0 0.0
          %2110 = vmatmul.mubr.f32.gmra.mrb[0].mxu0 %v1388
          %v2111 = vpop.f32.mrb[0].mxu0
          %v2112 = vadd.f32 0.0, %v2111
          %v2113 = vpop.f32.mrb[0].mxu0
          %v2114 = vadd.f32 0.0, %v2113
          %2115 = vmatprep.mubr.f32.mxu0 0.0
          %2116 = vmatmul.mubr.f32.gmra.mrb[0].mxu0 %v1391
          %v2117 = vpop.f32.mrb[0].mxu0
          %v2118 = vadd.f32 0.0, %v2117
          %v2119 = vpop.f32.mrb[0].mxu0
          %v2120 = vadd.f32 0.0, %v2119
          %2121 = vmatprep.mubr.f32.mxu0 0.0
          %2122 = vmatmul.mubr.f32.gmra.mrb[0].mxu0 %v1394
          %v2123 = vpop.f32.mrb[0].mxu0
          %v2124 = vadd.f32 0.0, %v2123
          %v2125 = vpop.f32.mrb[0].mxu0
          %v2126 = vadd.f32 0.0, %v2125
          %2127 = vmatprep.mubr.f32.mxu0 0.0
          %2128 = vmatmul.mubr.f32.gmra.mrb[0].mxu0 %v1397
          %v2129 = vpop.f32.mrb[0].mxu0
          %v2130 = vadd.f32 0.0, %v2129
          %v2131 = vpop.f32.mrb[0].mxu0
          %v2132 = vadd.f32 0.0, %v2131
          %2133 = vmatprep.mubr.f32.mxu0 0.0
          %2134 = vmatmul.mubr.f32.gmra.mrb[0].mxu0 %v1400
          %v2135 = vpop.f32.mrb[0].mxu0
          %v2136 = vadd.f32 0.0, %v2135
          %v2137 = vpop.f32.mrb[0].mxu0
          %v2138 = vadd.f32 0.0, %v2137
          %2139 = vmatprep.mubr.f32.mxu0 0.0
          %2140 = vmatmul.mubr.f32.gmra.mrb[0].mxu0 %v1403
          %v2141 = vpop.f32.mrb[0].mxu0
          %v2142 = vadd.f32 0.0, %v2141
          %v2143 = vpop.f32.mrb[0].mxu0
          %v2144 = vadd.f32 0.0, %v2143
          %2145 = vmatprep.mubr.f32.mxu0 0.0
          %2146 = vmatmul.mubr.f32.gmra.mrb[0].mxu0 %v1406
          %v2147 = vpop.f32.mrb[0].mxu0
          %v2148 = vadd.f32 0.0, %v2147
          %v2149 = vpop.f32.mrb[0].mxu0
          %v2150 = vadd.f32 0.0, %v2149
          %2151 = vmatprep.mubr.f32.mxu0 0.0
          %2152 = vmatmul.mubr.f32.gmra.mrb[0].mxu0 %v1409
          %v2153 = vpop.f32.mrb[0].mxu0
          %v2154 = vadd.f32 0.0, %v2153
          %v2155 = vpop.f32.mrb[0].mxu0
          %v2156 = vadd.f32 0.0, %v2155
          %2157 = vmatprep.mubr.f32.mxu0 0.0
          %2158 = vmatmul.mubr.f32.gmra.mrb[0].mxu0 %v1412
          %v2159 = vpop.f32.mrb[0].mxu0
          %v2160 = vadd.f32 0.0, %v2159
          %v2161 = vpop.f32.mrb[0].mxu0
          %v2162 = vadd.f32 0.0, %v2161
          %2163 = vmatprep.mubr.f32.mxu0 0.0
          %2164 = vmatmul.mubr.f32.gmra.mrb[0].mxu0 %v1415
          %v2165 = vpop.f32.mrb[0].mxu0
          %v2166 = vadd.f32 0.0, %v2165
          %v2167 = vpop.f32.mrb[0].mxu0
          %v2168 = vadd.f32 0.0, %v2167
          %2169 = vmatprep.mubr.f32.mxu0 0.0
          %2170 = vmatmul.mubr.f32.gmra.mrb[0].mxu0 %v1418
          %v2171 = vpop.f32.mrb[0].mxu0
          %v2172 = vadd.f32 0.0, %v2171
          %v2173 = vpop.f32.mrb[0].mxu0
          %v2174 = vadd.f32 0.0, %v2173
          %2175 = vmatprep.mubr.f32.mxu0 0.0
          %2176 = vmatmul.mubr.f32.gmra.mrb[0].mxu0 %v1421
          %v2177 = vpop.f32.mrb[0].mxu0
          %v2178 = vadd.f32 0.0, %v2177
          %v2179 = vpop.f32.mrb[0].mxu0
          %v2180 = vadd.f32 0.0, %v2179
          %2181 = vmatprep.mubr.f32.mxu0 0.0
          %2182 = vmatmul.mubr.f32.gmra.mrb[0].mxu0 %v1424
          %v2183 = vpop.f32.mrb[0].mxu0
          %v2184 = vadd.f32 0.0, %v2183
          %v2185 = vpop.f32.mrb[0].mxu0
          %v2186 = vadd.f32 0.0, %v2185
          %2187 = vmatprep.mubr.f32.mxu0 0.0
          %2188 = vmatmul.mubr.f32.gmra.mrb[0].mxu0 %v1427
          %v2189 = vpop.f32.mrb[0].mxu0
          %v2190 = vadd.f32 0.0, %v2189
          %v2191 = vpop.f32.mrb[0].mxu0
          %v2192 = vadd.f32 0.0, %v2191
          %2193 = vmatprep.mubr.f32.mxu0 0.0
          %2194 = vmatmul.mubr.f32.gmra.mrb[0].mxu0 %v1430
          %v2195 = vpop.f32.mrb[0].mxu0
          %v2196 = vadd.f32 0.0, %v2195
          %v2197 = vpop.f32.mrb[0].mxu0
          %v2198 = vadd.f32 0.0, %v2197
          %2199 = vmatprep.mubr.f32.mxu0 0.0
          %2200 = vmatmul.mubr.f32.gmra.mrb[0].mxu0 %v1433
          %v2201 = vpop.f32.mrb[0].mxu0
          %v2202 = vadd.f32 0.0, %v2201
          %v2203 = vpop.f32.mrb[0].mxu0
          %v2204 = vadd.f32 0.0, %v2203
          %2205 = vdwg.mxu0
          %2206 = vmatprep.subr.mxu0 %v1177
          %2207 = vmatpush1.msra.mxu0 %v1176
          %2208 = vmatprep.subr.mxu0 %v1185
          %2209 = vmatpush1.msra.mxu0 %v1184
          %2210 = vmatprep.subr.mxu0 %v1193
          %2211 = vmatpush1.msra.mxu0 %v1192
          %2212 = vmatprep.subr.mxu0 %v1201
          %2213 = vmatpush1.msra.mxu0 %v1200
          %2214 = vmatprep.subr.mxu0 %v1209
          %2215 = vmatpush1.msra.mxu0 %v1208
          %2216 = vmatprep.subr.mxu0 %v1217
          %2217 = vmatpush1.msra.mxu0 %v1216
          %2218 = vmatprep.subr.mxu0 %v1225
          %2219 = vmatpush1.msra.mxu0 %v1224
          %2220 = vmatprep.subr.mxu0 %v1233
          %2221 = vmatpush1.msra.mxu0 %v1232
          %2222 = vmatprep.subr.mxu0 0.0
          %2223 = vmatpush1.msra.mxu0 0.0
          %2224 = vmatprep.subr.mxu0 0.0
          %2225 = vmatpush1.msra.mxu0 0.0
          %2226 = vmatprep.subr.mxu0 0.0
          %2227 = vmatpush1.msra.mxu0 0.0
          %2228 = vmatprep.subr.mxu0 0.0
          %2229 = vmatpush1.msra.mxu0 0.0
          %2230 = vmatprep.subr.mxu0 0.0
          %2231 = vmatpush1.msra.mxu0 0.0
          %2232 = vmatprep.subr.mxu0 0.0
          %2233 = vmatpush1.msra.mxu0 0.0
          %2234 = vmatprep.subr.mxu0 0.0
          %2235 = vmatpush1.msra.mxu0 0.0
          %2236 = vmatprep.subr.mxu0 0.0
          %2237 = vmatpush1.msra.mxu0 0.0
          %2238 = vmatprep.subr.mxu0 0.0
          %2239 = vmatpush1.msra.mxu0 0.0
          %2240 = vmatprep.subr.mxu0 0.0
          %2241 = vmatpush1.msra.mxu0 0.0
          %2242 = vmatprep.subr.mxu0 0.0
          %2243 = vmatpush1.msra.mxu0 0.0
          %2244 = vmatprep.subr.mxu0 0.0
          %2245 = vmatpush1.msra.mxu0 0.0
          %2246 = vmatprep.subr.mxu0 0.0
          %2247 = vmatpush1.msra.mxu0 0.0
          %2248 = vmatprep.subr.mxu0 0.0
          %2249 = vmatpush1.msra.mxu0 0.0
          %2250 = vmatprep.subr.mxu0 0.0
          %2251 = vmatpush1.msra.mxu0 0.0
          %2252 = vmatprep.subr.mxu0 0.0
          %2253 = vmatpush1.msra.mxu0 0.0
          %2254 = vmatprep.subr.mxu0 0.0
          %2255 = vmatpush1.msra.mxu0 0.0
          %2256 = vmatprep.subr.mxu0 0.0
          %2257 = vmatpush1.msra.mxu0 0.0
          %2258 = vmatprep.subr.mxu0 0.0
          %2259 = vmatpush1.msra.mxu0 0.0
          %2260 = vmatprep.subr.mxu0 0.0
          %2261 = vmatpush1.msra.mxu0 0.0
          %2262 = vmatprep.subr.mxu0 0.0
          %2263 = vmatpush1.msra.mxu0 0.0
          %2264 = vmatprep.subr.mxu0 0.0
          %2265 = vmatpush1.msra.mxu0 0.0
          %2266 = vmatprep.subr.mxu0 0.0
          %2267 = vmatpush1.msra.mxu0 0.0
          %2268 = vmatprep.subr.mxu0 0.0
          %2269 = vmatpush1.msra.mxu0 0.0
          %2270 = vmatprep.mubr.f32.mxu0 0.0
          %2271 = vmatmul.mubr.f32.gmra.mrb[0].mxu0 %v1340
          %v2272 = vpop.f32.mrb[0].mxu0
          %v2273 = vadd.f32 0.0, %v2272
          %v2274 = vpop.f32.mrb[0].mxu0
          %v2275 = vadd.f32 0.0, %v2274
          %2276 = vmatprep.mubr.f32.mxu0 0.0
          %2277 = vmatmul.mubr.f32.gmra.mrb[0].mxu0 %v1343
          %v2278 = vpop.f32.mrb[0].mxu0
          %v2279 = vadd.f32 0.0, %v2278
          %v2280 = vpop.f32.mrb[0].mxu0
          %v2281 = vadd.f32 0.0, %v2280
          %2282 = vmatprep.mubr.f32.mxu0 0.0
          %2283 = vmatmul.mubr.f32.gmra.mrb[0].mxu0 %v1346
          %v2284 = vpop.f32.mrb[0].mxu0
          %v2285 = vadd.f32 0.0, %v2284
          %v2286 = vpop.f32.mrb[0].mxu0
          %v2287 = vadd.f32 0.0, %v2286
          %2288 = vmatprep.mubr.f32.mxu0 0.0
          %2289 = vmatmul.mubr.f32.gmra.mrb[0].mxu0 %v1349
          %v2290 = vpop.f32.mrb[0].mxu0
          %v2291 = vadd.f32 0.0, %v2290
          %v2292 = vpop.f32.mrb[0].mxu0
          %v2293 = vadd.f32 0.0, %v2292
          %2294 = vmatprep.mubr.f32.mxu0 0.0
          %2295 = vmatmul.mubr.f32.gmra.mrb[0].mxu0 %v1352
          %v2296 = vpop.f32.mrb[0].mxu0
          %v2297 = vadd.f32 0.0, %v2296
          %v2298 = vpop.f32.mrb[0].mxu0
          %v2299 = vadd.f32 0.0, %v2298
          %2300 = vmatprep.mubr.f32.mxu0 0.0
          %2301 = vmatmul.mubr.f32.gmra.mrb[0].mxu0 %v1355
          %v2302 = vpop.f32.mrb[0].mxu0
          %v2303 = vadd.f32 0.0, %v2302
          %v2304 = vpop.f32.mrb[0].mxu0
          %v2305 = vadd.f32 0.0, %v2304
          %2306 = vmatprep.mubr.f32.mxu0 0.0
          %2307 = vmatmul.mubr.f32.gmra.mrb[0].mxu0 %v1358
          %v2308 = vpop.f32.mrb[0].mxu0
          %v2309 = vadd.f32 0.0, %v2308
          %v2310 = vpop.f32.mrb[0].mxu0
          %v2311 = vadd.f32 0.0, %v2310
          %2312 = vmatprep.mubr.f32.mxu0 0.0
          %2313 = vmatmul.mubr.f32.gmra.mrb[0].mxu0 %v1361
          %v2314 = vpop.f32.mrb[0].mxu0
          %v2315 = vadd.f32 0.0, %v2314
          %v2316 = vpop.f32.mrb[0].mxu0
          %v2317 = vadd.f32 0.0, %v2316
          %2318 = vmatprep.mubr.f32.mxu0 0.0
          %2319 = vmatmul.mubr.f32.gmra.mrb[0].mxu0 %v1364
          %v2320 = vpop.f32.mrb[0].mxu0
          %v2321 = vadd.f32 0.0, %v2320
          %v2322 = vpop.f32.mrb[0].mxu0
          %v2323 = vadd.f32 0.0, %v2322
          %2324 = vmatprep.mubr.f32.mxu0 0.0
          %2325 = vmatmul.mubr.f32.gmra.mrb[0].mxu0 %v1367
          %v2326 = vpop.f32.mrb[0].mxu0
          %v2327 = vadd.f32 0.0, %v2326
          %v2328 = vpop.f32.mrb[0].mxu0
          %v2329 = vadd.f32 0.0, %v2328
          %2330 = vmatprep.mubr.f32.mxu0 0.0
          %2331 = vmatmul.mubr.f32.gmra.mrb[0].mxu0 %v1370
          %v2332 = vpop.f32.mrb[0].mxu0
          %v2333 = vadd.f32 0.0, %v2332
          %v2334 = vpop.f32.mrb[0].mxu0
          %v2335 = vadd.f32 0.0, %v2334
          %2336 = vmatprep.mubr.f32.mxu0 0.0
          %2337 = vmatmul.mubr.f32.gmra.mrb[0].mxu0 %v1373
          %v2338 = vpop.f32.mrb[0].mxu0
          %v2339 = vadd.f32 0.0, %v2338
          %v2340 = vpop.f32.mrb[0].mxu0
          %v2341 = vadd.f32 0.0, %v2340
          %2342 = vmatprep.mubr.f32.mxu0 0.0
          %2343 = vmatmul.mubr.f32.gmra.mrb[0].mxu0 %v1376
          %v2344 = vpop.f32.mrb[0].mxu0
          %v2345 = vadd.f32 0.0, %v2344
          %v2346 = vpop.f32.mrb[0].mxu0
          %v2347 = vadd.f32 0.0, %v2346
          %2348 = vmatprep.mubr.f32.mxu0 0.0
          %2349 = vmatmul.mubr.f32.gmra.mrb[0].mxu0 %v1379
          %v2350 = vpop.f32.mrb[0].mxu0
          %v2351 = vadd.f32 0.0, %v2350
          %v2352 = vpop.f32.mrb[0].mxu0
          %v2353 = vadd.f32 0.0, %v2352
          %2354 = vmatprep.mubr.f32.mxu0 0.0
          %2355 = vmatmul.mubr.f32.gmra.mrb[0].mxu0 %v1382
          %v2356 = vpop.f32.mrb[0].mxu0
          %v2357 = vadd.f32 0.0, %v2356
          %v2358 = vpop.f32.mrb[0].mxu0
          %v2359 = vadd.f32 0.0, %v2358
          %2360 = vmatprep.mubr.f32.mxu0 0.0
          %2361 = vmatmul.mubr.f32.gmra.mrb[0].mxu0 %v1385
          %v2362 = vpop.f32.mrb[0].mxu0
          %v2363 = vadd.f32 0.0, %v2362
          %v2364 = vpop.f32.mrb[0].mxu0
          %v2365 = vadd.f32 0.0, %v2364
          %2366 = vmatprep.mubr.f32.mxu0 0.0
          %2367 = vmatmul.mubr.f32.gmra.mrb[0].mxu0 %v1388
          %v2368 = vpop.f32.mrb[0].mxu0
          %v2369 = vadd.f32 0.0, %v2368
          %v2370 = vpop.f32.mrb[0].mxu0
          %v2371 = vadd.f32 0.0, %v2370
          %2372 = vmatprep.mubr.f32.mxu0 0.0
          %2373 = vmatmul.mubr.f32.gmra.mrb[0].mxu0 %v1391
          %v2374 = vpop.f32.mrb[0].mxu0
          %v2375 = vadd.f32 0.0, %v2374
          %v2376 = vpop.f32.mrb[0].mxu0
          %v2377 = vadd.f32 0.0, %v2376
          %2378 = vmatprep.mubr.f32.mxu0 0.0
          %2379 = vmatmul.mubr.f32.gmra.mrb[0].mxu0 %v1394
          %v2380 = vpop.f32.mrb[0].mxu0
          %v2381 = vadd.f32 0.0, %v2380
          %v2382 = vpop.f32.mrb[0].mxu0
          %v2383 = vadd.f32 0.0, %v2382
          %2384 = vmatprep.mubr.f32.mxu0 0.0
          %2385 = vmatmul.mubr.f32.gmra.mrb[0].mxu0 %v1397
          %v2386 = vpop.f32.mrb[0].mxu0
          %v2387 = vadd.f32 0.0, %v2386
          %v2388 = vpop.f32.mrb[0].mxu0
          %v2389 = vadd.f32 0.0, %v2388
          %2390 = vmatprep.mubr.f32.mxu0 0.0
          %2391 = vmatmul.mubr.f32.gmra.mrb[0].mxu0 %v1400
          %v2392 = vpop.f32.mrb[0].mxu0
          %v2393 = vadd.f32 0.0, %v2392
          %v2394 = vpop.f32.mrb[0].mxu0
          %v2395 = vadd.f32 0.0, %v2394
          %2396 = vmatprep.mubr.f32.mxu0 0.0
          %2397 = vmatmul.mubr.f32.gmra.mrb[0].mxu0 %v1403
          %v2398 = vpop.f32.mrb[0].mxu0
          %v2399 = vadd.f32 0.0, %v2398
          %v2400 = vpop.f32.mrb[0].mxu0
          %v2401 = vadd.f32 0.0, %v2400
          %2402 = vmatprep.mubr.f32.mxu0 0.0
          %2403 = vmatmul.mubr.f32.gmra.mrb[0].mxu0 %v1406
          %v2404 = vpop.f32.mrb[0].mxu0
          %v2405 = vadd.f32 0.0, %v2404
          %v2406 = vpop.f32.mrb[0].mxu0
          %v2407 = vadd.f32 0.0, %v2406
          %2408 = vmatprep.mubr.f32.mxu0 0.0
          %2409 = vmatmul.mubr.f32.gmra.mrb[0].mxu0 %v1409
          %v2410 = vpop.f32.mrb[0].mxu0
          %v2411 = vadd.f32 0.0, %v2410
          %v2412 = vpop.f32.mrb[0].mxu0
          %v2413 = vadd.f32 0.0, %v2412
          %2414 = vmatprep.mubr.f32.mxu0 0.0
          %2415 = vmatmul.mubr.f32.gmra.mrb[0].mxu0 %v1412
          %v2416 = vpop.f32.mrb[0].mxu0
          %v2417 = vadd.f32 0.0, %v2416
          %v2418 = vpop.f32.mrb[0].mxu0
          %v2419 = vadd.f32 0.0, %v2418
          %2420 = vmatprep.mubr.f32.mxu0 0.0
          %2421 = vmatmul.mubr.f32.gmra.mrb[0].mxu0 %v1415
          %v2422 = vpop.f32.mrb[0].mxu0
          %v2423 = vadd.f32 0.0, %v2422
          %v2424 = vpop.f32.mrb[0].mxu0
          %v2425 = vadd.f32 0.0, %v2424
          %2426 = vmatprep.mubr.f32.mxu0 0.0
          %2427 = vmatmul.mubr.f32.gmra.mrb[0].mxu0 %v1418
          %v2428 = vpop.f32.mrb[0].mxu0
          %v2429 = vadd.f32 0.0, %v2428
          %v2430 = vpop.f32.mrb[0].mxu0
          %v2431 = vadd.f32 0.0, %v2430
          %2432 = vmatprep.mubr.f32.mxu0 0.0
          %2433 = vmatmul.mubr.f32.gmra.mrb[0].mxu0 %v1421
          %v2434 = vpop.f32.mrb[0].mxu0
          %v2435 = vadd.f32 0.0, %v2434
          %v2436 = vpop.f32.mrb[0].mxu0
          %v2437 = vadd.f32 0.0, %v2436
          %2438 = vmatprep.mubr.f32.mxu0 0.0
          %2439 = vmatmul.mubr.f32.gmra.mrb[0].mxu0 %v1424
          %v2440 = vpop.f32.mrb[0].mxu0
          %v2441 = vadd.f32 0.0, %v2440
          %v2442 = vpop.f32.mrb[0].mxu0
          %v2443 = vadd.f32 0.0, %v2442
          %2444 = vmatprep.mubr.f32.mxu0 0.0
          %2445 = vmatmul.mubr.f32.gmra.mrb[0].mxu0 %v1427
          %v2446 = vpop.f32.mrb[0].mxu0
          %v2447 = vadd.f32 0.0, %v2446
          %v2448 = vpop.f32.mrb[0].mxu0
          %v2449 = vadd.f32 0.0, %v2448
          %2450 = vmatprep.mubr.f32.mxu0 0.0
          %2451 = vmatmul.mubr.f32.gmra.mrb[0].mxu0 %v1430
          %v2452 = vpop.f32.mrb[0].mxu0
          %v2453 = vadd.f32 0.0, %v2452
          %v2454 = vpop.f32.mrb[0].mxu0
          %v2455 = vadd.f32 0.0, %v2454
          %2456 = vmatprep.mubr.f32.mxu0 0.0
          %2457 = vmatmul.mubr.f32.gmra.mrb[0].mxu0 %v1433
          %v2458 = vpop.f32.mrb[0].mxu0
          %v2459 = vadd.f32 0.0, %v2458
          %v2460 = vpop.f32.mrb[0].mxu0
          %v2461 = vadd.f32 0.0, %v2460
          %2462 = vdwg.mxu0
          %v2463 = vlaneseq
          %v2464 = vshrl.u32 %v2463, 7
          %v2465 = vsub.s32 0, %v2464
          %v2466 = vrot.slane %v1330, %v2465
          %v2467 = vlaneseq
          %v2468 = vshrl.u32 %v2467, 7
          %v2469 = vsub.s32 0, %v2468
          %v2470 = vrot.slane %v1331, %v2469
          %v2471 = vlaneseq
          %v2472 = vshrl.u32 %v2471, 7
          %v2473 = vsub.s32 0, %v2472
          %v2474 = vrot.slane %v1332, %v2473
          %v2475 = vlaneseq
          %v2476 = vshrl.u32 %v2475, 7
          %v2477 = vsub.s32 0, %v2476
          %v2478 = vrot.slane %v1333, %v2477
          %v2479 = vlaneseq
          %v2480 = vshrl.u32 %v2479, 7
          %v2481 = vsub.s32 0, %v2480
          %v2482 = vrot.slane %v1334, %v2481
          %v2483 = vlaneseq
          %v2484 = vshrl.u32 %v2483, 7
          %v2485 = vsub.s32 0, %v2484
          %v2486 = vrot.slane %v1335, %v2485
          %v2487 = vlaneseq
          %v2488 = vshrl.u32 %v2487, 7
          %v2489 = vsub.s32 0, %v2488
          %v2490 = vrot.slane %v1336, %v2489
          %v2491 = vlaneseq
          %v2492 = vshrl.u32 %v2491, 7
          %v2493 = vsub.s32 0, %v2492
          %v2494 = vrot.slane %v1337, %v2493
          %v2495 = vmul.f32 %v1502, %v2466
          %v2496 = vmul.f32 %v1504, %v2470
          %v2497 = vmul.f32 %v1759, %v2474
          %v2498 = vmul.f32 %v1761, %v2478
          %v2499 = vmul.f32 %v2016, %v2482
          %v2500 = vmul.f32 %v2018, %v2486
          %v2501 = vmul.f32 %v2273, %v2490
          %v2502 = vmul.f32 %v2275, %v2494
          %v2503 = vmul.f32 %v1508, %v2466
          %v2504 = vmul.f32 %v1510, %v2470
          %v2505 = vmul.f32 %v1765, %v2474
          %v2506 = vmul.f32 %v1767, %v2478
          %v2507 = vmul.f32 %v2022, %v2482
          %v2508 = vmul.f32 %v2024, %v2486
          %v2509 = vmul.f32 %v2279, %v2490
          %v2510 = vmul.f32 %v2281, %v2494
          %v2511 = vmul.f32 %v1514, %v2466
          %v2512 = vmul.f32 %v1516, %v2470
          %v2513 = vmul.f32 %v1771, %v2474
          %v2514 = vmul.f32 %v1773, %v2478
          %v2515 = vmul.f32 %v2028, %v2482
          %v2516 = vmul.f32 %v2030, %v2486
          %v2517 = vmul.f32 %v2285, %v2490
          %v2518 = vmul.f32 %v2287, %v2494
          %v2519 = vmul.f32 %v1520, %v2466
          %v2520 = vmul.f32 %v1522, %v2470
          %v2521 = vmul.f32 %v1777, %v2474
          %v2522 = vmul.f32 %v1779, %v2478
          %v2523 = vmul.f32 %v2034, %v2482
          %v2524 = vmul.f32 %v2036, %v2486
          %v2525 = vmul.f32 %v2291, %v2490
          %v2526 = vmul.f32 %v2293, %v2494
          %v2527 = vlaneseq
          %v2528 = vshrl.u32 %v2527, 7
          %v2529 = vsub.s32 1, %v2528
          %v2530 = vrot.slane %v1330, %v2529
          %v2531 = vlaneseq
          %v2532 = vshrl.u32 %v2531, 7
          %v2533 = vsub.s32 1, %v2532
          %v2534 = vrot.slane %v1331, %v2533
          %v2535 = vlaneseq
          %v2536 = vshrl.u32 %v2535, 7
          %v2537 = vsub.s32 1, %v2536
          %v2538 = vrot.slane %v1332, %v2537
          %v2539 = vlaneseq
          %v2540 = vshrl.u32 %v2539, 7
          %v2541 = vsub.s32 1, %v2540
          %v2542 = vrot.slane %v1333, %v2541
          %v2543 = vlaneseq
          %v2544 = vshrl.u32 %v2543, 7
          %v2545 = vsub.s32 1, %v2544
          %v2546 = vrot.slane %v1334, %v2545
          %v2547 = vlaneseq
          %v2548 = vshrl.u32 %v2547, 7
          %v2549 = vsub.s32 1, %v2548
          %v2550 = vrot.slane %v1335, %v2549
          %v2551 = vlaneseq
          %v2552 = vshrl.u32 %v2551, 7
          %v2553 = vsub.s32 1, %v2552
          %v2554 = vrot.slane %v1336, %v2553
          %v2555 = vlaneseq
          %v2556 = vshrl.u32 %v2555, 7
          %v2557 = vsub.s32 1, %v2556
          %v2558 = vrot.slane %v1337, %v2557
          %v2559 = vmul.f32 %v1526, %v2530
          %v2560 = vmul.f32 %v1528, %v2534
          %v2561 = vmul.f32 %v1783, %v2538
          %v2562 = vmul.f32 %v1785, %v2542
          %v2563 = vmul.f32 %v2040, %v2546
          %v2564 = vmul.f32 %v2042, %v2550
          %v2565 = vmul.f32 %v2297, %v2554
          %v2566 = vmul.f32 %v2299, %v2558
          %v2567 = vmul.f32 %v1532, %v2530
          %v2568 = vmul.f32 %v1534, %v2534
          %v2569 = vmul.f32 %v1789, %v2538
          %v2570 = vmul.f32 %v1791, %v2542
          %v2571 = vmul.f32 %v2046, %v2546
          %v2572 = vmul.f32 %v2048, %v2550
          %v2573 = vmul.f32 %v2303, %v2554
          %v2574 = vmul.f32 %v2305, %v2558
          %v2575 = vmul.f32 %v1538, %v2530
          %v2576 = vmul.f32 %v1540, %v2534
          %v2577 = vmul.f32 %v1795, %v2538
          %v2578 = vmul.f32 %v1797, %v2542
          %v2579 = vmul.f32 %v2052, %v2546
          %v2580 = vmul.f32 %v2054, %v2550
          %v2581 = vmul.f32 %v2309, %v2554
          %v2582 = vmul.f32 %v2311, %v2558
          %v2583 = vmul.f32 %v1544, %v2530
          %v2584 = vmul.f32 %v1546, %v2534
          %v2585 = vmul.f32 %v1801, %v2538
          %v2586 = vmul.f32 %v1803, %v2542
          %v2587 = vmul.f32 %v2058, %v2546
          %v2588 = vmul.f32 %v2060, %v2550
          %v2589 = vmul.f32 %v2315, %v2554
          %v2590 = vmul.f32 %v2317, %v2558
          %v2591 = vadd.f32 %v2495, %v2559
          %v2592 = vadd.f32 %v2496, %v2560
          %v2593 = vadd.f32 %v2497, %v2561
          %v2594 = vadd.f32 %v2498, %v2562
          %v2595 = vadd.f32 %v2499, %v2563
          %v2596 = vadd.f32 %v2500, %v2564
          %v2597 = vadd.f32 %v2501, %v2565
          %v2598 = vadd.f32 %v2502, %v2566
          %v2599 = vadd.f32 %v2503, %v2567
          %v2600 = vadd.f32 %v2504, %v2568
          %v2601 = vadd.f32 %v2505, %v2569
          %v2602 = vadd.f32 %v2506, %v2570
          %v2603 = vadd.f32 %v2507, %v2571
          %v2604 = vadd.f32 %v2508, %v2572
          %v2605 = vadd.f32 %v2509, %v2573
          %v2606 = vadd.f32 %v2510, %v2574
          %v2607 = vadd.f32 %v2511, %v2575
          %v2608 = vadd.f32 %v2512, %v2576
          %v2609 = vadd.f32 %v2513, %v2577
          %v2610 = vadd.f32 %v2514, %v2578
          %v2611 = vadd.f32 %v2515, %v2579
          %v2612 = vadd.f32 %v2516, %v2580
          %v2613 = vadd.f32 %v2517, %v2581
          %v2614 = vadd.f32 %v2518, %v2582
          %v2615 = vadd.f32 %v2519, %v2583
          %v2616 = vadd.f32 %v2520, %v2584
          %v2617 = vadd.f32 %v2521, %v2585
          %v2618 = vadd.f32 %v2522, %v2586
          %v2619 = vadd.f32 %v2523, %v2587
          %v2620 = vadd.f32 %v2524, %v2588
          %v2621 = vadd.f32 %v2525, %v2589
          %v2622 = vadd.f32 %v2526, %v2590
          %v2623 = vlaneseq
          %v2624 = vshrl.u32 %v2623, 7
          %v2625 = vsub.s32 2, %v2624
          %v2626 = vrot.slane %v1330, %v2625
          %v2627 = vlaneseq
          %v2628 = vshrl.u32 %v2627, 7
          %v2629 = vsub.s32 2, %v2628
          %v2630 = vrot.slane %v1331, %v2629
          %v2631 = vlaneseq
          %v2632 = vshrl.u32 %v2631, 7
          %v2633 = vsub.s32 2, %v2632
          %v2634 = vrot.slane %v1332, %v2633
          %v2635 = vlaneseq
          %v2636 = vshrl.u32 %v2635, 7
          %v2637 = vsub.s32 2, %v2636
          %v2638 = vrot.slane %v1333, %v2637
          %v2639 = vlaneseq
          %v2640 = vshrl.u32 %v2639, 7
          %v2641 = vsub.s32 2, %v2640
          %v2642 = vrot.slane %v1334, %v2641
          %v2643 = vlaneseq
          %v2644 = vshrl.u32 %v2643, 7
          %v2645 = vsub.s32 2, %v2644
          %v2646 = vrot.slane %v1335, %v2645
          %v2647 = vlaneseq
          %v2648 = vshrl.u32 %v2647, 7
          %v2649 = vsub.s32 2, %v2648
          %v2650 = vrot.slane %v1336, %v2649
          %v2651 = vlaneseq
          %v2652 = vshrl.u32 %v2651, 7
          %v2653 = vsub.s32 2, %v2652
          %v2654 = vrot.slane %v1337, %v2653
          %v2655 = vmul.f32 %v1550, %v2626
          %v2656 = vmul.f32 %v1552, %v2630
          %v2657 = vmul.f32 %v1807, %v2634
          %v2658 = vmul.f32 %v1809, %v2638
          %v2659 = vmul.f32 %v2064, %v2642
          %v2660 = vmul.f32 %v2066, %v2646
          %v2661 = vmul.f32 %v2321, %v2650
          %v2662 = vmul.f32 %v2323, %v2654
          %v2663 = vmul.f32 %v1556, %v2626
          %v2664 = vmul.f32 %v1558, %v2630
          %v2665 = vmul.f32 %v1813, %v2634
          %v2666 = vmul.f32 %v1815, %v2638
          %v2667 = vmul.f32 %v2070, %v2642
          %v2668 = vmul.f32 %v2072, %v2646
          %v2669 = vmul.f32 %v2327, %v2650
          %v2670 = vmul.f32 %v2329, %v2654
          %v2671 = vmul.f32 %v1562, %v2626
          %v2672 = vmul.f32 %v1564, %v2630
          %v2673 = vmul.f32 %v1819, %v2634
          %v2674 = vmul.f32 %v1821, %v2638
          %v2675 = vmul.f32 %v2076, %v2642
          %v2676 = vmul.f32 %v2078, %v2646
          %v2677 = vmul.f32 %v2333, %v2650
          %v2678 = vmul.f32 %v2335, %v2654
          %v2679 = vmul.f32 %v1568, %v2626
          %v2680 = vmul.f32 %v1570, %v2630
          %v2681 = vmul.f32 %v1825, %v2634
          %v2682 = vmul.f32 %v1827, %v2638
          %v2683 = vmul.f32 %v2082, %v2642
          %v2684 = vmul.f32 %v2084, %v2646
          %v2685 = vmul.f32 %v2339, %v2650
          %v2686 = vmul.f32 %v2341, %v2654
          %v2687 = vadd.f32 %v2591, %v2655
          %v2688 = vadd.f32 %v2592, %v2656
          %v2689 = vadd.f32 %v2593, %v2657
          %v2690 = vadd.f32 %v2594, %v2658
          %v2691 = vadd.f32 %v2595, %v2659
          %v2692 = vadd.f32 %v2596, %v2660
          %v2693 = vadd.f32 %v2597, %v2661
          %v2694 = vadd.f32 %v2598, %v2662
          %v2695 = vadd.f32 %v2599, %v2663
          %v2696 = vadd.f32 %v2600, %v2664
          %v2697 = vadd.f32 %v2601, %v2665
          %v2698 = vadd.f32 %v2602, %v2666
          %v2699 = vadd.f32 %v2603, %v2667
          %v2700 = vadd.f32 %v2604, %v2668
          %v2701 = vadd.f32 %v2605, %v2669
          %v2702 = vadd.f32 %v2606, %v2670
          %v2703 = vadd.f32 %v2607, %v2671
          %v2704 = vadd.f32 %v2608, %v2672
          %v2705 = vadd.f32 %v2609, %v2673
          %v2706 = vadd.f32 %v2610, %v2674
          %v2707 = vadd.f32 %v2611, %v2675
          %v2708 = vadd.f32 %v2612, %v2676
          %v2709 = vadd.f32 %v2613, %v2677
          %v2710 = vadd.f32 %v2614, %v2678
          %v2711 = vadd.f32 %v2615, %v2679
          %v2712 = vadd.f32 %v2616, %v2680
          %v2713 = vadd.f32 %v2617, %v2681
          %v2714 = vadd.f32 %v2618, %v2682
          %v2715 = vadd.f32 %v2619, %v2683
          %v2716 = vadd.f32 %v2620, %v2684
          %v2717 = vadd.f32 %v2621, %v2685
          %v2718 = vadd.f32 %v2622, %v2686
          %v2719 = vlaneseq
          %v2720 = vshrl.u32 %v2719, 7
          %v2721 = vsub.s32 3, %v2720
          %v2722 = vrot.slane %v1330, %v2721
          %v2723 = vlaneseq
          %v2724 = vshrl.u32 %v2723, 7
          %v2725 = vsub.s32 3, %v2724
          %v2726 = vrot.slane %v1331, %v2725
          %v2727 = vlaneseq
          %v2728 = vshrl.u32 %v2727, 7
          %v2729 = vsub.s32 3, %v2728
          %v2730 = vrot.slane %v1332, %v2729
          %v2731 = vlaneseq
          %v2732 = vshrl.u32 %v2731, 7
          %v2733 = vsub.s32 3, %v2732
          %v2734 = vrot.slane %v1333, %v2733
          %v2735 = vlaneseq
          %v2736 = vshrl.u32 %v2735, 7
          %v2737 = vsub.s32 3, %v2736
          %v2738 = vrot.slane %v1334, %v2737
          %v2739 = vlaneseq
          %v2740 = vshrl.u32 %v2739, 7
          %v2741 = vsub.s32 3, %v2740
          %v2742 = vrot.slane %v1335, %v2741
          %v2743 = vlaneseq
          %v2744 = vshrl.u32 %v2743, 7
          %v2745 = vsub.s32 3, %v2744
          %v2746 = vrot.slane %v1336, %v2745
          %v2747 = vlaneseq
          %v2748 = vshrl.u32 %v2747, 7
          %v2749 = vsub.s32 3, %v2748
          %v2750 = vrot.slane %v1337, %v2749
          %v2751 = vmul.f32 %v1574, %v2722
          %v2752 = vmul.f32 %v1576, %v2726
          %v2753 = vmul.f32 %v1831, %v2730
          %v2754 = vmul.f32 %v1833, %v2734
          %v2755 = vmul.f32 %v2088, %v2738
          %v2756 = vmul.f32 %v2090, %v2742
          %v2757 = vmul.f32 %v2345, %v2746
          %v2758 = vmul.f32 %v2347, %v2750
          %v2759 = vmul.f32 %v1580, %v2722
          %v2760 = vmul.f32 %v1582, %v2726
          %v2761 = vmul.f32 %v1837, %v2730
          %v2762 = vmul.f32 %v1839, %v2734
          %v2763 = vmul.f32 %v2094, %v2738
          %v2764 = vmul.f32 %v2096, %v2742
          %v2765 = vmul.f32 %v2351, %v2746
          %v2766 = vmul.f32 %v2353, %v2750
          %v2767 = vmul.f32 %v1586, %v2722
          %v2768 = vmul.f32 %v1588, %v2726
          %v2769 = vmul.f32 %v1843, %v2730
          %v2770 = vmul.f32 %v1845, %v2734
          %v2771 = vmul.f32 %v2100, %v2738
          %v2772 = vmul.f32 %v2102, %v2742
          %v2773 = vmul.f32 %v2357, %v2746
          %v2774 = vmul.f32 %v2359, %v2750
          %v2775 = vmul.f32 %v1592, %v2722
          %v2776 = vmul.f32 %v1594, %v2726
          %v2777 = vmul.f32 %v1849, %v2730
          %v2778 = vmul.f32 %v1851, %v2734
          %v2779 = vmul.f32 %v2106, %v2738
          %v2780 = vmul.f32 %v2108, %v2742
          %v2781 = vmul.f32 %v2363, %v2746
          %v2782 = vmul.f32 %v2365, %v2750
          %v2783 = vadd.f32 %v2687, %v2751
          %v2784 = vadd.f32 %v2688, %v2752
          %v2785 = vadd.f32 %v2689, %v2753
          %v2786 = vadd.f32 %v2690, %v2754
          %v2787 = vadd.f32 %v2691, %v2755
          %v2788 = vadd.f32 %v2692, %v2756
          %v2789 = vadd.f32 %v2693, %v2757
          %v2790 = vadd.f32 %v2694, %v2758
          %v2791 = vadd.f32 %v2695, %v2759
          %v2792 = vadd.f32 %v2696, %v2760
          %v2793 = vadd.f32 %v2697, %v2761
          %v2794 = vadd.f32 %v2698, %v2762
          %v2795 = vadd.f32 %v2699, %v2763
          %v2796 = vadd.f32 %v2700, %v2764
          %v2797 = vadd.f32 %v2701, %v2765
          %v2798 = vadd.f32 %v2702, %v2766
          %v2799 = vadd.f32 %v2703, %v2767
          %v2800 = vadd.f32 %v2704, %v2768
          %v2801 = vadd.f32 %v2705, %v2769
          %v2802 = vadd.f32 %v2706, %v2770
          %v2803 = vadd.f32 %v2707, %v2771
          %v2804 = vadd.f32 %v2708, %v2772
          %v2805 = vadd.f32 %v2709, %v2773
          %v2806 = vadd.f32 %v2710, %v2774
          %v2807 = vadd.f32 %v2711, %v2775
          %v2808 = vadd.f32 %v2712, %v2776
          %v2809 = vadd.f32 %v2713, %v2777
          %v2810 = vadd.f32 %v2714, %v2778
          %v2811 = vadd.f32 %v2715, %v2779
          %v2812 = vadd.f32 %v2716, %v2780
          %v2813 = vadd.f32 %v2717, %v2781
          %v2814 = vadd.f32 %v2718, %v2782
          %v2815 = vlaneseq
          %v2816 = vshrl.u32 %v2815, 7
          %v2817 = vsub.s32 4, %v2816
          %v2818 = vrot.slane %v1330, %v2817
          %v2819 = vlaneseq
          %v2820 = vshrl.u32 %v2819, 7
          %v2821 = vsub.s32 4, %v2820
          %v2822 = vrot.slane %v1331, %v2821
          %v2823 = vlaneseq
          %v2824 = vshrl.u32 %v2823, 7
          %v2825 = vsub.s32 4, %v2824
          %v2826 = vrot.slane %v1332, %v2825
          %v2827 = vlaneseq
          %v2828 = vshrl.u32 %v2827, 7
          %v2829 = vsub.s32 4, %v2828
          %v2830 = vrot.slane %v1333, %v2829
          %v2831 = vlaneseq
          %v2832 = vshrl.u32 %v2831, 7
          %v2833 = vsub.s32 4, %v2832
          %v2834 = vrot.slane %v1334, %v2833
          %v2835 = vlaneseq
          %v2836 = vshrl.u32 %v2835, 7
          %v2837 = vsub.s32 4, %v2836
          %v2838 = vrot.slane %v1335, %v2837
          %v2839 = vlaneseq
          %v2840 = vshrl.u32 %v2839, 7
          %v2841 = vsub.s32 4, %v2840
          %v2842 = vrot.slane %v1336, %v2841
          %v2843 = vlaneseq
          %v2844 = vshrl.u32 %v2843, 7
          %v2845 = vsub.s32 4, %v2844
          %v2846 = vrot.slane %v1337, %v2845
          %v2847 = vmul.f32 %v1598, %v2818
          %v2848 = vmul.f32 %v1600, %v2822
          %v2849 = vmul.f32 %v1855, %v2826
          %v2850 = vmul.f32 %v1857, %v2830
          %v2851 = vmul.f32 %v2112, %v2834
          %v2852 = vmul.f32 %v2114, %v2838
          %v2853 = vmul.f32 %v2369, %v2842
          %v2854 = vmul.f32 %v2371, %v2846
          %v2855 = vmul.f32 %v1604, %v2818
          %v2856 = vmul.f32 %v1606, %v2822
          %v2857 = vmul.f32 %v1861, %v2826
          %v2858 = vmul.f32 %v1863, %v2830
          %v2859 = vmul.f32 %v2118, %v2834
          %v2860 = vmul.f32 %v2120, %v2838
          %v2861 = vmul.f32 %v2375, %v2842
          %v2862 = vmul.f32 %v2377, %v2846
          %v2863 = vmul.f32 %v1610, %v2818
          %v2864 = vmul.f32 %v1612, %v2822
          %v2865 = vmul.f32 %v1867, %v2826
          %v2866 = vmul.f32 %v1869, %v2830
          %v2867 = vmul.f32 %v2124, %v2834
          %v2868 = vmul.f32 %v2126, %v2838
          %v2869 = vmul.f32 %v2381, %v2842
          %v2870 = vmul.f32 %v2383, %v2846
          %v2871 = vmul.f32 %v1616, %v2818
          %v2872 = vmul.f32 %v1618, %v2822
          %v2873 = vmul.f32 %v1873, %v2826
          %v2874 = vmul.f32 %v1875, %v2830
          %v2875 = vmul.f32 %v2130, %v2834
          %v2876 = vmul.f32 %v2132, %v2838
          %v2877 = vmul.f32 %v2387, %v2842
          %v2878 = vmul.f32 %v2389, %v2846
          %v2879 = vadd.f32 %v2783, %v2847
          %v2880 = vadd.f32 %v2784, %v2848
          %v2881 = vadd.f32 %v2785, %v2849
          %v2882 = vadd.f32 %v2786, %v2850
          %v2883 = vadd.f32 %v2787, %v2851
          %v2884 = vadd.f32 %v2788, %v2852
          %v2885 = vadd.f32 %v2789, %v2853
          %v2886 = vadd.f32 %v2790, %v2854
          %v2887 = vadd.f32 %v2791, %v2855
          %v2888 = vadd.f32 %v2792, %v2856
          %v2889 = vadd.f32 %v2793, %v2857
          %v2890 = vadd.f32 %v2794, %v2858
          %v2891 = vadd.f32 %v2795, %v2859
          %v2892 = vadd.f32 %v2796, %v2860
          %v2893 = vadd.f32 %v2797, %v2861
          %v2894 = vadd.f32 %v2798, %v2862
          %v2895 = vadd.f32 %v2799, %v2863
          %v2896 = vadd.f32 %v2800, %v2864
          %v2897 = vadd.f32 %v2801, %v2865
          %v2898 = vadd.f32 %v2802, %v2866
          %v2899 = vadd.f32 %v2803, %v2867
          %v2900 = vadd.f32 %v2804, %v2868
          %v2901 = vadd.f32 %v2805, %v2869
          %v2902 = vadd.f32 %v2806, %v2870
          %v2903 = vadd.f32 %v2807, %v2871
          %v2904 = vadd.f32 %v2808, %v2872
          %v2905 = vadd.f32 %v2809, %v2873
          %v2906 = vadd.f32 %v2810, %v2874
          %v2907 = vadd.f32 %v2811, %v2875
          %v2908 = vadd.f32 %v2812, %v2876
          %v2909 = vadd.f32 %v2813, %v2877
          %v2910 = vadd.f32 %v2814, %v2878
          %v2911 = vlaneseq
          %v2912 = vshrl.u32 %v2911, 7
          %v2913 = vsub.s32 5, %v2912
          %v2914 = vrot.slane %v1330, %v2913
          %v2915 = vlaneseq
          %v2916 = vshrl.u32 %v2915, 7
          %v2917 = vsub.s32 5, %v2916
          %v2918 = vrot.slane %v1331, %v2917
          %v2919 = vlaneseq
          %v2920 = vshrl.u32 %v2919, 7
          %v2921 = vsub.s32 5, %v2920
          %v2922 = vrot.slane %v1332, %v2921
          %v2923 = vlaneseq
          %v2924 = vshrl.u32 %v2923, 7
          %v2925 = vsub.s32 5, %v2924
          %v2926 = vrot.slane %v1333, %v2925
          %v2927 = vlaneseq
          %v2928 = vshrl.u32 %v2927, 7
          %v2929 = vsub.s32 5, %v2928
          %v2930 = vrot.slane %v1334, %v2929
          %v2931 = vlaneseq
          %v2932 = vshrl.u32 %v2931, 7
          %v2933 = vsub.s32 5, %v2932
          %v2934 = vrot.slane %v1335, %v2933
          %v2935 = vlaneseq
          %v2936 = vshrl.u32 %v2935, 7
          %v2937 = vsub.s32 5, %v2936
          %v2938 = vrot.slane %v1336, %v2937
          %v2939 = vlaneseq
          %v2940 = vshrl.u32 %v2939, 7
          %v2941 = vsub.s32 5, %v2940
          %v2942 = vrot.slane %v1337, %v2941
          %v2943 = vmul.f32 %v1622, %v2914
          %v2944 = vmul.f32 %v1624, %v2918
          %v2945 = vmul.f32 %v1879, %v2922
          %v2946 = vmul.f32 %v1881, %v2926
          %v2947 = vmul.f32 %v2136, %v2930
          %v2948 = vmul.f32 %v2138, %v2934
          %v2949 = vmul.f32 %v2393, %v2938
          %v2950 = vmul.f32 %v2395, %v2942
          %v2951 = vmul.f32 %v1628, %v2914
          %v2952 = vmul.f32 %v1630, %v2918
          %v2953 = vmul.f32 %v1885, %v2922
          %v2954 = vmul.f32 %v1887, %v2926
          %v2955 = vmul.f32 %v2142, %v2930
          %v2956 = vmul.f32 %v2144, %v2934
          %v2957 = vmul.f32 %v2399, %v2938
          %v2958 = vmul.f32 %v2401, %v2942
          %v2959 = vmul.f32 %v1634, %v2914
          %v2960 = vmul.f32 %v1636, %v2918
          %v2961 = vmul.f32 %v1891, %v2922
          %v2962 = vmul.f32 %v1893, %v2926
          %v2963 = vmul.f32 %v2148, %v2930
          %v2964 = vmul.f32 %v2150, %v2934
          %v2965 = vmul.f32 %v2405, %v2938
          %v2966 = vmul.f32 %v2407, %v2942
          %v2967 = vmul.f32 %v1640, %v2914
          %v2968 = vmul.f32 %v1642, %v2918
          %v2969 = vmul.f32 %v1897, %v2922
          %v2970 = vmul.f32 %v1899, %v2926
          %v2971 = vmul.f32 %v2154, %v2930
          %v2972 = vmul.f32 %v2156, %v2934
          %v2973 = vmul.f32 %v2411, %v2938
          %v2974 = vmul.f32 %v2413, %v2942
          %v2975 = vadd.f32 %v2879, %v2943
          %v2976 = vadd.f32 %v2880, %v2944
          %v2977 = vadd.f32 %v2881, %v2945
          %v2978 = vadd.f32 %v2882, %v2946
          %v2979 = vadd.f32 %v2883, %v2947
          %v2980 = vadd.f32 %v2884, %v2948
          %v2981 = vadd.f32 %v2885, %v2949
          %v2982 = vadd.f32 %v2886, %v2950
          %v2983 = vadd.f32 %v2887, %v2951
          %v2984 = vadd.f32 %v2888, %v2952
          %v2985 = vadd.f32 %v2889, %v2953
          %v2986 = vadd.f32 %v2890, %v2954
          %v2987 = vadd.f32 %v2891, %v2955
          %v2988 = vadd.f32 %v2892, %v2956
          %v2989 = vadd.f32 %v2893, %v2957
          %v2990 = vadd.f32 %v2894, %v2958
          %v2991 = vadd.f32 %v2895, %v2959
          %v2992 = vadd.f32 %v2896, %v2960
          %v2993 = vadd.f32 %v2897, %v2961
          %v2994 = vadd.f32 %v2898, %v2962
          %v2995 = vadd.f32 %v2899, %v2963
          %v2996 = vadd.f32 %v2900, %v2964
          %v2997 = vadd.f32 %v2901, %v2965
          %v2998 = vadd.f32 %v2902, %v2966
          %v2999 = vadd.f32 %v2903, %v2967
          %v3000 = vadd.f32 %v2904, %v2968
          %v3001 = vadd.f32 %v2905, %v2969
          %v3002 = vadd.f32 %v2906, %v2970
          %v3003 = vadd.f32 %v2907, %v2971
          %v3004 = vadd.f32 %v2908, %v2972
          %v3005 = vadd.f32 %v2909, %v2973
          %v3006 = vadd.f32 %v2910, %v2974
          %v3007 = vlaneseq
          %v3008 = vshrl.u32 %v3007, 7
          %v3009 = vsub.s32 6, %v3008
          %v3010 = vrot.slane %v1330, %v3009
          %v3011 = vlaneseq
          %v3012 = vshrl.u32 %v3011, 7
          %v3013 = vsub.s32 6, %v3012
          %v3014 = vrot.slane %v1331, %v3013
          %v3015 = vlaneseq
          %v3016 = vshrl.u32 %v3015, 7
          %v3017 = vsub.s32 6, %v3016
          %v3018 = vrot.slane %v1332, %v3017
          %v3019 = vlaneseq
          %v3020 = vshrl.u32 %v3019, 7
          %v3021 = vsub.s32 6, %v3020
          %v3022 = vrot.slane %v1333, %v3021
          %v3023 = vlaneseq
          %v3024 = vshrl.u32 %v3023, 7
          %v3025 = vsub.s32 6, %v3024
          %v3026 = vrot.slane %v1334, %v3025
          %v3027 = vlaneseq
          %v3028 = vshrl.u32 %v3027, 7
          %v3029 = vsub.s32 6, %v3028
          %v3030 = vrot.slane %v1335, %v3029
          %v3031 = vlaneseq
          %v3032 = vshrl.u32 %v3031, 7
          %v3033 = vsub.s32 6, %v3032
          %v3034 = vrot.slane %v1336, %v3033
          %v3035 = vlaneseq
          %v3036 = vshrl.u32 %v3035, 7
          %v3037 = vsub.s32 6, %v3036
          %v3038 = vrot.slane %v1337, %v3037
          %v3039 = vmul.f32 %v1646, %v3010
          %v3040 = vmul.f32 %v1648, %v3014
          %v3041 = vmul.f32 %v1903, %v3018
          %v3042 = vmul.f32 %v1905, %v3022
          %v3043 = vmul.f32 %v2160, %v3026
          %v3044 = vmul.f32 %v2162, %v3030
          %v3045 = vmul.f32 %v2417, %v3034
          %v3046 = vmul.f32 %v2419, %v3038
          %v3047 = vmul.f32 %v1652, %v3010
          %v3048 = vmul.f32 %v1654, %v3014
          %v3049 = vmul.f32 %v1909, %v3018
          %v3050 = vmul.f32 %v1911, %v3022
          %v3051 = vmul.f32 %v2166, %v3026
          %v3052 = vmul.f32 %v2168, %v3030
          %v3053 = vmul.f32 %v2423, %v3034
          %v3054 = vmul.f32 %v2425, %v3038
          %v3055 = vmul.f32 %v1658, %v3010
          %v3056 = vmul.f32 %v1660, %v3014
          %v3057 = vmul.f32 %v1915, %v3018
          %v3058 = vmul.f32 %v1917, %v3022
          %v3059 = vmul.f32 %v2172, %v3026
          %v3060 = vmul.f32 %v2174, %v3030
          %v3061 = vmul.f32 %v2429, %v3034
          %v3062 = vmul.f32 %v2431, %v3038
          %v3063 = vmul.f32 %v1664, %v3010
          %v3064 = vmul.f32 %v1666, %v3014
          %v3065 = vmul.f32 %v1921, %v3018
          %v3066 = vmul.f32 %v1923, %v3022
          %v3067 = vmul.f32 %v2178, %v3026
          %v3068 = vmul.f32 %v2180, %v3030
          %v3069 = vmul.f32 %v2435, %v3034
          %v3070 = vmul.f32 %v2437, %v3038
          %v3071 = vadd.f32 %v2975, %v3039
          %v3072 = vadd.f32 %v2976, %v3040
          %v3073 = vadd.f32 %v2977, %v3041
          %v3074 = vadd.f32 %v2978, %v3042
          %v3075 = vadd.f32 %v2979, %v3043
          %v3076 = vadd.f32 %v2980, %v3044
          %v3077 = vadd.f32 %v2981, %v3045
          %v3078 = vadd.f32 %v2982, %v3046
          %v3079 = vadd.f32 %v2983, %v3047
          %v3080 = vadd.f32 %v2984, %v3048
          %v3081 = vadd.f32 %v2985, %v3049
          %v3082 = vadd.f32 %v2986, %v3050
          %v3083 = vadd.f32 %v2987, %v3051
          %v3084 = vadd.f32 %v2988, %v3052
          %v3085 = vadd.f32 %v2989, %v3053
          %v3086 = vadd.f32 %v2990, %v3054
          %v3087 = vadd.f32 %v2991, %v3055
          %v3088 = vadd.f32 %v2992, %v3056
          %v3089 = vadd.f32 %v2993, %v3057
          %v3090 = vadd.f32 %v2994, %v3058
          %v3091 = vadd.f32 %v2995, %v3059
          %v3092 = vadd.f32 %v2996, %v3060
          %v3093 = vadd.f32 %v2997, %v3061
          %v3094 = vadd.f32 %v2998, %v3062
          %v3095 = vadd.f32 %v2999, %v3063
          %v3096 = vadd.f32 %v3000, %v3064
          %v3097 = vadd.f32 %v3001, %v3065
          %v3098 = vadd.f32 %v3002, %v3066
          %v3099 = vadd.f32 %v3003, %v3067
          %v3100 = vadd.f32 %v3004, %v3068
          %v3101 = vadd.f32 %v3005, %v3069
          %v3102 = vadd.f32 %v3006, %v3070
          %v3103 = vlaneseq
          %v3104 = vshrl.u32 %v3103, 7
          %v3105 = vsub.s32 7, %v3104
          %v3106 = vrot.slane %v1330, %v3105
          %v3107 = vlaneseq
          %v3108 = vshrl.u32 %v3107, 7
          %v3109 = vsub.s32 7, %v3108
          %v3110 = vrot.slane %v1331, %v3109
          %v3111 = vlaneseq
          %v3112 = vshrl.u32 %v3111, 7
          %v3113 = vsub.s32 7, %v3112
          %v3114 = vrot.slane %v1332, %v3113
          %v3115 = vlaneseq
          %v3116 = vshrl.u32 %v3115, 7
          %v3117 = vsub.s32 7, %v3116
          %v3118 = vrot.slane %v1333, %v3117
          %v3119 = vlaneseq
          %v3120 = vshrl.u32 %v3119, 7
          %v3121 = vsub.s32 7, %v3120
          %v3122 = vrot.slane %v1334, %v3121
          %v3123 = vlaneseq
          %v3124 = vshrl.u32 %v3123, 7
          %v3125 = vsub.s32 7, %v3124
          %v3126 = vrot.slane %v1335, %v3125
          %v3127 = vlaneseq
          %v3128 = vshrl.u32 %v3127, 7
          %v3129 = vsub.s32 7, %v3128
          %v3130 = vrot.slane %v1336, %v3129
          %v3131 = vlaneseq
          %v3132 = vshrl.u32 %v3131, 7
          %v3133 = vsub.s32 7, %v3132
          %v3134 = vrot.slane %v1337, %v3133
          %v3135 = vmul.f32 %v1670, %v3106
          %v3136 = vmul.f32 %v1672, %v3110
          %v3137 = vmul.f32 %v1927, %v3114
          %v3138 = vmul.f32 %v1929, %v3118
          %v3139 = vmul.f32 %v2184, %v3122
          %v3140 = vmul.f32 %v2186, %v3126
          %v3141 = vmul.f32 %v2441, %v3130
          %v3142 = vmul.f32 %v2443, %v3134
          %v3143 = vmul.f32 %v1676, %v3106
          %v3144 = vmul.f32 %v1678, %v3110
          %v3145 = vmul.f32 %v1933, %v3114
          %v3146 = vmul.f32 %v1935, %v3118
          %v3147 = vmul.f32 %v2190, %v3122
          %v3148 = vmul.f32 %v2192, %v3126
          %v3149 = vmul.f32 %v2447, %v3130
          %v3150 = vmul.f32 %v2449, %v3134
          %v3151 = vmul.f32 %v1682, %v3106
          %v3152 = vmul.f32 %v1684, %v3110
          %v3153 = vmul.f32 %v1939, %v3114
          %v3154 = vmul.f32 %v1941, %v3118
          %v3155 = vmul.f32 %v2196, %v3122
          %v3156 = vmul.f32 %v2198, %v3126
          %v3157 = vmul.f32 %v2453, %v3130
          %v3158 = vmul.f32 %v2455, %v3134
          %v3159 = vmul.f32 %v1688, %v3106
          %v3160 = vmul.f32 %v1690, %v3110
          %v3161 = vmul.f32 %v1945, %v3114
          %v3162 = vmul.f32 %v1947, %v3118
          %v3163 = vmul.f32 %v2202, %v3122
          %v3164 = vmul.f32 %v2204, %v3126
          %v3165 = vmul.f32 %v2459, %v3130
          %v3166 = vmul.f32 %v2461, %v3134
          %v3167 = vadd.f32 %v3071, %v3135
          %v3168 = vadd.f32 %v3072, %v3136
          %v3169 = vadd.f32 %v3073, %v3137
          %v3170 = vadd.f32 %v3074, %v3138
          %v3171 = vadd.f32 %v3075, %v3139
          %v3172 = vadd.f32 %v3076, %v3140
          %v3173 = vadd.f32 %v3077, %v3141
          %v3174 = vadd.f32 %v3078, %v3142
          %v3175 = vadd.f32 %v3079, %v3143
          %v3176 = vadd.f32 %v3080, %v3144
          %v3177 = vadd.f32 %v3081, %v3145
          %v3178 = vadd.f32 %v3082, %v3146
          %v3179 = vadd.f32 %v3083, %v3147
          %v3180 = vadd.f32 %v3084, %v3148
          %v3181 = vadd.f32 %v3085, %v3149
          %v3182 = vadd.f32 %v3086, %v3150
          %v3183 = vadd.f32 %v3087, %v3151
          %v3184 = vadd.f32 %v3088, %v3152
          %v3185 = vadd.f32 %v3089, %v3153
          %v3186 = vadd.f32 %v3090, %v3154
          %v3187 = vadd.f32 %v3091, %v3155
          %v3188 = vadd.f32 %v3092, %v3156
          %v3189 = vadd.f32 %v3093, %v3157
          %v3190 = vadd.f32 %v3094, %v3158
          %v3191 = vadd.f32 %v3095, %v3159
          %v3192 = vadd.f32 %v3096, %v3160
          %v3193 = vadd.f32 %v3097, %v3161
          %v3194 = vadd.f32 %v3098, %v3162
          %v3195 = vadd.f32 %v3099, %v3163
          %v3196 = vadd.f32 %v3100, %v3164
          %v3197 = vadd.f32 %v3101, %v3165
          %v3198 = vadd.f32 %v3102, %v3166
          %v3199 = vmul.f32 %v482, 2.0
          %v3200 = vmul.f32 %v483, 2.0
          %v3201 = vmul.f32 %v484, 2.0
          %v3202 = vmul.f32 %v485, 2.0
          %v3203 = vmul.f32 %v482, 4.0
          %v3204 = vmul.f32 %v483, 4.0
          %v3205 = vmul.f32 %v484, 4.0
          %v3206 = vmul.f32 %v485, 4.0
          %v3207 = vmul.f32 %v482, 8.0
          %v3208 = vmul.f32 %v483, 8.0
          %v3209 = vmul.f32 %v484, 8.0
          %v3210 = vmul.f32 %v485, 8.0
          %v3215 = vcombine.high %v482, %v482
          %v3216 = vcombine.high %v483, %v483
          %v3217 = vcombine.high %v484, %v484
          %v3218 = vcombine.high %v485, %v485
          %v3227 = vcombine.high %v3199, %v3199
          %v3228 = vcombine.high %v3200, %v3200
          %v3229 = vcombine.high %v3201, %v3201
          %v3230 = vcombine.high %v3202, %v3202
          %v3231 = vrot.slane %v3199, 5
          %v3232 = vrot.slane %v3227, 5
          %v3233 = vrot.slane %v3200, 5
          %v3234 = vrot.slane %v3228, 5
          %v3235 = vrot.slane %v3201, 5
          %v3236 = vrot.slane %v3229, 5
          %v3237 = vrot.slane %v3202, 5
          %v3238 = vrot.slane %v3230, 5
          %v3251 = vcombine.high %v3203, %v3203
          %v3252 = vcombine.high %v3204, %v3204
          %v3253 = vcombine.high %v3205, %v3205
          %v3254 = vcombine.high %v3206, %v3206
          %v3255 = vrot.slane %v3203, 2
          %v3256 = vrot.slane %v3251, 2
          %v3257 = vrot.slane %v3204, 2
          %v3258 = vrot.slane %v3252, 2
          %v3259 = vrot.slane %v3205, 2
          %v3260 = vrot.slane %v3253, 2
          %v3261 = vrot.slane %v3206, 2
          %v3262 = vrot.slane %v3254, 2
          %v3275 = vcombine.high %v3207, %v3207
          %v3276 = vcombine.high %v3208, %v3208
          %v3277 = vcombine.high %v3209, %v3209
          %v3278 = vcombine.high %v3210, %v3210
          %v3279 = vrot.slane %v3207, 7
          %v3280 = vrot.slane %v3275, 7
          %v3281 = vrot.slane %v3208, 7
          %v3282 = vrot.slane %v3276, 7
          %v3283 = vrot.slane %v3209, 7
          %v3284 = vrot.slane %v3277, 7
          %v3285 = vrot.slane %v3210, 7
          %v3286 = vrot.slane %v3278, 7
          %vm3295 = vcmask 1042432
          %v3296 = vsel %vm3295, %v482, %v3231
          %v3297 = vsel %vm3295, %v3215, %v3232
          %v3298 = vsel %vm3295, %v483, %v3233
          %v3299 = vsel %vm3295, %v3216, %v3234
          %v3300 = vsel %vm3295, %v484, %v3235
          %v3301 = vsel %vm3295, %v3217, %v3236
          %v3302 = vsel %vm3295, %v485, %v3237
          %v3303 = vsel %vm3295, %v3218, %v3238
          %vm3304 = vcmask 1045504
          %v3305 = vsel %vm3304, %v3296, %v3255
          %v3306 = vsel %vm3304, %v3297, %v3256
          %v3307 = vsel %vm3304, %v3298, %v3257
          %v3308 = vsel %vm3304, %v3299, %v3258
          %v3309 = vsel %vm3304, %v3300, %v3259
          %v3310 = vsel %vm3304, %v3301, %v3260
          %v3311 = vsel %vm3304, %v3302, %v3261
          %v3312 = vsel %vm3304, %v3303, %v3262
          %vm3313 = vcmask 1040384
          %v3314 = vsel %vm3313, %v3255, %v3279
          %v3315 = vsel %vm3313, %v3256, %v3280
          %v3316 = vsel %vm3313, %v3257, %v3281
          %v3317 = vsel %vm3313, %v3258, %v3282
          %v3318 = vsel %vm3313, %v3259, %v3283
          %v3319 = vsel %vm3313, %v3260, %v3284
          %v3320 = vsel %vm3313, %v3261, %v3285
          %v3321 = vsel %vm3313, %v3262, %v3286
          %v3330 = vcombine.low %v3167, %v3168
          %v3331 = vcombine.low %v3169, %v3170
          %v3332 = vcombine.low %v3171, %v3172
          %v3333 = vcombine.low %v3173, %v3174
          %v3338 = vmul.f32 %v482, %v3330
          %v3339 = vmul.f32 %v483, %v3331
          %v3340 = vmul.f32 %v484, %v3332
          %v3341 = vmul.f32 %v485, %v3333
          %v3342 = vand.u32 2147483647, %v3305
          %vm3343 = vcmp.le.f32.partialorder %v3342, 0.7853982
          %vm3344 = vcmp.lt.s32.totalorder %v3305, 0
          %v3345 = vand.u32 %v3305, 2139095040
          %v3346 = vshrl.u32 %v3345, 23
          %v3347 = vsub.s32 %v3346, 127
          %v3348 = vand.u32 2147483647, %v3305
          %v3349 = vand.u32 %v3348, 8388607
          %v3350 = vor.u32 %v3349, 8388608
          %v3351 = vsub.s32 0, %v3350
          %v3352 = vadd.s32 %v3347, 1
          %vm3353 = vcmp.gt.s32.totalorder %v3352, 0
          %v3354 = vsel %vm3353, %v3352, 0
          %v3355 = vshrl.u32 %v3354, 5
          %v3356 = vand.u32 %v3354, 31
          %v3357 = vsub.s32 32, %v3356
          %v3358 = vshrl.u32 683565275, %v3357
          %v3359 = vshll.u32 683565275, %v3356
          %v3360 = vshrl.u32 2475754826, %v3357
          %v3361 = vor.u32 %v3359, %v3360
          %v3362 = vshll.u32 2475754826, %v3356
          %v3363 = vshrl.u32 2131351028, %v3357
          %v3364 = vor.u32 %v3362, %v3363
          %v3365 = vshll.u32 2131351028, %v3356
          %v3366 = vshrl.u32 2102212464, %v3357
          %v3367 = vor.u32 %v3365, %v3366
          %v3368 = vshll.u32 2102212464, %v3356
          %v3369 = vshrl.u32 920167782, %v3357
          %v3370 = vor.u32 %v3368, %v3369
          %v3371 = vshll.u32 920167782, %v3356
          %v3372 = vshrl.u32 1326507024, %v3357
          %v3373 = vor.u32 %v3371, %v3372
          %vm3374 = vcmp.lt.s32.totalorder %v3355, 1
          %vm3375 = vcmp.lt.s32.totalorder %v3355, 2
          %vm3376 = vcmp.lt.s32.totalorder %v3355, 3
          %vm3377 = vcmp.lt.s32.totalorder %v3355, 4
          %v3378 = vsel %vm3374, %v3358, %v3361
          %v3379 = vsel %vm3377, %v3367, 2102212464
          %v3380 = vsel %vm3376, %v3364, %v3379
          %v3381 = vsel %vm3375, %v3378, %v3380
          %v3382 = vsel %vm3374, %v3361, %v3364
          %v3383 = vsel %vm3377, %v3370, 920167782
          %v3384 = vsel %vm3376, %v3367, %v3383
          %v3385 = vsel %vm3375, %v3382, %v3384
          %v3386 = vsel %vm3374, %v3364, %v3367
          %v3387 = vsel %vm3377, %v3373, 1326507024
          %v3388 = vsel %vm3376, %v3370, %v3387
          %v3389 = vsel %vm3375, %v3386, %v3388
          %v3390 = vshll.u32 %v3350, 8
          %v3391 = vmul.u32.u64.compose %v3390, %v3389
          %v3392 = vextract.low.u32 %v3391
          %v3393 = vextract.high.u32 %v3391
          %v3394 = vmul.u32.u64.compose %v3390, %v3385
          %v3395 = vextract.low.u32 %v3394
          %v3396 = vextract.high.u32 %v3394
          %v3397 = vmul.u32 %v3390, %v3381
          %v3398 = vadd.s32 %v3393, %v3395
          %vm3399 = vc.u32 %v3393, %v3395
          %v3400 = vadd.s32 %v3396, 1
          %v3401 = vsel %vm3399, %v3400, %v3396
          %v3402 = vadd.s32 %v3397, %v3401
          %v3403 = vadd.s32 %v3402, 536870912
          %v3404 = vshrl.u32 %v3403, 30
          %v3405 = vshll.u32 %v3404, 30
          %v3406 = vsub.s32 %v3402, %v3405
          %vm3407 = vcmp.lt.s32.totalorder %v3406, 0
          %v3408 = vsub.s32 0, %v3406
          %v3409 = vsel %vm3407, %v3408, %v3406
          %v3410 = vclz %v3409
          %v3411 = vsub.s32 %v3410, 2
          %vm3412 = vcmp.gt.s32.totalorder 0, %v3411
          %v3413 = vsel %vm3412, 0, %v3411
          %v3414 = vsub.s32 32, %v3413
          %v3415 = vshll.u32 %v3406, %v3413
          %v3416 = vshrl.u32 %v3398, %v3414
          %v3417 = vor.u32 %v3415, %v3416
          %v3418 = vsub.s32 4294967266, %v3413
          %v3419 = vadd.s32 %v3418, 127
          %v3420 = vshll.u32 %v3419, 23
          %v3421 = vor.u32 4788187, %v3420
          %v3422 = vand.u32 2147483647, %v3421
          %v3424 = vcvt.s32.f32 %v3417
          %v3425 = vmul.f32 %v3424, %v3422
          %v3426 = vxor.u32 %v3425, 2147483648
          %v3427 = vsel %vm3344, %v3426, %v3425
          %v3428 = vsub.s32 4, %v3404
          %v3429 = vsel %vm3344, %v3428, %v3404
          %v3430 = vsel %vm3343, %v3305, %v3427
          %v3431 = vsel %vm3343, 0, %v3429
          %v3432 = vcosq.f32.pop %v3430
          %v3433 = vsinq.f32.pop %v3430
          %vm3434 = vweird.f32 %v3305
          %v3435 = vadd.s32 %v3431, 3
          %v3436 = vand.u32 %v3435, 3
          %vm3437 = vcmp.lt.s32.totalorder %v3436, 2
          %vm3438 = vcmp.eq.s32.totalorder %v3436, 0
          %v3439 = vxor.u32 %v3433, 2147483648
          %v3440 = vsel %vm3438, %v3432, %v3439
          %vm3441 = vcmp.eq.s32.totalorder %v3436, 2
          %v3442 = vxor.u32 %v3432, 2147483648
          %v3443 = vsel %vm3441, %v3442, %v3433
          %v3444 = vsel %vm3437, %v3440, %v3443
          %v3445 = vsel %vm3434, nan, %v3444
          %v3446 = vand.u32 2147483647, %v3306
          %vm3447 = vcmp.le.f32.partialorder %v3446, 0.7853982
          %vm3448 = vcmp.lt.s32.totalorder %v3306, 0
          %v3449 = vand.u32 %v3306, 2139095040
          %v3450 = vshrl.u32 %v3449, 23
          %v3451 = vsub.s32 %v3450, 127
          %v3452 = vand.u32 2147483647, %v3306
          %v3453 = vand.u32 %v3452, 8388607
          %v3454 = vor.u32 %v3453, 8388608
          %v3455 = vsub.s32 0, %v3454
          %v3456 = vadd.s32 %v3451, 1
          %vm3457 = vcmp.gt.s32.totalorder %v3456, 0
          %v3458 = vsel %vm3457, %v3456, 0
          %v3459 = vshrl.u32 %v3458, 5
          %v3460 = vand.u32 %v3458, 31
          %v3461 = vsub.s32 32, %v3460
          %v3462 = vshrl.u32 683565275, %v3461
          %v3463 = vshll.u32 683565275, %v3460
          %v3464 = vshrl.u32 2475754826, %v3461
          %v3465 = vor.u32 %v3463, %v3464
          %v3466 = vshll.u32 2475754826, %v3460
          %v3467 = vshrl.u32 2131351028, %v3461
          %v3468 = vor.u32 %v3466, %v3467
          %v3469 = vshll.u32 2131351028, %v3460
          %v3470 = vshrl.u32 2102212464, %v3461
          %v3471 = vor.u32 %v3469, %v3470
          %v3472 = vshll.u32 2102212464, %v3460
          %v3473 = vshrl.u32 920167782, %v3461
          %v3474 = vor.u32 %v3472, %v3473
          %v3475 = vshll.u32 920167782, %v3460
          %v3476 = vshrl.u32 1326507024, %v3461
          %v3477 = vor.u32 %v3475, %v3476
          %vm3478 = vcmp.lt.s32.totalorder %v3459, 1
          %vm3479 = vcmp.lt.s32.totalorder %v3459, 2
          %vm3480 = vcmp.lt.s32.totalorder %v3459, 3
          %vm3481 = vcmp.lt.s32.totalorder %v3459, 4
          %v3482 = vsel %vm3478, %v3462, %v3465
          %v3483 = vsel %vm3481, %v3471, 2102212464
          %v3484 = vsel %vm3480, %v3468, %v3483
          %v3485 = vsel %vm3479, %v3482, %v3484
          %v3486 = vsel %vm3478, %v3465, %v3468
          %v3487 = vsel %vm3481, %v3474, 920167782
          %v3488 = vsel %vm3480, %v3471, %v3487
          %v3489 = vsel %vm3479, %v3486, %v3488
          %v3490 = vsel %vm3478, %v3468, %v3471
          %v3491 = vsel %vm3481, %v3477, 1326507024
          %v3492 = vsel %vm3480, %v3474, %v3491
          %v3493 = vsel %vm3479, %v3490, %v3492
          %v3494 = vshll.u32 %v3454, 8
          %v3495 = vmul.u32.u64.compose %v3494, %v3493
          %v3496 = vextract.low.u32 %v3495
          %v3497 = vextract.high.u32 %v3495
          %v3498 = vmul.u32.u64.compose %v3494, %v3489
          %v3499 = vextract.low.u32 %v3498
          %v3500 = vextract.high.u32 %v3498
          %v3501 = vmul.u32 %v3494, %v3485
          %v3502 = vadd.s32 %v3497, %v3499
          %vm3503 = vc.u32 %v3497, %v3499
          %v3504 = vadd.s32 %v3500, 1
          %v3505 = vsel %vm3503, %v3504, %v3500
          %v3506 = vadd.s32 %v3501, %v3505
          %v3507 = vadd.s32 %v3506, 536870912
          %v3508 = vshrl.u32 %v3507, 30
          %v3509 = vshll.u32 %v3508, 30
          %v3510 = vsub.s32 %v3506, %v3509
          %vm3511 = vcmp.lt.s32.totalorder %v3510, 0
          %v3512 = vsub.s32 0, %v3510
          %v3513 = vsel %vm3511, %v3512, %v3510
          %v3514 = vclz %v3513
          %v3515 = vsub.s32 %v3514, 2
          %vm3516 = vcmp.gt.s32.totalorder 0, %v3515
          %v3517 = vsel %vm3516, 0, %v3515
          %v3518 = vsub.s32 32, %v3517
          %v3519 = vshll.u32 %v3510, %v3517
          %v3520 = vshrl.u32 %v3502, %v3518
          %v3521 = vor.u32 %v3519, %v3520
          %v3522 = vsub.s32 4294967266, %v3517
          %v3523 = vadd.s32 %v3522, 127
          %v3524 = vshll.u32 %v3523, 23
          %v3525 = vor.u32 4788187, %v3524
          %v3526 = vand.u32 2147483647, %v3525
          %v3528 = vcvt.s32.f32 %v3521
          %v3529 = vmul.f32 %v3528, %v3526
          %v3530 = vxor.u32 %v3529, 2147483648
          %v3531 = vsel %vm3448, %v3530, %v3529
          %v3532 = vsub.s32 4, %v3508
          %v3533 = vsel %vm3448, %v3532, %v3508
          %v3534 = vsel %vm3447, %v3306, %v3531
          %v3535 = vsel %vm3447, 0, %v3533
          %v3536 = vcosq.f32.pop %v3534
          %v3537 = vsinq.f32.pop %v3534
          %vm3538 = vweird.f32 %v3306
          %v3539 = vadd.s32 %v3535, 3
          %v3540 = vand.u32 %v3539, 3
          %vm3541 = vcmp.lt.s32.totalorder %v3540, 2
          %vm3542 = vcmp.eq.s32.totalorder %v3540, 0
          %v3543 = vxor.u32 %v3537, 2147483648
          %v3544 = vsel %vm3542, %v3536, %v3543
          %vm3545 = vcmp.eq.s32.totalorder %v3540, 2
          %v3546 = vxor.u32 %v3536, 2147483648
          %v3547 = vsel %vm3545, %v3546, %v3537
          %v3548 = vsel %vm3541, %v3544, %v3547
          %v3549 = vsel %vm3538, nan, %v3548
          %v3550 = vand.u32 2147483647, %v3307
          %vm3551 = vcmp.le.f32.partialorder %v3550, 0.7853982
          %vm3552 = vcmp.lt.s32.totalorder %v3307, 0
          %v3553 = vand.u32 %v3307, 2139095040
          %v3554 = vshrl.u32 %v3553, 23
          %v3555 = vsub.s32 %v3554, 127
          %v3556 = vand.u32 2147483647, %v3307
          %v3557 = vand.u32 %v3556, 8388607
          %v3558 = vor.u32 %v3557, 8388608
          %v3559 = vsub.s32 0, %v3558
          %v3560 = vadd.s32 %v3555, 1
          %vm3561 = vcmp.gt.s32.totalorder %v3560, 0
          %v3562 = vsel %vm3561, %v3560, 0
          %v3563 = vshrl.u32 %v3562, 5
          %v3564 = vand.u32 %v3562, 31
          %v3565 = vsub.s32 32, %v3564
          %v3566 = vshrl.u32 683565275, %v3565
          %v3567 = vshll.u32 683565275, %v3564
          %v3568 = vshrl.u32 2475754826, %v3565
          %v3569 = vor.u32 %v3567, %v3568
          %v3570 = vshll.u32 2475754826, %v3564
          %v3571 = vshrl.u32 2131351028, %v3565
          %v3572 = vor.u32 %v3570, %v3571
          %v3573 = vshll.u32 2131351028, %v3564
          %v3574 = vshrl.u32 2102212464, %v3565
          %v3575 = vor.u32 %v3573, %v3574
          %v3576 = vshll.u32 2102212464, %v3564
          %v3577 = vshrl.u32 920167782, %v3565
          %v3578 = vor.u32 %v3576, %v3577
          %v3579 = vshll.u32 920167782, %v3564
          %v3580 = vshrl.u32 1326507024, %v3565
          %v3581 = vor.u32 %v3579, %v3580
          %vm3582 = vcmp.lt.s32.totalorder %v3563, 1
          %vm3583 = vcmp.lt.s32.totalorder %v3563, 2
          %vm3584 = vcmp.lt.s32.totalorder %v3563, 3
          %vm3585 = vcmp.lt.s32.totalorder %v3563, 4
          %v3586 = vsel %vm3582, %v3566, %v3569
          %v3587 = vsel %vm3585, %v3575, 2102212464
          %v3588 = vsel %vm3584, %v3572, %v3587
          %v3589 = vsel %vm3583, %v3586, %v3588
          %v3590 = vsel %vm3582, %v3569, %v3572
          %v3591 = vsel %vm3585, %v3578, 920167782
          %v3592 = vsel %vm3584, %v3575, %v3591
          %v3593 = vsel %vm3583, %v3590, %v3592
          %v3594 = vsel %vm3582, %v3572, %v3575
          %v3595 = vsel %vm3585, %v3581, 1326507024
          %v3596 = vsel %vm3584, %v3578, %v3595
          %v3597 = vsel %vm3583, %v3594, %v3596
          %v3598 = vshll.u32 %v3558, 8
          %v3599 = vmul.u32.u64.compose %v3598, %v3597
          %v3600 = vextract.low.u32 %v3599
          %v3601 = vextract.high.u32 %v3599
          %v3602 = vmul.u32.u64.compose %v3598, %v3593
          %v3603 = vextract.low.u32 %v3602
          %v3604 = vextract.high.u32 %v3602
          %v3605 = vmul.u32 %v3598, %v3589
          %v3606 = vadd.s32 %v3601, %v3603
          %vm3607 = vc.u32 %v3601, %v3603
          %v3608 = vadd.s32 %v3604, 1
          %v3609 = vsel %vm3607, %v3608, %v3604
          %v3610 = vadd.s32 %v3605, %v3609
          %v3611 = vadd.s32 %v3610, 536870912
          %v3612 = vshrl.u32 %v3611, 30
          %v3613 = vshll.u32 %v3612, 30
          %v3614 = vsub.s32 %v3610, %v3613
          %vm3615 = vcmp.lt.s32.totalorder %v3614, 0
          %v3616 = vsub.s32 0, %v3614
          %v3617 = vsel %vm3615, %v3616, %v3614
          %v3618 = vclz %v3617
          %v3619 = vsub.s32 %v3618, 2
          %vm3620 = vcmp.gt.s32.totalorder 0, %v3619
          %v3621 = vsel %vm3620, 0, %v3619
          %v3622 = vsub.s32 32, %v3621
          %v3623 = vshll.u32 %v3614, %v3621
          %v3624 = vshrl.u32 %v3606, %v3622
          %v3625 = vor.u32 %v3623, %v3624
          %v3626 = vsub.s32 4294967266, %v3621
          %v3627 = vadd.s32 %v3626, 127
          %v3628 = vshll.u32 %v3627, 23
          %v3629 = vor.u32 4788187, %v3628
          %v3630 = vand.u32 2147483647, %v3629
          %v3632 = vcvt.s32.f32 %v3625
          %v3633 = vmul.f32 %v3632, %v3630
          %v3634 = vxor.u32 %v3633, 2147483648
          %v3635 = vsel %vm3552, %v3634, %v3633
          %v3636 = vsub.s32 4, %v3612
          %v3637 = vsel %vm3552, %v3636, %v3612
          %v3638 = vsel %vm3551, %v3307, %v3635
          %v3639 = vsel %vm3551, 0, %v3637
          %v3640 = vcosq.f32.pop %v3638
          %v3641 = vsinq.f32.pop %v3638
          %vm3642 = vweird.f32 %v3307
          %v3643 = vadd.s32 %v3639, 3
          %v3644 = vand.u32 %v3643, 3
          %vm3645 = vcmp.lt.s32.totalorder %v3644, 2
          %vm3646 = vcmp.eq.s32.totalorder %v3644, 0
          %v3647 = vxor.u32 %v3641, 2147483648
          %v3648 = vsel %vm3646, %v3640, %v3647
          %vm3649 = vcmp.eq.s32.totalorder %v3644, 2
          %v3650 = vxor.u32 %v3640, 2147483648
          %v3651 = vsel %vm3649, %v3650, %v3641
          %v3652 = vsel %vm3645, %v3648, %v3651
          %v3653 = vsel %vm3642, nan, %v3652
          %v3654 = vand.u32 2147483647, %v3308
          %vm3655 = vcmp.le.f32.partialorder %v3654, 0.7853982
          %vm3656 = vcmp.lt.s32.totalorder %v3308, 0
          %v3657 = vand.u32 %v3308, 2139095040
          %v3658 = vshrl.u32 %v3657, 23
          %v3659 = vsub.s32 %v3658, 127
          %v3660 = vand.u32 2147483647, %v3308
          %v3661 = vand.u32 %v3660, 8388607
          %v3662 = vor.u32 %v3661, 8388608
          %v3663 = vsub.s32 0, %v3662
          %v3664 = vadd.s32 %v3659, 1
          %vm3665 = vcmp.gt.s32.totalorder %v3664, 0
          %v3666 = vsel %vm3665, %v3664, 0
          %v3667 = vshrl.u32 %v3666, 5
          %v3668 = vand.u32 %v3666, 31
          %v3669 = vsub.s32 32, %v3668
          %v3670 = vshrl.u32 683565275, %v3669
          %v3671 = vshll.u32 683565275, %v3668
          %v3672 = vshrl.u32 2475754826, %v3669
          %v3673 = vor.u32 %v3671, %v3672
          %v3674 = vshll.u32 2475754826, %v3668
          %v3675 = vshrl.u32 2131351028, %v3669
          %v3676 = vor.u32 %v3674, %v3675
          %v3677 = vshll.u32 2131351028, %v3668
          %v3678 = vshrl.u32 2102212464, %v3669
          %v3679 = vor.u32 %v3677, %v3678
          %v3680 = vshll.u32 2102212464, %v3668
          %v3681 = vshrl.u32 920167782, %v3669
          %v3682 = vor.u32 %v3680, %v3681
          %v3683 = vshll.u32 920167782, %v3668
          %v3684 = vshrl.u32 1326507024, %v3669
          %v3685 = vor.u32 %v3683, %v3684
          %vm3686 = vcmp.lt.s32.totalorder %v3667, 1
          %vm3687 = vcmp.lt.s32.totalorder %v3667, 2
          %vm3688 = vcmp.lt.s32.totalorder %v3667, 3
          %vm3689 = vcmp.lt.s32.totalorder %v3667, 4
          %v3690 = vsel %vm3686, %v3670, %v3673
          %v3691 = vsel %vm3689, %v3679, 2102212464
          %v3692 = vsel %vm3688, %v3676, %v3691
          %v3693 = vsel %vm3687, %v3690, %v3692
          %v3694 = vsel %vm3686, %v3673, %v3676
          %v3695 = vsel %vm3689, %v3682, 920167782
          %v3696 = vsel %vm3688, %v3679, %v3695
          %v3697 = vsel %vm3687, %v3694, %v3696
          %v3698 = vsel %vm3686, %v3676, %v3679
          %v3699 = vsel %vm3689, %v3685, 1326507024
          %v3700 = vsel %vm3688, %v3682, %v3699
          %v3701 = vsel %vm3687, %v3698, %v3700
          %v3702 = vshll.u32 %v3662, 8
          %v3703 = vmul.u32.u64.compose %v3702, %v3701
          %v3704 = vextract.low.u32 %v3703
          %v3705 = vextract.high.u32 %v3703
          %v3706 = vmul.u32.u64.compose %v3702, %v3697
          %v3707 = vextract.low.u32 %v3706
          %v3708 = vextract.high.u32 %v3706
          %v3709 = vmul.u32 %v3702, %v3693
          %v3710 = vadd.s32 %v3705, %v3707
          %vm3711 = vc.u32 %v3705, %v3707
          %v3712 = vadd.s32 %v3708, 1
          %v3713 = vsel %vm3711, %v3712, %v3708
          %v3714 = vadd.s32 %v3709, %v3713
          %v3715 = vadd.s32 %v3714, 536870912
          %v3716 = vshrl.u32 %v3715, 30
          %v3717 = vshll.u32 %v3716, 30
          %v3718 = vsub.s32 %v3714, %v3717
          %vm3719 = vcmp.lt.s32.totalorder %v3718, 0
          %v3720 = vsub.s32 0, %v3718
          %v3721 = vsel %vm3719, %v3720, %v3718
          %v3722 = vclz %v3721
          %v3723 = vsub.s32 %v3722, 2
          %vm3724 = vcmp.gt.s32.totalorder 0, %v3723
          %v3725 = vsel %vm3724, 0, %v3723
          %v3726 = vsub.s32 32, %v3725
          %v3727 = vshll.u32 %v3718, %v3725
          %v3728 = vshrl.u32 %v3710, %v3726
          %v3729 = vor.u32 %v3727, %v3728
          %v3730 = vsub.s32 4294967266, %v3725
          %v3731 = vadd.s32 %v3730, 127
          %v3732 = vshll.u32 %v3731, 23
          %v3733 = vor.u32 4788187, %v3732
          %v3734 = vand.u32 2147483647, %v3733
          %v3736 = vcvt.s32.f32 %v3729
          %v3737 = vmul.f32 %v3736, %v3734
          %v3738 = vxor.u32 %v3737, 2147483648
          %v3739 = vsel %vm3656, %v3738, %v3737
          %v3740 = vsub.s32 4, %v3716
          %v3741 = vsel %vm3656, %v3740, %v3716
          %v3742 = vsel %vm3655, %v3308, %v3739
          %v3743 = vsel %vm3655, 0, %v3741
          %v3744 = vcosq.f32.pop %v3742
          %v3745 = vsinq.f32.pop %v3742
          %vm3746 = vweird.f32 %v3308
          %v3747 = vadd.s32 %v3743, 3
          %v3748 = vand.u32 %v3747, 3
          %vm3749 = vcmp.lt.s32.totalorder %v3748, 2
          %vm3750 = vcmp.eq.s32.totalorder %v3748, 0
          %v3751 = vxor.u32 %v3745, 2147483648
          %v3752 = vsel %vm3750, %v3744, %v3751
          %vm3753 = vcmp.eq.s32.totalorder %v3748, 2
          %v3754 = vxor.u32 %v3744, 2147483648
          %v3755 = vsel %vm3753, %v3754, %v3745
          %v3756 = vsel %vm3749, %v3752, %v3755
          %v3757 = vsel %vm3746, nan, %v3756
          %v3758 = vand.u32 2147483647, %v3309
          %vm3759 = vcmp.le.f32.partialorder %v3758, 0.7853982
          %vm3760 = vcmp.lt.s32.totalorder %v3309, 0
          %v3761 = vand.u32 %v3309, 2139095040
          %v3762 = vshrl.u32 %v3761, 23
          %v3763 = vsub.s32 %v3762, 127
          %v3764 = vand.u32 2147483647, %v3309
          %v3765 = vand.u32 %v3764, 8388607
          %v3766 = vor.u32 %v3765, 8388608
          %v3767 = vsub.s32 0, %v3766
          %v3768 = vadd.s32 %v3763, 1
          %vm3769 = vcmp.gt.s32.totalorder %v3768, 0
          %v3770 = vsel %vm3769, %v3768, 0
          %v3771 = vshrl.u32 %v3770, 5
          %v3772 = vand.u32 %v3770, 31
          %v3773 = vsub.s32 32, %v3772
          %v3774 = vshrl.u32 683565275, %v3773
          %v3775 = vshll.u32 683565275, %v3772
          %v3776 = vshrl.u32 2475754826, %v3773
          %v3777 = vor.u32 %v3775, %v3776
          %v3778 = vshll.u32 2475754826, %v3772
          %v3779 = vshrl.u32 2131351028, %v3773
          %v3780 = vor.u32 %v3778, %v3779
          %v3781 = vshll.u32 2131351028, %v3772
          %v3782 = vshrl.u32 2102212464, %v3773
          %v3783 = vor.u32 %v3781, %v3782
          %v3784 = vshll.u32 2102212464, %v3772
          %v3785 = vshrl.u32 920167782, %v3773
          %v3786 = vor.u32 %v3784, %v3785
          %v3787 = vshll.u32 920167782, %v3772
          %v3788 = vshrl.u32 1326507024, %v3773
          %v3789 = vor.u32 %v3787, %v3788
          %vm3790 = vcmp.lt.s32.totalorder %v3771, 1
          %vm3791 = vcmp.lt.s32.totalorder %v3771, 2
          %vm3792 = vcmp.lt.s32.totalorder %v3771, 3
          %vm3793 = vcmp.lt.s32.totalorder %v3771, 4
          %v3794 = vsel %vm3790, %v3774, %v3777
          %v3795 = vsel %vm3793, %v3783, 2102212464
          %v3796 = vsel %vm3792, %v3780, %v3795
          %v3797 = vsel %vm3791, %v3794, %v3796
          %v3798 = vsel %vm3790, %v3777, %v3780
          %v3799 = vsel %vm3793, %v3786, 920167782
          %v3800 = vsel %vm3792, %v3783, %v3799
          %v3801 = vsel %vm3791, %v3798, %v3800
          %v3802 = vsel %vm3790, %v3780, %v3783
          %v3803 = vsel %vm3793, %v3789, 1326507024
          %v3804 = vsel %vm3792, %v3786, %v3803
          %v3805 = vsel %vm3791, %v3802, %v3804
          %v3806 = vshll.u32 %v3766, 8
          %v3807 = vmul.u32.u64.compose %v3806, %v3805
          %v3808 = vextract.low.u32 %v3807
          %v3809 = vextract.high.u32 %v3807
          %v3810 = vmul.u32.u64.compose %v3806, %v3801
          %v3811 = vextract.low.u32 %v3810
          %v3812 = vextract.high.u32 %v3810
          %v3813 = vmul.u32 %v3806, %v3797
          %v3814 = vadd.s32 %v3809, %v3811
          %vm3815 = vc.u32 %v3809, %v3811
          %v3816 = vadd.s32 %v3812, 1
          %v3817 = vsel %vm3815, %v3816, %v3812
          %v3818 = vadd.s32 %v3813, %v3817
          %v3819 = vadd.s32 %v3818, 536870912
          %v3820 = vshrl.u32 %v3819, 30
          %v3821 = vshll.u32 %v3820, 30
          %v3822 = vsub.s32 %v3818, %v3821
          %vm3823 = vcmp.lt.s32.totalorder %v3822, 0
          %v3824 = vsub.s32 0, %v3822
          %v3825 = vsel %vm3823, %v3824, %v3822
          %v3826 = vclz %v3825
          %v3827 = vsub.s32 %v3826, 2
          %vm3828 = vcmp.gt.s32.totalorder 0, %v3827
          %v3829 = vsel %vm3828, 0, %v3827
          %v3830 = vsub.s32 32, %v3829
          %v3831 = vshll.u32 %v3822, %v3829
          %v3832 = vshrl.u32 %v3814, %v3830
          %v3833 = vor.u32 %v3831, %v3832
          %v3834 = vsub.s32 4294967266, %v3829
          %v3835 = vadd.s32 %v3834, 127
          %v3836 = vshll.u32 %v3835, 23
          %v3837 = vor.u32 4788187, %v3836
          %v3838 = vand.u32 2147483647, %v3837
          %v3840 = vcvt.s32.f32 %v3833
          %v3841 = vmul.f32 %v3840, %v3838
          %v3842 = vxor.u32 %v3841, 2147483648
          %v3843 = vsel %vm3760, %v3842, %v3841
          %v3844 = vsub.s32 4, %v3820
          %v3845 = vsel %vm3760, %v3844, %v3820
          %v3846 = vsel %vm3759, %v3309, %v3843
          %v3847 = vsel %vm3759, 0, %v3845
          %v3848 = vcosq.f32.pop %v3846
          %v3849 = vsinq.f32.pop %v3846
          %vm3850 = vweird.f32 %v3309
          %v3851 = vadd.s32 %v3847, 3
          %v3852 = vand.u32 %v3851, 3
          %vm3853 = vcmp.lt.s32.totalorder %v3852, 2
          %vm3854 = vcmp.eq.s32.totalorder %v3852, 0
          %v3855 = vxor.u32 %v3849, 2147483648
          %v3856 = vsel %vm3854, %v3848, %v3855
          %vm3857 = vcmp.eq.s32.totalorder %v3852, 2
          %v3858 = vxor.u32 %v3848, 2147483648
          %v3859 = vsel %vm3857, %v3858, %v3849
          %v3860 = vsel %vm3853, %v3856, %v3859
          %v3861 = vsel %vm3850, nan, %v3860
          %v3862 = vand.u32 2147483647, %v3310
          %vm3863 = vcmp.le.f32.partialorder %v3862, 0.7853982
          %vm3864 = vcmp.lt.s32.totalorder %v3310, 0
          %v3865 = vand.u32 %v3310, 2139095040
          %v3866 = vshrl.u32 %v3865, 23
          %v3867 = vsub.s32 %v3866, 127
          %v3868 = vand.u32 2147483647, %v3310
          %v3869 = vand.u32 %v3868, 8388607
          %v3870 = vor.u32 %v3869, 8388608
          %v3871 = vsub.s32 0, %v3870
          %v3872 = vadd.s32 %v3867, 1
          %vm3873 = vcmp.gt.s32.totalorder %v3872, 0
          %v3874 = vsel %vm3873, %v3872, 0
          %v3875 = vshrl.u32 %v3874, 5
          %v3876 = vand.u32 %v3874, 31
          %v3877 = vsub.s32 32, %v3876
          %v3878 = vshrl.u32 683565275, %v3877
          %v3879 = vshll.u32 683565275, %v3876
          %v3880 = vshrl.u32 2475754826, %v3877
          %v3881 = vor.u32 %v3879, %v3880
          %v3882 = vshll.u32 2475754826, %v3876
          %v3883 = vshrl.u32 2131351028, %v3877
          %v3884 = vor.u32 %v3882, %v3883
          %v3885 = vshll.u32 2131351028, %v3876
          %v3886 = vshrl.u32 2102212464, %v3877
          %v3887 = vor.u32 %v3885, %v3886
          %v3888 = vshll.u32 2102212464, %v3876
          %v3889 = vshrl.u32 920167782, %v3877
          %v3890 = vor.u32 %v3888, %v3889
          %v3891 = vshll.u32 920167782, %v3876
          %v3892 = vshrl.u32 1326507024, %v3877
          %v3893 = vor.u32 %v3891, %v3892
          %vm3894 = vcmp.lt.s32.totalorder %v3875, 1
          %vm3895 = vcmp.lt.s32.totalorder %v3875, 2
          %vm3896 = vcmp.lt.s32.totalorder %v3875, 3
          %vm3897 = vcmp.lt.s32.totalorder %v3875, 4
          %v3898 = vsel %vm3894, %v3878, %v3881
          %v3899 = vsel %vm3897, %v3887, 2102212464
          %v3900 = vsel %vm3896, %v3884, %v3899
          %v3901 = vsel %vm3895, %v3898, %v3900
          %v3902 = vsel %vm3894, %v3881, %v3884
          %v3903 = vsel %vm3897, %v3890, 920167782
          %v3904 = vsel %vm3896, %v3887, %v3903
          %v3905 = vsel %vm3895, %v3902, %v3904
          %v3906 = vsel %vm3894, %v3884, %v3887
          %v3907 = vsel %vm3897, %v3893, 1326507024
          %v3908 = vsel %vm3896, %v3890, %v3907
          %v3909 = vsel %vm3895, %v3906, %v3908
          %v3910 = vshll.u32 %v3870, 8
          %v3911 = vmul.u32.u64.compose %v3910, %v3909
          %v3912 = vextract.low.u32 %v3911
          %v3913 = vextract.high.u32 %v3911
          %v3914 = vmul.u32.u64.compose %v3910, %v3905
          %v3915 = vextract.low.u32 %v3914
          %v3916 = vextract.high.u32 %v3914
          %v3917 = vmul.u32 %v3910, %v3901
          %v3918 = vadd.s32 %v3913, %v3915
          %vm3919 = vc.u32 %v3913, %v3915
          %v3920 = vadd.s32 %v3916, 1
          %v3921 = vsel %vm3919, %v3920, %v3916
          %v3922 = vadd.s32 %v3917, %v3921
          %v3923 = vadd.s32 %v3922, 536870912
          %v3924 = vshrl.u32 %v3923, 30
          %v3925 = vshll.u32 %v3924, 30
          %v3926 = vsub.s32 %v3922, %v3925
          %vm3927 = vcmp.lt.s32.totalorder %v3926, 0
          %v3928 = vsub.s32 0, %v3926
          %v3929 = vsel %vm3927, %v3928, %v3926
          %v3930 = vclz %v3929
          %v3931 = vsub.s32 %v3930, 2
          %vm3932 = vcmp.gt.s32.totalorder 0, %v3931
          %v3933 = vsel %vm3932, 0, %v3931
          %v3934 = vsub.s32 32, %v3933
          %v3935 = vshll.u32 %v3926, %v3933
          %v3936 = vshrl.u32 %v3918, %v3934
          %v3937 = vor.u32 %v3935, %v3936
          %v3938 = vsub.s32 4294967266, %v3933
          %v3939 = vadd.s32 %v3938, 127
          %v3940 = vshll.u32 %v3939, 23
          %v3941 = vor.u32 4788187, %v3940
          %v3942 = vand.u32 2147483647, %v3941
          %v3944 = vcvt.s32.f32 %v3937
          %v3945 = vmul.f32 %v3944, %v3942
          %v3946 = vxor.u32 %v3945, 2147483648
          %v3947 = vsel %vm3864, %v3946, %v3945
          %v3948 = vsub.s32 4, %v3924
          %v3949 = vsel %vm3864, %v3948, %v3924
          %v3950 = vsel %vm3863, %v3310, %v3947
          %v3951 = vsel %vm3863, 0, %v3949
          %v3952 = vcosq.f32.pop %v3950
          %v3953 = vsinq.f32.pop %v3950
          %vm3954 = vweird.f32 %v3310
          %v3955 = vadd.s32 %v3951, 3
          %v3956 = vand.u32 %v3955, 3
          %vm3957 = vcmp.lt.s32.totalorder %v3956, 2
          %vm3958 = vcmp.eq.s32.totalorder %v3956, 0
          %v3959 = vxor.u32 %v3953, 2147483648
          %v3960 = vsel %vm3958, %v3952, %v3959
          %vm3961 = vcmp.eq.s32.totalorder %v3956, 2
          %v3962 = vxor.u32 %v3952, 2147483648
          %v3963 = vsel %vm3961, %v3962, %v3953
          %v3964 = vsel %vm3957, %v3960, %v3963
          %v3965 = vsel %vm3954, nan, %v3964
          %v3966 = vand.u32 2147483647, %v3311
          %vm3967 = vcmp.le.f32.partialorder %v3966, 0.7853982
          %vm3968 = vcmp.lt.s32.totalorder %v3311, 0
          %v3969 = vand.u32 %v3311, 2139095040
          %v3970 = vshrl.u32 %v3969, 23
          %v3971 = vsub.s32 %v3970, 127
          %v3972 = vand.u32 2147483647, %v3311
          %v3973 = vand.u32 %v3972, 8388607
          %v3974 = vor.u32 %v3973, 8388608
          %v3975 = vsub.s32 0, %v3974
          %v3976 = vadd.s32 %v3971, 1
          %vm3977 = vcmp.gt.s32.totalorder %v3976, 0
          %v3978 = vsel %vm3977, %v3976, 0
          %v3979 = vshrl.u32 %v3978, 5
          %v3980 = vand.u32 %v3978, 31
          %v3981 = vsub.s32 32, %v3980
          %v3982 = vshrl.u32 683565275, %v3981
          %v3983 = vshll.u32 683565275, %v3980
          %v3984 = vshrl.u32 2475754826, %v3981
          %v3985 = vor.u32 %v3983, %v3984
          %v3986 = vshll.u32 2475754826, %v3980
          %v3987 = vshrl.u32 2131351028, %v3981
          %v3988 = vor.u32 %v3986, %v3987
          %v3989 = vshll.u32 2131351028, %v3980
          %v3990 = vshrl.u32 2102212464, %v3981
          %v3991 = vor.u32 %v3989, %v3990
          %v3992 = vshll.u32 2102212464, %v3980
          %v3993 = vshrl.u32 920167782, %v3981
          %v3994 = vor.u32 %v3992, %v3993
          %v3995 = vshll.u32 920167782, %v3980
          %v3996 = vshrl.u32 1326507024, %v3981
          %v3997 = vor.u32 %v3995, %v3996
          %vm3998 = vcmp.lt.s32.totalorder %v3979, 1
          %vm3999 = vcmp.lt.s32.totalorder %v3979, 2
          %vm4000 = vcmp.lt.s32.totalorder %v3979, 3
          %vm4001 = vcmp.lt.s32.totalorder %v3979, 4
          %v4002 = vsel %vm3998, %v3982, %v3985
          %v4003 = vsel %vm4001, %v3991, 2102212464
          %v4004 = vsel %vm4000, %v3988, %v4003
          %v4005 = vsel %vm3999, %v4002, %v4004
          %v4006 = vsel %vm3998, %v3985, %v3988
          %v4007 = vsel %vm4001, %v3994, 920167782
          %v4008 = vsel %vm4000, %v3991, %v4007
          %v4009 = vsel %vm3999, %v4006, %v4008
          %v4010 = vsel %vm3998, %v3988, %v3991
          %v4011 = vsel %vm4001, %v3997, 1326507024
          %v4012 = vsel %vm4000, %v3994, %v4011
          %v4013 = vsel %vm3999, %v4010, %v4012
          %v4014 = vshll.u32 %v3974, 8
          %v4015 = vmul.u32.u64.compose %v4014, %v4013
          %v4016 = vextract.low.u32 %v4015
          %v4017 = vextract.high.u32 %v4015
          %v4018 = vmul.u32.u64.compose %v4014, %v4009
          %v4019 = vextract.low.u32 %v4018
          %v4020 = vextract.high.u32 %v4018
          %v4021 = vmul.u32 %v4014, %v4005
          %v4022 = vadd.s32 %v4017, %v4019
          %vm4023 = vc.u32 %v4017, %v4019
          %v4024 = vadd.s32 %v4020, 1
          %v4025 = vsel %vm4023, %v4024, %v4020
          %v4026 = vadd.s32 %v4021, %v4025
          %v4027 = vadd.s32 %v4026, 536870912
          %v4028 = vshrl.u32 %v4027, 30
          %v4029 = vshll.u32 %v4028, 30
          %v4030 = vsub.s32 %v4026, %v4029
          %vm4031 = vcmp.lt.s32.totalorder %v4030, 0
          %v4032 = vsub.s32 0, %v4030
          %v4033 = vsel %vm4031, %v4032, %v4030
          %v4034 = vclz %v4033
          %v4035 = vsub.s32 %v4034, 2
          %vm4036 = vcmp.gt.s32.totalorder 0, %v4035
          %v4037 = vsel %vm4036, 0, %v4035
          %v4038 = vsub.s32 32, %v4037
          %v4039 = vshll.u32 %v4030, %v4037
          %v4040 = vshrl.u32 %v4022, %v4038
          %v4041 = vor.u32 %v4039, %v4040
          %v4042 = vsub.s32 4294967266, %v4037
          %v4043 = vadd.s32 %v4042, 127
          %v4044 = vshll.u32 %v4043, 23
          %v4045 = vor.u32 4788187, %v4044
          %v4046 = vand.u32 2147483647, %v4045
          %v4048 = vcvt.s32.f32 %v4041
          %v4049 = vmul.f32 %v4048, %v4046
          %v4050 = vxor.u32 %v4049, 2147483648
          %v4051 = vsel %vm3968, %v4050, %v4049
          %v4052 = vsub.s32 4, %v4028
          %v4053 = vsel %vm3968, %v4052, %v4028
          %v4054 = vsel %vm3967, %v3311, %v4051
          %v4055 = vsel %vm3967, 0, %v4053
          %v4056 = vcosq.f32.pop %v4054
          %v4057 = vsinq.f32.pop %v4054
          %vm4058 = vweird.f32 %v3311
          %v4059 = vadd.s32 %v4055, 3
          %v4060 = vand.u32 %v4059, 3
          %vm4061 = vcmp.lt.s32.totalorder %v4060, 2
          %vm4062 = vcmp.eq.s32.totalorder %v4060, 0
          %v4063 = vxor.u32 %v4057, 2147483648
          %v4064 = vsel %vm4062, %v4056, %v4063
          %vm4065 = vcmp.eq.s32.totalorder %v4060, 2
          %v4066 = vxor.u32 %v4056, 2147483648
          %v4067 = vsel %vm4065, %v4066, %v4057
          %v4068 = vsel %vm4061, %v4064, %v4067
          %v4069 = vsel %vm4058, nan, %v4068
          %v4070 = vand.u32 2147483647, %v3312
          %vm4071 = vcmp.le.f32.partialorder %v4070, 0.7853982
          %vm4072 = vcmp.lt.s32.totalorder %v3312, 0
          %v4073 = vand.u32 %v3312, 2139095040
          %v4074 = vshrl.u32 %v4073, 23
          %v4075 = vsub.s32 %v4074, 127
          %v4076 = vand.u32 2147483647, %v3312
          %v4077 = vand.u32 %v4076, 8388607
          %v4078 = vor.u32 %v4077, 8388608
          %v4079 = vsub.s32 0, %v4078
          %v4080 = vadd.s32 %v4075, 1
          %vm4081 = vcmp.gt.s32.totalorder %v4080, 0
          %v4082 = vsel %vm4081, %v4080, 0
          %v4083 = vshrl.u32 %v4082, 5
          %v4084 = vand.u32 %v4082, 31
          %v4085 = vsub.s32 32, %v4084
          %v4086 = vshrl.u32 683565275, %v4085
          %v4087 = vshll.u32 683565275, %v4084
          %v4088 = vshrl.u32 2475754826, %v4085
          %v4089 = vor.u32 %v4087, %v4088
          %v4090 = vshll.u32 2475754826, %v4084
          %v4091 = vshrl.u32 2131351028, %v4085
          %v4092 = vor.u32 %v4090, %v4091
          %v4093 = vshll.u32 2131351028, %v4084
          %v4094 = vshrl.u32 2102212464, %v4085
          %v4095 = vor.u32 %v4093, %v4094
          %v4096 = vshll.u32 2102212464, %v4084
          %v4097 = vshrl.u32 920167782, %v4085
          %v4098 = vor.u32 %v4096, %v4097
          %v4099 = vshll.u32 920167782, %v4084
          %v4100 = vshrl.u32 1326507024, %v4085
          %v4101 = vor.u32 %v4099, %v4100
          %vm4102 = vcmp.lt.s32.totalorder %v4083, 1
          %vm4103 = vcmp.lt.s32.totalorder %v4083, 2
          %vm4104 = vcmp.lt.s32.totalorder %v4083, 3
          %vm4105 = vcmp.lt.s32.totalorder %v4083, 4
          %v4106 = vsel %vm4102, %v4086, %v4089
          %v4107 = vsel %vm4105, %v4095, 2102212464
          %v4108 = vsel %vm4104, %v4092, %v4107
          %v4109 = vsel %vm4103, %v4106, %v4108
          %v4110 = vsel %vm4102, %v4089, %v4092
          %v4111 = vsel %vm4105, %v4098, 920167782
          %v4112 = vsel %vm4104, %v4095, %v4111
          %v4113 = vsel %vm4103, %v4110, %v4112
          %v4114 = vsel %vm4102, %v4092, %v4095
          %v4115 = vsel %vm4105, %v4101, 1326507024
          %v4116 = vsel %vm4104, %v4098, %v4115
          %v4117 = vsel %vm4103, %v4114, %v4116
          %v4118 = vshll.u32 %v4078, 8
          %v4119 = vmul.u32.u64.compose %v4118, %v4117
          %v4120 = vextract.low.u32 %v4119
          %v4121 = vextract.high.u32 %v4119
          %v4122 = vmul.u32.u64.compose %v4118, %v4113
          %v4123 = vextract.low.u32 %v4122
          %v4124 = vextract.high.u32 %v4122
          %v4125 = vmul.u32 %v4118, %v4109
          %v4126 = vadd.s32 %v4121, %v4123
          %vm4127 = vc.u32 %v4121, %v4123
          %v4128 = vadd.s32 %v4124, 1
          %v4129 = vsel %vm4127, %v4128, %v4124
          %v4130 = vadd.s32 %v4125, %v4129
          %v4131 = vadd.s32 %v4130, 536870912
          %v4132 = vshrl.u32 %v4131, 30
          %v4133 = vshll.u32 %v4132, 30
          %v4134 = vsub.s32 %v4130, %v4133
          %vm4135 = vcmp.lt.s32.totalorder %v4134, 0
          %v4136 = vsub.s32 0, %v4134
          %v4137 = vsel %vm4135, %v4136, %v4134
          %v4138 = vclz %v4137
          %v4139 = vsub.s32 %v4138, 2
          %vm4140 = vcmp.gt.s32.totalorder 0, %v4139
          %v4141 = vsel %vm4140, 0, %v4139
          %v4142 = vsub.s32 32, %v4141
          %v4143 = vshll.u32 %v4134, %v4141
          %v4144 = vshrl.u32 %v4126, %v4142
          %v4145 = vor.u32 %v4143, %v4144
          %v4146 = vsub.s32 4294967266, %v4141
          %v4147 = vadd.s32 %v4146, 127
          %v4148 = vshll.u32 %v4147, 23
          %v4149 = vor.u32 4788187, %v4148
          %v4150 = vand.u32 2147483647, %v4149
          %v4152 = vcvt.s32.f32 %v4145
          %v4153 = vmul.f32 %v4152, %v4150
          %v4154 = vxor.u32 %v4153, 2147483648
          %v4155 = vsel %vm4072, %v4154, %v4153
          %v4156 = vsub.s32 4, %v4132
          %v4157 = vsel %vm4072, %v4156, %v4132
          %v4158 = vsel %vm4071, %v3312, %v4155
          %v4159 = vsel %vm4071, 0, %v4157
          %v4160 = vcosq.f32.pop %v4158
          %v4161 = vsinq.f32.pop %v4158
          %vm4162 = vweird.f32 %v3312
          %v4163 = vadd.s32 %v4159, 3
          %v4164 = vand.u32 %v4163, 3
          %vm4165 = vcmp.lt.s32.totalorder %v4164, 2
          %vm4166 = vcmp.eq.s32.totalorder %v4164, 0
          %v4167 = vxor.u32 %v4161, 2147483648
          %v4168 = vsel %vm4166, %v4160, %v4167
          %vm4169 = vcmp.eq.s32.totalorder %v4164, 2
          %v4170 = vxor.u32 %v4160, 2147483648
          %v4171 = vsel %vm4169, %v4170, %v4161
          %v4172 = vsel %vm4165, %v4168, %v4171
          %v4173 = vsel %vm4162, nan, %v4172
          %v4174 = vand.u32 2147483647, %v3314
          %vm4175 = vcmp.le.f32.partialorder %v4174, 0.7853982
          %vm4176 = vcmp.lt.s32.totalorder %v3314, 0
          %v4177 = vand.u32 %v3314, 2139095040
          %v4178 = vshrl.u32 %v4177, 23
          %v4179 = vsub.s32 %v4178, 127
          %v4180 = vand.u32 2147483647, %v3314
          %v4181 = vand.u32 %v4180, 8388607
          %v4182 = vor.u32 %v4181, 8388608
          %v4183 = vsub.s32 0, %v4182
          %v4184 = vadd.s32 %v4179, 1
          %vm4185 = vcmp.gt.s32.totalorder %v4184, 0
          %v4186 = vsel %vm4185, %v4184, 0
          %v4187 = vshrl.u32 %v4186, 5
          %v4188 = vand.u32 %v4186, 31
          %v4189 = vsub.s32 32, %v4188
          %v4190 = vshrl.u32 683565275, %v4189
          %v4191 = vshll.u32 683565275, %v4188
          %v4192 = vshrl.u32 2475754826, %v4189
          %v4193 = vor.u32 %v4191, %v4192
          %v4194 = vshll.u32 2475754826, %v4188
          %v4195 = vshrl.u32 2131351028, %v4189
          %v4196 = vor.u32 %v4194, %v4195
          %v4197 = vshll.u32 2131351028, %v4188
          %v4198 = vshrl.u32 2102212464, %v4189
          %v4199 = vor.u32 %v4197, %v4198
          %v4200 = vshll.u32 2102212464, %v4188
          %v4201 = vshrl.u32 920167782, %v4189
          %v4202 = vor.u32 %v4200, %v4201
          %v4203 = vshll.u32 920167782, %v4188
          %v4204 = vshrl.u32 1326507024, %v4189
          %v4205 = vor.u32 %v4203, %v4204
          %vm4206 = vcmp.lt.s32.totalorder %v4187, 1
          %vm4207 = vcmp.lt.s32.totalorder %v4187, 2
          %vm4208 = vcmp.lt.s32.totalorder %v4187, 3
          %vm4209 = vcmp.lt.s32.totalorder %v4187, 4
          %v4210 = vsel %vm4206, %v4190, %v4193
          %v4211 = vsel %vm4209, %v4199, 2102212464
          %v4212 = vsel %vm4208, %v4196, %v4211
          %v4213 = vsel %vm4207, %v4210, %v4212
          %v4214 = vsel %vm4206, %v4193, %v4196
          %v4215 = vsel %vm4209, %v4202, 920167782
          %v4216 = vsel %vm4208, %v4199, %v4215
          %v4217 = vsel %vm4207, %v4214, %v4216
          %v4218 = vsel %vm4206, %v4196, %v4199
          %v4219 = vsel %vm4209, %v4205, 1326507024
          %v4220 = vsel %vm4208, %v4202, %v4219
          %v4221 = vsel %vm4207, %v4218, %v4220
          %v4222 = vshll.u32 %v4182, 8
          %v4223 = vmul.u32.u64.compose %v4222, %v4221
          %v4224 = vextract.low.u32 %v4223
          %v4225 = vextract.high.u32 %v4223
          %v4226 = vmul.u32.u64.compose %v4222, %v4217
          %v4227 = vextract.low.u32 %v4226
          %v4228 = vextract.high.u32 %v4226
          %v4229 = vmul.u32 %v4222, %v4213
          %v4230 = vadd.s32 %v4225, %v4227
          %vm4231 = vc.u32 %v4225, %v4227
          %v4232 = vadd.s32 %v4228, 1
          %v4233 = vsel %vm4231, %v4232, %v4228
          %v4234 = vadd.s32 %v4229, %v4233
          %v4235 = vadd.s32 %v4234, 536870912
          %v4236 = vshrl.u32 %v4235, 30
          %v4237 = vshll.u32 %v4236, 30
          %v4238 = vsub.s32 %v4234, %v4237
          %vm4239 = vcmp.lt.s32.totalorder %v4238, 0
          %v4240 = vsub.s32 0, %v4238
          %v4241 = vsel %vm4239, %v4240, %v4238
          %v4242 = vclz %v4241
          %v4243 = vsub.s32 %v4242, 2
          %vm4244 = vcmp.gt.s32.totalorder 0, %v4243
          %v4245 = vsel %vm4244, 0, %v4243
          %v4246 = vsub.s32 32, %v4245
          %v4247 = vshll.u32 %v4238, %v4245
          %v4248 = vshrl.u32 %v4230, %v4246
          %v4249 = vor.u32 %v4247, %v4248
          %v4250 = vsub.s32 4294967266, %v4245
          %v4251 = vadd.s32 %v4250, 127
          %v4252 = vshll.u32 %v4251, 23
          %v4253 = vor.u32 4788187, %v4252
          %v4254 = vand.u32 2147483647, %v4253
          %v4256 = vcvt.s32.f32 %v4249
          %v4257 = vmul.f32 %v4256, %v4254
          %v4258 = vxor.u32 %v4257, 2147483648
          %v4259 = vsel %vm4176, %v4258, %v4257
          %v4260 = vsub.s32 4, %v4236
          %v4261 = vsel %vm4176, %v4260, %v4236
          %v4262 = vsel %vm4175, %v3314, %v4259
          %v4263 = vsel %vm4175, 0, %v4261
          %v4264 = vcosq.f32.pop %v4262
          %v4265 = vsinq.f32.pop %v4262
          %vm4266 = vweird.f32 %v3314
          %v4267 = vadd.s32 %v4263, 3
          %v4268 = vand.u32 %v4267, 3
          %vm4269 = vcmp.lt.s32.totalorder %v4268, 2
          %vm4270 = vcmp.eq.s32.totalorder %v4268, 0
          %v4271 = vxor.u32 %v4265, 2147483648
          %v4272 = vsel %vm4270, %v4264, %v4271
          %vm4273 = vcmp.eq.s32.totalorder %v4268, 2
          %v4274 = vxor.u32 %v4264, 2147483648
          %v4275 = vsel %vm4273, %v4274, %v4265
          %v4276 = vsel %vm4269, %v4272, %v4275
          %v4277 = vsel %vm4266, nan, %v4276
          %v4278 = vand.u32 2147483647, %v3315
          %vm4279 = vcmp.le.f32.partialorder %v4278, 0.7853982
          %vm4280 = vcmp.lt.s32.totalorder %v3315, 0
          %v4281 = vand.u32 %v3315, 2139095040
          %v4282 = vshrl.u32 %v4281, 23
          %v4283 = vsub.s32 %v4282, 127
          %v4284 = vand.u32 2147483647, %v3315
          %v4285 = vand.u32 %v4284, 8388607
          %v4286 = vor.u32 %v4285, 8388608
          %v4287 = vsub.s32 0, %v4286
          %v4288 = vadd.s32 %v4283, 1
          %vm4289 = vcmp.gt.s32.totalorder %v4288, 0
          %v4290 = vsel %vm4289, %v4288, 0
          %v4291 = vshrl.u32 %v4290, 5
          %v4292 = vand.u32 %v4290, 31
          %v4293 = vsub.s32 32, %v4292
          %v4294 = vshrl.u32 683565275, %v4293
          %v4295 = vshll.u32 683565275, %v4292
          %v4296 = vshrl.u32 2475754826, %v4293
          %v4297 = vor.u32 %v4295, %v4296
          %v4298 = vshll.u32 2475754826, %v4292
          %v4299 = vshrl.u32 2131351028, %v4293
          %v4300 = vor.u32 %v4298, %v4299
          %v4301 = vshll.u32 2131351028, %v4292
          %v4302 = vshrl.u32 2102212464, %v4293
          %v4303 = vor.u32 %v4301, %v4302
          %v4304 = vshll.u32 2102212464, %v4292
          %v4305 = vshrl.u32 920167782, %v4293
          %v4306 = vor.u32 %v4304, %v4305
          %v4307 = vshll.u32 920167782, %v4292
          %v4308 = vshrl.u32 1326507024, %v4293
          %v4309 = vor.u32 %v4307, %v4308
          %vm4310 = vcmp.lt.s32.totalorder %v4291, 1
          %vm4311 = vcmp.lt.s32.totalorder %v4291, 2
          %vm4312 = vcmp.lt.s32.totalorder %v4291, 3
          %vm4313 = vcmp.lt.s32.totalorder %v4291, 4
          %v4314 = vsel %vm4310, %v4294, %v4297
          %v4315 = vsel %vm4313, %v4303, 2102212464
          %v4316 = vsel %vm4312, %v4300, %v4315
          %v4317 = vsel %vm4311, %v4314, %v4316
          %v4318 = vsel %vm4310, %v4297, %v4300
          %v4319 = vsel %vm4313, %v4306, 920167782
          %v4320 = vsel %vm4312, %v4303, %v4319
          %v4321 = vsel %vm4311, %v4318, %v4320
          %v4322 = vsel %vm4310, %v4300, %v4303
          %v4323 = vsel %vm4313, %v4309, 1326507024
          %v4324 = vsel %vm4312, %v4306, %v4323
          %v4325 = vsel %vm4311, %v4322, %v4324
          %v4326 = vshll.u32 %v4286, 8
          %v4327 = vmul.u32.u64.compose %v4326, %v4325
          %v4328 = vextract.low.u32 %v4327
          %v4329 = vextract.high.u32 %v4327
          %v4330 = vmul.u32.u64.compose %v4326, %v4321
          %v4331 = vextract.low.u32 %v4330
          %v4332 = vextract.high.u32 %v4330
          %v4333 = vmul.u32 %v4326, %v4317
          %v4334 = vadd.s32 %v4329, %v4331
          %vm4335 = vc.u32 %v4329, %v4331
          %v4336 = vadd.s32 %v4332, 1
          %v4337 = vsel %vm4335, %v4336, %v4332
          %v4338 = vadd.s32 %v4333, %v4337
          %v4339 = vadd.s32 %v4338, 536870912
          %v4340 = vshrl.u32 %v4339, 30
          %v4341 = vshll.u32 %v4340, 30
          %v4342 = vsub.s32 %v4338, %v4341
          %vm4343 = vcmp.lt.s32.totalorder %v4342, 0
          %v4344 = vsub.s32 0, %v4342
          %v4345 = vsel %vm4343, %v4344, %v4342
          %v4346 = vclz %v4345
          %v4347 = vsub.s32 %v4346, 2
          %vm4348 = vcmp.gt.s32.totalorder 0, %v4347
          %v4349 = vsel %vm4348, 0, %v4347
          %v4350 = vsub.s32 32, %v4349
          %v4351 = vshll.u32 %v4342, %v4349
          %v4352 = vshrl.u32 %v4334, %v4350
          %v4353 = vor.u32 %v4351, %v4352
          %v4354 = vsub.s32 4294967266, %v4349
          %v4355 = vadd.s32 %v4354, 127
          %v4356 = vshll.u32 %v4355, 23
          %v4357 = vor.u32 4788187, %v4356
          %v4358 = vand.u32 2147483647, %v4357
          %v4360 = vcvt.s32.f32 %v4353
          %v4361 = vmul.f32 %v4360, %v4358
          %v4362 = vxor.u32 %v4361, 2147483648
          %v4363 = vsel %vm4280, %v4362, %v4361
          %v4364 = vsub.s32 4, %v4340
          %v4365 = vsel %vm4280, %v4364, %v4340
          %v4366 = vsel %vm4279, %v3315, %v4363
          %v4367 = vsel %vm4279, 0, %v4365
          %v4368 = vcosq.f32.pop %v4366
          %v4369 = vsinq.f32.pop %v4366
          %vm4370 = vweird.f32 %v3315
          %v4371 = vadd.s32 %v4367, 3
          %v4372 = vand.u32 %v4371, 3
          %vm4373 = vcmp.lt.s32.totalorder %v4372, 2
          %vm4374 = vcmp.eq.s32.totalorder %v4372, 0
          %v4375 = vxor.u32 %v4369, 2147483648
          %v4376 = vsel %vm4374, %v4368, %v4375
          %vm4377 = vcmp.eq.s32.totalorder %v4372, 2
          %v4378 = vxor.u32 %v4368, 2147483648
          %v4379 = vsel %vm4377, %v4378, %v4369
          %v4380 = vsel %vm4373, %v4376, %v4379
          %v4381 = vsel %vm4370, nan, %v4380
          %v4382 = vand.u32 2147483647, %v3316
          %vm4383 = vcmp.le.f32.partialorder %v4382, 0.7853982
          %vm4384 = vcmp.lt.s32.totalorder %v3316, 0
          %v4385 = vand.u32 %v3316, 2139095040
          %v4386 = vshrl.u32 %v4385, 23
          %v4387 = vsub.s32 %v4386, 127
          %v4388 = vand.u32 2147483647, %v3316
          %v4389 = vand.u32 %v4388, 8388607
          %v4390 = vor.u32 %v4389, 8388608
          %v4391 = vsub.s32 0, %v4390
          %v4392 = vadd.s32 %v4387, 1
          %vm4393 = vcmp.gt.s32.totalorder %v4392, 0
          %v4394 = vsel %vm4393, %v4392, 0
          %v4395 = vshrl.u32 %v4394, 5
          %v4396 = vand.u32 %v4394, 31
          %v4397 = vsub.s32 32, %v4396
          %v4398 = vshrl.u32 683565275, %v4397
          %v4399 = vshll.u32 683565275, %v4396
          %v4400 = vshrl.u32 2475754826, %v4397
          %v4401 = vor.u32 %v4399, %v4400
          %v4402 = vshll.u32 2475754826, %v4396
          %v4403 = vshrl.u32 2131351028, %v4397
          %v4404 = vor.u32 %v4402, %v4403
          %v4405 = vshll.u32 2131351028, %v4396
          %v4406 = vshrl.u32 2102212464, %v4397
          %v4407 = vor.u32 %v4405, %v4406
          %v4408 = vshll.u32 2102212464, %v4396
          %v4409 = vshrl.u32 920167782, %v4397
          %v4410 = vor.u32 %v4408, %v4409
          %v4411 = vshll.u32 920167782, %v4396
          %v4412 = vshrl.u32 1326507024, %v4397
          %v4413 = vor.u32 %v4411, %v4412
          %vm4414 = vcmp.lt.s32.totalorder %v4395, 1
          %vm4415 = vcmp.lt.s32.totalorder %v4395, 2
          %vm4416 = vcmp.lt.s32.totalorder %v4395, 3
          %vm4417 = vcmp.lt.s32.totalorder %v4395, 4
          %v4418 = vsel %vm4414, %v4398, %v4401
          %v4419 = vsel %vm4417, %v4407, 2102212464
          %v4420 = vsel %vm4416, %v4404, %v4419
          %v4421 = vsel %vm4415, %v4418, %v4420
          %v4422 = vsel %vm4414, %v4401, %v4404
          %v4423 = vsel %vm4417, %v4410, 920167782
          %v4424 = vsel %vm4416, %v4407, %v4423
          %v4425 = vsel %vm4415, %v4422, %v4424
          %v4426 = vsel %vm4414, %v4404, %v4407
          %v4427 = vsel %vm4417, %v4413, 1326507024
          %v4428 = vsel %vm4416, %v4410, %v4427
          %v4429 = vsel %vm4415, %v4426, %v4428
          %v4430 = vshll.u32 %v4390, 8
          %v4431 = vmul.u32.u64.compose %v4430, %v4429
          %v4432 = vextract.low.u32 %v4431
          %v4433 = vextract.high.u32 %v4431
          %v4434 = vmul.u32.u64.compose %v4430, %v4425
          %v4435 = vextract.low.u32 %v4434
          %v4436 = vextract.high.u32 %v4434
          %v4437 = vmul.u32 %v4430, %v4421
          %v4438 = vadd.s32 %v4433, %v4435
          %vm4439 = vc.u32 %v4433, %v4435
          %v4440 = vadd.s32 %v4436, 1
          %v4441 = vsel %vm4439, %v4440, %v4436
          %v4442 = vadd.s32 %v4437, %v4441
          %v4443 = vadd.s32 %v4442, 536870912
          %v4444 = vshrl.u32 %v4443, 30
          %v4445 = vshll.u32 %v4444, 30
          %v4446 = vsub.s32 %v4442, %v4445
          %vm4447 = vcmp.lt.s32.totalorder %v4446, 0
          %v4448 = vsub.s32 0, %v4446
          %v4449 = vsel %vm4447, %v4448, %v4446
          %v4450 = vclz %v4449
          %v4451 = vsub.s32 %v4450, 2
          %vm4452 = vcmp.gt.s32.totalorder 0, %v4451
          %v4453 = vsel %vm4452, 0, %v4451
          %v4454 = vsub.s32 32, %v4453
          %v4455 = vshll.u32 %v4446, %v4453
          %v4456 = vshrl.u32 %v4438, %v4454
          %v4457 = vor.u32 %v4455, %v4456
          %v4458 = vsub.s32 4294967266, %v4453
          %v4459 = vadd.s32 %v4458, 127
          %v4460 = vshll.u32 %v4459, 23
          %v4461 = vor.u32 4788187, %v4460
          %v4462 = vand.u32 2147483647, %v4461
          %v4464 = vcvt.s32.f32 %v4457
          %v4465 = vmul.f32 %v4464, %v4462
          %v4466 = vxor.u32 %v4465, 2147483648
          %v4467 = vsel %vm4384, %v4466, %v4465
          %v4468 = vsub.s32 4, %v4444
          %v4469 = vsel %vm4384, %v4468, %v4444
          %v4470 = vsel %vm4383, %v3316, %v4467
          %v4471 = vsel %vm4383, 0, %v4469
          %v4472 = vcosq.f32.pop %v4470
          %v4473 = vsinq.f32.pop %v4470
          %vm4474 = vweird.f32 %v3316
          %v4475 = vadd.s32 %v4471, 3
          %v4476 = vand.u32 %v4475, 3
          %vm4477 = vcmp.lt.s32.totalorder %v4476, 2
          %vm4478 = vcmp.eq.s32.totalorder %v4476, 0
          %v4479 = vxor.u32 %v4473, 2147483648
          %v4480 = vsel %vm4478, %v4472, %v4479
          %vm4481 = vcmp.eq.s32.totalorder %v4476, 2
          %v4482 = vxor.u32 %v4472, 2147483648
          %v4483 = vsel %vm4481, %v4482, %v4473
          %v4484 = vsel %vm4477, %v4480, %v4483
          %v4485 = vsel %vm4474, nan, %v4484
          %v4486 = vand.u32 2147483647, %v3317
          %vm4487 = vcmp.le.f32.partialorder %v4486, 0.7853982
          %vm4488 = vcmp.lt.s32.totalorder %v3317, 0
          %v4489 = vand.u32 %v3317, 2139095040
          %v4490 = vshrl.u32 %v4489, 23
          %v4491 = vsub.s32 %v4490, 127
          %v4492 = vand.u32 2147483647, %v3317
          %v4493 = vand.u32 %v4492, 8388607
          %v4494 = vor.u32 %v4493, 8388608
          %v4495 = vsub.s32 0, %v4494
          %v4496 = vadd.s32 %v4491, 1
          %vm4497 = vcmp.gt.s32.totalorder %v4496, 0
          %v4498 = vsel %vm4497, %v4496, 0
          %v4499 = vshrl.u32 %v4498, 5
          %v4500 = vand.u32 %v4498, 31
          %v4501 = vsub.s32 32, %v4500
          %v4502 = vshrl.u32 683565275, %v4501
          %v4503 = vshll.u32 683565275, %v4500
          %v4504 = vshrl.u32 2475754826, %v4501
          %v4505 = vor.u32 %v4503, %v4504
          %v4506 = vshll.u32 2475754826, %v4500
          %v4507 = vshrl.u32 2131351028, %v4501
          %v4508 = vor.u32 %v4506, %v4507
          %v4509 = vshll.u32 2131351028, %v4500
          %v4510 = vshrl.u32 2102212464, %v4501
          %v4511 = vor.u32 %v4509, %v4510
          %v4512 = vshll.u32 2102212464, %v4500
          %v4513 = vshrl.u32 920167782, %v4501
          %v4514 = vor.u32 %v4512, %v4513
          %v4515 = vshll.u32 920167782, %v4500
          %v4516 = vshrl.u32 1326507024, %v4501
          %v4517 = vor.u32 %v4515, %v4516
          %vm4518 = vcmp.lt.s32.totalorder %v4499, 1
          %vm4519 = vcmp.lt.s32.totalorder %v4499, 2
          %vm4520 = vcmp.lt.s32.totalorder %v4499, 3
          %vm4521 = vcmp.lt.s32.totalorder %v4499, 4
          %v4522 = vsel %vm4518, %v4502, %v4505
          %v4523 = vsel %vm4521, %v4511, 2102212464
          %v4524 = vsel %vm4520, %v4508, %v4523
          %v4525 = vsel %vm4519, %v4522, %v4524
          %v4526 = vsel %vm4518, %v4505, %v4508
          %v4527 = vsel %vm4521, %v4514, 920167782
          %v4528 = vsel %vm4520, %v4511, %v4527
          %v4529 = vsel %vm4519, %v4526, %v4528
          %v4530 = vsel %vm4518, %v4508, %v4511
          %v4531 = vsel %vm4521, %v4517, 1326507024
          %v4532 = vsel %vm4520, %v4514, %v4531
          %v4533 = vsel %vm4519, %v4530, %v4532
          %v4534 = vshll.u32 %v4494, 8
          %v4535 = vmul.u32.u64.compose %v4534, %v4533
          %v4536 = vextract.low.u32 %v4535
          %v4537 = vextract.high.u32 %v4535
          %v4538 = vmul.u32.u64.compose %v4534, %v4529
          %v4539 = vextract.low.u32 %v4538
          %v4540 = vextract.high.u32 %v4538
          %v4541 = vmul.u32 %v4534, %v4525
          %v4542 = vadd.s32 %v4537, %v4539
          %vm4543 = vc.u32 %v4537, %v4539
          %v4544 = vadd.s32 %v4540, 1
          %v4545 = vsel %vm4543, %v4544, %v4540
          %v4546 = vadd.s32 %v4541, %v4545
          %v4547 = vadd.s32 %v4546, 536870912
          %v4548 = vshrl.u32 %v4547, 30
          %v4549 = vshll.u32 %v4548, 30
          %v4550 = vsub.s32 %v4546, %v4549
          %vm4551 = vcmp.lt.s32.totalorder %v4550, 0
          %v4552 = vsub.s32 0, %v4550
          %v4553 = vsel %vm4551, %v4552, %v4550
          %v4554 = vclz %v4553
          %v4555 = vsub.s32 %v4554, 2
          %vm4556 = vcmp.gt.s32.totalorder 0, %v4555
          %v4557 = vsel %vm4556, 0, %v4555
          %v4558 = vsub.s32 32, %v4557
          %v4559 = vshll.u32 %v4550, %v4557
          %v4560 = vshrl.u32 %v4542, %v4558
          %v4561 = vor.u32 %v4559, %v4560
          %v4562 = vsub.s32 4294967266, %v4557
          %v4563 = vadd.s32 %v4562, 127
          %v4564 = vshll.u32 %v4563, 23
          %v4565 = vor.u32 4788187, %v4564
          %v4566 = vand.u32 2147483647, %v4565
          %v4568 = vcvt.s32.f32 %v4561
          %v4569 = vmul.f32 %v4568, %v4566
          %v4570 = vxor.u32 %v4569, 2147483648
          %v4571 = vsel %vm4488, %v4570, %v4569
          %v4572 = vsub.s32 4, %v4548
          %v4573 = vsel %vm4488, %v4572, %v4548
          %v4574 = vsel %vm4487, %v3317, %v4571
          %v4575 = vsel %vm4487, 0, %v4573
          %v4576 = vcosq.f32.pop %v4574
          %v4577 = vsinq.f32.pop %v4574
          %vm4578 = vweird.f32 %v3317
          %v4579 = vadd.s32 %v4575, 3
          %v4580 = vand.u32 %v4579, 3
          %vm4581 = vcmp.lt.s32.totalorder %v4580, 2
          %vm4582 = vcmp.eq.s32.totalorder %v4580, 0
          %v4583 = vxor.u32 %v4577, 2147483648
          %v4584 = vsel %vm4582, %v4576, %v4583
          %vm4585 = vcmp.eq.s32.totalorder %v4580, 2
          %v4586 = vxor.u32 %v4576, 2147483648
          %v4587 = vsel %vm4585, %v4586, %v4577
          %v4588 = vsel %vm4581, %v4584, %v4587
          %v4589 = vsel %vm4578, nan, %v4588
          %v4590 = vand.u32 2147483647, %v3318
          %vm4591 = vcmp.le.f32.partialorder %v4590, 0.7853982
          %vm4592 = vcmp.lt.s32.totalorder %v3318, 0
          %v4593 = vand.u32 %v3318, 2139095040
          %v4594 = vshrl.u32 %v4593, 23
          %v4595 = vsub.s32 %v4594, 127
          %v4596 = vand.u32 2147483647, %v3318
          %v4597 = vand.u32 %v4596, 8388607
          %v4598 = vor.u32 %v4597, 8388608
          %v4599 = vsub.s32 0, %v4598
          %v4600 = vadd.s32 %v4595, 1
          %vm4601 = vcmp.gt.s32.totalorder %v4600, 0
          %v4602 = vsel %vm4601, %v4600, 0
          %v4603 = vshrl.u32 %v4602, 5
          %v4604 = vand.u32 %v4602, 31
          %v4605 = vsub.s32 32, %v4604
          %v4606 = vshrl.u32 683565275, %v4605
          %v4607 = vshll.u32 683565275, %v4604
          %v4608 = vshrl.u32 2475754826, %v4605
          %v4609 = vor.u32 %v4607, %v4608
          %v4610 = vshll.u32 2475754826, %v4604
          %v4611 = vshrl.u32 2131351028, %v4605
          %v4612 = vor.u32 %v4610, %v4611
          %v4613 = vshll.u32 2131351028, %v4604
          %v4614 = vshrl.u32 2102212464, %v4605
          %v4615 = vor.u32 %v4613, %v4614
          %v4616 = vshll.u32 2102212464, %v4604
          %v4617 = vshrl.u32 920167782, %v4605
          %v4618 = vor.u32 %v4616, %v4617
          %v4619 = vshll.u32 920167782, %v4604
          %v4620 = vshrl.u32 1326507024, %v4605
          %v4621 = vor.u32 %v4619, %v4620
          %vm4622 = vcmp.lt.s32.totalorder %v4603, 1
          %vm4623 = vcmp.lt.s32.totalorder %v4603, 2
          %vm4624 = vcmp.lt.s32.totalorder %v4603, 3
          %vm4625 = vcmp.lt.s32.totalorder %v4603, 4
          %v4626 = vsel %vm4622, %v4606, %v4609
          %v4627 = vsel %vm4625, %v4615, 2102212464
          %v4628 = vsel %vm4624, %v4612, %v4627
          %v4629 = vsel %vm4623, %v4626, %v4628
          %v4630 = vsel %vm4622, %v4609, %v4612
          %v4631 = vsel %vm4625, %v4618, 920167782
          %v4632 = vsel %vm4624, %v4615, %v4631
          %v4633 = vsel %vm4623, %v4630, %v4632
          %v4634 = vsel %vm4622, %v4612, %v4615
          %v4635 = vsel %vm4625, %v4621, 1326507024
          %v4636 = vsel %vm4624, %v4618, %v4635
          %v4637 = vsel %vm4623, %v4634, %v4636
          %v4638 = vshll.u32 %v4598, 8
          %v4639 = vmul.u32.u64.compose %v4638, %v4637
          %v4640 = vextract.low.u32 %v4639
          %v4641 = vextract.high.u32 %v4639
          %v4642 = vmul.u32.u64.compose %v4638, %v4633
          %v4643 = vextract.low.u32 %v4642
          %v4644 = vextract.high.u32 %v4642
          %v4645 = vmul.u32 %v4638, %v4629
          %v4646 = vadd.s32 %v4641, %v4643
          %vm4647 = vc.u32 %v4641, %v4643
          %v4648 = vadd.s32 %v4644, 1
          %v4649 = vsel %vm4647, %v4648, %v4644
          %v4650 = vadd.s32 %v4645, %v4649
          %v4651 = vadd.s32 %v4650, 536870912
          %v4652 = vshrl.u32 %v4651, 30
          %v4653 = vshll.u32 %v4652, 30
          %v4654 = vsub.s32 %v4650, %v4653
          %vm4655 = vcmp.lt.s32.totalorder %v4654, 0
          %v4656 = vsub.s32 0, %v4654
          %v4657 = vsel %vm4655, %v4656, %v4654
          %v4658 = vclz %v4657
          %v4659 = vsub.s32 %v4658, 2
          %vm4660 = vcmp.gt.s32.totalorder 0, %v4659
          %v4661 = vsel %vm4660, 0, %v4659
          %v4662 = vsub.s32 32, %v4661
          %v4663 = vshll.u32 %v4654, %v4661
          %v4664 = vshrl.u32 %v4646, %v4662
          %v4665 = vor.u32 %v4663, %v4664
          %v4666 = vsub.s32 4294967266, %v4661
          %v4667 = vadd.s32 %v4666, 127
          %v4668 = vshll.u32 %v4667, 23
          %v4669 = vor.u32 4788187, %v4668
          %v4670 = vand.u32 2147483647, %v4669
          %v4672 = vcvt.s32.f32 %v4665
          %v4673 = vmul.f32 %v4672, %v4670
          %v4674 = vxor.u32 %v4673, 2147483648
          %v4675 = vsel %vm4592, %v4674, %v4673
          %v4676 = vsub.s32 4, %v4652
          %v4677 = vsel %vm4592, %v4676, %v4652
          %v4678 = vsel %vm4591, %v3318, %v4675
          %v4679 = vsel %vm4591, 0, %v4677
          %v4680 = vcosq.f32.pop %v4678
          %v4681 = vsinq.f32.pop %v4678
          %vm4682 = vweird.f32 %v3318
          %v4683 = vadd.s32 %v4679, 3
          %v4684 = vand.u32 %v4683, 3
          %vm4685 = vcmp.lt.s32.totalorder %v4684, 2
          %vm4686 = vcmp.eq.s32.totalorder %v4684, 0
          %v4687 = vxor.u32 %v4681, 2147483648
          %v4688 = vsel %vm4686, %v4680, %v4687
          %vm4689 = vcmp.eq.s32.totalorder %v4684, 2
          %v4690 = vxor.u32 %v4680, 2147483648
          %v4691 = vsel %vm4689, %v4690, %v4681
          %v4692 = vsel %vm4685, %v4688, %v4691
          %v4693 = vsel %vm4682, nan, %v4692
          %v4694 = vand.u32 2147483647, %v3319
          %vm4695 = vcmp.le.f32.partialorder %v4694, 0.7853982
          %vm4696 = vcmp.lt.s32.totalorder %v3319, 0
          %v4697 = vand.u32 %v3319, 2139095040
          %v4698 = vshrl.u32 %v4697, 23
          %v4699 = vsub.s32 %v4698, 127
          %v4700 = vand.u32 2147483647, %v3319
          %v4701 = vand.u32 %v4700, 8388607
          %v4702 = vor.u32 %v4701, 8388608
          %v4703 = vsub.s32 0, %v4702
          %v4704 = vadd.s32 %v4699, 1
          %vm4705 = vcmp.gt.s32.totalorder %v4704, 0
          %v4706 = vsel %vm4705, %v4704, 0
          %v4707 = vshrl.u32 %v4706, 5
          %v4708 = vand.u32 %v4706, 31
          %v4709 = vsub.s32 32, %v4708
          %v4710 = vshrl.u32 683565275, %v4709
          %v4711 = vshll.u32 683565275, %v4708
          %v4712 = vshrl.u32 2475754826, %v4709
          %v4713 = vor.u32 %v4711, %v4712
          %v4714 = vshll.u32 2475754826, %v4708
          %v4715 = vshrl.u32 2131351028, %v4709
          %v4716 = vor.u32 %v4714, %v4715
          %v4717 = vshll.u32 2131351028, %v4708
          %v4718 = vshrl.u32 2102212464, %v4709
          %v4719 = vor.u32 %v4717, %v4718
          %v4720 = vshll.u32 2102212464, %v4708
          %v4721 = vshrl.u32 920167782, %v4709
          %v4722 = vor.u32 %v4720, %v4721
          %v4723 = vshll.u32 920167782, %v4708
          %v4724 = vshrl.u32 1326507024, %v4709
          %v4725 = vor.u32 %v4723, %v4724
          %vm4726 = vcmp.lt.s32.totalorder %v4707, 1
          %vm4727 = vcmp.lt.s32.totalorder %v4707, 2
          %vm4728 = vcmp.lt.s32.totalorder %v4707, 3
          %vm4729 = vcmp.lt.s32.totalorder %v4707, 4
          %v4730 = vsel %vm4726, %v4710, %v4713
          %v4731 = vsel %vm4729, %v4719, 2102212464
          %v4732 = vsel %vm4728, %v4716, %v4731
          %v4733 = vsel %vm4727, %v4730, %v4732
          %v4734 = vsel %vm4726, %v4713, %v4716
          %v4735 = vsel %vm4729, %v4722, 920167782
          %v4736 = vsel %vm4728, %v4719, %v4735
          %v4737 = vsel %vm4727, %v4734, %v4736
          %v4738 = vsel %vm4726, %v4716, %v4719
          %v4739 = vsel %vm4729, %v4725, 1326507024
          %v4740 = vsel %vm4728, %v4722, %v4739
          %v4741 = vsel %vm4727, %v4738, %v4740
          %v4742 = vshll.u32 %v4702, 8
          %v4743 = vmul.u32.u64.compose %v4742, %v4741
          %v4744 = vextract.low.u32 %v4743
          %v4745 = vextract.high.u32 %v4743
          %v4746 = vmul.u32.u64.compose %v4742, %v4737
          %v4747 = vextract.low.u32 %v4746
          %v4748 = vextract.high.u32 %v4746
          %v4749 = vmul.u32 %v4742, %v4733
          %v4750 = vadd.s32 %v4745, %v4747
          %vm4751 = vc.u32 %v4745, %v4747
          %v4752 = vadd.s32 %v4748, 1
          %v4753 = vsel %vm4751, %v4752, %v4748
          %v4754 = vadd.s32 %v4749, %v4753
          %v4755 = vadd.s32 %v4754, 536870912
          %v4756 = vshrl.u32 %v4755, 30
          %v4757 = vshll.u32 %v4756, 30
          %v4758 = vsub.s32 %v4754, %v4757
          %vm4759 = vcmp.lt.s32.totalorder %v4758, 0
          %v4760 = vsub.s32 0, %v4758
          %v4761 = vsel %vm4759, %v4760, %v4758
          %v4762 = vclz %v4761
          %v4763 = vsub.s32 %v4762, 2
          %vm4764 = vcmp.gt.s32.totalorder 0, %v4763
          %v4765 = vsel %vm4764, 0, %v4763
          %v4766 = vsub.s32 32, %v4765
          %v4767 = vshll.u32 %v4758, %v4765
          %v4768 = vshrl.u32 %v4750, %v4766
          %v4769 = vor.u32 %v4767, %v4768
          %v4770 = vsub.s32 4294967266, %v4765
          %v4771 = vadd.s32 %v4770, 127
          %v4772 = vshll.u32 %v4771, 23
          %v4773 = vor.u32 4788187, %v4772
          %v4774 = vand.u32 2147483647, %v4773
          %v4776 = vcvt.s32.f32 %v4769
          %v4777 = vmul.f32 %v4776, %v4774
          %v4778 = vxor.u32 %v4777, 2147483648
          %v4779 = vsel %vm4696, %v4778, %v4777
          %v4780 = vsub.s32 4, %v4756
          %v4781 = vsel %vm4696, %v4780, %v4756
          %v4782 = vsel %vm4695, %v3319, %v4779
          %v4783 = vsel %vm4695, 0, %v4781
          %v4784 = vcosq.f32.pop %v4782
          %v4785 = vsinq.f32.pop %v4782
          %vm4786 = vweird.f32 %v3319
          %v4787 = vadd.s32 %v4783, 3
          %v4788 = vand.u32 %v4787, 3
          %vm4789 = vcmp.lt.s32.totalorder %v4788, 2
          %vm4790 = vcmp.eq.s32.totalorder %v4788, 0
          %v4791 = vxor.u32 %v4785, 2147483648
          %v4792 = vsel %vm4790, %v4784, %v4791
          %vm4793 = vcmp.eq.s32.totalorder %v4788, 2
          %v4794 = vxor.u32 %v4784, 2147483648
          %v4795 = vsel %vm4793, %v4794, %v4785
          %v4796 = vsel %vm4789, %v4792, %v4795
          %v4797 = vsel %vm4786, nan, %v4796
          %v4798 = vand.u32 2147483647, %v3320
          %vm4799 = vcmp.le.f32.partialorder %v4798, 0.7853982
          %vm4800 = vcmp.lt.s32.totalorder %v3320, 0
          %v4801 = vand.u32 %v3320, 2139095040
          %v4802 = vshrl.u32 %v4801, 23
          %v4803 = vsub.s32 %v4802, 127
          %v4804 = vand.u32 2147483647, %v3320
          %v4805 = vand.u32 %v4804, 8388607
          %v4806 = vor.u32 %v4805, 8388608
          %v4807 = vsub.s32 0, %v4806
          %v4808 = vadd.s32 %v4803, 1
          %vm4809 = vcmp.gt.s32.totalorder %v4808, 0
          %v4810 = vsel %vm4809, %v4808, 0
          %v4811 = vshrl.u32 %v4810, 5
          %v4812 = vand.u32 %v4810, 31
          %v4813 = vsub.s32 32, %v4812
          %v4814 = vshrl.u32 683565275, %v4813
          %v4815 = vshll.u32 683565275, %v4812
          %v4816 = vshrl.u32 2475754826, %v4813
          %v4817 = vor.u32 %v4815, %v4816
          %v4818 = vshll.u32 2475754826, %v4812
          %v4819 = vshrl.u32 2131351028, %v4813
          %v4820 = vor.u32 %v4818, %v4819
          %v4821 = vshll.u32 2131351028, %v4812
          %v4822 = vshrl.u32 2102212464, %v4813
          %v4823 = vor.u32 %v4821, %v4822
          %v4824 = vshll.u32 2102212464, %v4812
          %v4825 = vshrl.u32 920167782, %v4813
          %v4826 = vor.u32 %v4824, %v4825
          %v4827 = vshll.u32 920167782, %v4812
          %v4828 = vshrl.u32 1326507024, %v4813
          %v4829 = vor.u32 %v4827, %v4828
          %vm4830 = vcmp.lt.s32.totalorder %v4811, 1
          %vm4831 = vcmp.lt.s32.totalorder %v4811, 2
          %vm4832 = vcmp.lt.s32.totalorder %v4811, 3
          %vm4833 = vcmp.lt.s32.totalorder %v4811, 4
          %v4834 = vsel %vm4830, %v4814, %v4817
          %v4835 = vsel %vm4833, %v4823, 2102212464
          %v4836 = vsel %vm4832, %v4820, %v4835
          %v4837 = vsel %vm4831, %v4834, %v4836
          %v4838 = vsel %vm4830, %v4817, %v4820
          %v4839 = vsel %vm4833, %v4826, 920167782
          %v4840 = vsel %vm4832, %v4823, %v4839
          %v4841 = vsel %vm4831, %v4838, %v4840
          %v4842 = vsel %vm4830, %v4820, %v4823
          %v4843 = vsel %vm4833, %v4829, 1326507024
          %v4844 = vsel %vm4832, %v4826, %v4843
          %v4845 = vsel %vm4831, %v4842, %v4844
          %v4846 = vshll.u32 %v4806, 8
          %v4847 = vmul.u32.u64.compose %v4846, %v4845
          %v4848 = vextract.low.u32 %v4847
          %v4849 = vextract.high.u32 %v4847
          %v4850 = vmul.u32.u64.compose %v4846, %v4841
          %v4851 = vextract.low.u32 %v4850
          %v4852 = vextract.high.u32 %v4850
          %v4853 = vmul.u32 %v4846, %v4837
          %v4854 = vadd.s32 %v4849, %v4851
          %vm4855 = vc.u32 %v4849, %v4851
          %v4856 = vadd.s32 %v4852, 1
          %v4857 = vsel %vm4855, %v4856, %v4852
          %v4858 = vadd.s32 %v4853, %v4857
          %v4859 = vadd.s32 %v4858, 536870912
          %v4860 = vshrl.u32 %v4859, 30
          %v4861 = vshll.u32 %v4860, 30
          %v4862 = vsub.s32 %v4858, %v4861
          %vm4863 = vcmp.lt.s32.totalorder %v4862, 0
          %v4864 = vsub.s32 0, %v4862
          %v4865 = vsel %vm4863, %v4864, %v4862
          %v4866 = vclz %v4865
          %v4867 = vsub.s32 %v4866, 2
          %vm4868 = vcmp.gt.s32.totalorder 0, %v4867
          %v4869 = vsel %vm4868, 0, %v4867
          %v4870 = vsub.s32 32, %v4869
          %v4871 = vshll.u32 %v4862, %v4869
          %v4872 = vshrl.u32 %v4854, %v4870
          %v4873 = vor.u32 %v4871, %v4872
          %v4874 = vsub.s32 4294967266, %v4869
          %v4875 = vadd.s32 %v4874, 127
          %v4876 = vshll.u32 %v4875, 23
          %v4877 = vor.u32 4788187, %v4876
          %v4878 = vand.u32 2147483647, %v4877
          %v4880 = vcvt.s32.f32 %v4873
          %v4881 = vmul.f32 %v4880, %v4878
          %v4882 = vxor.u32 %v4881, 2147483648
          %v4883 = vsel %vm4800, %v4882, %v4881
          %v4884 = vsub.s32 4, %v4860
          %v4885 = vsel %vm4800, %v4884, %v4860
          %v4886 = vsel %vm4799, %v3320, %v4883
          %v4887 = vsel %vm4799, 0, %v4885
          %v4888 = vcosq.f32.pop %v4886
          %v4889 = vsinq.f32.pop %v4886
          %vm4890 = vweird.f32 %v3320
          %v4891 = vadd.s32 %v4887, 3
          %v4892 = vand.u32 %v4891, 3
          %vm4893 = vcmp.lt.s32.totalorder %v4892, 2
          %vm4894 = vcmp.eq.s32.totalorder %v4892, 0
          %v4895 = vxor.u32 %v4889, 2147483648
          %v4896 = vsel %vm4894, %v4888, %v4895
          %vm4897 = vcmp.eq.s32.totalorder %v4892, 2
          %v4898 = vxor.u32 %v4888, 2147483648
          %v4899 = vsel %vm4897, %v4898, %v4889
          %v4900 = vsel %vm4893, %v4896, %v4899
          %v4901 = vsel %vm4890, nan, %v4900
          %v4902 = vand.u32 2147483647, %v3321
          %vm4903 = vcmp.le.f32.partialorder %v4902, 0.7853982
          %vm4904 = vcmp.lt.s32.totalorder %v3321, 0
          %v4905 = vand.u32 %v3321, 2139095040
          %v4906 = vshrl.u32 %v4905, 23
          %v4907 = vsub.s32 %v4906, 127
          %v4908 = vand.u32 2147483647, %v3321
          %v4909 = vand.u32 %v4908, 8388607
          %v4910 = vor.u32 %v4909, 8388608
          %v4911 = vsub.s32 0, %v4910
          %v4912 = vadd.s32 %v4907, 1
          %vm4913 = vcmp.gt.s32.totalorder %v4912, 0
          %v4914 = vsel %vm4913, %v4912, 0
          %v4915 = vshrl.u32 %v4914, 5
          %v4916 = vand.u32 %v4914, 31
          %v4917 = vsub.s32 32, %v4916
          %v4918 = vshrl.u32 683565275, %v4917
          %v4919 = vshll.u32 683565275, %v4916
          %v4920 = vshrl.u32 2475754826, %v4917
          %v4921 = vor.u32 %v4919, %v4920
          %v4922 = vshll.u32 2475754826, %v4916
          %v4923 = vshrl.u32 2131351028, %v4917
          %v4924 = vor.u32 %v4922, %v4923
          %v4925 = vshll.u32 2131351028, %v4916
          %v4926 = vshrl.u32 2102212464, %v4917
          %v4927 = vor.u32 %v4925, %v4926
          %v4928 = vshll.u32 2102212464, %v4916
          %v4929 = vshrl.u32 920167782, %v4917
          %v4930 = vor.u32 %v4928, %v4929
          %v4931 = vshll.u32 920167782, %v4916
          %v4932 = vshrl.u32 1326507024, %v4917
          %v4933 = vor.u32 %v4931, %v4932
          %vm4934 = vcmp.lt.s32.totalorder %v4915, 1
          %vm4935 = vcmp.lt.s32.totalorder %v4915, 2
          %vm4936 = vcmp.lt.s32.totalorder %v4915, 3
          %vm4937 = vcmp.lt.s32.totalorder %v4915, 4
          %v4938 = vsel %vm4934, %v4918, %v4921
          %v4939 = vsel %vm4937, %v4927, 2102212464
          %v4940 = vsel %vm4936, %v4924, %v4939
          %v4941 = vsel %vm4935, %v4938, %v4940
          %v4942 = vsel %vm4934, %v4921, %v4924
          %v4943 = vsel %vm4937, %v4930, 920167782
          %v4944 = vsel %vm4936, %v4927, %v4943
          %v4945 = vsel %vm4935, %v4942, %v4944
          %v4946 = vsel %vm4934, %v4924, %v4927
          %v4947 = vsel %vm4937, %v4933, 1326507024
          %v4948 = vsel %vm4936, %v4930, %v4947
          %v4949 = vsel %vm4935, %v4946, %v4948
          %v4950 = vshll.u32 %v4910, 8
          %v4951 = vmul.u32.u64.compose %v4950, %v4949
          %v4952 = vextract.low.u32 %v4951
          %v4953 = vextract.high.u32 %v4951
          %v4954 = vmul.u32.u64.compose %v4950, %v4945
          %v4955 = vextract.low.u32 %v4954
          %v4956 = vextract.high.u32 %v4954
          %v4957 = vmul.u32 %v4950, %v4941
          %v4958 = vadd.s32 %v4953, %v4955
          %vm4959 = vc.u32 %v4953, %v4955
          %v4960 = vadd.s32 %v4956, 1
          %v4961 = vsel %vm4959, %v4960, %v4956
          %v4962 = vadd.s32 %v4957, %v4961
          %v4963 = vadd.s32 %v4962, 536870912
          %v4964 = vshrl.u32 %v4963, 30
          %v4965 = vshll.u32 %v4964, 30
          %v4966 = vsub.s32 %v4962, %v4965
          %vm4967 = vcmp.lt.s32.totalorder %v4966, 0
          %v4968 = vsub.s32 0, %v4966
          %v4969 = vsel %vm4967, %v4968, %v4966
          %v4970 = vclz %v4969
          %v4971 = vsub.s32 %v4970, 2
          %vm4972 = vcmp.gt.s32.totalorder 0, %v4971
          %v4973 = vsel %vm4972, 0, %v4971
          %v4974 = vsub.s32 32, %v4973
          %v4975 = vshll.u32 %v4966, %v4973
          %v4976 = vshrl.u32 %v4958, %v4974
          %v4977 = vor.u32 %v4975, %v4976
          %v4978 = vsub.s32 4294967266, %v4973
          %v4979 = vadd.s32 %v4978, 127
          %v4980 = vshll.u32 %v4979, 23
          %v4981 = vor.u32 4788187, %v4980
          %v4982 = vand.u32 2147483647, %v4981
          %v4984 = vcvt.s32.f32 %v4977
          %v4985 = vmul.f32 %v4984, %v4982
          %v4986 = vxor.u32 %v4985, 2147483648
          %v4987 = vsel %vm4904, %v4986, %v4985
          %v4988 = vsub.s32 4, %v4964
          %v4989 = vsel %vm4904, %v4988, %v4964
          %v4990 = vsel %vm4903, %v3321, %v4987
          %v4991 = vsel %vm4903, 0, %v4989
          %v4992 = vcosq.f32.pop %v4990
          %v4993 = vsinq.f32.pop %v4990
          %vm4994 = vweird.f32 %v3321
          %v4995 = vadd.s32 %v4991, 3
          %v4996 = vand.u32 %v4995, 3
          %vm4997 = vcmp.lt.s32.totalorder %v4996, 2
          %vm4998 = vcmp.eq.s32.totalorder %v4996, 0
          %v4999 = vxor.u32 %v4993, 2147483648
          %v5000 = vsel %vm4998, %v4992, %v4999
          %vm5001 = vcmp.eq.s32.totalorder %v4996, 2
          %v5002 = vxor.u32 %v4992, 2147483648
          %v5003 = vsel %vm5001, %v5002, %v4993
          %v5004 = vsel %vm4997, %v5000, %v5003
          %v5005 = vsel %vm4994, nan, %v5004
          %vm5014 = vcmask 1044480
          %v5015 = vrot.slane %v3167, 3
          %v5016 = vrot.slane %v3175, 3
          %v5017 = vsel %vm5014, %v5015, %v5016
          %v5018 = vrot.slane %v3168, 3
          %v5019 = vrot.slane %v3176, 3
          %v5020 = vsel %vm5014, %v5018, %v5019
          %v5021 = vrot.slane %v3169, 3
          %v5022 = vrot.slane %v3177, 3
          %v5023 = vsel %vm5014, %v5021, %v5022
          %v5024 = vrot.slane %v3170, 3
          %v5025 = vrot.slane %v3178, 3
          %v5026 = vsel %vm5014, %v5024, %v5025
          %v5027 = vrot.slane %v3171, 3
          %v5028 = vrot.slane %v3179, 3
          %v5029 = vsel %vm5014, %v5027, %v5028
          %v5030 = vrot.slane %v3172, 3
          %v5031 = vrot.slane %v3180, 3
          %v5032 = vsel %vm5014, %v5030, %v5031
          %v5033 = vrot.slane %v3173, 3
          %v5034 = vrot.slane %v3181, 3
          %v5035 = vsel %vm5014, %v5033, %v5034
          %v5036 = vrot.slane %v3174, 3
          %v5037 = vrot.slane %v3182, 3
          %v5038 = vsel %vm5014, %v5036, %v5037
          %v5055 = vmul.f32 %v3445, %v5017
          %v5056 = vmul.f32 %v3549, %v5020
          %v5057 = vmul.f32 %v3653, %v5023
          %v5058 = vmul.f32 %v3757, %v5026
          %v5059 = vmul.f32 %v3861, %v5029
          %v5060 = vmul.f32 %v3965, %v5032
          %v5061 = vmul.f32 %v4069, %v5035
          %v5062 = vmul.f32 %v4173, %v5038
          %v5063 = vmul.f32 %v4277, %v5016
          %v5064 = vmul.f32 %v4381, %v5019
          %v5065 = vmul.f32 %v4485, %v5022
          %v5066 = vmul.f32 %v4589, %v5025
          %v5067 = vmul.f32 %v4693, %v5028
          %v5068 = vmul.f32 %v4797, %v5031
          %v5069 = vmul.f32 %v4901, %v5034
          %v5070 = vmul.f32 %v5005, %v5037
          %v5071 = vand.u32 2147483647, %v3305
          %vm5072 = vcmp.le.f32.partialorder %v5071, 0.7853982
          %vm5073 = vcmp.lt.s32.totalorder %v3305, 0
          %v5074 = vand.u32 %v3305, 2139095040
          %v5075 = vshrl.u32 %v5074, 23
          %v5076 = vsub.s32 %v5075, 127
          %v5077 = vand.u32 2147483647, %v3305
          %v5078 = vand.u32 %v5077, 8388607
          %v5079 = vor.u32 %v5078, 8388608
          %v5080 = vsub.s32 0, %v5079
          %v5081 = vadd.s32 %v5076, 1
          %vm5082 = vcmp.gt.s32.totalorder %v5081, 0
          %v5083 = vsel %vm5082, %v5081, 0
          %v5084 = vshrl.u32 %v5083, 5
          %v5085 = vand.u32 %v5083, 31
          %v5086 = vsub.s32 32, %v5085
          %v5087 = vshrl.u32 683565275, %v5086
          %v5088 = vshll.u32 683565275, %v5085
          %v5089 = vshrl.u32 2475754826, %v5086
          %v5090 = vor.u32 %v5088, %v5089
          %v5091 = vshll.u32 2475754826, %v5085
          %v5092 = vshrl.u32 2131351028, %v5086
          %v5093 = vor.u32 %v5091, %v5092
          %v5094 = vshll.u32 2131351028, %v5085
          %v5095 = vshrl.u32 2102212464, %v5086
          %v5096 = vor.u32 %v5094, %v5095
          %v5097 = vshll.u32 2102212464, %v5085
          %v5098 = vshrl.u32 920167782, %v5086
          %v5099 = vor.u32 %v5097, %v5098
          %v5100 = vshll.u32 920167782, %v5085
          %v5101 = vshrl.u32 1326507024, %v5086
          %v5102 = vor.u32 %v5100, %v5101
          %vm5103 = vcmp.lt.s32.totalorder %v5084, 1
          %vm5104 = vcmp.lt.s32.totalorder %v5084, 2
          %vm5105 = vcmp.lt.s32.totalorder %v5084, 3
          %vm5106 = vcmp.lt.s32.totalorder %v5084, 4
          %v5107 = vsel %vm5103, %v5087, %v5090
          %v5108 = vsel %vm5106, %v5096, 2102212464
          %v5109 = vsel %vm5105, %v5093, %v5108
          %v5110 = vsel %vm5104, %v5107, %v5109
          %v5111 = vsel %vm5103, %v5090, %v5093
          %v5112 = vsel %vm5106, %v5099, 920167782
          %v5113 = vsel %vm5105, %v5096, %v5112
          %v5114 = vsel %vm5104, %v5111, %v5113
          %v5115 = vsel %vm5103, %v5093, %v5096
          %v5116 = vsel %vm5106, %v5102, 1326507024
          %v5117 = vsel %vm5105, %v5099, %v5116
          %v5118 = vsel %vm5104, %v5115, %v5117
          %v5119 = vshll.u32 %v5079, 8
          %v5120 = vmul.u32.u64.compose %v5119, %v5118
          %v5121 = vextract.low.u32 %v5120
          %v5122 = vextract.high.u32 %v5120
          %v5123 = vmul.u32.u64.compose %v5119, %v5114
          %v5124 = vextract.low.u32 %v5123
          %v5125 = vextract.high.u32 %v5123
          %v5126 = vmul.u32 %v5119, %v5110
          %v5127 = vadd.s32 %v5122, %v5124
          %vm5128 = vc.u32 %v5122, %v5124
          %v5129 = vadd.s32 %v5125, 1
          %v5130 = vsel %vm5128, %v5129, %v5125
          %v5131 = vadd.s32 %v5126, %v5130
          %v5132 = vadd.s32 %v5131, 536870912
          %v5133 = vshrl.u32 %v5132, 30
          %v5134 = vshll.u32 %v5133, 30
          %v5135 = vsub.s32 %v5131, %v5134
          %vm5136 = vcmp.lt.s32.totalorder %v5135, 0
          %v5137 = vsub.s32 0, %v5135
          %v5138 = vsel %vm5136, %v5137, %v5135
          %v5139 = vclz %v5138
          %v5140 = vsub.s32 %v5139, 2
          %vm5141 = vcmp.gt.s32.totalorder 0, %v5140
          %v5142 = vsel %vm5141, 0, %v5140
          %v5143 = vsub.s32 32, %v5142
          %v5144 = vshll.u32 %v5135, %v5142
          %v5145 = vshrl.u32 %v5127, %v5143
          %v5146 = vor.u32 %v5144, %v5145
          %v5147 = vsub.s32 4294967266, %v5142
          %v5148 = vadd.s32 %v5147, 127
          %v5149 = vshll.u32 %v5148, 23
          %v5150 = vor.u32 4788187, %v5149
          %v5151 = vand.u32 2147483647, %v5150
          %v5153 = vcvt.s32.f32 %v5146
          %v5154 = vmul.f32 %v5153, %v5151
          %v5155 = vxor.u32 %v5154, 2147483648
          %v5156 = vsel %vm5073, %v5155, %v5154
          %v5157 = vsub.s32 4, %v5133
          %v5158 = vsel %vm5073, %v5157, %v5133
          %v5159 = vsel %vm5072, %v3305, %v5156
          %v5160 = vsel %vm5072, 0, %v5158
          %v5161 = vcosq.f32.pop %v5159
          %v5162 = vsinq.f32.pop %v5159
          %vm5163 = vweird.f32 %v3305
          %v5164 = vand.u32 %v5160, 3
          %vm5165 = vcmp.lt.s32.totalorder %v5164, 2
          %vm5166 = vcmp.eq.s32.totalorder %v5164, 0
          %v5167 = vxor.u32 %v5162, 2147483648
          %v5168 = vsel %vm5166, %v5161, %v5167
          %vm5169 = vcmp.eq.s32.totalorder %v5164, 2
          %v5170 = vxor.u32 %v5161, 2147483648
          %v5171 = vsel %vm5169, %v5170, %v5162
          %v5172 = vsel %vm5165, %v5168, %v5171
          %v5173 = vsel %vm5163, nan, %v5172
          %v5174 = vand.u32 2147483647, %v3306
          %vm5175 = vcmp.le.f32.partialorder %v5174, 0.7853982
          %vm5176 = vcmp.lt.s32.totalorder %v3306, 0
          %v5177 = vand.u32 %v3306, 2139095040
          %v5178 = vshrl.u32 %v5177, 23
          %v5179 = vsub.s32 %v5178, 127
          %v5180 = vand.u32 2147483647, %v3306
          %v5181 = vand.u32 %v5180, 8388607
          %v5182 = vor.u32 %v5181, 8388608
          %v5183 = vsub.s32 0, %v5182
          %v5184 = vadd.s32 %v5179, 1
          %vm5185 = vcmp.gt.s32.totalorder %v5184, 0
          %v5186 = vsel %vm5185, %v5184, 0
          %v5187 = vshrl.u32 %v5186, 5
          %v5188 = vand.u32 %v5186, 31
          %v5189 = vsub.s32 32, %v5188
          %v5190 = vshrl.u32 683565275, %v5189
          %v5191 = vshll.u32 683565275, %v5188
          %v5192 = vshrl.u32 2475754826, %v5189
          %v5193 = vor.u32 %v5191, %v5192
          %v5194 = vshll.u32 2475754826, %v5188
          %v5195 = vshrl.u32 2131351028, %v5189
          %v5196 = vor.u32 %v5194, %v5195
          %v5197 = vshll.u32 2131351028, %v5188
          %v5198 = vshrl.u32 2102212464, %v5189
          %v5199 = vor.u32 %v5197, %v5198
          %v5200 = vshll.u32 2102212464, %v5188
          %v5201 = vshrl.u32 920167782, %v5189
          %v5202 = vor.u32 %v5200, %v5201
          %v5203 = vshll.u32 920167782, %v5188
          %v5204 = vshrl.u32 1326507024, %v5189
          %v5205 = vor.u32 %v5203, %v5204
          %vm5206 = vcmp.lt.s32.totalorder %v5187, 1
          %vm5207 = vcmp.lt.s32.totalorder %v5187, 2
          %vm5208 = vcmp.lt.s32.totalorder %v5187, 3
          %vm5209 = vcmp.lt.s32.totalorder %v5187, 4
          %v5210 = vsel %vm5206, %v5190, %v5193
          %v5211 = vsel %vm5209, %v5199, 2102212464
          %v5212 = vsel %vm5208, %v5196, %v5211
          %v5213 = vsel %vm5207, %v5210, %v5212
          %v5214 = vsel %vm5206, %v5193, %v5196
          %v5215 = vsel %vm5209, %v5202, 920167782
          %v5216 = vsel %vm5208, %v5199, %v5215
          %v5217 = vsel %vm5207, %v5214, %v5216
          %v5218 = vsel %vm5206, %v5196, %v5199
          %v5219 = vsel %vm5209, %v5205, 1326507024
          %v5220 = vsel %vm5208, %v5202, %v5219
          %v5221 = vsel %vm5207, %v5218, %v5220
          %v5222 = vshll.u32 %v5182, 8
          %v5223 = vmul.u32.u64.compose %v5222, %v5221
          %v5224 = vextract.low.u32 %v5223
          %v5225 = vextract.high.u32 %v5223
          %v5226 = vmul.u32.u64.compose %v5222, %v5217
          %v5227 = vextract.low.u32 %v5226
          %v5228 = vextract.high.u32 %v5226
          %v5229 = vmul.u32 %v5222, %v5213
          %v5230 = vadd.s32 %v5225, %v5227
          %vm5231 = vc.u32 %v5225, %v5227
          %v5232 = vadd.s32 %v5228, 1
          %v5233 = vsel %vm5231, %v5232, %v5228
          %v5234 = vadd.s32 %v5229, %v5233
          %v5235 = vadd.s32 %v5234, 536870912
          %v5236 = vshrl.u32 %v5235, 30
          %v5237 = vshll.u32 %v5236, 30
          %v5238 = vsub.s32 %v5234, %v5237
          %vm5239 = vcmp.lt.s32.totalorder %v5238, 0
          %v5240 = vsub.s32 0, %v5238
          %v5241 = vsel %vm5239, %v5240, %v5238
          %v5242 = vclz %v5241
          %v5243 = vsub.s32 %v5242, 2
          %vm5244 = vcmp.gt.s32.totalorder 0, %v5243
          %v5245 = vsel %vm5244, 0, %v5243
          %v5246 = vsub.s32 32, %v5245
          %v5247 = vshll.u32 %v5238, %v5245
          %v5248 = vshrl.u32 %v5230, %v5246
          %v5249 = vor.u32 %v5247, %v5248
          %v5250 = vsub.s32 4294967266, %v5245
          %v5251 = vadd.s32 %v5250, 127
          %v5252 = vshll.u32 %v5251, 23
          %v5253 = vor.u32 4788187, %v5252
          %v5254 = vand.u32 2147483647, %v5253
          %v5256 = vcvt.s32.f32 %v5249
          %v5257 = vmul.f32 %v5256, %v5254
          %v5258 = vxor.u32 %v5257, 2147483648
          %v5259 = vsel %vm5176, %v5258, %v5257
          %v5260 = vsub.s32 4, %v5236
          %v5261 = vsel %vm5176, %v5260, %v5236
          %v5262 = vsel %vm5175, %v3306, %v5259
          %v5263 = vsel %vm5175, 0, %v5261
          %v5264 = vcosq.f32.pop %v5262
          %v5265 = vsinq.f32.pop %v5262
          %vm5266 = vweird.f32 %v3306
          %v5267 = vand.u32 %v5263, 3
          %vm5268 = vcmp.lt.s32.totalorder %v5267, 2
          %vm5269 = vcmp.eq.s32.totalorder %v5267, 0
          %v5270 = vxor.u32 %v5265, 2147483648
          %v5271 = vsel %vm5269, %v5264, %v5270
          %vm5272 = vcmp.eq.s32.totalorder %v5267, 2
          %v5273 = vxor.u32 %v5264, 2147483648
          %v5274 = vsel %vm5272, %v5273, %v5265
          %v5275 = vsel %vm5268, %v5271, %v5274
          %v5276 = vsel %vm5266, nan, %v5275
          %v5277 = vand.u32 2147483647, %v3307
          %vm5278 = vcmp.le.f32.partialorder %v5277, 0.7853982
          %vm5279 = vcmp.lt.s32.totalorder %v3307, 0
          %v5280 = vand.u32 %v3307, 2139095040
          %v5281 = vshrl.u32 %v5280, 23
          %v5282 = vsub.s32 %v5281, 127
          %v5283 = vand.u32 2147483647, %v3307
          %v5284 = vand.u32 %v5283, 8388607
          %v5285 = vor.u32 %v5284, 8388608
          %v5286 = vsub.s32 0, %v5285
          %v5287 = vadd.s32 %v5282, 1
          %vm5288 = vcmp.gt.s32.totalorder %v5287, 0
          %v5289 = vsel %vm5288, %v5287, 0
          %v5290 = vshrl.u32 %v5289, 5
          %v5291 = vand.u32 %v5289, 31
          %v5292 = vsub.s32 32, %v5291
          %v5293 = vshrl.u32 683565275, %v5292
          %v5294 = vshll.u32 683565275, %v5291
          %v5295 = vshrl.u32 2475754826, %v5292
          %v5296 = vor.u32 %v5294, %v5295
          %v5297 = vshll.u32 2475754826, %v5291
          %v5298 = vshrl.u32 2131351028, %v5292
          %v5299 = vor.u32 %v5297, %v5298
          %v5300 = vshll.u32 2131351028, %v5291
          %v5301 = vshrl.u32 2102212464, %v5292
          %v5302 = vor.u32 %v5300, %v5301
          %v5303 = vshll.u32 2102212464, %v5291
          %v5304 = vshrl.u32 920167782, %v5292
          %v5305 = vor.u32 %v5303, %v5304
          %v5306 = vshll.u32 920167782, %v5291
          %v5307 = vshrl.u32 1326507024, %v5292
          %v5308 = vor.u32 %v5306, %v5307
          %vm5309 = vcmp.lt.s32.totalorder %v5290, 1
          %vm5310 = vcmp.lt.s32.totalorder %v5290, 2
          %vm5311 = vcmp.lt.s32.totalorder %v5290, 3
          %vm5312 = vcmp.lt.s32.totalorder %v5290, 4
          %v5313 = vsel %vm5309, %v5293, %v5296
          %v5314 = vsel %vm5312, %v5302, 2102212464
          %v5315 = vsel %vm5311, %v5299, %v5314
          %v5316 = vsel %vm5310, %v5313, %v5315
          %v5317 = vsel %vm5309, %v5296, %v5299
          %v5318 = vsel %vm5312, %v5305, 920167782
          %v5319 = vsel %vm5311, %v5302, %v5318
          %v5320 = vsel %vm5310, %v5317, %v5319
          %v5321 = vsel %vm5309, %v5299, %v5302
          %v5322 = vsel %vm5312, %v5308, 1326507024
          %v5323 = vsel %vm5311, %v5305, %v5322
          %v5324 = vsel %vm5310, %v5321, %v5323
          %v5325 = vshll.u32 %v5285, 8
          %v5326 = vmul.u32.u64.compose %v5325, %v5324
          %v5327 = vextract.low.u32 %v5326
          %v5328 = vextract.high.u32 %v5326
          %v5329 = vmul.u32.u64.compose %v5325, %v5320
          %v5330 = vextract.low.u32 %v5329
          %v5331 = vextract.high.u32 %v5329
          %v5332 = vmul.u32 %v5325, %v5316
          %v5333 = vadd.s32 %v5328, %v5330
          %vm5334 = vc.u32 %v5328, %v5330
          %v5335 = vadd.s32 %v5331, 1
          %v5336 = vsel %vm5334, %v5335, %v5331
          %v5337 = vadd.s32 %v5332, %v5336
          %v5338 = vadd.s32 %v5337, 536870912
          %v5339 = vshrl.u32 %v5338, 30
          %v5340 = vshll.u32 %v5339, 30
          %v5341 = vsub.s32 %v5337, %v5340
          %vm5342 = vcmp.lt.s32.totalorder %v5341, 0
          %v5343 = vsub.s32 0, %v5341
          %v5344 = vsel %vm5342, %v5343, %v5341
          %v5345 = vclz %v5344
          %v5346 = vsub.s32 %v5345, 2
          %vm5347 = vcmp.gt.s32.totalorder 0, %v5346
          %v5348 = vsel %vm5347, 0, %v5346
          %v5349 = vsub.s32 32, %v5348
          %v5350 = vshll.u32 %v5341, %v5348
          %v5351 = vshrl.u32 %v5333, %v5349
          %v5352 = vor.u32 %v5350, %v5351
          %v5353 = vsub.s32 4294967266, %v5348
          %v5354 = vadd.s32 %v5353, 127
          %v5355 = vshll.u32 %v5354, 23
          %v5356 = vor.u32 4788187, %v5355
          %v5357 = vand.u32 2147483647, %v5356
          %v5359 = vcvt.s32.f32 %v5352
          %v5360 = vmul.f32 %v5359, %v5357
          %v5361 = vxor.u32 %v5360, 2147483648
          %v5362 = vsel %vm5279, %v5361, %v5360
          %v5363 = vsub.s32 4, %v5339
          %v5364 = vsel %vm5279, %v5363, %v5339
          %v5365 = vsel %vm5278, %v3307, %v5362
          %v5366 = vsel %vm5278, 0, %v5364
          %v5367 = vcosq.f32.pop %v5365
          %v5368 = vsinq.f32.pop %v5365
          %vm5369 = vweird.f32 %v3307
          %v5370 = vand.u32 %v5366, 3
          %vm5371 = vcmp.lt.s32.totalorder %v5370, 2
          %vm5372 = vcmp.eq.s32.totalorder %v5370, 0
          %v5373 = vxor.u32 %v5368, 2147483648
          %v5374 = vsel %vm5372, %v5367, %v5373
          %vm5375 = vcmp.eq.s32.totalorder %v5370, 2
          %v5376 = vxor.u32 %v5367, 2147483648
          %v5377 = vsel %vm5375, %v5376, %v5368
          %v5378 = vsel %vm5371, %v5374, %v5377
          %v5379 = vsel %vm5369, nan, %v5378
          %v5380 = vand.u32 2147483647, %v3308
          %vm5381 = vcmp.le.f32.partialorder %v5380, 0.7853982
          %vm5382 = vcmp.lt.s32.totalorder %v3308, 0
          %v5383 = vand.u32 %v3308, 2139095040
          %v5384 = vshrl.u32 %v5383, 23
          %v5385 = vsub.s32 %v5384, 127
          %v5386 = vand.u32 2147483647, %v3308
          %v5387 = vand.u32 %v5386, 8388607
          %v5388 = vor.u32 %v5387, 8388608
          %v5389 = vsub.s32 0, %v5388
          %v5390 = vadd.s32 %v5385, 1
          %vm5391 = vcmp.gt.s32.totalorder %v5390, 0
          %v5392 = vsel %vm5391, %v5390, 0
          %v5393 = vshrl.u32 %v5392, 5
          %v5394 = vand.u32 %v5392, 31
          %v5395 = vsub.s32 32, %v5394
          %v5396 = vshrl.u32 683565275, %v5395
          %v5397 = vshll.u32 683565275, %v5394
          %v5398 = vshrl.u32 2475754826, %v5395
          %v5399 = vor.u32 %v5397, %v5398
          %v5400 = vshll.u32 2475754826, %v5394
          %v5401 = vshrl.u32 2131351028, %v5395
          %v5402 = vor.u32 %v5400, %v5401
          %v5403 = vshll.u32 2131351028, %v5394
          %v5404 = vshrl.u32 2102212464, %v5395
          %v5405 = vor.u32 %v5403, %v5404
          %v5406 = vshll.u32 2102212464, %v5394
          %v5407 = vshrl.u32 920167782, %v5395
          %v5408 = vor.u32 %v5406, %v5407
          %v5409 = vshll.u32 920167782, %v5394
          %v5410 = vshrl.u32 1326507024, %v5395
          %v5411 = vor.u32 %v5409, %v5410
          %vm5412 = vcmp.lt.s32.totalorder %v5393, 1
          %vm5413 = vcmp.lt.s32.totalorder %v5393, 2
          %vm5414 = vcmp.lt.s32.totalorder %v5393, 3
          %vm5415 = vcmp.lt.s32.totalorder %v5393, 4
          %v5416 = vsel %vm5412, %v5396, %v5399
          %v5417 = vsel %vm5415, %v5405, 2102212464
          %v5418 = vsel %vm5414, %v5402, %v5417
          %v5419 = vsel %vm5413, %v5416, %v5418
          %v5420 = vsel %vm5412, %v5399, %v5402
          %v5421 = vsel %vm5415, %v5408, 920167782
          %v5422 = vsel %vm5414, %v5405, %v5421
          %v5423 = vsel %vm5413, %v5420, %v5422
          %v5424 = vsel %vm5412, %v5402, %v5405
          %v5425 = vsel %vm5415, %v5411, 1326507024
          %v5426 = vsel %vm5414, %v5408, %v5425
          %v5427 = vsel %vm5413, %v5424, %v5426
          %v5428 = vshll.u32 %v5388, 8
          %v5429 = vmul.u32.u64.compose %v5428, %v5427
          %v5430 = vextract.low.u32 %v5429
          %v5431 = vextract.high.u32 %v5429
          %v5432 = vmul.u32.u64.compose %v5428, %v5423
          %v5433 = vextract.low.u32 %v5432
          %v5434 = vextract.high.u32 %v5432
          %v5435 = vmul.u32 %v5428, %v5419
          %v5436 = vadd.s32 %v5431, %v5433
          %vm5437 = vc.u32 %v5431, %v5433
          %v5438 = vadd.s32 %v5434, 1
          %v5439 = vsel %vm5437, %v5438, %v5434
          %v5440 = vadd.s32 %v5435, %v5439
          %v5441 = vadd.s32 %v5440, 536870912
          %v5442 = vshrl.u32 %v5441, 30
          %v5443 = vshll.u32 %v5442, 30
          %v5444 = vsub.s32 %v5440, %v5443
          %vm5445 = vcmp.lt.s32.totalorder %v5444, 0
          %v5446 = vsub.s32 0, %v5444
          %v5447 = vsel %vm5445, %v5446, %v5444
          %v5448 = vclz %v5447
          %v5449 = vsub.s32 %v5448, 2
          %vm5450 = vcmp.gt.s32.totalorder 0, %v5449
          %v5451 = vsel %vm5450, 0, %v5449
          %v5452 = vsub.s32 32, %v5451
          %v5453 = vshll.u32 %v5444, %v5451
          %v5454 = vshrl.u32 %v5436, %v5452
          %v5455 = vor.u32 %v5453, %v5454
          %v5456 = vsub.s32 4294967266, %v5451
          %v5457 = vadd.s32 %v5456, 127
          %v5458 = vshll.u32 %v5457, 23
          %v5459 = vor.u32 4788187, %v5458
          %v5460 = vand.u32 2147483647, %v5459
          %v5462 = vcvt.s32.f32 %v5455
          %v5463 = vmul.f32 %v5462, %v5460
          %v5464 = vxor.u32 %v5463, 2147483648
          %v5465 = vsel %vm5382, %v5464, %v5463
          %v5466 = vsub.s32 4, %v5442
          %v5467 = vsel %vm5382, %v5466, %v5442
          %v5468 = vsel %vm5381, %v3308, %v5465
          %v5469 = vsel %vm5381, 0, %v5467
          %v5470 = vcosq.f32.pop %v5468
          %v5471 = vsinq.f32.pop %v5468
          %vm5472 = vweird.f32 %v3308
          %v5473 = vand.u32 %v5469, 3
          %vm5474 = vcmp.lt.s32.totalorder %v5473, 2
          %vm5475 = vcmp.eq.s32.totalorder %v5473, 0
          %v5476 = vxor.u32 %v5471, 2147483648
          %v5477 = vsel %vm5475, %v5470, %v5476
          %vm5478 = vcmp.eq.s32.totalorder %v5473, 2
          %v5479 = vxor.u32 %v5470, 2147483648
          %v5480 = vsel %vm5478, %v5479, %v5471
          %v5481 = vsel %vm5474, %v5477, %v5480
          %v5482 = vsel %vm5472, nan, %v5481
          %v5483 = vand.u32 2147483647, %v3309
          %vm5484 = vcmp.le.f32.partialorder %v5483, 0.7853982
          %vm5485 = vcmp.lt.s32.totalorder %v3309, 0
          %v5486 = vand.u32 %v3309, 2139095040
          %v5487 = vshrl.u32 %v5486, 23
          %v5488 = vsub.s32 %v5487, 127
          %v5489 = vand.u32 2147483647, %v3309
          %v5490 = vand.u32 %v5489, 8388607
          %v5491 = vor.u32 %v5490, 8388608
          %v5492 = vsub.s32 0, %v5491
          %v5493 = vadd.s32 %v5488, 1
          %vm5494 = vcmp.gt.s32.totalorder %v5493, 0
          %v5495 = vsel %vm5494, %v5493, 0
          %v5496 = vshrl.u32 %v5495, 5
          %v5497 = vand.u32 %v5495, 31
          %v5498 = vsub.s32 32, %v5497
          %v5499 = vshrl.u32 683565275, %v5498
          %v5500 = vshll.u32 683565275, %v5497
          %v5501 = vshrl.u32 2475754826, %v5498
          %v5502 = vor.u32 %v5500, %v5501
          %v5503 = vshll.u32 2475754826, %v5497
          %v5504 = vshrl.u32 2131351028, %v5498
          %v5505 = vor.u32 %v5503, %v5504
          %v5506 = vshll.u32 2131351028, %v5497
          %v5507 = vshrl.u32 2102212464, %v5498
          %v5508 = vor.u32 %v5506, %v5507
          %v5509 = vshll.u32 2102212464, %v5497
          %v5510 = vshrl.u32 920167782, %v5498
          %v5511 = vor.u32 %v5509, %v5510
          %v5512 = vshll.u32 920167782, %v5497
          %v5513 = vshrl.u32 1326507024, %v5498
          %v5514 = vor.u32 %v5512, %v5513
          %vm5515 = vcmp.lt.s32.totalorder %v5496, 1
          %vm5516 = vcmp.lt.s32.totalorder %v5496, 2
          %vm5517 = vcmp.lt.s32.totalorder %v5496, 3
          %vm5518 = vcmp.lt.s32.totalorder %v5496, 4
          %v5519 = vsel %vm5515, %v5499, %v5502
          %v5520 = vsel %vm5518, %v5508, 2102212464
          %v5521 = vsel %vm5517, %v5505, %v5520
          %v5522 = vsel %vm5516, %v5519, %v5521
          %v5523 = vsel %vm5515, %v5502, %v5505
          %v5524 = vsel %vm5518, %v5511, 920167782
          %v5525 = vsel %vm5517, %v5508, %v5524
          %v5526 = vsel %vm5516, %v5523, %v5525
          %v5527 = vsel %vm5515, %v5505, %v5508
          %v5528 = vsel %vm5518, %v5514, 1326507024
          %v5529 = vsel %vm5517, %v5511, %v5528
          %v5530 = vsel %vm5516, %v5527, %v5529
          %v5531 = vshll.u32 %v5491, 8
          %v5532 = vmul.u32.u64.compose %v5531, %v5530
          %v5533 = vextract.low.u32 %v5532
          %v5534 = vextract.high.u32 %v5532
          %v5535 = vmul.u32.u64.compose %v5531, %v5526
          %v5536 = vextract.low.u32 %v5535
          %v5537 = vextract.high.u32 %v5535
          %v5538 = vmul.u32 %v5531, %v5522
          %v5539 = vadd.s32 %v5534, %v5536
          %vm5540 = vc.u32 %v5534, %v5536
          %v5541 = vadd.s32 %v5537, 1
          %v5542 = vsel %vm5540, %v5541, %v5537
          %v5543 = vadd.s32 %v5538, %v5542
          %v5544 = vadd.s32 %v5543, 536870912
          %v5545 = vshrl.u32 %v5544, 30
          %v5546 = vshll.u32 %v5545, 30
          %v5547 = vsub.s32 %v5543, %v5546
          %vm5548 = vcmp.lt.s32.totalorder %v5547, 0
          %v5549 = vsub.s32 0, %v5547
          %v5550 = vsel %vm5548, %v5549, %v5547
          %v5551 = vclz %v5550
          %v5552 = vsub.s32 %v5551, 2
          %vm5553 = vcmp.gt.s32.totalorder 0, %v5552
          %v5554 = vsel %vm5553, 0, %v5552
          %v5555 = vsub.s32 32, %v5554
          %v5556 = vshll.u32 %v5547, %v5554
          %v5557 = vshrl.u32 %v5539, %v5555
          %v5558 = vor.u32 %v5556, %v5557
          %v5559 = vsub.s32 4294967266, %v5554
          %v5560 = vadd.s32 %v5559, 127
          %v5561 = vshll.u32 %v5560, 23
          %v5562 = vor.u32 4788187, %v5561
          %v5563 = vand.u32 2147483647, %v5562
          %v5565 = vcvt.s32.f32 %v5558
          %v5566 = vmul.f32 %v5565, %v5563
          %v5567 = vxor.u32 %v5566, 2147483648
          %v5568 = vsel %vm5485, %v5567, %v5566
          %v5569 = vsub.s32 4, %v5545
          %v5570 = vsel %vm5485, %v5569, %v5545
          %v5571 = vsel %vm5484, %v3309, %v5568
          %v5572 = vsel %vm5484, 0, %v5570
          %v5573 = vcosq.f32.pop %v5571
          %v5574 = vsinq.f32.pop %v5571
          %vm5575 = vweird.f32 %v3309
          %v5576 = vand.u32 %v5572, 3
          %vm5577 = vcmp.lt.s32.totalorder %v5576, 2
          %vm5578 = vcmp.eq.s32.totalorder %v5576, 0
          %v5579 = vxor.u32 %v5574, 2147483648
          %v5580 = vsel %vm5578, %v5573, %v5579
          %vm5581 = vcmp.eq.s32.totalorder %v5576, 2
          %v5582 = vxor.u32 %v5573, 2147483648
          %v5583 = vsel %vm5581, %v5582, %v5574
          %v5584 = vsel %vm5577, %v5580, %v5583
          %v5585 = vsel %vm5575, nan, %v5584
          %v5586 = vand.u32 2147483647, %v3310
          %vm5587 = vcmp.le.f32.partialorder %v5586, 0.7853982
          %vm5588 = vcmp.lt.s32.totalorder %v3310, 0
          %v5589 = vand.u32 %v3310, 2139095040
          %v5590 = vshrl.u32 %v5589, 23
          %v5591 = vsub.s32 %v5590, 127
          %v5592 = vand.u32 2147483647, %v3310
          %v5593 = vand.u32 %v5592, 8388607
          %v5594 = vor.u32 %v5593, 8388608
          %v5595 = vsub.s32 0, %v5594
          %v5596 = vadd.s32 %v5591, 1
          %vm5597 = vcmp.gt.s32.totalorder %v5596, 0
          %v5598 = vsel %vm5597, %v5596, 0
          %v5599 = vshrl.u32 %v5598, 5
          %v5600 = vand.u32 %v5598, 31
          %v5601 = vsub.s32 32, %v5600
          %v5602 = vshrl.u32 683565275, %v5601
          %v5603 = vshll.u32 683565275, %v5600
          %v5604 = vshrl.u32 2475754826, %v5601
          %v5605 = vor.u32 %v5603, %v5604
          %v5606 = vshll.u32 2475754826, %v5600
          %v5607 = vshrl.u32 2131351028, %v5601
          %v5608 = vor.u32 %v5606, %v5607
          %v5609 = vshll.u32 2131351028, %v5600
          %v5610 = vshrl.u32 2102212464, %v5601
          %v5611 = vor.u32 %v5609, %v5610
          %v5612 = vshll.u32 2102212464, %v5600
          %v5613 = vshrl.u32 920167782, %v5601
          %v5614 = vor.u32 %v5612, %v5613
          %v5615 = vshll.u32 920167782, %v5600
          %v5616 = vshrl.u32 1326507024, %v5601
          %v5617 = vor.u32 %v5615, %v5616
          %vm5618 = vcmp.lt.s32.totalorder %v5599, 1
          %vm5619 = vcmp.lt.s32.totalorder %v5599, 2
          %vm5620 = vcmp.lt.s32.totalorder %v5599, 3
          %vm5621 = vcmp.lt.s32.totalorder %v5599, 4
          %v5622 = vsel %vm5618, %v5602, %v5605
          %v5623 = vsel %vm5621, %v5611, 2102212464
          %v5624 = vsel %vm5620, %v5608, %v5623
          %v5625 = vsel %vm5619, %v5622, %v5624
          %v5626 = vsel %vm5618, %v5605, %v5608
          %v5627 = vsel %vm5621, %v5614, 920167782
          %v5628 = vsel %vm5620, %v5611, %v5627
          %v5629 = vsel %vm5619, %v5626, %v5628
          %v5630 = vsel %vm5618, %v5608, %v5611
          %v5631 = vsel %vm5621, %v5617, 1326507024
          %v5632 = vsel %vm5620, %v5614, %v5631
          %v5633 = vsel %vm5619, %v5630, %v5632
          %v5634 = vshll.u32 %v5594, 8
          %v5635 = vmul.u32.u64.compose %v5634, %v5633
          %v5636 = vextract.low.u32 %v5635
          %v5637 = vextract.high.u32 %v5635
          %v5638 = vmul.u32.u64.compose %v5634, %v5629
          %v5639 = vextract.low.u32 %v5638
          %v5640 = vextract.high.u32 %v5638
          %v5641 = vmul.u32 %v5634, %v5625
          %v5642 = vadd.s32 %v5637, %v5639
          %vm5643 = vc.u32 %v5637, %v5639
          %v5644 = vadd.s32 %v5640, 1
          %v5645 = vsel %vm5643, %v5644, %v5640
          %v5646 = vadd.s32 %v5641, %v5645
          %v5647 = vadd.s32 %v5646, 536870912
          %v5648 = vshrl.u32 %v5647, 30
          %v5649 = vshll.u32 %v5648, 30
          %v5650 = vsub.s32 %v5646, %v5649
          %vm5651 = vcmp.lt.s32.totalorder %v5650, 0
          %v5652 = vsub.s32 0, %v5650
          %v5653 = vsel %vm5651, %v5652, %v5650
          %v5654 = vclz %v5653
          %v5655 = vsub.s32 %v5654, 2
          %vm5656 = vcmp.gt.s32.totalorder 0, %v5655
          %v5657 = vsel %vm5656, 0, %v5655
          %v5658 = vsub.s32 32, %v5657
          %v5659 = vshll.u32 %v5650, %v5657
          %v5660 = vshrl.u32 %v5642, %v5658
          %v5661 = vor.u32 %v5659, %v5660
          %v5662 = vsub.s32 4294967266, %v5657
          %v5663 = vadd.s32 %v5662, 127
          %v5664 = vshll.u32 %v5663, 23
          %v5665 = vor.u32 4788187, %v5664
          %v5666 = vand.u32 2147483647, %v5665
          %v5668 = vcvt.s32.f32 %v5661
          %v5669 = vmul.f32 %v5668, %v5666
          %v5670 = vxor.u32 %v5669, 2147483648
          %v5671 = vsel %vm5588, %v5670, %v5669
          %v5672 = vsub.s32 4, %v5648
          %v5673 = vsel %vm5588, %v5672, %v5648
          %v5674 = vsel %vm5587, %v3310, %v5671
          %v5675 = vsel %vm5587, 0, %v5673
          %v5676 = vcosq.f32.pop %v5674
          %v5677 = vsinq.f32.pop %v5674
          %vm5678 = vweird.f32 %v3310
          %v5679 = vand.u32 %v5675, 3
          %vm5680 = vcmp.lt.s32.totalorder %v5679, 2
          %vm5681 = vcmp.eq.s32.totalorder %v5679, 0
          %v5682 = vxor.u32 %v5677, 2147483648
          %v5683 = vsel %vm5681, %v5676, %v5682
          %vm5684 = vcmp.eq.s32.totalorder %v5679, 2
          %v5685 = vxor.u32 %v5676, 2147483648
          %v5686 = vsel %vm5684, %v5685, %v5677
          %v5687 = vsel %vm5680, %v5683, %v5686
          %v5688 = vsel %vm5678, nan, %v5687
          %v5689 = vand.u32 2147483647, %v3311
          %vm5690 = vcmp.le.f32.partialorder %v5689, 0.7853982
          %vm5691 = vcmp.lt.s32.totalorder %v3311, 0
          %v5692 = vand.u32 %v3311, 2139095040
          %v5693 = vshrl.u32 %v5692, 23
          %v5694 = vsub.s32 %v5693, 127
          %v5695 = vand.u32 2147483647, %v3311
          %v5696 = vand.u32 %v5695, 8388607
          %v5697 = vor.u32 %v5696, 8388608
          %v5698 = vsub.s32 0, %v5697
          %v5699 = vadd.s32 %v5694, 1
          %vm5700 = vcmp.gt.s32.totalorder %v5699, 0
          %v5701 = vsel %vm5700, %v5699, 0
          %v5702 = vshrl.u32 %v5701, 5
          %v5703 = vand.u32 %v5701, 31
          %v5704 = vsub.s32 32, %v5703
          %v5705 = vshrl.u32 683565275, %v5704
          %v5706 = vshll.u32 683565275, %v5703
          %v5707 = vshrl.u32 2475754826, %v5704
          %v5708 = vor.u32 %v5706, %v5707
          %v5709 = vshll.u32 2475754826, %v5703
          %v5710 = vshrl.u32 2131351028, %v5704
          %v5711 = vor.u32 %v5709, %v5710
          %v5712 = vshll.u32 2131351028, %v5703
          %v5713 = vshrl.u32 2102212464, %v5704
          %v5714 = vor.u32 %v5712, %v5713
          %v5715 = vshll.u32 2102212464, %v5703
          %v5716 = vshrl.u32 920167782, %v5704
          %v5717 = vor.u32 %v5715, %v5716
          %v5718 = vshll.u32 920167782, %v5703
          %v5719 = vshrl.u32 1326507024, %v5704
          %v5720 = vor.u32 %v5718, %v5719
          %vm5721 = vcmp.lt.s32.totalorder %v5702, 1
          %vm5722 = vcmp.lt.s32.totalorder %v5702, 2
          %vm5723 = vcmp.lt.s32.totalorder %v5702, 3
          %vm5724 = vcmp.lt.s32.totalorder %v5702, 4
          %v5725 = vsel %vm5721, %v5705, %v5708
          %v5726 = vsel %vm5724, %v5714, 2102212464
          %v5727 = vsel %vm5723, %v5711, %v5726
          %v5728 = vsel %vm5722, %v5725, %v5727
          %v5729 = vsel %vm5721, %v5708, %v5711
          %v5730 = vsel %vm5724, %v5717, 920167782
          %v5731 = vsel %vm5723, %v5714, %v5730
          %v5732 = vsel %vm5722, %v5729, %v5731
          %v5733 = vsel %vm5721, %v5711, %v5714
          %v5734 = vsel %vm5724, %v5720, 1326507024
          %v5735 = vsel %vm5723, %v5717, %v5734
          %v5736 = vsel %vm5722, %v5733, %v5735
          %v5737 = vshll.u32 %v5697, 8
          %v5738 = vmul.u32.u64.compose %v5737, %v5736
          %v5739 = vextract.low.u32 %v5738
          %v5740 = vextract.high.u32 %v5738
          %v5741 = vmul.u32.u64.compose %v5737, %v5732
          %v5742 = vextract.low.u32 %v5741
          %v5743 = vextract.high.u32 %v5741
          %v5744 = vmul.u32 %v5737, %v5728
          %v5745 = vadd.s32 %v5740, %v5742
          %vm5746 = vc.u32 %v5740, %v5742
          %v5747 = vadd.s32 %v5743, 1
          %v5748 = vsel %vm5746, %v5747, %v5743
          %v5749 = vadd.s32 %v5744, %v5748
          %v5750 = vadd.s32 %v5749, 536870912
          %v5751 = vshrl.u32 %v5750, 30
          %v5752 = vshll.u32 %v5751, 30
          %v5753 = vsub.s32 %v5749, %v5752
          %vm5754 = vcmp.lt.s32.totalorder %v5753, 0
          %v5755 = vsub.s32 0, %v5753
          %v5756 = vsel %vm5754, %v5755, %v5753
          %v5757 = vclz %v5756
          %v5758 = vsub.s32 %v5757, 2
          %vm5759 = vcmp.gt.s32.totalorder 0, %v5758
          %v5760 = vsel %vm5759, 0, %v5758
          %v5761 = vsub.s32 32, %v5760
          %v5762 = vshll.u32 %v5753, %v5760
          %v5763 = vshrl.u32 %v5745, %v5761
          %v5764 = vor.u32 %v5762, %v5763
          %v5765 = vsub.s32 4294967266, %v5760
          %v5766 = vadd.s32 %v5765, 127
          %v5767 = vshll.u32 %v5766, 23
          %v5768 = vor.u32 4788187, %v5767
          %v5769 = vand.u32 2147483647, %v5768
          %v5771 = vcvt.s32.f32 %v5764
          %v5772 = vmul.f32 %v5771, %v5769
          %v5773 = vxor.u32 %v5772, 2147483648
          %v5774 = vsel %vm5691, %v5773, %v5772
          %v5775 = vsub.s32 4, %v5751
          %v5776 = vsel %vm5691, %v5775, %v5751
          %v5777 = vsel %vm5690, %v3311, %v5774
          %v5778 = vsel %vm5690, 0, %v5776
          %v5779 = vcosq.f32.pop %v5777
          %v5780 = vsinq.f32.pop %v5777
          %vm5781 = vweird.f32 %v3311
          %v5782 = vand.u32 %v5778, 3
          %vm5783 = vcmp.lt.s32.totalorder %v5782, 2
          %vm5784 = vcmp.eq.s32.totalorder %v5782, 0
          %v5785 = vxor.u32 %v5780, 2147483648
          %v5786 = vsel %vm5784, %v5779, %v5785
          %vm5787 = vcmp.eq.s32.totalorder %v5782, 2
          %v5788 = vxor.u32 %v5779, 2147483648
          %v5789 = vsel %vm5787, %v5788, %v5780
          %v5790 = vsel %vm5783, %v5786, %v5789
          %v5791 = vsel %vm5781, nan, %v5790
          %v5792 = vand.u32 2147483647, %v3312
          %vm5793 = vcmp.le.f32.partialorder %v5792, 0.7853982
          %vm5794 = vcmp.lt.s32.totalorder %v3312, 0
          %v5795 = vand.u32 %v3312, 2139095040
          %v5796 = vshrl.u32 %v5795, 23
          %v5797 = vsub.s32 %v5796, 127
          %v5798 = vand.u32 2147483647, %v3312
          %v5799 = vand.u32 %v5798, 8388607
          %v5800 = vor.u32 %v5799, 8388608
          %v5801 = vsub.s32 0, %v5800
          %v5802 = vadd.s32 %v5797, 1
          %vm5803 = vcmp.gt.s32.totalorder %v5802, 0
          %v5804 = vsel %vm5803, %v5802, 0
          %v5805 = vshrl.u32 %v5804, 5
          %v5806 = vand.u32 %v5804, 31
          %v5807 = vsub.s32 32, %v5806
          %v5808 = vshrl.u32 683565275, %v5807
          %v5809 = vshll.u32 683565275, %v5806
          %v5810 = vshrl.u32 2475754826, %v5807
          %v5811 = vor.u32 %v5809, %v5810
          %v5812 = vshll.u32 2475754826, %v5806
          %v5813 = vshrl.u32 2131351028, %v5807
          %v5814 = vor.u32 %v5812, %v5813
          %v5815 = vshll.u32 2131351028, %v5806
          %v5816 = vshrl.u32 2102212464, %v5807
          %v5817 = vor.u32 %v5815, %v5816
          %v5818 = vshll.u32 2102212464, %v5806
          %v5819 = vshrl.u32 920167782, %v5807
          %v5820 = vor.u32 %v5818, %v5819
          %v5821 = vshll.u32 920167782, %v5806
          %v5822 = vshrl.u32 1326507024, %v5807
          %v5823 = vor.u32 %v5821, %v5822
          %vm5824 = vcmp.lt.s32.totalorder %v5805, 1
          %vm5825 = vcmp.lt.s32.totalorder %v5805, 2
          %vm5826 = vcmp.lt.s32.totalorder %v5805, 3
          %vm5827 = vcmp.lt.s32.totalorder %v5805, 4
          %v5828 = vsel %vm5824, %v5808, %v5811
          %v5829 = vsel %vm5827, %v5817, 2102212464
          %v5830 = vsel %vm5826, %v5814, %v5829
          %v5831 = vsel %vm5825, %v5828, %v5830
          %v5832 = vsel %vm5824, %v5811, %v5814
          %v5833 = vsel %vm5827, %v5820, 920167782
          %v5834 = vsel %vm5826, %v5817, %v5833
          %v5835 = vsel %vm5825, %v5832, %v5834
          %v5836 = vsel %vm5824, %v5814, %v5817
          %v5837 = vsel %vm5827, %v5823, 1326507024
          %v5838 = vsel %vm5826, %v5820, %v5837
          %v5839 = vsel %vm5825, %v5836, %v5838
          %v5840 = vshll.u32 %v5800, 8
          %v5841 = vmul.u32.u64.compose %v5840, %v5839
          %v5842 = vextract.low.u32 %v5841
          %v5843 = vextract.high.u32 %v5841
          %v5844 = vmul.u32.u64.compose %v5840, %v5835
          %v5845 = vextract.low.u32 %v5844
          %v5846 = vextract.high.u32 %v5844
          %v5847 = vmul.u32 %v5840, %v5831
          %v5848 = vadd.s32 %v5843, %v5845
          %vm5849 = vc.u32 %v5843, %v5845
          %v5850 = vadd.s32 %v5846, 1
          %v5851 = vsel %vm5849, %v5850, %v5846
          %v5852 = vadd.s32 %v5847, %v5851
          %v5853 = vadd.s32 %v5852, 536870912
          %v5854 = vshrl.u32 %v5853, 30
          %v5855 = vshll.u32 %v5854, 30
          %v5856 = vsub.s32 %v5852, %v5855
          %vm5857 = vcmp.lt.s32.totalorder %v5856, 0
          %v5858 = vsub.s32 0, %v5856
          %v5859 = vsel %vm5857, %v5858, %v5856
          %v5860 = vclz %v5859
          %v5861 = vsub.s32 %v5860, 2
          %vm5862 = vcmp.gt.s32.totalorder 0, %v5861
          %v5863 = vsel %vm5862, 0, %v5861
          %v5864 = vsub.s32 32, %v5863
          %v5865 = vshll.u32 %v5856, %v5863
          %v5866 = vshrl.u32 %v5848, %v5864
          %v5867 = vor.u32 %v5865, %v5866
          %v5868 = vsub.s32 4294967266, %v5863
          %v5869 = vadd.s32 %v5868, 127
          %v5870 = vshll.u32 %v5869, 23
          %v5871 = vor.u32 4788187, %v5870
          %v5872 = vand.u32 2147483647, %v5871
          %v5874 = vcvt.s32.f32 %v5867
          %v5875 = vmul.f32 %v5874, %v5872
          %v5876 = vxor.u32 %v5875, 2147483648
          %v5877 = vsel %vm5794, %v5876, %v5875
          %v5878 = vsub.s32 4, %v5854
          %v5879 = vsel %vm5794, %v5878, %v5854
          %v5880 = vsel %vm5793, %v3312, %v5877
          %v5881 = vsel %vm5793, 0, %v5879
          %v5882 = vcosq.f32.pop %v5880
          %v5883 = vsinq.f32.pop %v5880
          %vm5884 = vweird.f32 %v3312
          %v5885 = vand.u32 %v5881, 3
          %vm5886 = vcmp.lt.s32.totalorder %v5885, 2
          %vm5887 = vcmp.eq.s32.totalorder %v5885, 0
          %v5888 = vxor.u32 %v5883, 2147483648
          %v5889 = vsel %vm5887, %v5882, %v5888
          %vm5890 = vcmp.eq.s32.totalorder %v5885, 2
          %v5891 = vxor.u32 %v5882, 2147483648
          %v5892 = vsel %vm5890, %v5891, %v5883
          %v5893 = vsel %vm5886, %v5889, %v5892
          %v5894 = vsel %vm5884, nan, %v5893
          %v5895 = vand.u32 2147483647, %v3314
          %vm5896 = vcmp.le.f32.partialorder %v5895, 0.7853982
          %vm5897 = vcmp.lt.s32.totalorder %v3314, 0
          %v5898 = vand.u32 %v3314, 2139095040
          %v5899 = vshrl.u32 %v5898, 23
          %v5900 = vsub.s32 %v5899, 127
          %v5901 = vand.u32 2147483647, %v3314
          %v5902 = vand.u32 %v5901, 8388607
          %v5903 = vor.u32 %v5902, 8388608
          %v5904 = vsub.s32 0, %v5903
          %v5905 = vadd.s32 %v5900, 1
          %vm5906 = vcmp.gt.s32.totalorder %v5905, 0
          %v5907 = vsel %vm5906, %v5905, 0
          %v5908 = vshrl.u32 %v5907, 5
          %v5909 = vand.u32 %v5907, 31
          %v5910 = vsub.s32 32, %v5909
          %v5911 = vshrl.u32 683565275, %v5910
          %v5912 = vshll.u32 683565275, %v5909
          %v5913 = vshrl.u32 2475754826, %v5910
          %v5914 = vor.u32 %v5912, %v5913
          %v5915 = vshll.u32 2475754826, %v5909
          %v5916 = vshrl.u32 2131351028, %v5910
          %v5917 = vor.u32 %v5915, %v5916
          %v5918 = vshll.u32 2131351028, %v5909
          %v5919 = vshrl.u32 2102212464, %v5910
          %v5920 = vor.u32 %v5918, %v5919
          %v5921 = vshll.u32 2102212464, %v5909
          %v5922 = vshrl.u32 920167782, %v5910
          %v5923 = vor.u32 %v5921, %v5922
          %v5924 = vshll.u32 920167782, %v5909
          %v5925 = vshrl.u32 1326507024, %v5910
          %v5926 = vor.u32 %v5924, %v5925
          %vm5927 = vcmp.lt.s32.totalorder %v5908, 1
          %vm5928 = vcmp.lt.s32.totalorder %v5908, 2
          %vm5929 = vcmp.lt.s32.totalorder %v5908, 3
          %vm5930 = vcmp.lt.s32.totalorder %v5908, 4
          %v5931 = vsel %vm5927, %v5911, %v5914
          %v5932 = vsel %vm5930, %v5920, 2102212464
          %v5933 = vsel %vm5929, %v5917, %v5932
          %v5934 = vsel %vm5928, %v5931, %v5933
          %v5935 = vsel %vm5927, %v5914, %v5917
          %v5936 = vsel %vm5930, %v5923, 920167782
          %v5937 = vsel %vm5929, %v5920, %v5936
          %v5938 = vsel %vm5928, %v5935, %v5937
          %v5939 = vsel %vm5927, %v5917, %v5920
          %v5940 = vsel %vm5930, %v5926, 1326507024
          %v5941 = vsel %vm5929, %v5923, %v5940
          %v5942 = vsel %vm5928, %v5939, %v5941
          %v5943 = vshll.u32 %v5903, 8
          %v5944 = vmul.u32.u64.compose %v5943, %v5942
          %v5945 = vextract.low.u32 %v5944
          %v5946 = vextract.high.u32 %v5944
          %v5947 = vmul.u32.u64.compose %v5943, %v5938
          %v5948 = vextract.low.u32 %v5947
          %v5949 = vextract.high.u32 %v5947
          %v5950 = vmul.u32 %v5943, %v5934
          %v5951 = vadd.s32 %v5946, %v5948
          %vm5952 = vc.u32 %v5946, %v5948
          %v5953 = vadd.s32 %v5949, 1
          %v5954 = vsel %vm5952, %v5953, %v5949
          %v5955 = vadd.s32 %v5950, %v5954
          %v5956 = vadd.s32 %v5955, 536870912
          %v5957 = vshrl.u32 %v5956, 30
          %v5958 = vshll.u32 %v5957, 30
          %v5959 = vsub.s32 %v5955, %v5958
          %vm5960 = vcmp.lt.s32.totalorder %v5959, 0
          %v5961 = vsub.s32 0, %v5959
          %v5962 = vsel %vm5960, %v5961, %v5959
          %v5963 = vclz %v5962
          %v5964 = vsub.s32 %v5963, 2
          %vm5965 = vcmp.gt.s32.totalorder 0, %v5964
          %v5966 = vsel %vm5965, 0, %v5964
          %v5967 = vsub.s32 32, %v5966
          %v5968 = vshll.u32 %v5959, %v5966
          %v5969 = vshrl.u32 %v5951, %v5967
          %v5970 = vor.u32 %v5968, %v5969
          %v5971 = vsub.s32 4294967266, %v5966
          %v5972 = vadd.s32 %v5971, 127
          %v5973 = vshll.u32 %v5972, 23
          %v5974 = vor.u32 4788187, %v5973
          %v5975 = vand.u32 2147483647, %v5974
          %v5977 = vcvt.s32.f32 %v5970
          %v5978 = vmul.f32 %v5977, %v5975
          %v5979 = vxor.u32 %v5978, 2147483648
          %v5980 = vsel %vm5897, %v5979, %v5978
          %v5981 = vsub.s32 4, %v5957
          %v5982 = vsel %vm5897, %v5981, %v5957
          %v5983 = vsel %vm5896, %v3314, %v5980
          %v5984 = vsel %vm5896, 0, %v5982
          %v5985 = vcosq.f32.pop %v5983
          %v5986 = vsinq.f32.pop %v5983
          %vm5987 = vweird.f32 %v3314
          %v5988 = vand.u32 %v5984, 3
          %vm5989 = vcmp.lt.s32.totalorder %v5988, 2
          %vm5990 = vcmp.eq.s32.totalorder %v5988, 0
          %v5991 = vxor.u32 %v5986, 2147483648
          %v5992 = vsel %vm5990, %v5985, %v5991
          %vm5993 = vcmp.eq.s32.totalorder %v5988, 2
          %v5994 = vxor.u32 %v5985, 2147483648
          %v5995 = vsel %vm5993, %v5994, %v5986
          %v5996 = vsel %vm5989, %v5992, %v5995
          %v5997 = vsel %vm5987, nan, %v5996
          %v5998 = vand.u32 2147483647, %v3315
          %vm5999 = vcmp.le.f32.partialorder %v5998, 0.7853982
          %vm6000 = vcmp.lt.s32.totalorder %v3315, 0
          %v6001 = vand.u32 %v3315, 2139095040
          %v6002 = vshrl.u32 %v6001, 23
          %v6003 = vsub.s32 %v6002, 127
          %v6004 = vand.u32 2147483647, %v3315
          %v6005 = vand.u32 %v6004, 8388607
          %v6006 = vor.u32 %v6005, 8388608
          %v6007 = vsub.s32 0, %v6006
          %v6008 = vadd.s32 %v6003, 1
          %vm6009 = vcmp.gt.s32.totalorder %v6008, 0
          %v6010 = vsel %vm6009, %v6008, 0
          %v6011 = vshrl.u32 %v6010, 5
          %v6012 = vand.u32 %v6010, 31
          %v6013 = vsub.s32 32, %v6012
          %v6014 = vshrl.u32 683565275, %v6013
          %v6015 = vshll.u32 683565275, %v6012
          %v6016 = vshrl.u32 2475754826, %v6013
          %v6017 = vor.u32 %v6015, %v6016
          %v6018 = vshll.u32 2475754826, %v6012
          %v6019 = vshrl.u32 2131351028, %v6013
          %v6020 = vor.u32 %v6018, %v6019
          %v6021 = vshll.u32 2131351028, %v6012
          %v6022 = vshrl.u32 2102212464, %v6013
          %v6023 = vor.u32 %v6021, %v6022
          %v6024 = vshll.u32 2102212464, %v6012
          %v6025 = vshrl.u32 920167782, %v6013
          %v6026 = vor.u32 %v6024, %v6025
          %v6027 = vshll.u32 920167782, %v6012
          %v6028 = vshrl.u32 1326507024, %v6013
          %v6029 = vor.u32 %v6027, %v6028
          %vm6030 = vcmp.lt.s32.totalorder %v6011, 1
          %vm6031 = vcmp.lt.s32.totalorder %v6011, 2
          %vm6032 = vcmp.lt.s32.totalorder %v6011, 3
          %vm6033 = vcmp.lt.s32.totalorder %v6011, 4
          %v6034 = vsel %vm6030, %v6014, %v6017
          %v6035 = vsel %vm6033, %v6023, 2102212464
          %v6036 = vsel %vm6032, %v6020, %v6035
          %v6037 = vsel %vm6031, %v6034, %v6036
          %v6038 = vsel %vm6030, %v6017, %v6020
          %v6039 = vsel %vm6033, %v6026, 920167782
          %v6040 = vsel %vm6032, %v6023, %v6039
          %v6041 = vsel %vm6031, %v6038, %v6040
          %v6042 = vsel %vm6030, %v6020, %v6023
          %v6043 = vsel %vm6033, %v6029, 1326507024
          %v6044 = vsel %vm6032, %v6026, %v6043
          %v6045 = vsel %vm6031, %v6042, %v6044
          %v6046 = vshll.u32 %v6006, 8
          %v6047 = vmul.u32.u64.compose %v6046, %v6045
          %v6048 = vextract.low.u32 %v6047
          %v6049 = vextract.high.u32 %v6047
          %v6050 = vmul.u32.u64.compose %v6046, %v6041
          %v6051 = vextract.low.u32 %v6050
          %v6052 = vextract.high.u32 %v6050
          %v6053 = vmul.u32 %v6046, %v6037
          %v6054 = vadd.s32 %v6049, %v6051
          %vm6055 = vc.u32 %v6049, %v6051
          %v6056 = vadd.s32 %v6052, 1
          %v6057 = vsel %vm6055, %v6056, %v6052
          %v6058 = vadd.s32 %v6053, %v6057
          %v6059 = vadd.s32 %v6058, 536870912
          %v6060 = vshrl.u32 %v6059, 30
          %v6061 = vshll.u32 %v6060, 30
          %v6062 = vsub.s32 %v6058, %v6061
          %vm6063 = vcmp.lt.s32.totalorder %v6062, 0
          %v6064 = vsub.s32 0, %v6062
          %v6065 = vsel %vm6063, %v6064, %v6062
          %v6066 = vclz %v6065
          %v6067 = vsub.s32 %v6066, 2
          %vm6068 = vcmp.gt.s32.totalorder 0, %v6067
          %v6069 = vsel %vm6068, 0, %v6067
          %v6070 = vsub.s32 32, %v6069
          %v6071 = vshll.u32 %v6062, %v6069
          %v6072 = vshrl.u32 %v6054, %v6070
          %v6073 = vor.u32 %v6071, %v6072
          %v6074 = vsub.s32 4294967266, %v6069
          %v6075 = vadd.s32 %v6074, 127
          %v6076 = vshll.u32 %v6075, 23
          %v6077 = vor.u32 4788187, %v6076
          %v6078 = vand.u32 2147483647, %v6077
          %v6080 = vcvt.s32.f32 %v6073
          %v6081 = vmul.f32 %v6080, %v6078
          %v6082 = vxor.u32 %v6081, 2147483648
          %v6083 = vsel %vm6000, %v6082, %v6081
          %v6084 = vsub.s32 4, %v6060
          %v6085 = vsel %vm6000, %v6084, %v6060
          %v6086 = vsel %vm5999, %v3315, %v6083
          %v6087 = vsel %vm5999, 0, %v6085
          %v6088 = vcosq.f32.pop %v6086
          %v6089 = vsinq.f32.pop %v6086
          %vm6090 = vweird.f32 %v3315
          %v6091 = vand.u32 %v6087, 3
          %vm6092 = vcmp.lt.s32.totalorder %v6091, 2
          %vm6093 = vcmp.eq.s32.totalorder %v6091, 0
          %v6094 = vxor.u32 %v6089, 2147483648
          %v6095 = vsel %vm6093, %v6088, %v6094
          %vm6096 = vcmp.eq.s32.totalorder %v6091, 2
          %v6097 = vxor.u32 %v6088, 2147483648
          %v6098 = vsel %vm6096, %v6097, %v6089
          %v6099 = vsel %vm6092, %v6095, %v6098
          %v6100 = vsel %vm6090, nan, %v6099
          %v6101 = vand.u32 2147483647, %v3316
          %vm6102 = vcmp.le.f32.partialorder %v6101, 0.7853982
          %vm6103 = vcmp.lt.s32.totalorder %v3316, 0
          %v6104 = vand.u32 %v3316, 2139095040
          %v6105 = vshrl.u32 %v6104, 23
          %v6106 = vsub.s32 %v6105, 127
          %v6107 = vand.u32 2147483647, %v3316
          %v6108 = vand.u32 %v6107, 8388607
          %v6109 = vor.u32 %v6108, 8388608
          %v6110 = vsub.s32 0, %v6109
          %v6111 = vadd.s32 %v6106, 1
          %vm6112 = vcmp.gt.s32.totalorder %v6111, 0
          %v6113 = vsel %vm6112, %v6111, 0
          %v6114 = vshrl.u32 %v6113, 5
          %v6115 = vand.u32 %v6113, 31
          %v6116 = vsub.s32 32, %v6115
          %v6117 = vshrl.u32 683565275, %v6116
          %v6118 = vshll.u32 683565275, %v6115
          %v6119 = vshrl.u32 2475754826, %v6116
          %v6120 = vor.u32 %v6118, %v6119
          %v6121 = vshll.u32 2475754826, %v6115
          %v6122 = vshrl.u32 2131351028, %v6116
          %v6123 = vor.u32 %v6121, %v6122
          %v6124 = vshll.u32 2131351028, %v6115
          %v6125 = vshrl.u32 2102212464, %v6116
          %v6126 = vor.u32 %v6124, %v6125
          %v6127 = vshll.u32 2102212464, %v6115
          %v6128 = vshrl.u32 920167782, %v6116
          %v6129 = vor.u32 %v6127, %v6128
          %v6130 = vshll.u32 920167782, %v6115
          %v6131 = vshrl.u32 1326507024, %v6116
          %v6132 = vor.u32 %v6130, %v6131
          %vm6133 = vcmp.lt.s32.totalorder %v6114, 1
          %vm6134 = vcmp.lt.s32.totalorder %v6114, 2
          %vm6135 = vcmp.lt.s32.totalorder %v6114, 3
          %vm6136 = vcmp.lt.s32.totalorder %v6114, 4
          %v6137 = vsel %vm6133, %v6117, %v6120
          %v6138 = vsel %vm6136, %v6126, 2102212464
          %v6139 = vsel %vm6135, %v6123, %v6138
          %v6140 = vsel %vm6134, %v6137, %v6139
          %v6141 = vsel %vm6133, %v6120, %v6123
          %v6142 = vsel %vm6136, %v6129, 920167782
          %v6143 = vsel %vm6135, %v6126, %v6142
          %v6144 = vsel %vm6134, %v6141, %v6143
          %v6145 = vsel %vm6133, %v6123, %v6126
          %v6146 = vsel %vm6136, %v6132, 1326507024
          %v6147 = vsel %vm6135, %v6129, %v6146
          %v6148 = vsel %vm6134, %v6145, %v6147
          %v6149 = vshll.u32 %v6109, 8
          %v6150 = vmul.u32.u64.compose %v6149, %v6148
          %v6151 = vextract.low.u32 %v6150
          %v6152 = vextract.high.u32 %v6150
          %v6153 = vmul.u32.u64.compose %v6149, %v6144
          %v6154 = vextract.low.u32 %v6153
          %v6155 = vextract.high.u32 %v6153
          %v6156 = vmul.u32 %v6149, %v6140
          %v6157 = vadd.s32 %v6152, %v6154
          %vm6158 = vc.u32 %v6152, %v6154
          %v6159 = vadd.s32 %v6155, 1
          %v6160 = vsel %vm6158, %v6159, %v6155
          %v6161 = vadd.s32 %v6156, %v6160
          %v6162 = vadd.s32 %v6161, 536870912
          %v6163 = vshrl.u32 %v6162, 30
          %v6164 = vshll.u32 %v6163, 30
          %v6165 = vsub.s32 %v6161, %v6164
          %vm6166 = vcmp.lt.s32.totalorder %v6165, 0
          %v6167 = vsub.s32 0, %v6165
          %v6168 = vsel %vm6166, %v6167, %v6165
          %v6169 = vclz %v6168
          %v6170 = vsub.s32 %v6169, 2
          %vm6171 = vcmp.gt.s32.totalorder 0, %v6170
          %v6172 = vsel %vm6171, 0, %v6170
          %v6173 = vsub.s32 32, %v6172
          %v6174 = vshll.u32 %v6165, %v6172
          %v6175 = vshrl.u32 %v6157, %v6173
          %v6176 = vor.u32 %v6174, %v6175
          %v6177 = vsub.s32 4294967266, %v6172
          %v6178 = vadd.s32 %v6177, 127
          %v6179 = vshll.u32 %v6178, 23
          %v6180 = vor.u32 4788187, %v6179
          %v6181 = vand.u32 2147483647, %v6180
          %v6183 = vcvt.s32.f32 %v6176
          %v6184 = vmul.f32 %v6183, %v6181
          %v6185 = vxor.u32 %v6184, 2147483648
          %v6186 = vsel %vm6103, %v6185, %v6184
          %v6187 = vsub.s32 4, %v6163
          %v6188 = vsel %vm6103, %v6187, %v6163
          %v6189 = vsel %vm6102, %v3316, %v6186
          %v6190 = vsel %vm6102, 0, %v6188
          %v6191 = vcosq.f32.pop %v6189
          %v6192 = vsinq.f32.pop %v6189
          %vm6193 = vweird.f32 %v3316
          %v6194 = vand.u32 %v6190, 3
          %vm6195 = vcmp.lt.s32.totalorder %v6194, 2
          %vm6196 = vcmp.eq.s32.totalorder %v6194, 0
          %v6197 = vxor.u32 %v6192, 2147483648
          %v6198 = vsel %vm6196, %v6191, %v6197
          %vm6199 = vcmp.eq.s32.totalorder %v6194, 2
          %v6200 = vxor.u32 %v6191, 2147483648
          %v6201 = vsel %vm6199, %v6200, %v6192
          %v6202 = vsel %vm6195, %v6198, %v6201
          %v6203 = vsel %vm6193, nan, %v6202
          %v6204 = vand.u32 2147483647, %v3317
          %vm6205 = vcmp.le.f32.partialorder %v6204, 0.7853982
          %vm6206 = vcmp.lt.s32.totalorder %v3317, 0
          %v6207 = vand.u32 %v3317, 2139095040
          %v6208 = vshrl.u32 %v6207, 23
          %v6209 = vsub.s32 %v6208, 127
          %v6210 = vand.u32 2147483647, %v3317
          %v6211 = vand.u32 %v6210, 8388607
          %v6212 = vor.u32 %v6211, 8388608
          %v6213 = vsub.s32 0, %v6212
          %v6214 = vadd.s32 %v6209, 1
          %vm6215 = vcmp.gt.s32.totalorder %v6214, 0
          %v6216 = vsel %vm6215, %v6214, 0
          %v6217 = vshrl.u32 %v6216, 5
          %v6218 = vand.u32 %v6216, 31
          %v6219 = vsub.s32 32, %v6218
          %v6220 = vshrl.u32 683565275, %v6219
          %v6221 = vshll.u32 683565275, %v6218
          %v6222 = vshrl.u32 2475754826, %v6219
          %v6223 = vor.u32 %v6221, %v6222
          %v6224 = vshll.u32 2475754826, %v6218
          %v6225 = vshrl.u32 2131351028, %v6219
          %v6226 = vor.u32 %v6224, %v6225
          %v6227 = vshll.u32 2131351028, %v6218
          %v6228 = vshrl.u32 2102212464, %v6219
          %v6229 = vor.u32 %v6227, %v6228
          %v6230 = vshll.u32 2102212464, %v6218
          %v6231 = vshrl.u32 920167782, %v6219
          %v6232 = vor.u32 %v6230, %v6231
          %v6233 = vshll.u32 920167782, %v6218
          %v6234 = vshrl.u32 1326507024, %v6219
          %v6235 = vor.u32 %v6233, %v6234
          %vm6236 = vcmp.lt.s32.totalorder %v6217, 1
          %vm6237 = vcmp.lt.s32.totalorder %v6217, 2
          %vm6238 = vcmp.lt.s32.totalorder %v6217, 3
          %vm6239 = vcmp.lt.s32.totalorder %v6217, 4
          %v6240 = vsel %vm6236, %v6220, %v6223
          %v6241 = vsel %vm6239, %v6229, 2102212464
          %v6242 = vsel %vm6238, %v6226, %v6241
          %v6243 = vsel %vm6237, %v6240, %v6242
          %v6244 = vsel %vm6236, %v6223, %v6226
          %v6245 = vsel %vm6239, %v6232, 920167782
          %v6246 = vsel %vm6238, %v6229, %v6245
          %v6247 = vsel %vm6237, %v6244, %v6246
          %v6248 = vsel %vm6236, %v6226, %v6229
          %v6249 = vsel %vm6239, %v6235, 1326507024
          %v6250 = vsel %vm6238, %v6232, %v6249
          %v6251 = vsel %vm6237, %v6248, %v6250
          %v6252 = vshll.u32 %v6212, 8
          %v6253 = vmul.u32.u64.compose %v6252, %v6251
          %v6254 = vextract.low.u32 %v6253
          %v6255 = vextract.high.u32 %v6253
          %v6256 = vmul.u32.u64.compose %v6252, %v6247
          %v6257 = vextract.low.u32 %v6256
          %v6258 = vextract.high.u32 %v6256
          %v6259 = vmul.u32 %v6252, %v6243
          %v6260 = vadd.s32 %v6255, %v6257
          %vm6261 = vc.u32 %v6255, %v6257
          %v6262 = vadd.s32 %v6258, 1
          %v6263 = vsel %vm6261, %v6262, %v6258
          %v6264 = vadd.s32 %v6259, %v6263
          %v6265 = vadd.s32 %v6264, 536870912
          %v6266 = vshrl.u32 %v6265, 30
          %v6267 = vshll.u32 %v6266, 30
          %v6268 = vsub.s32 %v6264, %v6267
          %vm6269 = vcmp.lt.s32.totalorder %v6268, 0
          %v6270 = vsub.s32 0, %v6268
          %v6271 = vsel %vm6269, %v6270, %v6268
          %v6272 = vclz %v6271
          %v6273 = vsub.s32 %v6272, 2
          %vm6274 = vcmp.gt.s32.totalorder 0, %v6273
          %v6275 = vsel %vm6274, 0, %v6273
          %v6276 = vsub.s32 32, %v6275
          %v6277 = vshll.u32 %v6268, %v6275
          %v6278 = vshrl.u32 %v6260, %v6276
          %v6279 = vor.u32 %v6277, %v6278
          %v6280 = vsub.s32 4294967266, %v6275
          %v6281 = vadd.s32 %v6280, 127
          %v6282 = vshll.u32 %v6281, 23
          %v6283 = vor.u32 4788187, %v6282
          %v6284 = vand.u32 2147483647, %v6283
          %v6286 = vcvt.s32.f32 %v6279
          %v6287 = vmul.f32 %v6286, %v6284
          %v6288 = vxor.u32 %v6287, 2147483648
          %v6289 = vsel %vm6206, %v6288, %v6287
          %v6290 = vsub.s32 4, %v6266
          %v6291 = vsel %vm6206, %v6290, %v6266
          %v6292 = vsel %vm6205, %v3317, %v6289
          %v6293 = vsel %vm6205, 0, %v6291
          %v6294 = vcosq.f32.pop %v6292
          %v6295 = vsinq.f32.pop %v6292
          %vm6296 = vweird.f32 %v3317
          %v6297 = vand.u32 %v6293, 3
          %vm6298 = vcmp.lt.s32.totalorder %v6297, 2
          %vm6299 = vcmp.eq.s32.totalorder %v6297, 0
          %v6300 = vxor.u32 %v6295, 2147483648
          %v6301 = vsel %vm6299, %v6294, %v6300
          %vm6302 = vcmp.eq.s32.totalorder %v6297, 2
          %v6303 = vxor.u32 %v6294, 2147483648
          %v6304 = vsel %vm6302, %v6303, %v6295
          %v6305 = vsel %vm6298, %v6301, %v6304
          %v6306 = vsel %vm6296, nan, %v6305
          %v6307 = vand.u32 2147483647, %v3318
          %vm6308 = vcmp.le.f32.partialorder %v6307, 0.7853982
          %vm6309 = vcmp.lt.s32.totalorder %v3318, 0
          %v6310 = vand.u32 %v3318, 2139095040
          %v6311 = vshrl.u32 %v6310, 23
          %v6312 = vsub.s32 %v6311, 127
          %v6313 = vand.u32 2147483647, %v3318
          %v6314 = vand.u32 %v6313, 8388607
          %v6315 = vor.u32 %v6314, 8388608
          %v6316 = vsub.s32 0, %v6315
          %v6317 = vadd.s32 %v6312, 1
          %vm6318 = vcmp.gt.s32.totalorder %v6317, 0
          %v6319 = vsel %vm6318, %v6317, 0
          %v6320 = vshrl.u32 %v6319, 5
          %v6321 = vand.u32 %v6319, 31
          %v6322 = vsub.s32 32, %v6321
          %v6323 = vshrl.u32 683565275, %v6322
          %v6324 = vshll.u32 683565275, %v6321
          %v6325 = vshrl.u32 2475754826, %v6322
          %v6326 = vor.u32 %v6324, %v6325
          %v6327 = vshll.u32 2475754826, %v6321
          %v6328 = vshrl.u32 2131351028, %v6322
          %v6329 = vor.u32 %v6327, %v6328
          %v6330 = vshll.u32 2131351028, %v6321
          %v6331 = vshrl.u32 2102212464, %v6322
          %v6332 = vor.u32 %v6330, %v6331
          %v6333 = vshll.u32 2102212464, %v6321
          %v6334 = vshrl.u32 920167782, %v6322
          %v6335 = vor.u32 %v6333, %v6334
          %v6336 = vshll.u32 920167782, %v6321
          %v6337 = vshrl.u32 1326507024, %v6322
          %v6338 = vor.u32 %v6336, %v6337
          %vm6339 = vcmp.lt.s32.totalorder %v6320, 1
          %vm6340 = vcmp.lt.s32.totalorder %v6320, 2
          %vm6341 = vcmp.lt.s32.totalorder %v6320, 3
          %vm6342 = vcmp.lt.s32.totalorder %v6320, 4
          %v6343 = vsel %vm6339, %v6323, %v6326
          %v6344 = vsel %vm6342, %v6332, 2102212464
          %v6345 = vsel %vm6341, %v6329, %v6344
          %v6346 = vsel %vm6340, %v6343, %v6345
          %v6347 = vsel %vm6339, %v6326, %v6329
          %v6348 = vsel %vm6342, %v6335, 920167782
          %v6349 = vsel %vm6341, %v6332, %v6348
          %v6350 = vsel %vm6340, %v6347, %v6349
          %v6351 = vsel %vm6339, %v6329, %v6332
          %v6352 = vsel %vm6342, %v6338, 1326507024
          %v6353 = vsel %vm6341, %v6335, %v6352
          %v6354 = vsel %vm6340, %v6351, %v6353
          %v6355 = vshll.u32 %v6315, 8
          %v6356 = vmul.u32.u64.compose %v6355, %v6354
          %v6357 = vextract.low.u32 %v6356
          %v6358 = vextract.high.u32 %v6356
          %v6359 = vmul.u32.u64.compose %v6355, %v6350
          %v6360 = vextract.low.u32 %v6359
          %v6361 = vextract.high.u32 %v6359
          %v6362 = vmul.u32 %v6355, %v6346
          %v6363 = vadd.s32 %v6358, %v6360
          %vm6364 = vc.u32 %v6358, %v6360
          %v6365 = vadd.s32 %v6361, 1
          %v6366 = vsel %vm6364, %v6365, %v6361
          %v6367 = vadd.s32 %v6362, %v6366
          %v6368 = vadd.s32 %v6367, 536870912
          %v6369 = vshrl.u32 %v6368, 30
          %v6370 = vshll.u32 %v6369, 30
          %v6371 = vsub.s32 %v6367, %v6370
          %vm6372 = vcmp.lt.s32.totalorder %v6371, 0
          %v6373 = vsub.s32 0, %v6371
          %v6374 = vsel %vm6372, %v6373, %v6371
          %v6375 = vclz %v6374
          %v6376 = vsub.s32 %v6375, 2
          %vm6377 = vcmp.gt.s32.totalorder 0, %v6376
          %v6378 = vsel %vm6377, 0, %v6376
          %v6379 = vsub.s32 32, %v6378
          %v6380 = vshll.u32 %v6371, %v6378
          %v6381 = vshrl.u32 %v6363, %v6379
          %v6382 = vor.u32 %v6380, %v6381
          %v6383 = vsub.s32 4294967266, %v6378
          %v6384 = vadd.s32 %v6383, 127
          %v6385 = vshll.u32 %v6384, 23
          %v6386 = vor.u32 4788187, %v6385
          %v6387 = vand.u32 2147483647, %v6386
          %v6389 = vcvt.s32.f32 %v6382
          %v6390 = vmul.f32 %v6389, %v6387
          %v6391 = vxor.u32 %v6390, 2147483648
          %v6392 = vsel %vm6309, %v6391, %v6390
          %v6393 = vsub.s32 4, %v6369
          %v6394 = vsel %vm6309, %v6393, %v6369
          %v6395 = vsel %vm6308, %v3318, %v6392
          %v6396 = vsel %vm6308, 0, %v6394
          %v6397 = vcosq.f32.pop %v6395
          %v6398 = vsinq.f32.pop %v6395
          %vm6399 = vweird.f32 %v3318
          %v6400 = vand.u32 %v6396, 3
          %vm6401 = vcmp.lt.s32.totalorder %v6400, 2
          %vm6402 = vcmp.eq.s32.totalorder %v6400, 0
          %v6403 = vxor.u32 %v6398, 2147483648
          %v6404 = vsel %vm6402, %v6397, %v6403
          %vm6405 = vcmp.eq.s32.totalorder %v6400, 2
          %v6406 = vxor.u32 %v6397, 2147483648
          %v6407 = vsel %vm6405, %v6406, %v6398
          %v6408 = vsel %vm6401, %v6404, %v6407
          %v6409 = vsel %vm6399, nan, %v6408
          %v6410 = vand.u32 2147483647, %v3319
          %vm6411 = vcmp.le.f32.partialorder %v6410, 0.7853982
          %vm6412 = vcmp.lt.s32.totalorder %v3319, 0
          %v6413 = vand.u32 %v3319, 2139095040
          %v6414 = vshrl.u32 %v6413, 23
          %v6415 = vsub.s32 %v6414, 127
          %v6416 = vand.u32 2147483647, %v3319
          %v6417 = vand.u32 %v6416, 8388607
          %v6418 = vor.u32 %v6417, 8388608
          %v6419 = vsub.s32 0, %v6418
          %v6420 = vadd.s32 %v6415, 1
          %vm6421 = vcmp.gt.s32.totalorder %v6420, 0
          %v6422 = vsel %vm6421, %v6420, 0
          %v6423 = vshrl.u32 %v6422, 5
          %v6424 = vand.u32 %v6422, 31
          %v6425 = vsub.s32 32, %v6424
          %v6426 = vshrl.u32 683565275, %v6425
          %v6427 = vshll.u32 683565275, %v6424
          %v6428 = vshrl.u32 2475754826, %v6425
          %v6429 = vor.u32 %v6427, %v6428
          %v6430 = vshll.u32 2475754826, %v6424
          %v6431 = vshrl.u32 2131351028, %v6425
          %v6432 = vor.u32 %v6430, %v6431
          %v6433 = vshll.u32 2131351028, %v6424
          %v6434 = vshrl.u32 2102212464, %v6425
          %v6435 = vor.u32 %v6433, %v6434
          %v6436 = vshll.u32 2102212464, %v6424
          %v6437 = vshrl.u32 920167782, %v6425
          %v6438 = vor.u32 %v6436, %v6437
          %v6439 = vshll.u32 920167782, %v6424
          %v6440 = vshrl.u32 1326507024, %v6425
          %v6441 = vor.u32 %v6439, %v6440
          %vm6442 = vcmp.lt.s32.totalorder %v6423, 1
          %vm6443 = vcmp.lt.s32.totalorder %v6423, 2
          %vm6444 = vcmp.lt.s32.totalorder %v6423, 3
          %vm6445 = vcmp.lt.s32.totalorder %v6423, 4
          %v6446 = vsel %vm6442, %v6426, %v6429
          %v6447 = vsel %vm6445, %v6435, 2102212464
          %v6448 = vsel %vm6444, %v6432, %v6447
          %v6449 = vsel %vm6443, %v6446, %v6448
          %v6450 = vsel %vm6442, %v6429, %v6432
          %v6451 = vsel %vm6445, %v6438, 920167782
          %v6452 = vsel %vm6444, %v6435, %v6451
          %v6453 = vsel %vm6443, %v6450, %v6452
          %v6454 = vsel %vm6442, %v6432, %v6435
          %v6455 = vsel %vm6445, %v6441, 1326507024
          %v6456 = vsel %vm6444, %v6438, %v6455
          %v6457 = vsel %vm6443, %v6454, %v6456
          %v6458 = vshll.u32 %v6418, 8
          %v6459 = vmul.u32.u64.compose %v6458, %v6457
          %v6460 = vextract.low.u32 %v6459
          %v6461 = vextract.high.u32 %v6459
          %v6462 = vmul.u32.u64.compose %v6458, %v6453
          %v6463 = vextract.low.u32 %v6462
          %v6464 = vextract.high.u32 %v6462
          %v6465 = vmul.u32 %v6458, %v6449
          %v6466 = vadd.s32 %v6461, %v6463
          %vm6467 = vc.u32 %v6461, %v6463
          %v6468 = vadd.s32 %v6464, 1
          %v6469 = vsel %vm6467, %v6468, %v6464
          %v6470 = vadd.s32 %v6465, %v6469
          %v6471 = vadd.s32 %v6470, 536870912
          %v6472 = vshrl.u32 %v6471, 30
          %v6473 = vshll.u32 %v6472, 30
          %v6474 = vsub.s32 %v6470, %v6473
          %vm6475 = vcmp.lt.s32.totalorder %v6474, 0
          %v6476 = vsub.s32 0, %v6474
          %v6477 = vsel %vm6475, %v6476, %v6474
          %v6478 = vclz %v6477
          %v6479 = vsub.s32 %v6478, 2
          %vm6480 = vcmp.gt.s32.totalorder 0, %v6479
          %v6481 = vsel %vm6480, 0, %v6479
          %v6482 = vsub.s32 32, %v6481
          %v6483 = vshll.u32 %v6474, %v6481
          %v6484 = vshrl.u32 %v6466, %v6482
          %v6485 = vor.u32 %v6483, %v6484
          %v6486 = vsub.s32 4294967266, %v6481
          %v6487 = vadd.s32 %v6486, 127
          %v6488 = vshll.u32 %v6487, 23
          %v6489 = vor.u32 4788187, %v6488
          %v6490 = vand.u32 2147483647, %v6489
          %v6492 = vcvt.s32.f32 %v6485
          %v6493 = vmul.f32 %v6492, %v6490
          %v6494 = vxor.u32 %v6493, 2147483648
          %v6495 = vsel %vm6412, %v6494, %v6493
          %v6496 = vsub.s32 4, %v6472
          %v6497 = vsel %vm6412, %v6496, %v6472
          %v6498 = vsel %vm6411, %v3319, %v6495
          %v6499 = vsel %vm6411, 0, %v6497
          %v6500 = vcosq.f32.pop %v6498
          %v6501 = vsinq.f32.pop %v6498
          %vm6502 = vweird.f32 %v3319
          %v6503 = vand.u32 %v6499, 3
          %vm6504 = vcmp.lt.s32.totalorder %v6503, 2
          %vm6505 = vcmp.eq.s32.totalorder %v6503, 0
          %v6506 = vxor.u32 %v6501, 2147483648
          %v6507 = vsel %vm6505, %v6500, %v6506
          %vm6508 = vcmp.eq.s32.totalorder %v6503, 2
          %v6509 = vxor.u32 %v6500, 2147483648
          %v6510 = vsel %vm6508, %v6509, %v6501
          %v6511 = vsel %vm6504, %v6507, %v6510
          %v6512 = vsel %vm6502, nan, %v6511
          %v6513 = vand.u32 2147483647, %v3320
          %vm6514 = vcmp.le.f32.partialorder %v6513, 0.7853982
          %vm6515 = vcmp.lt.s32.totalorder %v3320, 0
          %v6516 = vand.u32 %v3320, 2139095040
          %v6517 = vshrl.u32 %v6516, 23
          %v6518 = vsub.s32 %v6517, 127
          %v6519 = vand.u32 2147483647, %v3320
          %v6520 = vand.u32 %v6519, 8388607
          %v6521 = vor.u32 %v6520, 8388608
          %v6522 = vsub.s32 0, %v6521
          %v6523 = vadd.s32 %v6518, 1
          %vm6524 = vcmp.gt.s32.totalorder %v6523, 0
          %v6525 = vsel %vm6524, %v6523, 0
          %v6526 = vshrl.u32 %v6525, 5
          %v6527 = vand.u32 %v6525, 31
          %v6528 = vsub.s32 32, %v6527
          %v6529 = vshrl.u32 683565275, %v6528
          %v6530 = vshll.u32 683565275, %v6527
          %v6531 = vshrl.u32 2475754826, %v6528
          %v6532 = vor.u32 %v6530, %v6531
          %v6533 = vshll.u32 2475754826, %v6527
          %v6534 = vshrl.u32 2131351028, %v6528
          %v6535 = vor.u32 %v6533, %v6534
          %v6536 = vshll.u32 2131351028, %v6527
          %v6537 = vshrl.u32 2102212464, %v6528
          %v6538 = vor.u32 %v6536, %v6537
          %v6539 = vshll.u32 2102212464, %v6527
          %v6540 = vshrl.u32 920167782, %v6528
          %v6541 = vor.u32 %v6539, %v6540
          %v6542 = vshll.u32 920167782, %v6527
          %v6543 = vshrl.u32 1326507024, %v6528
          %v6544 = vor.u32 %v6542, %v6543
          %vm6545 = vcmp.lt.s32.totalorder %v6526, 1
          %vm6546 = vcmp.lt.s32.totalorder %v6526, 2
          %vm6547 = vcmp.lt.s32.totalorder %v6526, 3
          %vm6548 = vcmp.lt.s32.totalorder %v6526, 4
          %v6549 = vsel %vm6545, %v6529, %v6532
          %v6550 = vsel %vm6548, %v6538, 2102212464
          %v6551 = vsel %vm6547, %v6535, %v6550
          %v6552 = vsel %vm6546, %v6549, %v6551
          %v6553 = vsel %vm6545, %v6532, %v6535
          %v6554 = vsel %vm6548, %v6541, 920167782
          %v6555 = vsel %vm6547, %v6538, %v6554
          %v6556 = vsel %vm6546, %v6553, %v6555
          %v6557 = vsel %vm6545, %v6535, %v6538
          %v6558 = vsel %vm6548, %v6544, 1326507024
          %v6559 = vsel %vm6547, %v6541, %v6558
          %v6560 = vsel %vm6546, %v6557, %v6559
          %v6561 = vshll.u32 %v6521, 8
          %v6562 = vmul.u32.u64.compose %v6561, %v6560
          %v6563 = vextract.low.u32 %v6562
          %v6564 = vextract.high.u32 %v6562
          %v6565 = vmul.u32.u64.compose %v6561, %v6556
          %v6566 = vextract.low.u32 %v6565
          %v6567 = vextract.high.u32 %v6565
          %v6568 = vmul.u32 %v6561, %v6552
          %v6569 = vadd.s32 %v6564, %v6566
          %vm6570 = vc.u32 %v6564, %v6566
          %v6571 = vadd.s32 %v6567, 1
          %v6572 = vsel %vm6570, %v6571, %v6567
          %v6573 = vadd.s32 %v6568, %v6572
          %v6574 = vadd.s32 %v6573, 536870912
          %v6575 = vshrl.u32 %v6574, 30
          %v6576 = vshll.u32 %v6575, 30
          %v6577 = vsub.s32 %v6573, %v6576
          %vm6578 = vcmp.lt.s32.totalorder %v6577, 0
          %v6579 = vsub.s32 0, %v6577
          %v6580 = vsel %vm6578, %v6579, %v6577
          %v6581 = vclz %v6580
          %v6582 = vsub.s32 %v6581, 2
          %vm6583 = vcmp.gt.s32.totalorder 0, %v6582
          %v6584 = vsel %vm6583, 0, %v6582
          %v6585 = vsub.s32 32, %v6584
          %v6586 = vshll.u32 %v6577, %v6584
          %v6587 = vshrl.u32 %v6569, %v6585
          %v6588 = vor.u32 %v6586, %v6587
          %v6589 = vsub.s32 4294967266, %v6584
          %v6590 = vadd.s32 %v6589, 127
          %v6591 = vshll.u32 %v6590, 23
          %v6592 = vor.u32 4788187, %v6591
          %v6593 = vand.u32 2147483647, %v6592
          %v6595 = vcvt.s32.f32 %v6588
          %v6596 = vmul.f32 %v6595, %v6593
          %v6597 = vxor.u32 %v6596, 2147483648
          %v6598 = vsel %vm6515, %v6597, %v6596
          %v6599 = vsub.s32 4, %v6575
          %v6600 = vsel %vm6515, %v6599, %v6575
          %v6601 = vsel %vm6514, %v3320, %v6598
          %v6602 = vsel %vm6514, 0, %v6600
          %v6603 = vcosq.f32.pop %v6601
          %v6604 = vsinq.f32.pop %v6601
          %vm6605 = vweird.f32 %v3320
          %v6606 = vand.u32 %v6602, 3
          %vm6607 = vcmp.lt.s32.totalorder %v6606, 2
          %vm6608 = vcmp.eq.s32.totalorder %v6606, 0
          %v6609 = vxor.u32 %v6604, 2147483648
          %v6610 = vsel %vm6608, %v6603, %v6609
          %vm6611 = vcmp.eq.s32.totalorder %v6606, 2
          %v6612 = vxor.u32 %v6603, 2147483648
          %v6613 = vsel %vm6611, %v6612, %v6604
          %v6614 = vsel %vm6607, %v6610, %v6613
          %v6615 = vsel %vm6605, nan, %v6614
          %v6616 = vand.u32 2147483647, %v3321
          %vm6617 = vcmp.le.f32.partialorder %v6616, 0.7853982
          %vm6618 = vcmp.lt.s32.totalorder %v3321, 0
          %v6619 = vand.u32 %v3321, 2139095040
          %v6620 = vshrl.u32 %v6619, 23
          %v6621 = vsub.s32 %v6620, 127
          %v6622 = vand.u32 2147483647, %v3321
          %v6623 = vand.u32 %v6622, 8388607
          %v6624 = vor.u32 %v6623, 8388608
          %v6625 = vsub.s32 0, %v6624
          %v6626 = vadd.s32 %v6621, 1
          %vm6627 = vcmp.gt.s32.totalorder %v6626, 0
          %v6628 = vsel %vm6627, %v6626, 0
          %v6629 = vshrl.u32 %v6628, 5
          %v6630 = vand.u32 %v6628, 31
          %v6631 = vsub.s32 32, %v6630
          %v6632 = vshrl.u32 683565275, %v6631
          %v6633 = vshll.u32 683565275, %v6630
          %v6634 = vshrl.u32 2475754826, %v6631
          %v6635 = vor.u32 %v6633, %v6634
          %v6636 = vshll.u32 2475754826, %v6630
          %v6637 = vshrl.u32 2131351028, %v6631
          %v6638 = vor.u32 %v6636, %v6637
          %v6639 = vshll.u32 2131351028, %v6630
          %v6640 = vshrl.u32 2102212464, %v6631
          %v6641 = vor.u32 %v6639, %v6640
          %v6642 = vshll.u32 2102212464, %v6630
          %v6643 = vshrl.u32 920167782, %v6631
          %v6644 = vor.u32 %v6642, %v6643
          %v6645 = vshll.u32 920167782, %v6630
          %v6646 = vshrl.u32 1326507024, %v6631
          %v6647 = vor.u32 %v6645, %v6646
          %vm6648 = vcmp.lt.s32.totalorder %v6629, 1
          %vm6649 = vcmp.lt.s32.totalorder %v6629, 2
          %vm6650 = vcmp.lt.s32.totalorder %v6629, 3
          %vm6651 = vcmp.lt.s32.totalorder %v6629, 4
          %v6652 = vsel %vm6648, %v6632, %v6635
          %v6653 = vsel %vm6651, %v6641, 2102212464
          %v6654 = vsel %vm6650, %v6638, %v6653
          %v6655 = vsel %vm6649, %v6652, %v6654
          %v6656 = vsel %vm6648, %v6635, %v6638
          %v6657 = vsel %vm6651, %v6644, 920167782
          %v6658 = vsel %vm6650, %v6641, %v6657
          %v6659 = vsel %vm6649, %v6656, %v6658
          %v6660 = vsel %vm6648, %v6638, %v6641
          %v6661 = vsel %vm6651, %v6647, 1326507024
          %v6662 = vsel %vm6650, %v6644, %v6661
          %v6663 = vsel %vm6649, %v6660, %v6662
          %v6664 = vshll.u32 %v6624, 8
          %v6665 = vmul.u32.u64.compose %v6664, %v6663
          %v6666 = vextract.low.u32 %v6665
          %v6667 = vextract.high.u32 %v6665
          %v6668 = vmul.u32.u64.compose %v6664, %v6659
          %v6669 = vextract.low.u32 %v6668
          %v6670 = vextract.high.u32 %v6668
          %v6671 = vmul.u32 %v6664, %v6655
          %v6672 = vadd.s32 %v6667, %v6669
          %vm6673 = vc.u32 %v6667, %v6669
          %v6674 = vadd.s32 %v6670, 1
          %v6675 = vsel %vm6673, %v6674, %v6670
          %v6676 = vadd.s32 %v6671, %v6675
          %v6677 = vadd.s32 %v6676, 536870912
          %v6678 = vshrl.u32 %v6677, 30
          %v6679 = vshll.u32 %v6678, 30
          %v6680 = vsub.s32 %v6676, %v6679
          %vm6681 = vcmp.lt.s32.totalorder %v6680, 0
          %v6682 = vsub.s32 0, %v6680
          %v6683 = vsel %vm6681, %v6682, %v6680
          %v6684 = vclz %v6683
          %v6685 = vsub.s32 %v6684, 2
          %vm6686 = vcmp.gt.s32.totalorder 0, %v6685
          %v6687 = vsel %vm6686, 0, %v6685
          %v6688 = vsub.s32 32, %v6687
          %v6689 = vshll.u32 %v6680, %v6687
          %v6690 = vshrl.u32 %v6672, %v6688
          %v6691 = vor.u32 %v6689, %v6690
          %v6692 = vsub.s32 4294967266, %v6687
          %v6693 = vadd.s32 %v6692, 127
          %v6694 = vshll.u32 %v6693, 23
          %v6695 = vor.u32 4788187, %v6694
          %v6696 = vand.u32 2147483647, %v6695
          %v6698 = vcvt.s32.f32 %v6691
          %v6699 = vmul.f32 %v6698, %v6696
          %v6700 = vxor.u32 %v6699, 2147483648
          %v6701 = vsel %vm6618, %v6700, %v6699
          %v6702 = vsub.s32 4, %v6678
          %v6703 = vsel %vm6618, %v6702, %v6678
          %v6704 = vsel %vm6617, %v3321, %v6701
          %v6705 = vsel %vm6617, 0, %v6703
          %v6706 = vcosq.f32.pop %v6704
          %v6707 = vsinq.f32.pop %v6704
          %vm6708 = vweird.f32 %v3321
          %v6709 = vand.u32 %v6705, 3
          %vm6710 = vcmp.lt.s32.totalorder %v6709, 2
          %vm6711 = vcmp.eq.s32.totalorder %v6709, 0
          %v6712 = vxor.u32 %v6707, 2147483648
          %v6713 = vsel %vm6711, %v6706, %v6712
          %vm6714 = vcmp.eq.s32.totalorder %v6709, 2
          %v6715 = vxor.u32 %v6706, 2147483648
          %v6716 = vsel %vm6714, %v6715, %v6707
          %v6717 = vsel %vm6710, %v6713, %v6716
          %v6718 = vsel %vm6708, nan, %v6717
          %v6735 = vrot.slane %v3175, 7
          %v6736 = vrot.slane %v3183, 7
          %v6737 = vsel %vm3313, %v6735, %v6736
          %v6738 = vrot.slane %v3176, 7
          %v6739 = vrot.slane %v3184, 7
          %v6740 = vsel %vm3313, %v6738, %v6739
          %v6741 = vrot.slane %v3177, 7
          %v6742 = vrot.slane %v3185, 7
          %v6743 = vsel %vm3313, %v6741, %v6742
          %v6744 = vrot.slane %v3178, 7
          %v6745 = vrot.slane %v3186, 7
          %v6746 = vsel %vm3313, %v6744, %v6745
          %v6747 = vrot.slane %v3179, 7
          %v6748 = vrot.slane %v3187, 7
          %v6749 = vsel %vm3313, %v6747, %v6748
          %v6750 = vrot.slane %v3180, 7
          %v6751 = vrot.slane %v3188, 7
          %v6752 = vsel %vm3313, %v6750, %v6751
          %v6753 = vrot.slane %v3181, 7
          %v6754 = vrot.slane %v3189, 7
          %v6755 = vsel %vm3313, %v6753, %v6754
          %v6756 = vrot.slane %v3182, 7
          %v6757 = vrot.slane %v3190, 7
          %v6758 = vsel %vm3313, %v6756, %v6757
          %v6759 = vrot.slane %v3191, 7
          %v6760 = vsel %vm3313, %v6736, %v6759
          %v6761 = vrot.slane %v3192, 7
          %v6762 = vsel %vm3313, %v6739, %v6761
          %v6763 = vrot.slane %v3193, 7
          %v6764 = vsel %vm3313, %v6742, %v6763
          %v6765 = vrot.slane %v3194, 7
          %v6766 = vsel %vm3313, %v6745, %v6765
          %v6767 = vrot.slane %v3195, 7
          %v6768 = vsel %vm3313, %v6748, %v6767
          %v6769 = vrot.slane %v3196, 7
          %v6770 = vsel %vm3313, %v6751, %v6769
          %v6771 = vrot.slane %v3197, 7
          %v6772 = vsel %vm3313, %v6754, %v6771
          %v6773 = vrot.slane %v3198, 7
          %v6774 = vsel %vm3313, %v6757, %v6773
          %v6791 = vmul.f32 %v5173, %v6737
          %v6792 = vmul.f32 %v5276, %v6740
          %v6793 = vmul.f32 %v5379, %v6743
          %v6794 = vmul.f32 %v5482, %v6746
          %v6795 = vmul.f32 %v5585, %v6749
          %v6796 = vmul.f32 %v5688, %v6752
          %v6797 = vmul.f32 %v5791, %v6755
          %v6798 = vmul.f32 %v5894, %v6758
          %v6799 = vmul.f32 %v5997, %v6760
          %v6800 = vmul.f32 %v6100, %v6762
          %v6801 = vmul.f32 %v6203, %v6764
          %v6802 = vmul.f32 %v6306, %v6766
          %v6803 = vmul.f32 %v6409, %v6768
          %v6804 = vmul.f32 %v6512, %v6770
          %v6805 = vmul.f32 %v6615, %v6772
          %v6806 = vmul.f32 %v6718, %v6774
          %v6811 = vcombine.high %v3338, %v3338
          %v6812 = vcombine.high %v3339, %v3339
          %v6813 = vcombine.high %v3340, %v3340
          %v6814 = vcombine.high %v3341, %v3341
          %v6835 = vrot.slane %v5055, 5
          %v6836 = vrot.slane %v5056, 5
          %v6837 = vrot.slane %v5057, 5
          %v6838 = vrot.slane %v5058, 5
          %v6839 = vrot.slane %v5059, 5
          %v6840 = vrot.slane %v5060, 5
          %v6841 = vrot.slane %v5061, 5
          %v6842 = vrot.slane %v5062, 5
          %v6843 = vrot.slane %v5063, 5
          %v6844 = vsel %vm3295, %v6835, %v6843
          %v6845 = vrot.slane %v5064, 5
          %v6846 = vsel %vm3295, %v6836, %v6845
          %v6847 = vrot.slane %v5065, 5
          %v6848 = vsel %vm3295, %v6837, %v6847
          %v6849 = vrot.slane %v5066, 5
          %v6850 = vsel %vm3295, %v6838, %v6849
          %v6851 = vrot.slane %v5067, 5
          %v6852 = vsel %vm3295, %v6839, %v6851
          %v6853 = vrot.slane %v5068, 5
          %v6854 = vsel %vm3295, %v6840, %v6853
          %v6855 = vrot.slane %v5069, 5
          %v6856 = vsel %vm3295, %v6841, %v6855
          %v6857 = vrot.slane %v5070, 5
          %v6858 = vsel %vm3295, %v6842, %v6857
          %vm6891 = vcmask 1046528
          %v6892 = vrot.slane %v6791, 1
          %v6893 = vrot.slane %v6792, 1
          %v6894 = vrot.slane %v6793, 1
          %v6895 = vrot.slane %v6794, 1
          %v6896 = vrot.slane %v6795, 1
          %v6897 = vrot.slane %v6796, 1
          %v6898 = vrot.slane %v6797, 1
          %v6899 = vrot.slane %v6798, 1
          %v6900 = vrot.slane %v6799, 1
          %v6901 = vsel %vm6891, %v6892, %v6900
          %v6902 = vrot.slane %v6800, 1
          %v6903 = vsel %vm6891, %v6893, %v6902
          %v6904 = vrot.slane %v6801, 1
          %v6905 = vsel %vm6891, %v6894, %v6904
          %v6906 = vrot.slane %v6802, 1
          %v6907 = vsel %vm6891, %v6895, %v6906
          %v6908 = vrot.slane %v6803, 1
          %v6909 = vsel %vm6891, %v6896, %v6908
          %v6910 = vrot.slane %v6804, 1
          %v6911 = vsel %vm6891, %v6897, %v6910
          %v6912 = vrot.slane %v6805, 1
          %v6913 = vsel %vm6891, %v6898, %v6912
          %v6914 = vrot.slane %v6806, 1
          %v6915 = vsel %vm6891, %v6899, %v6914
          %v6932 = vsel %vm3295, %v3338, %v6835
          %v6933 = vsel %vm3295, %v6811, %v6836
          %v6934 = vsel %vm3295, %v3339, %v6837
          %v6935 = vsel %vm3295, %v6812, %v6838
          %v6936 = vsel %vm3295, %v3340, %v6839
          %v6937 = vsel %vm3295, %v6813, %v6840
          %v6938 = vsel %vm3295, %v3341, %v6841
          %v6939 = vsel %vm3295, %v6814, %v6842
          %v6940 = vsel %vm6891, %v6844, %v6892
          %v6941 = vsel %vm6891, %v6846, %v6893
          %v6942 = vsel %vm6891, %v6848, %v6894
          %v6943 = vsel %vm6891, %v6850, %v6895
          %v6944 = vsel %vm6891, %v6852, %v6896
          %v6945 = vsel %vm6891, %v6854, %v6897
          %v6946 = vsel %vm6891, %v6856, %v6898
          %v6947 = vsel %vm6891, %v6858, %v6899
          %6949 = vset.pattern.permute.xlu0 0
          %6950 = vperm.xlu0 %6949, %v395
          %v6951 = vpop.permute.xlu0 %6950
          %6954 = vset.pattern.permute.xlu0 0
          %6955 = vperm.xlu0 %6954, %v396
          %v6956 = vpop.permute.xlu0 %6955
          %6959 = vset.pattern.permute.xlu0 0
          %6960 = vperm.xlu0 %6959, %v397
          %v6961 = vpop.permute.xlu0 %6960
          %6964 = vset.pattern.permute.xlu0 0
          %6965 = vperm.xlu0 %6964, %v398
          %v6966 = vpop.permute.xlu0 %6965
          %vm6968 = vcmask 220160
          %v6970 = vsel %vm6968, %v391, 0
          %v6973 = vsel %vm6968, %v392, 0
          %v6976 = vsel %vm6968, %v393, 0
          %v6979 = vsel %vm6968, %v394, 0
          %v6981 = vsel %vm3295, %v6900, 0
          %v6983 = vsel %vm3295, %v6902, 0
          %v6985 = vsel %vm3295, %v6904, 0
          %v6987 = vsel %vm3295, %v6906, 0
          %v6989 = vsel %vm3295, %v6908, 0
          %v6991 = vsel %vm3295, %v6910, 0
          %v6993 = vsel %vm3295, %v6912, 0
          %v6995 = vsel %vm3295, %v6914, 0
          %6997 = vmatprep.subr.mxu0 %v6933
          %6998 = vmatpush1.msra.mxu0 %v6932
          %6999 = vmatprep.subr.mxu0 %v6941
          %7000 = vmatpush1.msra.mxu0 %v6940
          %7001 = vmatprep.subr.mxu0 %v6903
          %7002 = vmatpush1.msra.mxu0 %v6901
          %7003 = vmatprep.subr.mxu0 %v6983
          %7004 = vmatpush1.msra.mxu0 %v6981
          %7005 = vmatprep.subr.mxu0 0.0
          %7006 = vmatpush1.msra.mxu0 0.0
          %7007 = vmatprep.subr.mxu0 0.0
          %7008 = vmatpush1.msra.mxu0 0.0
          %7009 = vmatprep.subr.mxu0 0.0
          %7010 = vmatpush1.msra.mxu0 0.0
          %7011 = vmatprep.subr.mxu0 0.0
          %7012 = vmatpush1.msra.mxu0 0.0
          %7013 = vmatprep.subr.mxu0 0.0
          %7014 = vmatpush1.msra.mxu0 0.0
          %7015 = vmatprep.subr.mxu0 0.0
          %7016 = vmatpush1.msra.mxu0 0.0
          %7017 = vmatprep.subr.mxu0 0.0
          %7018 = vmatpush1.msra.mxu0 0.0
          %7019 = vmatprep.subr.mxu0 0.0
          %7020 = vmatpush1.msra.mxu0 0.0
          %7021 = vmatprep.subr.mxu0 0.0
          %7022 = vmatpush1.msra.mxu0 0.0
          %7023 = vmatprep.subr.mxu0 0.0
          %7024 = vmatpush1.msra.mxu0 0.0
          %7025 = vmatprep.subr.mxu0 0.0
          %7026 = vmatpush1.msra.mxu0 0.0
          %7027 = vmatprep.subr.mxu0 0.0
          %7028 = vmatpush1.msra.mxu0 0.0
          %7029 = vmatprep.subr.mxu0 0.0
          %7030 = vmatpush1.msra.mxu0 0.0
          %7031 = vmatprep.subr.mxu0 0.0
          %7032 = vmatpush1.msra.mxu0 0.0
          %7033 = vmatprep.subr.mxu0 0.0
          %7034 = vmatpush1.msra.mxu0 0.0
          %7035 = vmatprep.subr.mxu0 0.0
          %7036 = vmatpush1.msra.mxu0 0.0
          %7037 = vmatprep.subr.mxu0 0.0
          %7038 = vmatpush1.msra.mxu0 0.0
          %7039 = vmatprep.subr.mxu0 0.0
          %7040 = vmatpush1.msra.mxu0 0.0
          %7041 = vmatprep.subr.mxu0 0.0
          %7042 = vmatpush1.msra.mxu0 0.0
          %7043 = vmatprep.subr.mxu0 0.0
          %7044 = vmatpush1.msra.mxu0 0.0
          %7045 = vmatprep.subr.mxu0 0.0
          %7046 = vmatpush1.msra.mxu0 0.0
          %7047 = vmatprep.subr.mxu0 0.0
          %7048 = vmatpush1.msra.mxu0 0.0
          %7049 = vmatprep.subr.mxu0 0.0
          %7050 = vmatpush1.msra.mxu0 0.0
          %7051 = vmatprep.subr.mxu0 0.0
          %7052 = vmatpush1.msra.mxu0 0.0
          %7053 = vmatprep.subr.mxu0 0.0
          %7054 = vmatpush1.msra.mxu0 0.0
          %7055 = vmatprep.subr.mxu0 0.0
          %7056 = vmatpush1.msra.mxu0 0.0
          %7057 = vmatprep.subr.mxu0 0.0
          %7058 = vmatpush1.msra.mxu0 0.0
          %7059 = vmatprep.subr.mxu0 0.0
          %7060 = vmatpush1.msra.mxu0 0.0
          %7061 = vmatprep.mubr.f32.mxu0 0.0
          %7062 = vmatmul.mubr.f32.gmra.mrb[0].mxu0 %v6970
          %v7063 = vpop.f32.mrb[0].mxu0
          %v7064 = vadd.f32 %v6951, %v7063
          %v7065 = vpop.f32.mrb[0].mxu0
          %v7066 = vadd.f32 %v6951, %v7065
          %7067 = vmatprep.mubr.f32.mxu0 0.0
          %7068 = vmatmul.mubr.f32.gmra.mrb[0].mxu0 %v6973
          %v7069 = vpop.f32.mrb[0].mxu0
          %v7070 = vadd.f32 %v6956, %v7069
          %v7071 = vpop.f32.mrb[0].mxu0
          %v7072 = vadd.f32 %v6956, %v7071
          %7073 = vmatprep.mubr.f32.mxu0 0.0
          %7074 = vmatmul.mubr.f32.gmra.mrb[0].mxu0 %v6976
          %v7075 = vpop.f32.mrb[0].mxu0
          %v7076 = vadd.f32 %v6961, %v7075
          %v7077 = vpop.f32.mrb[0].mxu0
          %v7078 = vadd.f32 %v6961, %v7077
          %7079 = vmatprep.mubr.f32.mxu0 0.0
          %7080 = vmatmul.mubr.f32.gmra.mrb[0].mxu0 %v6979
          %v7081 = vpop.f32.mrb[0].mxu0
          %v7082 = vadd.f32 %v6966, %v7081
          %v7083 = vpop.f32.mrb[0].mxu0
          %v7084 = vadd.f32 %v6966, %v7083
          %7085 = vdwg.mxu0
          %7086 = vmatprep.subr.mxu0 %v6935
          %7087 = vmatpush1.msra.mxu0 %v6934
          %7088 = vmatprep.subr.mxu0 %v6943
          %7089 = vmatpush1.msra.mxu0 %v6942
          %7090 = vmatprep.subr.mxu0 %v6907
          %7091 = vmatpush1.msra.mxu0 %v6905
          %7092 = vmatprep.subr.mxu0 %v6987
          %7093 = vmatpush1.msra.mxu0 %v6985
          %7094 = vmatprep.subr.mxu0 0.0
          %7095 = vmatpush1.msra.mxu0 0.0
          %7096 = vmatprep.subr.mxu0 0.0
          %7097 = vmatpush1.msra.mxu0 0.0
          %7098 = vmatprep.subr.mxu0 0.0
          %7099 = vmatpush1.msra.mxu0 0.0
          %7100 = vmatprep.subr.mxu0 0.0
          %7101 = vmatpush1.msra.mxu0 0.0
          %7102 = vmatprep.subr.mxu0 0.0
          %7103 = vmatpush1.msra.mxu0 0.0
          %7104 = vmatprep.subr.mxu0 0.0
          %7105 = vmatpush1.msra.mxu0 0.0
          %7106 = vmatprep.subr.mxu0 0.0
          %7107 = vmatpush1.msra.mxu0 0.0
          %7108 = vmatprep.subr.mxu0 0.0
          %7109 = vmatpush1.msra.mxu0 0.0
          %7110 = vmatprep.subr.mxu0 0.0
          %7111 = vmatpush1.msra.mxu0 0.0
          %7112 = vmatprep.subr.mxu0 0.0
          %7113 = vmatpush1.msra.mxu0 0.0
          %7114 = vmatprep.subr.mxu0 0.0
          %7115 = vmatpush1.msra.mxu0 0.0
          %7116 = vmatprep.subr.mxu0 0.0
          %7117 = vmatpush1.msra.mxu0 0.0
          %7118 = vmatprep.subr.mxu0 0.0
          %7119 = vmatpush1.msra.mxu0 0.0
          %7120 = vmatprep.subr.mxu0 0.0
          %7121 = vmatpush1.msra.mxu0 0.0
          %7122 = vmatprep.subr.mxu0 0.0
          %7123 = vmatpush1.msra.mxu0 0.0
          %7124 = vmatprep.subr.mxu0 0.0
          %7125 = vmatpush1.msra.mxu0 0.0
          %7126 = vmatprep.subr.mxu0 0.0
          %7127 = vmatpush1.msra.mxu0 0.0
          %7128 = vmatprep.subr.mxu0 0.0
          %7129 = vmatpush1.msra.mxu0 0.0
          %7130 = vmatprep.subr.mxu0 0.0
          %7131 = vmatpush1.msra.mxu0 0.0
          %7132 = vmatprep.subr.mxu0 0.0
          %7133 = vmatpush1.msra.mxu0 0.0
          %7134 = vmatprep.subr.mxu0 0.0
          %7135 = vmatpush1.msra.mxu0 0.0
          %7136 = vmatprep.subr.mxu0 0.0
          %7137 = vmatpush1.msra.mxu0 0.0
          %7138 = vmatprep.subr.mxu0 0.0
          %7139 = vmatpush1.msra.mxu0 0.0
          %7140 = vmatprep.subr.mxu0 0.0
          %7141 = vmatpush1.msra.mxu0 0.0
          %7142 = vmatprep.subr.mxu0 0.0
          %7143 = vmatpush1.msra.mxu0 0.0
          %7144 = vmatprep.subr.mxu0 0.0
          %7145 = vmatpush1.msra.mxu0 0.0
          %7146 = vmatprep.subr.mxu0 0.0
          %7147 = vmatpush1.msra.mxu0 0.0
          %7148 = vmatprep.subr.mxu0 0.0
          %7149 = vmatpush1.msra.mxu0 0.0
          %7150 = vmatprep.mubr.f32.mxu0 0.0
          %7151 = vmatmul.mubr.f32.gmra.mrb[0].mxu0 %v6970
          %v7152 = vpop.f32.mrb[0].mxu0
          %v7153 = vadd.f32 %v6951, %v7152
          %v7154 = vpop.f32.mrb[0].mxu0
          %v7155 = vadd.f32 %v6951, %v7154
          %7156 = vmatprep.mubr.f32.mxu0 0.0
          %7157 = vmatmul.mubr.f32.gmra.mrb[0].mxu0 %v6973
          %v7158 = vpop.f32.mrb[0].mxu0
          %v7159 = vadd.f32 %v6956, %v7158
          %v7160 = vpop.f32.mrb[0].mxu0
          %v7161 = vadd.f32 %v6956, %v7160
          %7162 = vmatprep.mubr.f32.mxu0 0.0
          %7163 = vmatmul.mubr.f32.gmra.mrb[0].mxu0 %v6976
          %v7164 = vpop.f32.mrb[0].mxu0
          %v7165 = vadd.f32 %v6961, %v7164
          %v7166 = vpop.f32.mrb[0].mxu0
          %v7167 = vadd.f32 %v6961, %v7166
          %7168 = vmatprep.mubr.f32.mxu0 0.0
          %7169 = vmatmul.mubr.f32.gmra.mrb[0].mxu0 %v6979
          %v7170 = vpop.f32.mrb[0].mxu0
          %v7171 = vadd.f32 %v6966, %v7170
          %v7172 = vpop.f32.mrb[0].mxu0
          %v7173 = vadd.f32 %v6966, %v7172
          %7174 = vdwg.mxu0
          %7175 = vmatprep.subr.mxu0 %v6937
          %7176 = vmatpush1.msra.mxu0 %v6936
          %7177 = vmatprep.subr.mxu0 %v6945
          %7178 = vmatpush1.msra.mxu0 %v6944
          %7179 = vmatprep.subr.mxu0 %v6911
          %7180 = vmatpush1.msra.mxu0 %v6909
          %7181 = vmatprep.subr.mxu0 %v6991
          %7182 = vmatpush1.msra.mxu0 %v6989
          %7183 = vmatprep.subr.mxu0 0.0
          %7184 = vmatpush1.msra.mxu0 0.0
          %7185 = vmatprep.subr.mxu0 0.0
          %7186 = vmatpush1.msra.mxu0 0.0
          %7187 = vmatprep.subr.mxu0 0.0
          %7188 = vmatpush1.msra.mxu0 0.0
          %7189 = vmatprep.subr.mxu0 0.0
          %7190 = vmatpush1.msra.mxu0 0.0
          %7191 = vmatprep.subr.mxu0 0.0
          %7192 = vmatpush1.msra.mxu0 0.0
          %7193 = vmatprep.subr.mxu0 0.0
          %7194 = vmatpush1.msra.mxu0 0.0
          %7195 = vmatprep.subr.mxu0 0.0
          %7196 = vmatpush1.msra.mxu0 0.0
          %7197 = vmatprep.subr.mxu0 0.0
          %7198 = vmatpush1.msra.mxu0 0.0
          %7199 = vmatprep.subr.mxu0 0.0
          %7200 = vmatpush1.msra.mxu0 0.0
          %7201 = vmatprep.subr.mxu0 0.0
          %7202 = vmatpush1.msra.mxu0 0.0
          %7203 = vmatprep.subr.mxu0 0.0
          %7204 = vmatpush1.msra.mxu0 0.0
          %7205 = vmatprep.subr.mxu0 0.0
          %7206 = vmatpush1.msra.mxu0 0.0
          %7207 = vmatprep.subr.mxu0 0.0
          %7208 = vmatpush1.msra.mxu0 0.0
          %7209 = vmatprep.subr.mxu0 0.0
          %7210 = vmatpush1.msra.mxu0 0.0
          %7211 = vmatprep.subr.mxu0 0.0
          %7212 = vmatpush1.msra.mxu0 0.0
          %7213 = vmatprep.subr.mxu0 0.0
          %7214 = vmatpush1.msra.mxu0 0.0
          %7215 = vmatprep.subr.mxu0 0.0
          %7216 = vmatpush1.msra.mxu0 0.0
          %7217 = vmatprep.subr.mxu0 0.0
          %7218 = vmatpush1.msra.mxu0 0.0
          %7219 = vmatprep.subr.mxu0 0.0
          %7220 = vmatpush1.msra.mxu0 0.0
          %7221 = vmatprep.subr.mxu0 0.0
          %7222 = vmatpush1.msra.mxu0 0.0
          %7223 = vmatprep.subr.mxu0 0.0
          %7224 = vmatpush1.msra.mxu0 0.0
          %7225 = vmatprep.subr.mxu0 0.0
          %7226 = vmatpush1.msra.mxu0 0.0
          %7227 = vmatprep.subr.mxu0 0.0
          %7228 = vmatpush1.msra.mxu0 0.0
          %7229 = vmatprep.subr.mxu0 0.0
          %7230 = vmatpush1.msra.mxu0 0.0
          %7231 = vmatprep.subr.mxu0 0.0
          %7232 = vmatpush1.msra.mxu0 0.0
          %7233 = vmatprep.subr.mxu0 0.0
          %7234 = vmatpush1.msra.mxu0 0.0
          %7235 = vmatprep.subr.mxu0 0.0
          %7236 = vmatpush1.msra.mxu0 0.0
          %7237 = vmatprep.subr.mxu0 0.0
          %7238 = vmatpush1.msra.mxu0 0.0
          %7239 = vmatprep.mubr.f32.mxu0 0.0
          %7240 = vmatmul.mubr.f32.gmra.mrb[0].mxu0 %v6970
          %v7241 = vpop.f32.mrb[0].mxu0
          %v7242 = vadd.f32 %v6951, %v7241
          %v7243 = vpop.f32.mrb[0].mxu0
          %v7244 = vadd.f32 %v6951, %v7243
          %7245 = vmatprep.mubr.f32.mxu0 0.0
          %7246 = vmatmul.mubr.f32.gmra.mrb[0].mxu0 %v6973
          %v7247 = vpop.f32.mrb[0].mxu0
          %v7248 = vadd.f32 %v6956, %v7247
          %v7249 = vpop.f32.mrb[0].mxu0
          %v7250 = vadd.f32 %v6956, %v7249
          %7251 = vmatprep.mubr.f32.mxu0 0.0
          %7252 = vmatmul.mubr.f32.gmra.mrb[0].mxu0 %v6976
          %v7253 = vpop.f32.mrb[0].mxu0
          %v7254 = vadd.f32 %v6961, %v7253
          %v7255 = vpop.f32.mrb[0].mxu0
          %v7256 = vadd.f32 %v6961, %v7255
          %7257 = vmatprep.mubr.f32.mxu0 0.0
          %7258 = vmatmul.mubr.f32.gmra.mrb[0].mxu0 %v6979
          %v7259 = vpop.f32.mrb[0].mxu0
          %v7260 = vadd.f32 %v6966, %v7259
          %v7261 = vpop.f32.mrb[0].mxu0
          %v7262 = vadd.f32 %v6966, %v7261
          %7263 = vdwg.mxu0
          %7264 = vmatprep.subr.mxu0 %v6939
          %7265 = vmatpush1.msra.mxu0 %v6938
          %7266 = vmatprep.subr.mxu0 %v6947
          %7267 = vmatpush1.msra.mxu0 %v6946
          %7268 = vmatprep.subr.mxu0 %v6915
          %7269 = vmatpush1.msra.mxu0 %v6913
          %7270 = vmatprep.subr.mxu0 %v6995
          %7271 = vmatpush1.msra.mxu0 %v6993
          %7272 = vmatprep.subr.mxu0 0.0
          %7273 = vmatpush1.msra.mxu0 0.0
          %7274 = vmatprep.subr.mxu0 0.0
          %7275 = vmatpush1.msra.mxu0 0.0
          %7276 = vmatprep.subr.mxu0 0.0
          %7277 = vmatpush1.msra.mxu0 0.0
          %7278 = vmatprep.subr.mxu0 0.0
          %7279 = vmatpush1.msra.mxu0 0.0
          %7280 = vmatprep.subr.mxu0 0.0
          %7281 = vmatpush1.msra.mxu0 0.0
          %7282 = vmatprep.subr.mxu0 0.0
          %7283 = vmatpush1.msra.mxu0 0.0
          %7284 = vmatprep.subr.mxu0 0.0
          %7285 = vmatpush1.msra.mxu0 0.0
          %7286 = vmatprep.subr.mxu0 0.0
          %7287 = vmatpush1.msra.mxu0 0.0
          %7288 = vmatprep.subr.mxu0 0.0
          %7289 = vmatpush1.msra.mxu0 0.0
          %7290 = vmatprep.subr.mxu0 0.0
          %7291 = vmatpush1.msra.mxu0 0.0
          %7292 = vmatprep.subr.mxu0 0.0
          %7293 = vmatpush1.msra.mxu0 0.0
          %7294 = vmatprep.subr.mxu0 0.0
          %7295 = vmatpush1.msra.mxu0 0.0
          %7296 = vmatprep.subr.mxu0 0.0
          %7297 = vmatpush1.msra.mxu0 0.0
          %7298 = vmatprep.subr.mxu0 0.0
          %7299 = vmatpush1.msra.mxu0 0.0
          %7300 = vmatprep.subr.mxu0 0.0
          %7301 = vmatpush1.msra.mxu0 0.0
          %7302 = vmatprep.subr.mxu0 0.0
          %7303 = vmatpush1.msra.mxu0 0.0
          %7304 = vmatprep.subr.mxu0 0.0
          %7305 = vmatpush1.msra.mxu0 0.0
          %7306 = vmatprep.subr.mxu0 0.0
          %7307 = vmatpush1.msra.mxu0 0.0
          %7308 = vmatprep.subr.mxu0 0.0
          %7309 = vmatpush1.msra.mxu0 0.0
          %7310 = vmatprep.subr.mxu0 0.0
          %7311 = vmatpush1.msra.mxu0 0.0
          %7312 = vmatprep.subr.mxu0 0.0
          %7313 = vmatpush1.msra.mxu0 0.0
          %7314 = vmatprep.subr.mxu0 0.0
          %7315 = vmatpush1.msra.mxu0 0.0
          %7316 = vmatprep.subr.mxu0 0.0
          %7317 = vmatpush1.msra.mxu0 0.0
          %7318 = vmatprep.subr.mxu0 0.0
          %7319 = vmatpush1.msra.mxu0 0.0
          %7320 = vmatprep.subr.mxu0 0.0
          %7321 = vmatpush1.msra.mxu0 0.0
          %7322 = vmatprep.subr.mxu0 0.0
          %7323 = vmatpush1.msra.mxu0 0.0
          %7324 = vmatprep.subr.mxu0 0.0
          %7325 = vmatpush1.msra.mxu0 0.0
          %7326 = vmatprep.subr.mxu0 0.0
          %7327 = vmatpush1.msra.mxu0 0.0
          %7328 = vmatprep.mubr.f32.mxu0 0.0
          %7329 = vmatmul.mubr.f32.gmra.mrb[0].mxu0 %v6970
          %v7330 = vpop.f32.mrb[0].mxu0
          %v7331 = vadd.f32 %v6951, %v7330
          %v7332 = vpop.f32.mrb[0].mxu0
          %v7333 = vadd.f32 %v6951, %v7332
          %7334 = vmatprep.mubr.f32.mxu0 0.0
          %7335 = vmatmul.mubr.f32.gmra.mrb[0].mxu0 %v6973
          %v7336 = vpop.f32.mrb[0].mxu0
          %v7337 = vadd.f32 %v6956, %v7336
          %v7338 = vpop.f32.mrb[0].mxu0
          %v7339 = vadd.f32 %v6956, %v7338
          %7340 = vmatprep.mubr.f32.mxu0 0.0
          %7341 = vmatmul.mubr.f32.gmra.mrb[0].mxu0 %v6976
          %v7342 = vpop.f32.mrb[0].mxu0
          %v7343 = vadd.f32 %v6961, %v7342
          %v7344 = vpop.f32.mrb[0].mxu0
          %v7345 = vadd.f32 %v6961, %v7344
          %7346 = vmatprep.mubr.f32.mxu0 0.0
          %7347 = vmatmul.mubr.f32.gmra.mrb[0].mxu0 %v6979
          %v7348 = vpop.f32.mrb[0].mxu0
          %v7349 = vadd.f32 %v6966, %v7348
          %v7350 = vpop.f32.mrb[0].mxu0
          %v7351 = vadd.f32 %v6966, %v7350
          %7352 = vdwg.mxu0
          %v7353 = vmul.f32 %v7064, 0.2
          %v7354 = vmul.f32 %v7066, 0.2
          %v7355 = vmul.f32 %v7153, 0.2
          %v7356 = vmul.f32 %v7155, 0.2
          %v7357 = vmul.f32 %v7242, 0.2
          %v7358 = vmul.f32 %v7244, 0.2
          %v7359 = vmul.f32 %v7331, 0.2
          %v7360 = vmul.f32 %v7333, 0.2
          %v7361 = vmul.f32 %v7070, 0.2
          %v7362 = vmul.f32 %v7072, 0.2
          %v7363 = vmul.f32 %v7159, 0.2
          %v7364 = vmul.f32 %v7161, 0.2
          %v7365 = vmul.f32 %v7248, 0.2
          %v7366 = vmul.f32 %v7250, 0.2
          %v7367 = vmul.f32 %v7337, 0.2
          %v7368 = vmul.f32 %v7339, 0.2
          %v7369 = vmul.f32 %v7076, 0.2
          %v7370 = vmul.f32 %v7078, 0.2
          %v7371 = vmul.f32 %v7165, 0.2
          %v7372 = vmul.f32 %v7167, 0.2
          %v7373 = vmul.f32 %v7254, 0.2
          %v7374 = vmul.f32 %v7256, 0.2
          %v7375 = vmul.f32 %v7343, 0.2
          %v7376 = vmul.f32 %v7345, 0.2
          %v7377 = vmul.f32 %v7082, 0.2
          %v7378 = vmul.f32 %v7084, 0.2
          %v7379 = vmul.f32 %v7171, 0.2
          %v7380 = vmul.f32 %v7173, 0.2
          %v7381 = vmul.f32 %v7260, 0.2
          %v7382 = vmul.f32 %v7262, 0.2
          %v7383 = vmul.f32 %v7349, 0.2
          %v7384 = vmul.f32 %v7351, 0.2
          %v7385 = vmax.f32 %v7064, %v7353
          %v7386 = vmax.f32 %v7066, %v7354
          %v7387 = vmax.f32 %v7153, %v7355
          %v7388 = vmax.f32 %v7155, %v7356
          %v7389 = vmax.f32 %v7242, %v7357
          %v7390 = vmax.f32 %v7244, %v7358
          %v7391 = vmax.f32 %v7331, %v7359
          %v7392 = vmax.f32 %v7333, %v7360
          %v7393 = vmax.f32 %v7070, %v7361
          %v7394 = vmax.f32 %v7072, %v7362
          %v7395 = vmax.f32 %v7159, %v7363
          %v7396 = vmax.f32 %v7161, %v7364
          %v7397 = vmax.f32 %v7248, %v7365
          %v7398 = vmax.f32 %v7250, %v7366
          %v7399 = vmax.f32 %v7337, %v7367
          %v7400 = vmax.f32 %v7339, %v7368
          %v7401 = vmax.f32 %v7076, %v7369
          %v7402 = vmax.f32 %v7078, %v7370
          %v7403 = vmax.f32 %v7165, %v7371
          %v7404 = vmax.f32 %v7167, %v7372
          %v7405 = vmax.f32 %v7254, %v7373
          %v7406 = vmax.f32 %v7256, %v7374
          %v7407 = vmax.f32 %v7343, %v7375
          %v7408 = vmax.f32 %v7345, %v7376
          %v7409 = vmax.f32 %v7082, %v7377
          %v7410 = vmax.f32 %v7084, %v7378
          %v7411 = vmax.f32 %v7171, %v7379
          %v7412 = vmax.f32 %v7173, %v7380
          %v7413 = vmax.f32 %v7260, %v7381
          %v7414 = vmax.f32 %v7262, %v7382
          %v7415 = vmax.f32 %v7349, %v7383
          %v7416 = vmax.f32 %v7351, %v7384
          %7418 = vset.pattern.permute.xlu0 0
          %7419 = vperm.xlu0 %7418, %v408
          %v7420 = vpop.permute.xlu0 %7419
          %7423 = vset.pattern.permute.xlu0 0
          %7424 = vperm.xlu0 %7423, %v409
          %v7425 = vpop.permute.xlu0 %7424
          %7428 = vset.pattern.permute.xlu0 0
          %7429 = vperm.xlu0 %7428, %v410
          %v7430 = vpop.permute.xlu0 %7429
          %7433 = vset.pattern.permute.xlu0 0
          %7434 = vperm.xlu0 %7433, %v411
          %v7435 = vpop.permute.xlu0 %7434
          %vm7437 = vcmask 261120
          %v7439 = vsel %vm7437, %v399, 0
          %v7442 = vsel %vm7437, %v400, 0
          %v7445 = vsel %vm7437, %v401, 0
          %v7448 = vsel %vm7437, %v402, 0
          %7450 = vmatprep.subr.mxu0 %v7386
          %7451 = vmatpush1.msra.mxu0 %v7385
          %7452 = vmatprep.subr.mxu0 %v7394
          %7453 = vmatpush1.msra.mxu0 %v7393
          %7454 = vmatprep.subr.mxu0 %v7402
          %7455 = vmatpush1.msra.mxu0 %v7401
          %7456 = vmatprep.subr.mxu0 %v7410
          %7457 = vmatpush1.msra.mxu0 %v7409
          %7458 = vmatprep.subr.mxu0 0.0
          %7459 = vmatpush1.msra.mxu0 0.0
          %7460 = vmatprep.subr.mxu0 0.0
          %7461 = vmatpush1.msra.mxu0 0.0
          %7462 = vmatprep.subr.mxu0 0.0
          %7463 = vmatpush1.msra.mxu0 0.0
          %7464 = vmatprep.subr.mxu0 0.0
          %7465 = vmatpush1.msra.mxu0 0.0
          %7466 = vmatprep.subr.mxu0 0.0
          %7467 = vmatpush1.msra.mxu0 0.0
          %7468 = vmatprep.subr.mxu0 0.0
          %7469 = vmatpush1.msra.mxu0 0.0
          %7470 = vmatprep.subr.mxu0 0.0
          %7471 = vmatpush1.msra.mxu0 0.0
          %7472 = vmatprep.subr.mxu0 0.0
          %7473 = vmatpush1.msra.mxu0 0.0
          %7474 = vmatprep.subr.mxu0 0.0
          %7475 = vmatpush1.msra.mxu0 0.0
          %7476 = vmatprep.subr.mxu0 0.0
          %7477 = vmatpush1.msra.mxu0 0.0
          %7478 = vmatprep.subr.mxu0 0.0
          %7479 = vmatpush1.msra.mxu0 0.0
          %7480 = vmatprep.subr.mxu0 0.0
          %7481 = vmatpush1.msra.mxu0 0.0
          %7482 = vmatprep.subr.mxu0 0.0
          %7483 = vmatpush1.msra.mxu0 0.0
          %7484 = vmatprep.subr.mxu0 0.0
          %7485 = vmatpush1.msra.mxu0 0.0
          %7486 = vmatprep.subr.mxu0 0.0
          %7487 = vmatpush1.msra.mxu0 0.0
          %7488 = vmatprep.subr.mxu0 0.0
          %7489 = vmatpush1.msra.mxu0 0.0
          %7490 = vmatprep.subr.mxu0 0.0
          %7491 = vmatpush1.msra.mxu0 0.0
          %7492 = vmatprep.subr.mxu0 0.0
          %7493 = vmatpush1.msra.mxu0 0.0
          %7494 = vmatprep.subr.mxu0 0.0
          %7495 = vmatpush1.msra.mxu0 0.0
          %7496 = vmatprep.subr.mxu0 0.0
          %7497 = vmatpush1.msra.mxu0 0.0
          %7498 = vmatprep.subr.mxu0 0.0
          %7499 = vmatpush1.msra.mxu0 0.0
          %7500 = vmatprep.subr.mxu0 0.0
          %7501 = vmatpush1.msra.mxu0 0.0
          %7502 = vmatprep.subr.mxu0 0.0
          %7503 = vmatpush1.msra.mxu0 0.0
          %7504 = vmatprep.subr.mxu0 0.0
          %7505 = vmatpush1.msra.mxu0 0.0
          %7506 = vmatprep.subr.mxu0 0.0
          %7507 = vmatpush1.msra.mxu0 0.0
          %7508 = vmatprep.subr.mxu0 0.0
          %7509 = vmatpush1.msra.mxu0 0.0
          %7510 = vmatprep.subr.mxu0 0.0
          %7511 = vmatpush1.msra.mxu0 0.0
          %7512 = vmatprep.subr.mxu0 0.0
          %7513 = vmatpush1.msra.mxu0 0.0
          %7514 = vmatprep.mubr.f32.mxu0 0.0
          %7515 = vmatmul.mubr.f32.gmra.mrb[0].mxu0 %v7439
          %v7516 = vpop.f32.mrb[0].mxu0
          %v7517 = vadd.f32 %v7420, %v7516
          %v7518 = vpop.f32.mrb[0].mxu0
          %v7519 = vadd.f32 %v7420, %v7518
          %7520 = vmatprep.mubr.f32.mxu0 0.0
          %7521 = vmatmul.mubr.f32.gmra.mrb[0].mxu0 %v7442
          %v7522 = vpop.f32.mrb[0].mxu0
          %v7523 = vadd.f32 %v7425, %v7522
          %v7524 = vpop.f32.mrb[0].mxu0
          %v7525 = vadd.f32 %v7425, %v7524
          %7526 = vmatprep.mubr.f32.mxu0 0.0
          %7527 = vmatmul.mubr.f32.gmra.mrb[0].mxu0 %v7445
          %v7528 = vpop.f32.mrb[0].mxu0
          %v7529 = vadd.f32 %v7430, %v7528
          %v7530 = vpop.f32.mrb[0].mxu0
          %v7531 = vadd.f32 %v7430, %v7530
          %7532 = vmatprep.mubr.f32.mxu0 0.0
          %7533 = vmatmul.mubr.f32.gmra.mrb[0].mxu0 %v7448
          %v7534 = vpop.f32.mrb[0].mxu0
          %v7535 = vadd.f32 %v7435, %v7534
          %v7536 = vpop.f32.mrb[0].mxu0
          %v7537 = vadd.f32 %v7435, %v7536
          %7538 = vdwg.mxu0
          %7539 = vmatprep.subr.mxu0 %v7388
          %7540 = vmatpush1.msra.mxu0 %v7387
          %7541 = vmatprep.subr.mxu0 %v7396
          %7542 = vmatpush1.msra.mxu0 %v7395
          %7543 = vmatprep.subr.mxu0 %v7404
          %7544 = vmatpush1.msra.mxu0 %v7403
          %7545 = vmatprep.subr.mxu0 %v7412
          %7546 = vmatpush1.msra.mxu0 %v7411
          %7547 = vmatprep.subr.mxu0 0.0
          %7548 = vmatpush1.msra.mxu0 0.0
          %7549 = vmatprep.subr.mxu0 0.0
          %7550 = vmatpush1.msra.mxu0 0.0
          %7551 = vmatprep.subr.mxu0 0.0
          %7552 = vmatpush1.msra.mxu0 0.0
          %7553 = vmatprep.subr.mxu0 0.0
          %7554 = vmatpush1.msra.mxu0 0.0
          %7555 = vmatprep.subr.mxu0 0.0
          %7556 = vmatpush1.msra.mxu0 0.0
          %7557 = vmatprep.subr.mxu0 0.0
          %7558 = vmatpush1.msra.mxu0 0.0
          %7559 = vmatprep.subr.mxu0 0.0
          %7560 = vmatpush1.msra.mxu0 0.0
          %7561 = vmatprep.subr.mxu0 0.0
          %7562 = vmatpush1.msra.mxu0 0.0
          %7563 = vmatprep.subr.mxu0 0.0
          %7564 = vmatpush1.msra.mxu0 0.0
          %7565 = vmatprep.subr.mxu0 0.0
          %7566 = vmatpush1.msra.mxu0 0.0
          %7567 = vmatprep.subr.mxu0 0.0
          %7568 = vmatpush1.msra.mxu0 0.0
          %7569 = vmatprep.subr.mxu0 0.0
          %7570 = vmatpush1.msra.mxu0 0.0
          %7571 = vmatprep.subr.mxu0 0.0
          %7572 = vmatpush1.msra.mxu0 0.0
          %7573 = vmatprep.subr.mxu0 0.0
          %7574 = vmatpush1.msra.mxu0 0.0
          %7575 = vmatprep.subr.mxu0 0.0
          %7576 = vmatpush1.msra.mxu0 0.0
          %7577 = vmatprep.subr.mxu0 0.0
          %7578 = vmatpush1.msra.mxu0 0.0
          %7579 = vmatprep.subr.mxu0 0.0
          %7580 = vmatpush1.msra.mxu0 0.0
          %7581 = vmatprep.subr.mxu0 0.0
          %7582 = vmatpush1.msra.mxu0 0.0
          %7583 = vmatprep.subr.mxu0 0.0
          %7584 = vmatpush1.msra.mxu0 0.0
          %7585 = vmatprep.subr.mxu0 0.0
          %7586 = vmatpush1.msra.mxu0 0.0
          %7587 = vmatprep.subr.mxu0 0.0
          %7588 = vmatpush1.msra.mxu0 0.0
          %7589 = vmatprep.subr.mxu0 0.0
          %7590 = vmatpush1.msra.mxu0 0.0
          %7591 = vmatprep.subr.mxu0 0.0
          %7592 = vmatpush1.msra.mxu0 0.0
          %7593 = vmatprep.subr.mxu0 0.0
          %7594 = vmatpush1.msra.mxu0 0.0
          %7595 = vmatprep.subr.mxu0 0.0
          %7596 = vmatpush1.msra.mxu0 0.0
          %7597 = vmatprep.subr.mxu0 0.0
          %7598 = vmatpush1.msra.mxu0 0.0
          %7599 = vmatprep.subr.mxu0 0.0
          %7600 = vmatpush1.msra.mxu0 0.0
          %7601 = vmatprep.subr.mxu0 0.0
          %7602 = vmatpush1.msra.mxu0 0.0
          %7603 = vmatprep.mubr.f32.mxu0 0.0
          %7604 = vmatmul.mubr.f32.gmra.mrb[0].mxu0 %v7439
          %v7605 = vpop.f32.mrb[0].mxu0
          %v7606 = vadd.f32 %v7420, %v7605
          %v7607 = vpop.f32.mrb[0].mxu0
          %v7608 = vadd.f32 %v7420, %v7607
          %7609 = vmatprep.mubr.f32.mxu0 0.0
          %7610 = vmatmul.mubr.f32.gmra.mrb[0].mxu0 %v7442
          %v7611 = vpop.f32.mrb[0].mxu0
          %v7612 = vadd.f32 %v7425, %v7611
          %v7613 = vpop.f32.mrb[0].mxu0
          %v7614 = vadd.f32 %v7425, %v7613
          %7615 = vmatprep.mubr.f32.mxu0 0.0
          %7616 = vmatmul.mubr.f32.gmra.mrb[0].mxu0 %v7445
          %v7617 = vpop.f32.mrb[0].mxu0
          %v7618 = vadd.f32 %v7430, %v7617
          %v7619 = vpop.f32.mrb[0].mxu0
          %v7620 = vadd.f32 %v7430, %v7619
          %7621 = vmatprep.mubr.f32.mxu0 0.0
          %7622 = vmatmul.mubr.f32.gmra.mrb[0].mxu0 %v7448
          %v7623 = vpop.f32.mrb[0].mxu0
          %v7624 = vadd.f32 %v7435, %v7623
          %v7625 = vpop.f32.mrb[0].mxu0
          %v7626 = vadd.f32 %v7435, %v7625
          %7627 = vdwg.mxu0
          %7628 = vmatprep.subr.mxu0 %v7390
          %7629 = vmatpush1.msra.mxu0 %v7389
          %7630 = vmatprep.subr.mxu0 %v7398
          %7631 = vmatpush1.msra.mxu0 %v7397
          %7632 = vmatprep.subr.mxu0 %v7406
          %7633 = vmatpush1.msra.mxu0 %v7405
          %7634 = vmatprep.subr.mxu0 %v7414
          %7635 = vmatpush1.msra.mxu0 %v7413
          %7636 = vmatprep.subr.mxu0 0.0
          %7637 = vmatpush1.msra.mxu0 0.0
          %7638 = vmatprep.subr.mxu0 0.0
          %7639 = vmatpush1.msra.mxu0 0.0
          %7640 = vmatprep.subr.mxu0 0.0
          %7641 = vmatpush1.msra.mxu0 0.0
          %7642 = vmatprep.subr.mxu0 0.0
          %7643 = vmatpush1.msra.mxu0 0.0
          %7644 = vmatprep.subr.mxu0 0.0
          %7645 = vmatpush1.msra.mxu0 0.0
          %7646 = vmatprep.subr.mxu0 0.0
          %7647 = vmatpush1.msra.mxu0 0.0
          %7648 = vmatprep.subr.mxu0 0.0
          %7649 = vmatpush1.msra.mxu0 0.0
          %7650 = vmatprep.subr.mxu0 0.0
          %7651 = vmatpush1.msra.mxu0 0.0
          %7652 = vmatprep.subr.mxu0 0.0
          %7653 = vmatpush1.msra.mxu0 0.0
          %7654 = vmatprep.subr.mxu0 0.0
          %7655 = vmatpush1.msra.mxu0 0.0
          %7656 = vmatprep.subr.mxu0 0.0
          %7657 = vmatpush1.msra.mxu0 0.0
          %7658 = vmatprep.subr.mxu0 0.0
          %7659 = vmatpush1.msra.mxu0 0.0
          %7660 = vmatprep.subr.mxu0 0.0
          %7661 = vmatpush1.msra.mxu0 0.0
          %7662 = vmatprep.subr.mxu0 0.0
          %7663 = vmatpush1.msra.mxu0 0.0
          %7664 = vmatprep.subr.mxu0 0.0
          %7665 = vmatpush1.msra.mxu0 0.0
          %7666 = vmatprep.subr.mxu0 0.0
          %7667 = vmatpush1.msra.mxu0 0.0
          %7668 = vmatprep.subr.mxu0 0.0
          %7669 = vmatpush1.msra.mxu0 0.0
          %7670 = vmatprep.subr.mxu0 0.0
          %7671 = vmatpush1.msra.mxu0 0.0
          %7672 = vmatprep.subr.mxu0 0.0
          %7673 = vmatpush1.msra.mxu0 0.0
          %7674 = vmatprep.subr.mxu0 0.0
          %7675 = vmatpush1.msra.mxu0 0.0
          %7676 = vmatprep.subr.mxu0 0.0
          %7677 = vmatpush1.msra.mxu0 0.0
          %7678 = vmatprep.subr.mxu0 0.0
          %7679 = vmatpush1.msra.mxu0 0.0
          %7680 = vmatprep.subr.mxu0 0.0
          %7681 = vmatpush1.msra.mxu0 0.0
          %7682 = vmatprep.subr.mxu0 0.0
          %7683 = vmatpush1.msra.mxu0 0.0
          %7684 = vmatprep.subr.mxu0 0.0
          %7685 = vmatpush1.msra.mxu0 0.0
          %7686 = vmatprep.subr.mxu0 0.0
          %7687 = vmatpush1.msra.mxu0 0.0
          %7688 = vmatprep.subr.mxu0 0.0
          %7689 = vmatpush1.msra.mxu0 0.0
          %7690 = vmatprep.subr.mxu0 0.0
          %7691 = vmatpush1.msra.mxu0 0.0
          %7692 = vmatprep.mubr.f32.mxu0 0.0
          %7693 = vmatmul.mubr.f32.gmra.mrb[0].mxu0 %v7439
          %v7694 = vpop.f32.mrb[0].mxu0
          %v7695 = vadd.f32 %v7420, %v7694
          %v7696 = vpop.f32.mrb[0].mxu0
          %v7697 = vadd.f32 %v7420, %v7696
          %7698 = vmatprep.mubr.f32.mxu0 0.0
          %7699 = vmatmul.mubr.f32.gmra.mrb[0].mxu0 %v7442
          %v7700 = vpop.f32.mrb[0].mxu0
          %v7701 = vadd.f32 %v7425, %v7700
          %v7702 = vpop.f32.mrb[0].mxu0
          %v7703 = vadd.f32 %v7425, %v7702
          %7704 = vmatprep.mubr.f32.mxu0 0.0
          %7705 = vmatmul.mubr.f32.gmra.mrb[0].mxu0 %v7445
          %v7706 = vpop.f32.mrb[0].mxu0
          %v7707 = vadd.f32 %v7430, %v7706
          %v7708 = vpop.f32.mrb[0].mxu0
          %v7709 = vadd.f32 %v7430, %v7708
          %7710 = vmatprep.mubr.f32.mxu0 0.0
          %7711 = vmatmul.mubr.f32.gmra.mrb[0].mxu0 %v7448
          %v7712 = vpop.f32.mrb[0].mxu0
          %v7713 = vadd.f32 %v7435, %v7712
          %v7714 = vpop.f32.mrb[0].mxu0
          %v7715 = vadd.f32 %v7435, %v7714
          %7716 = vdwg.mxu0
          %7717 = vmatprep.subr.mxu0 %v7392
          %7718 = vmatpush1.msra.mxu0 %v7391
          %7719 = vmatprep.subr.mxu0 %v7400
          %7720 = vmatpush1.msra.mxu0 %v7399
          %7721 = vmatprep.subr.mxu0 %v7408
          %7722 = vmatpush1.msra.mxu0 %v7407
          %7723 = vmatprep.subr.mxu0 %v7416
          %7724 = vmatpush1.msra.mxu0 %v7415
          %7725 = vmatprep.subr.mxu0 0.0
          %7726 = vmatpush1.msra.mxu0 0.0
          %7727 = vmatprep.subr.mxu0 0.0
          %7728 = vmatpush1.msra.mxu0 0.0
          %7729 = vmatprep.subr.mxu0 0.0
          %7730 = vmatpush1.msra.mxu0 0.0
          %7731 = vmatprep.subr.mxu0 0.0
          %7732 = vmatpush1.msra.mxu0 0.0
          %7733 = vmatprep.subr.mxu0 0.0
          %7734 = vmatpush1.msra.mxu0 0.0
          %7735 = vmatprep.subr.mxu0 0.0
          %7736 = vmatpush1.msra.mxu0 0.0
          %7737 = vmatprep.subr.mxu0 0.0
          %7738 = vmatpush1.msra.mxu0 0.0
          %7739 = vmatprep.subr.mxu0 0.0
          %7740 = vmatpush1.msra.mxu0 0.0
          %7741 = vmatprep.subr.mxu0 0.0
          %7742 = vmatpush1.msra.mxu0 0.0
          %7743 = vmatprep.subr.mxu0 0.0
          %7744 = vmatpush1.msra.mxu0 0.0
          %7745 = vmatprep.subr.mxu0 0.0
          %7746 = vmatpush1.msra.mxu0 0.0
          %7747 = vmatprep.subr.mxu0 0.0
          %7748 = vmatpush1.msra.mxu0 0.0
          %7749 = vmatprep.subr.mxu0 0.0
          %7750 = vmatpush1.msra.mxu0 0.0
          %7751 = vmatprep.subr.mxu0 0.0
          %7752 = vmatpush1.msra.mxu0 0.0
          %7753 = vmatprep.subr.mxu0 0.0
          %7754 = vmatpush1.msra.mxu0 0.0
          %7755 = vmatprep.subr.mxu0 0.0
          %7756 = vmatpush1.msra.mxu0 0.0
          %7757 = vmatprep.subr.mxu0 0.0
          %7758 = vmatpush1.msra.mxu0 0.0
          %7759 = vmatprep.subr.mxu0 0.0
          %7760 = vmatpush1.msra.mxu0 0.0
          %7761 = vmatprep.subr.mxu0 0.0
          %7762 = vmatpush1.msra.mxu0 0.0
          %7763 = vmatprep.subr.mxu0 0.0
          %7764 = vmatpush1.msra.mxu0 0.0
          %7765 = vmatprep.subr.mxu0 0.0
          %7766 = vmatpush1.msra.mxu0 0.0
          %7767 = vmatprep.subr.mxu0 0.0
          %7768 = vmatpush1.msra.mxu0 0.0
          %7769 = vmatprep.subr.mxu0 0.0
          %7770 = vmatpush1.msra.mxu0 0.0
          %7771 = vmatprep.subr.mxu0 0.0
          %7772 = vmatpush1.msra.mxu0 0.0
          %7773 = vmatprep.subr.mxu0 0.0
          %7774 = vmatpush1.msra.mxu0 0.0
          %7775 = vmatprep.subr.mxu0 0.0
          %7776 = vmatpush1.msra.mxu0 0.0
          %7777 = vmatprep.subr.mxu0 0.0
          %7778 = vmatpush1.msra.mxu0 0.0
          %7779 = vmatprep.subr.mxu0 0.0
          %7780 = vmatpush1.msra.mxu0 0.0
          %7781 = vmatprep.mubr.f32.mxu0 0.0
          %7782 = vmatmul.mubr.f32.gmra.mrb[0].mxu0 %v7439
          %v7783 = vpop.f32.mrb[0].mxu0
          %v7784 = vadd.f32 %v7420, %v7783
          %v7785 = vpop.f32.mrb[0].mxu0
          %v7786 = vadd.f32 %v7420, %v7785
          %7787 = vmatprep.mubr.f32.mxu0 0.0
          %7788 = vmatmul.mubr.f32.gmra.mrb[0].mxu0 %v7442
          %v7789 = vpop.f32.mrb[0].mxu0
          %v7790 = vadd.f32 %v7425, %v7789
          %v7791 = vpop.f32.mrb[0].mxu0
          %v7792 = vadd.f32 %v7425, %v7791
          %7793 = vmatprep.mubr.f32.mxu0 0.0
          %7794 = vmatmul.mubr.f32.gmra.mrb[0].mxu0 %v7445
          %v7795 = vpop.f32.mrb[0].mxu0
          %v7796 = vadd.f32 %v7430, %v7795
          %v7797 = vpop.f32.mrb[0].mxu0
          %v7798 = vadd.f32 %v7430, %v7797
          %7799 = vmatprep.mubr.f32.mxu0 0.0
          %7800 = vmatmul.mubr.f32.gmra.mrb[0].mxu0 %v7448
          %v7801 = vpop.f32.mrb[0].mxu0
          %v7802 = vadd.f32 %v7435, %v7801
          %v7803 = vpop.f32.mrb[0].mxu0
          %v7804 = vadd.f32 %v7435, %v7803
          %7805 = vdwg.mxu0
          %v7806 = vmul.f32 %v7517, 0.2
          %v7807 = vmul.f32 %v7519, 0.2
          %v7808 = vmul.f32 %v7606, 0.2
          %v7809 = vmul.f32 %v7608, 0.2
          %v7810 = vmul.f32 %v7695, 0.2
          %v7811 = vmul.f32 %v7697, 0.2
          %v7812 = vmul.f32 %v7784, 0.2
          %v7813 = vmul.f32 %v7786, 0.2
          %v7814 = vmul.f32 %v7523, 0.2
          %v7815 = vmul.f32 %v7525, 0.2
          %v7816 = vmul.f32 %v7612, 0.2
          %v7817 = vmul.f32 %v7614, 0.2
          %v7818 = vmul.f32 %v7701, 0.2
          %v7819 = vmul.f32 %v7703, 0.2
          %v7820 = vmul.f32 %v7790, 0.2
          %v7821 = vmul.f32 %v7792, 0.2
          %v7822 = vmul.f32 %v7529, 0.2
          %v7823 = vmul.f32 %v7531, 0.2
          %v7824 = vmul.f32 %v7618, 0.2
          %v7825 = vmul.f32 %v7620, 0.2
          %v7826 = vmul.f32 %v7707, 0.2
          %v7827 = vmul.f32 %v7709, 0.2
          %v7828 = vmul.f32 %v7796, 0.2
          %v7829 = vmul.f32 %v7798, 0.2
          %v7830 = vmul.f32 %v7535, 0.2
          %v7831 = vmul.f32 %v7537, 0.2
          %v7832 = vmul.f32 %v7624, 0.2
          %v7833 = vmul.f32 %v7626, 0.2
          %v7834 = vmul.f32 %v7713, 0.2
          %v7835 = vmul.f32 %v7715, 0.2
          %v7836 = vmul.f32 %v7802, 0.2
          %v7837 = vmul.f32 %v7804, 0.2
          %v7838 = vmax.f32 %v7517, %v7806
          %v7839 = vmax.f32 %v7519, %v7807
          %v7840 = vmax.f32 %v7606, %v7808
          %v7841 = vmax.f32 %v7608, %v7809
          %v7842 = vmax.f32 %v7695, %v7810
          %v7843 = vmax.f32 %v7697, %v7811
          %v7844 = vmax.f32 %v7784, %v7812
          %v7845 = vmax.f32 %v7786, %v7813
          %v7846 = vmax.f32 %v7523, %v7814
          %v7847 = vmax.f32 %v7525, %v7815
          %v7848 = vmax.f32 %v7612, %v7816
          %v7849 = vmax.f32 %v7614, %v7817
          %v7850 = vmax.f32 %v7701, %v7818
          %v7851 = vmax.f32 %v7703, %v7819
          %v7852 = vmax.f32 %v7790, %v7820
          %v7853 = vmax.f32 %v7792, %v7821
          %v7854 = vmax.f32 %v7529, %v7822
          %v7855 = vmax.f32 %v7531, %v7823
          %v7856 = vmax.f32 %v7618, %v7824
          %v7857 = vmax.f32 %v7620, %v7825
          %v7858 = vmax.f32 %v7707, %v7826
          %v7859 = vmax.f32 %v7709, %v7827
          %v7860 = vmax.f32 %v7796, %v7828
          %v7861 = vmax.f32 %v7798, %v7829
          %v7862 = vmax.f32 %v7535, %v7830
          %v7863 = vmax.f32 %v7537, %v7831
          %v7864 = vmax.f32 %v7624, %v7832
          %v7865 = vmax.f32 %v7626, %v7833
          %v7866 = vmax.f32 %v7713, %v7834
          %v7867 = vmax.f32 %v7715, %v7835
          %v7868 = vmax.f32 %v7802, %v7836
          %v7869 = vmax.f32 %v7804, %v7837
          %7871 = vset.pattern.permute.xlu0 0
          %7872 = vperm.xlu0 %7871, %v413
          %v7873 = vpop.permute.xlu0 %7872
          %7876 = vset.pattern.permute.xlu0 0
          %7877 = vperm.xlu0 %7876, %v414
          %v7878 = vpop.permute.xlu0 %7877
          %7881 = vset.pattern.permute.xlu0 0
          %7882 = vperm.xlu0 %7881, %v415
          %v7883 = vpop.permute.xlu0 %7882
          %7886 = vset.pattern.permute.xlu0 0
          %7887 = vperm.xlu0 %7886, %v416
          %v7888 = vpop.permute.xlu0 %7887
          %v7891 = vsel %vm7437, %v404, 0
          %v7894 = vsel %vm7437, %v405, 0
          %v7897 = vsel %vm7437, %v406, 0
          %v7900 = vsel %vm7437, %v407, 0
          %7902 = vmatprep.subr.mxu0 %v7839
          %7903 = vmatpush1.msra.mxu0 %v7838
          %7904 = vmatprep.subr.mxu0 %v7847
          %7905 = vmatpush1.msra.mxu0 %v7846
          %7906 = vmatprep.subr.mxu0 %v7855
          %7907 = vmatpush1.msra.mxu0 %v7854
          %7908 = vmatprep.subr.mxu0 %v7863
          %7909 = vmatpush1.msra.mxu0 %v7862
          %7910 = vmatprep.subr.mxu0 0.0
          %7911 = vmatpush1.msra.mxu0 0.0
          %7912 = vmatprep.subr.mxu0 0.0
          %7913 = vmatpush1.msra.mxu0 0.0
          %7914 = vmatprep.subr.mxu0 0.0
          %7915 = vmatpush1.msra.mxu0 0.0
          %7916 = vmatprep.subr.mxu0 0.0
          %7917 = vmatpush1.msra.mxu0 0.0
          %7918 = vmatprep.subr.mxu0 0.0
          %7919 = vmatpush1.msra.mxu0 0.0
          %7920 = vmatprep.subr.mxu0 0.0
          %7921 = vmatpush1.msra.mxu0 0.0
          %7922 = vmatprep.subr.mxu0 0.0
          %7923 = vmatpush1.msra.mxu0 0.0
          %7924 = vmatprep.subr.mxu0 0.0
          %7925 = vmatpush1.msra.mxu0 0.0
          %7926 = vmatprep.subr.mxu0 0.0
          %7927 = vmatpush1.msra.mxu0 0.0
          %7928 = vmatprep.subr.mxu0 0.0
          %7929 = vmatpush1.msra.mxu0 0.0
          %7930 = vmatprep.subr.mxu0 0.0
          %7931 = vmatpush1.msra.mxu0 0.0
          %7932 = vmatprep.subr.mxu0 0.0
          %7933 = vmatpush1.msra.mxu0 0.0
          %7934 = vmatprep.subr.mxu0 0.0
          %7935 = vmatpush1.msra.mxu0 0.0
          %7936 = vmatprep.subr.mxu0 0.0
          %7937 = vmatpush1.msra.mxu0 0.0
          %7938 = vmatprep.subr.mxu0 0.0
          %7939 = vmatpush1.msra.mxu0 0.0
          %7940 = vmatprep.subr.mxu0 0.0
          %7941 = vmatpush1.msra.mxu0 0.0
          %7942 = vmatprep.subr.mxu0 0.0
          %7943 = vmatpush1.msra.mxu0 0.0
          %7944 = vmatprep.subr.mxu0 0.0
          %7945 = vmatpush1.msra.mxu0 0.0
          %7946 = vmatprep.subr.mxu0 0.0
          %7947 = vmatpush1.msra.mxu0 0.0
          %7948 = vmatprep.subr.mxu0 0.0
          %7949 = vmatpush1.msra.mxu0 0.0
          %7950 = vmatprep.subr.mxu0 0.0
          %7951 = vmatpush1.msra.mxu0 0.0
          %7952 = vmatprep.subr.mxu0 0.0
          %7953 = vmatpush1.msra.mxu0 0.0
          %7954 = vmatprep.subr.mxu0 0.0
          %7955 = vmatpush1.msra.mxu0 0.0
          %7956 = vmatprep.subr.mxu0 0.0
          %7957 = vmatpush1.msra.mxu0 0.0
          %7958 = vmatprep.subr.mxu0 0.0
          %7959 = vmatpush1.msra.mxu0 0.0
          %7960 = vmatprep.subr.mxu0 0.0
          %7961 = vmatpush1.msra.mxu0 0.0
          %7962 = vmatprep.subr.mxu0 0.0
          %7963 = vmatpush1.msra.mxu0 0.0
          %7964 = vmatprep.subr.mxu0 0.0
          %7965 = vmatpush1.msra.mxu0 0.0
          %7966 = vmatprep.mubr.f32.mxu0 0.0
          %7967 = vmatmul.mubr.f32.gmra.mrb[0].mxu0 %v7891
          %v7968 = vpop.f32.mrb[0].mxu0
          %v7969 = vadd.f32 %v7873, %v7968
          %v7970 = vpop.f32.mrb[0].mxu0
          %v7971 = vadd.f32 %v7873, %v7970
          %7972 = vmatprep.mubr.f32.mxu0 0.0
          %7973 = vmatmul.mubr.f32.gmra.mrb[0].mxu0 %v7894
          %v7974 = vpop.f32.mrb[0].mxu0
          %v7975 = vadd.f32 %v7878, %v7974
          %v7976 = vpop.f32.mrb[0].mxu0
          %v7977 = vadd.f32 %v7878, %v7976
          %7978 = vmatprep.mubr.f32.mxu0 0.0
          %7979 = vmatmul.mubr.f32.gmra.mrb[0].mxu0 %v7897
          %v7980 = vpop.f32.mrb[0].mxu0
          %v7981 = vadd.f32 %v7883, %v7980
          %v7982 = vpop.f32.mrb[0].mxu0
          %v7983 = vadd.f32 %v7883, %v7982
          %7984 = vmatprep.mubr.f32.mxu0 0.0
          %7985 = vmatmul.mubr.f32.gmra.mrb[0].mxu0 %v7900
          %v7986 = vpop.f32.mrb[0].mxu0
          %v7987 = vadd.f32 %v7888, %v7986
          %v7988 = vpop.f32.mrb[0].mxu0
          %v7989 = vadd.f32 %v7888, %v7988
          %7990 = vdwg.mxu0
          %7991 = vmatprep.subr.mxu0 %v7841
          %7992 = vmatpush1.msra.mxu0 %v7840
          %7993 = vmatprep.subr.mxu0 %v7849
          %7994 = vmatpush1.msra.mxu0 %v7848
          %7995 = vmatprep.subr.mxu0 %v7857
          %7996 = vmatpush1.msra.mxu0 %v7856
          %7997 = vmatprep.subr.mxu0 %v7865
          %7998 = vmatpush1.msra.mxu0 %v7864
          %7999 = vmatprep.subr.mxu0 0.0
          %8000 = vmatpush1.msra.mxu0 0.0
          %8001 = vmatprep.subr.mxu0 0.0
          %8002 = vmatpush1.msra.mxu0 0.0
          %8003 = vmatprep.subr.mxu0 0.0
          %8004 = vmatpush1.msra.mxu0 0.0
          %8005 = vmatprep.subr.mxu0 0.0
          %8006 = vmatpush1.msra.mxu0 0.0
          %8007 = vmatprep.subr.mxu0 0.0
          %8008 = vmatpush1.msra.mxu0 0.0
          %8009 = vmatprep.subr.mxu0 0.0
          %8010 = vmatpush1.msra.mxu0 0.0
          %8011 = vmatprep.subr.mxu0 0.0
          %8012 = vmatpush1.msra.mxu0 0.0
          %8013 = vmatprep.subr.mxu0 0.0
          %8014 = vmatpush1.msra.mxu0 0.0
          %8015 = vmatprep.subr.mxu0 0.0
          %8016 = vmatpush1.msra.mxu0 0.0
          %8017 = vmatprep.subr.mxu0 0.0
          %8018 = vmatpush1.msra.mxu0 0.0
          %8019 = vmatprep.subr.mxu0 0.0
          %8020 = vmatpush1.msra.mxu0 0.0
          %8021 = vmatprep.subr.mxu0 0.0
          %8022 = vmatpush1.msra.mxu0 0.0
          %8023 = vmatprep.subr.mxu0 0.0
          %8024 = vmatpush1.msra.mxu0 0.0
          %8025 = vmatprep.subr.mxu0 0.0
          %8026 = vmatpush1.msra.mxu0 0.0
          %8027 = vmatprep.subr.mxu0 0.0
          %8028 = vmatpush1.msra.mxu0 0.0
          %8029 = vmatprep.subr.mxu0 0.0
          %8030 = vmatpush1.msra.mxu0 0.0
          %8031 = vmatprep.subr.mxu0 0.0
          %8032 = vmatpush1.msra.mxu0 0.0
          %8033 = vmatprep.subr.mxu0 0.0
          %8034 = vmatpush1.msra.mxu0 0.0
          %8035 = vmatprep.subr.mxu0 0.0
          %8036 = vmatpush1.msra.mxu0 0.0
          %8037 = vmatprep.subr.mxu0 0.0
          %8038 = vmatpush1.msra.mxu0 0.0
          %8039 = vmatprep.subr.mxu0 0.0
          %8040 = vmatpush1.msra.mxu0 0.0
          %8041 = vmatprep.subr.mxu0 0.0
          %8042 = vmatpush1.msra.mxu0 0.0
          %8043 = vmatprep.subr.mxu0 0.0
          %8044 = vmatpush1.msra.mxu0 0.0
          %8045 = vmatprep.subr.mxu0 0.0
          %8046 = vmatpush1.msra.mxu0 0.0
          %8047 = vmatprep.subr.mxu0 0.0
          %8048 = vmatpush1.msra.mxu0 0.0
          %8049 = vmatprep.subr.mxu0 0.0
          %8050 = vmatpush1.msra.mxu0 0.0
          %8051 = vmatprep.subr.mxu0 0.0
          %8052 = vmatpush1.msra.mxu0 0.0
          %8053 = vmatprep.subr.mxu0 0.0
          %8054 = vmatpush1.msra.mxu0 0.0
          %8055 = vmatprep.mubr.f32.mxu0 0.0
          %8056 = vmatmul.mubr.f32.gmra.mrb[0].mxu0 %v7891
          %v8057 = vpop.f32.mrb[0].mxu0
          %v8058 = vadd.f32 %v7873, %v8057
          %v8059 = vpop.f32.mrb[0].mxu0
          %v8060 = vadd.f32 %v7873, %v8059
          %8061 = vmatprep.mubr.f32.mxu0 0.0
          %8062 = vmatmul.mubr.f32.gmra.mrb[0].mxu0 %v7894
          %v8063 = vpop.f32.mrb[0].mxu0
          %v8064 = vadd.f32 %v7878, %v8063
          %v8065 = vpop.f32.mrb[0].mxu0
          %v8066 = vadd.f32 %v7878, %v8065
          %8067 = vmatprep.mubr.f32.mxu0 0.0
          %8068 = vmatmul.mubr.f32.gmra.mrb[0].mxu0 %v7897
          %v8069 = vpop.f32.mrb[0].mxu0
          %v8070 = vadd.f32 %v7883, %v8069
          %v8071 = vpop.f32.mrb[0].mxu0
          %v8072 = vadd.f32 %v7883, %v8071
          %8073 = vmatprep.mubr.f32.mxu0 0.0
          %8074 = vmatmul.mubr.f32.gmra.mrb[0].mxu0 %v7900
          %v8075 = vpop.f32.mrb[0].mxu0
          %v8076 = vadd.f32 %v7888, %v8075
          %v8077 = vpop.f32.mrb[0].mxu0
          %v8078 = vadd.f32 %v7888, %v8077
          %8079 = vdwg.mxu0
          %8080 = vmatprep.subr.mxu0 %v7843
          %8081 = vmatpush1.msra.mxu0 %v7842
          %8082 = vmatprep.subr.mxu0 %v7851
          %8083 = vmatpush1.msra.mxu0 %v7850
          %8084 = vmatprep.subr.mxu0 %v7859
          %8085 = vmatpush1.msra.mxu0 %v7858
          %8086 = vmatprep.subr.mxu0 %v7867
          %8087 = vmatpush1.msra.mxu0 %v7866
          %8088 = vmatprep.subr.mxu0 0.0
          %8089 = vmatpush1.msra.mxu0 0.0
          %8090 = vmatprep.subr.mxu0 0.0
          %8091 = vmatpush1.msra.mxu0 0.0
          %8092 = vmatprep.subr.mxu0 0.0
          %8093 = vmatpush1.msra.mxu0 0.0
          %8094 = vmatprep.subr.mxu0 0.0
          %8095 = vmatpush1.msra.mxu0 0.0
          %8096 = vmatprep.subr.mxu0 0.0
          %8097 = vmatpush1.msra.mxu0 0.0
          %8098 = vmatprep.subr.mxu0 0.0
          %8099 = vmatpush1.msra.mxu0 0.0
          %8100 = vmatprep.subr.mxu0 0.0
          %8101 = vmatpush1.msra.mxu0 0.0
          %8102 = vmatprep.subr.mxu0 0.0
          %8103 = vmatpush1.msra.mxu0 0.0
          %8104 = vmatprep.subr.mxu0 0.0
          %8105 = vmatpush1.msra.mxu0 0.0
          %8106 = vmatprep.subr.mxu0 0.0
          %8107 = vmatpush1.msra.mxu0 0.0
          %8108 = vmatprep.subr.mxu0 0.0
          %8109 = vmatpush1.msra.mxu0 0.0
          %8110 = vmatprep.subr.mxu0 0.0
          %8111 = vmatpush1.msra.mxu0 0.0
          %8112 = vmatprep.subr.mxu0 0.0
          %8113 = vmatpush1.msra.mxu0 0.0
          %8114 = vmatprep.subr.mxu0 0.0
          %8115 = vmatpush1.msra.mxu0 0.0
          %8116 = vmatprep.subr.mxu0 0.0
          %8117 = vmatpush1.msra.mxu0 0.0
          %8118 = vmatprep.subr.mxu0 0.0
          %8119 = vmatpush1.msra.mxu0 0.0
          %8120 = vmatprep.subr.mxu0 0.0
          %8121 = vmatpush1.msra.mxu0 0.0
          %8122 = vmatprep.subr.mxu0 0.0
          %8123 = vmatpush1.msra.mxu0 0.0
          %8124 = vmatprep.subr.mxu0 0.0
          %8125 = vmatpush1.msra.mxu0 0.0
          %8126 = vmatprep.subr.mxu0 0.0
          %8127 = vmatpush1.msra.mxu0 0.0
          %8128 = vmatprep.subr.mxu0 0.0
          %8129 = vmatpush1.msra.mxu0 0.0
          %8130 = vmatprep.subr.mxu0 0.0
          %8131 = vmatpush1.msra.mxu0 0.0
          %8132 = vmatprep.subr.mxu0 0.0
          %8133 = vmatpush1.msra.mxu0 0.0
          %8134 = vmatprep.subr.mxu0 0.0
          %8135 = vmatpush1.msra.mxu0 0.0
          %8136 = vmatprep.subr.mxu0 0.0
          %8137 = vmatpush1.msra.mxu0 0.0
          %8138 = vmatprep.subr.mxu0 0.0
          %8139 = vmatpush1.msra.mxu0 0.0
          %8140 = vmatprep.subr.mxu0 0.0
          %8141 = vmatpush1.msra.mxu0 0.0
          %8142 = vmatprep.subr.mxu0 0.0
          %8143 = vmatpush1.msra.mxu0 0.0
          %8144 = vmatprep.mubr.f32.mxu0 0.0
          %8145 = vmatmul.mubr.f32.gmra.mrb[0].mxu0 %v7891
          %v8146 = vpop.f32.mrb[0].mxu0
          %v8147 = vadd.f32 %v7873, %v8146
          %v8148 = vpop.f32.mrb[0].mxu0
          %v8149 = vadd.f32 %v7873, %v8148
          %8150 = vmatprep.mubr.f32.mxu0 0.0
          %8151 = vmatmul.mubr.f32.gmra.mrb[0].mxu0 %v7894
          %v8152 = vpop.f32.mrb[0].mxu0
          %v8153 = vadd.f32 %v7878, %v8152
          %v8154 = vpop.f32.mrb[0].mxu0
          %v8155 = vadd.f32 %v7878, %v8154
          %8156 = vmatprep.mubr.f32.mxu0 0.0
          %8157 = vmatmul.mubr.f32.gmra.mrb[0].mxu0 %v7897
          %v8158 = vpop.f32.mrb[0].mxu0
          %v8159 = vadd.f32 %v7883, %v8158
          %v8160 = vpop.f32.mrb[0].mxu0
          %v8161 = vadd.f32 %v7883, %v8160
          %8162 = vmatprep.mubr.f32.mxu0 0.0
          %8163 = vmatmul.mubr.f32.gmra.mrb[0].mxu0 %v7900
          %v8164 = vpop.f32.mrb[0].mxu0
          %v8165 = vadd.f32 %v7888, %v8164
          %v8166 = vpop.f32.mrb[0].mxu0
          %v8167 = vadd.f32 %v7888, %v8166
          %8168 = vdwg.mxu0
          %8169 = vmatprep.subr.mxu0 %v7845
          %8170 = vmatpush1.msra.mxu0 %v7844
          %8171 = vmatprep.subr.mxu0 %v7853
          %8172 = vmatpush1.msra.mxu0 %v7852
          %8173 = vmatprep.subr.mxu0 %v7861
          %8174 = vmatpush1.msra.mxu0 %v7860
          %8175 = vmatprep.subr.mxu0 %v7869
          %8176 = vmatpush1.msra.mxu0 %v7868
          %8177 = vmatprep.subr.mxu0 0.0
          %8178 = vmatpush1.msra.mxu0 0.0
          %8179 = vmatprep.subr.mxu0 0.0
          %8180 = vmatpush1.msra.mxu0 0.0
          %8181 = vmatprep.subr.mxu0 0.0
          %8182 = vmatpush1.msra.mxu0 0.0
          %8183 = vmatprep.subr.mxu0 0.0
          %8184 = vmatpush1.msra.mxu0 0.0
          %8185 = vmatprep.subr.mxu0 0.0
          %8186 = vmatpush1.msra.mxu0 0.0
          %8187 = vmatprep.subr.mxu0 0.0
          %8188 = vmatpush1.msra.mxu0 0.0
          %8189 = vmatprep.subr.mxu0 0.0
          %8190 = vmatpush1.msra.mxu0 0.0
          %8191 = vmatprep.subr.mxu0 0.0
          %8192 = vmatpush1.msra.mxu0 0.0
          %8193 = vmatprep.subr.mxu0 0.0
          %8194 = vmatpush1.msra.mxu0 0.0
          %8195 = vmatprep.subr.mxu0 0.0
          %8196 = vmatpush1.msra.mxu0 0.0
          %8197 = vmatprep.subr.mxu0 0.0
          %8198 = vmatpush1.msra.mxu0 0.0
          %8199 = vmatprep.subr.mxu0 0.0
          %8200 = vmatpush1.msra.mxu0 0.0
          %8201 = vmatprep.subr.mxu0 0.0
          %8202 = vmatpush1.msra.mxu0 0.0
          %8203 = vmatprep.subr.mxu0 0.0
          %8204 = vmatpush1.msra.mxu0 0.0
          %8205 = vmatprep.subr.mxu0 0.0
          %8206 = vmatpush1.msra.mxu0 0.0
          %8207 = vmatprep.subr.mxu0 0.0
          %8208 = vmatpush1.msra.mxu0 0.0
          %8209 = vmatprep.subr.mxu0 0.0
          %8210 = vmatpush1.msra.mxu0 0.0
          %8211 = vmatprep.subr.mxu0 0.0
          %8212 = vmatpush1.msra.mxu0 0.0
          %8213 = vmatprep.subr.mxu0 0.0
          %8214 = vmatpush1.msra.mxu0 0.0
          %8215 = vmatprep.subr.mxu0 0.0
          %8216 = vmatpush1.msra.mxu0 0.0
          %8217 = vmatprep.subr.mxu0 0.0
          %8218 = vmatpush1.msra.mxu0 0.0
          %8219 = vmatprep.subr.mxu0 0.0
          %8220 = vmatpush1.msra.mxu0 0.0
          %8221 = vmatprep.subr.mxu0 0.0
          %8222 = vmatpush1.msra.mxu0 0.0
          %8223 = vmatprep.subr.mxu0 0.0
          %8224 = vmatpush1.msra.mxu0 0.0
          %8225 = vmatprep.subr.mxu0 0.0
          %8226 = vmatpush1.msra.mxu0 0.0
          %8227 = vmatprep.subr.mxu0 0.0
          %8228 = vmatpush1.msra.mxu0 0.0
          %8229 = vmatprep.subr.mxu0 0.0
          %8230 = vmatpush1.msra.mxu0 0.0
          %8231 = vmatprep.subr.mxu0 0.0
          %8232 = vmatpush1.msra.mxu0 0.0
          %8233 = vmatprep.mubr.f32.mxu0 0.0
          %8234 = vmatmul.mubr.f32.gmra.mrb[0].mxu0 %v7891
          %v8235 = vpop.f32.mrb[0].mxu0
          %v8236 = vadd.f32 %v7873, %v8235
          %v8237 = vpop.f32.mrb[0].mxu0
          %v8238 = vadd.f32 %v7873, %v8237
          %8239 = vmatprep.mubr.f32.mxu0 0.0
          %8240 = vmatmul.mubr.f32.gmra.mrb[0].mxu0 %v7894
          %v8241 = vpop.f32.mrb[0].mxu0
          %v8242 = vadd.f32 %v7878, %v8241
          %v8243 = vpop.f32.mrb[0].mxu0
          %v8244 = vadd.f32 %v7878, %v8243
          %8245 = vmatprep.mubr.f32.mxu0 0.0
          %8246 = vmatmul.mubr.f32.gmra.mrb[0].mxu0 %v7897
          %v8247 = vpop.f32.mrb[0].mxu0
          %v8248 = vadd.f32 %v7883, %v8247
          %v8249 = vpop.f32.mrb[0].mxu0
          %v8250 = vadd.f32 %v7883, %v8249
          %8251 = vmatprep.mubr.f32.mxu0 0.0
          %8252 = vmatmul.mubr.f32.gmra.mrb[0].mxu0 %v7900
          %v8253 = vpop.f32.mrb[0].mxu0
          %v8254 = vadd.f32 %v7888, %v8253
          %v8255 = vpop.f32.mrb[0].mxu0
          %v8256 = vadd.f32 %v7888, %v8255
          %8257 = vdwg.mxu0
          %v8258 = vmul.f32 %v7969, 0.2
          %v8259 = vmul.f32 %v7971, 0.2
          %v8260 = vmul.f32 %v8058, 0.2
          %v8261 = vmul.f32 %v8060, 0.2
          %v8262 = vmul.f32 %v8147, 0.2
          %v8263 = vmul.f32 %v8149, 0.2
          %v8264 = vmul.f32 %v8236, 0.2
          %v8265 = vmul.f32 %v8238, 0.2
          %v8266 = vmul.f32 %v7975, 0.2
          %v8267 = vmul.f32 %v7977, 0.2
          %v8268 = vmul.f32 %v8064, 0.2
          %v8269 = vmul.f32 %v8066, 0.2
          %v8270 = vmul.f32 %v8153, 0.2
          %v8271 = vmul.f32 %v8155, 0.2
          %v8272 = vmul.f32 %v8242, 0.2
          %v8273 = vmul.f32 %v8244, 0.2
          %v8274 = vmul.f32 %v7981, 0.2
          %v8275 = vmul.f32 %v7983, 0.2
          %v8276 = vmul.f32 %v8070, 0.2
          %v8277 = vmul.f32 %v8072, 0.2
          %v8278 = vmul.f32 %v8159, 0.2
          %v8279 = vmul.f32 %v8161, 0.2
          %v8280 = vmul.f32 %v8248, 0.2
          %v8281 = vmul.f32 %v8250, 0.2
          %v8282 = vmul.f32 %v7987, 0.2
          %v8283 = vmul.f32 %v7989, 0.2
          %v8284 = vmul.f32 %v8076, 0.2
          %v8285 = vmul.f32 %v8078, 0.2
          %v8286 = vmul.f32 %v8165, 0.2
          %v8287 = vmul.f32 %v8167, 0.2
          %v8288 = vmul.f32 %v8254, 0.2
          %v8289 = vmul.f32 %v8256, 0.2
          %v8290 = vmax.f32 %v7969, %v8258
          %v8291 = vmax.f32 %v7971, %v8259
          %v8292 = vmax.f32 %v8058, %v8260
          %v8293 = vmax.f32 %v8060, %v8261
          %v8294 = vmax.f32 %v8147, %v8262
          %v8295 = vmax.f32 %v8149, %v8263
          %v8296 = vmax.f32 %v8236, %v8264
          %v8297 = vmax.f32 %v8238, %v8265
          %v8298 = vmax.f32 %v7975, %v8266
          %v8299 = vmax.f32 %v7977, %v8267
          %v8300 = vmax.f32 %v8064, %v8268
          %v8301 = vmax.f32 %v8066, %v8269
          %v8302 = vmax.f32 %v8153, %v8270
          %v8303 = vmax.f32 %v8155, %v8271
          %v8304 = vmax.f32 %v8242, %v8272
          %v8305 = vmax.f32 %v8244, %v8273
          %v8306 = vmax.f32 %v7981, %v8274
          %v8307 = vmax.f32 %v7983, %v8275
          %v8308 = vmax.f32 %v8070, %v8276
          %v8309 = vmax.f32 %v8072, %v8277
          %v8310 = vmax.f32 %v8159, %v8278
          %v8311 = vmax.f32 %v8161, %v8279
          %v8312 = vmax.f32 %v8248, %v8280
          %v8313 = vmax.f32 %v8250, %v8281
          %v8314 = vmax.f32 %v7987, %v8282
          %v8315 = vmax.f32 %v7989, %v8283
          %v8316 = vmax.f32 %v8076, %v8284
          %v8317 = vmax.f32 %v8078, %v8285
          %v8318 = vmax.f32 %v8165, %v8286
          %v8319 = vmax.f32 %v8167, %v8287
          %v8320 = vmax.f32 %v8254, %v8288
          %v8321 = vmax.f32 %v8256, %v8289
          %8323 = vset.pattern.permute.xlu0 0
          %8324 = vperm.xlu0 %8323, %v418
          %v8325 = vpop.permute.xlu0 %8324
          %v8328 = vsel %vm7437, %v417, 0
          %8330 = vmatprep.subr.mxu0 %v8291
          %8331 = vmatpush1.msra.mxu0 %v8290
          %8332 = vmatprep.subr.mxu0 %v8299
          %8333 = vmatpush1.msra.mxu0 %v8298
          %8334 = vmatprep.subr.mxu0 %v8307
          %8335 = vmatpush1.msra.mxu0 %v8306
          %8336 = vmatprep.subr.mxu0 %v8315
          %8337 = vmatpush1.msra.mxu0 %v8314
          %8338 = vmatprep.subr.mxu0 0.0
          %8339 = vmatpush1.msra.mxu0 0.0
          %8340 = vmatprep.subr.mxu0 0.0
          %8341 = vmatpush1.msra.mxu0 0.0
          %8342 = vmatprep.subr.mxu0 0.0
          %8343 = vmatpush1.msra.mxu0 0.0
          %8344 = vmatprep.subr.mxu0 0.0
          %8345 = vmatpush1.msra.mxu0 0.0
          %8346 = vmatprep.subr.mxu0 0.0
          %8347 = vmatpush1.msra.mxu0 0.0
          %8348 = vmatprep.subr.mxu0 0.0
          %8349 = vmatpush1.msra.mxu0 0.0
          %8350 = vmatprep.subr.mxu0 0.0
          %8351 = vmatpush1.msra.mxu0 0.0
          %8352 = vmatprep.subr.mxu0 0.0
          %8353 = vmatpush1.msra.mxu0 0.0
          %8354 = vmatprep.subr.mxu0 0.0
          %8355 = vmatpush1.msra.mxu0 0.0
          %8356 = vmatprep.subr.mxu0 0.0
          %8357 = vmatpush1.msra.mxu0 0.0
          %8358 = vmatprep.subr.mxu0 0.0
          %8359 = vmatpush1.msra.mxu0 0.0
          %8360 = vmatprep.subr.mxu0 0.0
          %8361 = vmatpush1.msra.mxu0 0.0
          %8362 = vmatprep.subr.mxu0 0.0
          %8363 = vmatpush1.msra.mxu0 0.0
          %8364 = vmatprep.subr.mxu0 0.0
          %8365 = vmatpush1.msra.mxu0 0.0
          %8366 = vmatprep.subr.mxu0 0.0
          %8367 = vmatpush1.msra.mxu0 0.0
          %8368 = vmatprep.subr.mxu0 0.0
          %8369 = vmatpush1.msra.mxu0 0.0
          %8370 = vmatprep.subr.mxu0 0.0
          %8371 = vmatpush1.msra.mxu0 0.0
          %8372 = vmatprep.subr.mxu0 0.0
          %8373 = vmatpush1.msra.mxu0 0.0
          %8374 = vmatprep.subr.mxu0 0.0
          %8375 = vmatpush1.msra.mxu0 0.0
          %8376 = vmatprep.subr.mxu0 0.0
          %8377 = vmatpush1.msra.mxu0 0.0
          %8378 = vmatprep.subr.mxu0 0.0
          %8379 = vmatpush1.msra.mxu0 0.0
          %8380 = vmatprep.subr.mxu0 0.0
          %8381 = vmatpush1.msra.mxu0 0.0
          %8382 = vmatprep.subr.mxu0 0.0
          %8383 = vmatpush1.msra.mxu0 0.0
          %8384 = vmatprep.subr.mxu0 0.0
          %8385 = vmatpush1.msra.mxu0 0.0
          %8386 = vmatprep.subr.mxu0 0.0
          %8387 = vmatpush1.msra.mxu0 0.0
          %8388 = vmatprep.subr.mxu0 0.0
          %8389 = vmatpush1.msra.mxu0 0.0
          %8390 = vmatprep.subr.mxu0 0.0
          %8391 = vmatpush1.msra.mxu0 0.0
          %8392 = vmatprep.subr.mxu0 0.0
          %8393 = vmatpush1.msra.mxu0 0.0
          %8394 = vmatprep.mubr.f32.mxu0 0.0
          %8395 = vmatmul.mubr.f32.gmra.mrb[0].mxu0 %v8328
          %v8396 = vpop.f32.mrb[0].mxu0
          %v8397 = vadd.f32 %v8325, %v8396
          %v8398 = vpop.f32.mrb[0].mxu0
          %v8399 = vadd.f32 %v8325, %v8398
          %8400 = vdwg.mxu0
          %8401 = vmatprep.subr.mxu0 %v8293
          %8402 = vmatpush1.msra.mxu0 %v8292
          %8403 = vmatprep.subr.mxu0 %v8301
          %8404 = vmatpush1.msra.mxu0 %v8300
          %8405 = vmatprep.subr.mxu0 %v8309
          %8406 = vmatpush1.msra.mxu0 %v8308
          %8407 = vmatprep.subr.mxu0 %v8317
          %8408 = vmatpush1.msra.mxu0 %v8316
          %8409 = vmatprep.subr.mxu0 0.0
          %8410 = vmatpush1.msra.mxu0 0.0
          %8411 = vmatprep.subr.mxu0 0.0
          %8412 = vmatpush1.msra.mxu0 0.0
          %8413 = vmatprep.subr.mxu0 0.0
          %8414 = vmatpush1.msra.mxu0 0.0
          %8415 = vmatprep.subr.mxu0 0.0
          %8416 = vmatpush1.msra.mxu0 0.0
          %8417 = vmatprep.subr.mxu0 0.0
          %8418 = vmatpush1.msra.mxu0 0.0
          %8419 = vmatprep.subr.mxu0 0.0
          %8420 = vmatpush1.msra.mxu0 0.0
          %8421 = vmatprep.subr.mxu0 0.0
          %8422 = vmatpush1.msra.mxu0 0.0
          %8423 = vmatprep.subr.mxu0 0.0
          %8424 = vmatpush1.msra.mxu0 0.0
          %8425 = vmatprep.subr.mxu0 0.0
          %8426 = vmatpush1.msra.mxu0 0.0
          %8427 = vmatprep.subr.mxu0 0.0
          %8428 = vmatpush1.msra.mxu0 0.0
          %8429 = vmatprep.subr.mxu0 0.0
          %8430 = vmatpush1.msra.mxu0 0.0
          %8431 = vmatprep.subr.mxu0 0.0
          %8432 = vmatpush1.msra.mxu0 0.0
          %8433 = vmatprep.subr.mxu0 0.0
          %8434 = vmatpush1.msra.mxu0 0.0
          %8435 = vmatprep.subr.mxu0 0.0
          %8436 = vmatpush1.msra.mxu0 0.0
          %8437 = vmatprep.subr.mxu0 0.0
          %8438 = vmatpush1.msra.mxu0 0.0
          %8439 = vmatprep.subr.mxu0 0.0
          %8440 = vmatpush1.msra.mxu0 0.0
          %8441 = vmatprep.subr.mxu0 0.0
          %8442 = vmatpush1.msra.mxu0 0.0
          %8443 = vmatprep.subr.mxu0 0.0
          %8444 = vmatpush1.msra.mxu0 0.0
          %8445 = vmatprep.subr.mxu0 0.0
          %8446 = vmatpush1.msra.mxu0 0.0
          %8447 = vmatprep.subr.mxu0 0.0
          %8448 = vmatpush1.msra.mxu0 0.0
          %8449 = vmatprep.subr.mxu0 0.0
          %8450 = vmatpush1.msra.mxu0 0.0
          %8451 = vmatprep.subr.mxu0 0.0
          %8452 = vmatpush1.msra.mxu0 0.0
          %8453 = vmatprep.subr.mxu0 0.0
          %8454 = vmatpush1.msra.mxu0 0.0
          %8455 = vmatprep.subr.mxu0 0.0
          %8456 = vmatpush1.msra.mxu0 0.0
          %8457 = vmatprep.subr.mxu0 0.0
          %8458 = vmatpush1.msra.mxu0 0.0
          %8459 = vmatprep.subr.mxu0 0.0
          %8460 = vmatpush1.msra.mxu0 0.0
          %8461 = vmatprep.subr.mxu0 0.0
          %8462 = vmatpush1.msra.mxu0 0.0
          %8463 = vmatprep.subr.mxu0 0.0
          %8464 = vmatpush1.msra.mxu0 0.0
          %8465 = vmatprep.mubr.f32.mxu0 0.0
          %8466 = vmatmul.mubr.f32.gmra.mrb[0].mxu0 %v8328
          %v8467 = vpop.f32.mrb[0].mxu0
          %v8468 = vadd.f32 %v8325, %v8467
          %v8469 = vpop.f32.mrb[0].mxu0
          %v8470 = vadd.f32 %v8325, %v8469
          %8471 = vdwg.mxu0
          %8472 = vmatprep.subr.mxu0 %v8295
          %8473 = vmatpush1.msra.mxu0 %v8294
          %8474 = vmatprep.subr.mxu0 %v8303
          %8475 = vmatpush1.msra.mxu0 %v8302
          %8476 = vmatprep.subr.mxu0 %v8311
          %8477 = vmatpush1.msra.mxu0 %v8310
          %8478 = vmatprep.subr.mxu0 %v8319
          %8479 = vmatpush1.msra.mxu0 %v8318
          %8480 = vmatprep.subr.mxu0 0.0
          %8481 = vmatpush1.msra.mxu0 0.0
          %8482 = vmatprep.subr.mxu0 0.0
          %8483 = vmatpush1.msra.mxu0 0.0
          %8484 = vmatprep.subr.mxu0 0.0
          %8485 = vmatpush1.msra.mxu0 0.0
          %8486 = vmatprep.subr.mxu0 0.0
          %8487 = vmatpush1.msra.mxu0 0.0
          %8488 = vmatprep.subr.mxu0 0.0
          %8489 = vmatpush1.msra.mxu0 0.0
          %8490 = vmatprep.subr.mxu0 0.0
          %8491 = vmatpush1.msra.mxu0 0.0
          %8492 = vmatprep.subr.mxu0 0.0
          %8493 = vmatpush1.msra.mxu0 0.0
          %8494 = vmatprep.subr.mxu0 0.0
          %8495 = vmatpush1.msra.mxu0 0.0
          %8496 = vmatprep.subr.mxu0 0.0
          %8497 = vmatpush1.msra.mxu0 0.0
          %8498 = vmatprep.subr.mxu0 0.0
          %8499 = vmatpush1.msra.mxu0 0.0
          %8500 = vmatprep.subr.mxu0 0.0
          %8501 = vmatpush1.msra.mxu0 0.0
          %8502 = vmatprep.subr.mxu0 0.0
          %8503 = vmatpush1.msra.mxu0 0.0
          %8504 = vmatprep.subr.mxu0 0.0
          %8505 = vmatpush1.msra.mxu0 0.0
          %8506 = vmatprep.subr.mxu0 0.0
          %8507 = vmatpush1.msra.mxu0 0.0
          %8508 = vmatprep.subr.mxu0 0.0
          %8509 = vmatpush1.msra.mxu0 0.0
          %8510 = vmatprep.subr.mxu0 0.0
          %8511 = vmatpush1.msra.mxu0 0.0
          %8512 = vmatprep.subr.mxu0 0.0
          %8513 = vmatpush1.msra.mxu0 0.0
          %8514 = vmatprep.subr.mxu0 0.0
          %8515 = vmatpush1.msra.mxu0 0.0
          %8516 = vmatprep.subr.mxu0 0.0
          %8517 = vmatpush1.msra.mxu0 0.0
          %8518 = vmatprep.subr.mxu0 0.0
          %8519 = vmatpush1.msra.mxu0 0.0
          %8520 = vmatprep.subr.mxu0 0.0
          %8521 = vmatpush1.msra.mxu0 0.0
          %8522 = vmatprep.subr.mxu0 0.0
          %8523 = vmatpush1.msra.mxu0 0.0
          %8524 = vmatprep.subr.mxu0 0.0
          %8525 = vmatpush1.msra.mxu0 0.0
          %8526 = vmatprep.subr.mxu0 0.0
          %8527 = vmatpush1.msra.mxu0 0.0
          %8528 = vmatprep.subr.mxu0 0.0
          %8529 = vmatpush1.msra.mxu0 0.0
          %8530 = vmatprep.subr.mxu0 0.0
          %8531 = vmatpush1.msra.mxu0 0.0
          %8532 = vmatprep.subr.mxu0 0.0
          %8533 = vmatpush1.msra.mxu0 0.0
          %8534 = vmatprep.subr.mxu0 0.0
          %8535 = vmatpush1.msra.mxu0 0.0
          %8536 = vmatprep.mubr.f32.mxu0 0.0
          %8537 = vmatmul.mubr.f32.gmra.mrb[0].mxu0 %v8328
          %v8538 = vpop.f32.mrb[0].mxu0
          %v8539 = vadd.f32 %v8325, %v8538
          %v8540 = vpop.f32.mrb[0].mxu0
          %v8541 = vadd.f32 %v8325, %v8540
          %8542 = vdwg.mxu0
          %8543 = vmatprep.subr.mxu0 %v8297
          %8544 = vmatpush1.msra.mxu0 %v8296
          %8545 = vmatprep.subr.mxu0 %v8305
          %8546 = vmatpush1.msra.mxu0 %v8304
          %8547 = vmatprep.subr.mxu0 %v8313
          %8548 = vmatpush1.msra.mxu0 %v8312
          %8549 = vmatprep.subr.mxu0 %v8321
          %8550 = vmatpush1.msra.mxu0 %v8320
          %8551 = vmatprep.subr.mxu0 0.0
          %8552 = vmatpush1.msra.mxu0 0.0
          %8553 = vmatprep.subr.mxu0 0.0
          %8554 = vmatpush1.msra.mxu0 0.0
          %8555 = vmatprep.subr.mxu0 0.0
          %8556 = vmatpush1.msra.mxu0 0.0
          %8557 = vmatprep.subr.mxu0 0.0
          %8558 = vmatpush1.msra.mxu0 0.0
          %8559 = vmatprep.subr.mxu0 0.0
          %8560 = vmatpush1.msra.mxu0 0.0
          %8561 = vmatprep.subr.mxu0 0.0
          %8562 = vmatpush1.msra.mxu0 0.0
          %8563 = vmatprep.subr.mxu0 0.0
          %8564 = vmatpush1.msra.mxu0 0.0
          %8565 = vmatprep.subr.mxu0 0.0
          %8566 = vmatpush1.msra.mxu0 0.0
          %8567 = vmatprep.subr.mxu0 0.0
          %8568 = vmatpush1.msra.mxu0 0.0
          %8569 = vmatprep.subr.mxu0 0.0
          %8570 = vmatpush1.msra.mxu0 0.0
          %8571 = vmatprep.subr.mxu0 0.0
          %8572 = vmatpush1.msra.mxu0 0.0
          %8573 = vmatprep.subr.mxu0 0.0
          %8574 = vmatpush1.msra.mxu0 0.0
          %8575 = vmatprep.subr.mxu0 0.0
          %8576 = vmatpush1.msra.mxu0 0.0
          %8577 = vmatprep.subr.mxu0 0.0
          %8578 = vmatpush1.msra.mxu0 0.0
          %8579 = vmatprep.subr.mxu0 0.0
          %8580 = vmatpush1.msra.mxu0 0.0
          %8581 = vmatprep.subr.mxu0 0.0
          %8582 = vmatpush1.msra.mxu0 0.0
          %8583 = vmatprep.subr.mxu0 0.0
          %8584 = vmatpush1.msra.mxu0 0.0
          %8585 = vmatprep.subr.mxu0 0.0
          %8586 = vmatpush1.msra.mxu0 0.0
          %8587 = vmatprep.subr.mxu0 0.0
          %8588 = vmatpush1.msra.mxu0 0.0
          %8589 = vmatprep.subr.mxu0 0.0
          %8590 = vmatpush1.msra.mxu0 0.0
          %8591 = vmatprep.subr.mxu0 0.0
          %8592 = vmatpush1.msra.mxu0 0.0
          %8593 = vmatprep.subr.mxu0 0.0
          %8594 = vmatpush1.msra.mxu0 0.0
          %8595 = vmatprep.subr.mxu0 0.0
          %8596 = vmatpush1.msra.mxu0 0.0
          %8597 = vmatprep.subr.mxu0 0.0
          %8598 = vmatpush1.msra.mxu0 0.0
          %8599 = vmatprep.subr.mxu0 0.0
          %8600 = vmatpush1.msra.mxu0 0.0
          %8601 = vmatprep.subr.mxu0 0.0
          %8602 = vmatpush1.msra.mxu0 0.0
          %8603 = vmatprep.subr.mxu0 0.0
          %8604 = vmatpush1.msra.mxu0 0.0
          %8605 = vmatprep.subr.mxu0 0.0
          %8606 = vmatpush1.msra.mxu0 0.0
          %8607 = vmatprep.mubr.f32.mxu0 0.0
          %8608 = vmatmul.mubr.f32.gmra.mrb[0].mxu0 %v8328
          %v8609 = vpop.f32.mrb[0].mxu0
          %v8610 = vadd.f32 %v8325, %v8609
          %v8611 = vpop.f32.mrb[0].mxu0
          %v8612 = vadd.f32 %v8325, %v8611
          %8613 = vdwg.mxu0
          %v8614 = vmul.f32 %v8397, 0.2
          %v8615 = vmul.f32 %v8399, 0.2
          %v8616 = vmul.f32 %v8468, 0.2
          %v8617 = vmul.f32 %v8470, 0.2
          %v8618 = vmul.f32 %v8539, 0.2
          %v8619 = vmul.f32 %v8541, 0.2
          %v8620 = vmul.f32 %v8610, 0.2
          %v8621 = vmul.f32 %v8612, 0.2
          %v8630 = vcombine.low %v8614, %v8615
          %v8631 = vcombine.low %v8616, %v8617
          %v8632 = vcombine.low %v8618, %v8619
          %v8633 = vcombine.low %v8620, %v8621
          %v8638 = vadd.f32 %v482, %v8630
          %v8639 = vadd.f32 %v483, %v8631
          %v8640 = vadd.f32 %v484, %v8632
          %v8641 = vadd.f32 %v485, %v8633
          %v8642 = vmul.f32 %v8397, %v8397
          %v8643 = vmul.f32 %v8399, %v8399
          %v8644 = vmul.f32 %v8468, %v8468
          %v8645 = vmul.f32 %v8470, %v8470
          %v8646 = vmul.f32 %v8539, %v8539
          %v8647 = vmul.f32 %v8541, %v8541
          %v8648 = vmul.f32 %v8610, %v8610
          %v8649 = vmul.f32 %v8612, %v8612
          %v8658 = vrot.slane %v8642, 1
          %v8659 = vrot.slane %v8643, 1
          %v8660 = vrot.slane %v8644, 1
          %v8661 = vrot.slane %v8645, 1
          %v8662 = vrot.slane %v8646, 1
          %v8663 = vrot.slane %v8647, 1
          %v8664 = vrot.slane %v8648, 1
          %v8665 = vrot.slane %v8649, 1
          %v8674 = vadd.f32 %v8642, %v8658
          %v8675 = vadd.f32 %v8643, %v8659
          %v8676 = vadd.f32 %v8644, %v8660
          %v8677 = vadd.f32 %v8645, %v8661
          %v8678 = vadd.f32 %v8646, %v8662
          %v8679 = vadd.f32 %v8647, %v8663
          %v8680 = vadd.f32 %v8648, %v8664
          %v8681 = vadd.f32 %v8649, %v8665
          %v8682 = vrot.slane %v8642, 2
          %v8683 = vrot.slane %v8643, 2
          %v8684 = vrot.slane %v8644, 2
          %v8685 = vrot.slane %v8645, 2
          %v8686 = vrot.slane %v8646, 2
          %v8687 = vrot.slane %v8647, 2
          %v8688 = vrot.slane %v8648, 2
          %v8689 = vrot.slane %v8649, 2
          %v8698 = vadd.f32 %v8674, %v8682
          %v8699 = vadd.f32 %v8675, %v8683
          %v8700 = vadd.f32 %v8676, %v8684
          %v8701 = vadd.f32 %v8677, %v8685
          %v8702 = vadd.f32 %v8678, %v8686
          %v8703 = vadd.f32 %v8679, %v8687
          %v8704 = vadd.f32 %v8680, %v8688
          %v8705 = vadd.f32 %v8681, %v8689
          %v8706 = vmul.f32 %v8698, 0.33333334
          %v8707 = vmul.f32 %v8699, 0.33333334
          %v8708 = vmul.f32 %v8700, 0.33333334
          %v8709 = vmul.f32 %v8701, 0.33333334
          %v8710 = vmul.f32 %v8702, 0.33333334
          %v8711 = vmul.f32 %v8703, 0.33333334
          %v8712 = vmul.f32 %v8704, 0.33333334
          %v8713 = vmul.f32 %v8705, 0.33333334
          %v8714 = vadd.f32 %v486, %v8706
          %v8715 = vadd.f32 %v487, %v8707
          %v8716 = vadd.f32 %v488, %v8708
          %v8717 = vadd.f32 %v489, %v8709
          %v8718 = vadd.f32 %v490, %v8710
          %v8719 = vadd.f32 %v491, %v8711
          %v8720 = vadd.f32 %v492, %v8712
          %v8721 = vadd.f32 %v493, %v8713
        $region57: #{tpu_custom_call.1} parent=51 // loop_footer
          %s481 = sadd.s32 1, %s477
        $region58: #{tpu_custom_call.1} parent=51 // loop_footer_branch
          %476 = sbr.rel target = $region54
        $region59: #{tpu_custom_call.1} parent=51 // loop_exit
          _
        %v8726 = vcombine.high %v482, %v482
        %v8727 = vcombine.high %v483, %v483
        %v8728 = vcombine.high %v484, %v484
        %v8729 = vcombine.high %v485, %v485
        %v8742 = vrot.slane %v486, 5
        %v8743 = vrot.slane %v487, 5
        %v8744 = vrot.slane %v488, 5
        %v8745 = vrot.slane %v489, 5
        %v8746 = vrot.slane %v490, 5
        %v8747 = vrot.slane %v491, 5
        %v8748 = vrot.slane %v492, 5
        %v8749 = vrot.slane %v493, 5
        %vm8758 = vcmask 1042432
        %v8759 = vsel %vm8758, %v482, %v8742
        %v8760 = vsel %vm8758, %v8726, %v8743
        %v8761 = vsel %vm8758, %v483, %v8744
        %v8762 = vsel %vm8758, %v8727, %v8745
        %v8763 = vsel %vm8758, %v484, %v8746
        %v8764 = vsel %vm8758, %v8728, %v8747
        %v8765 = vsel %vm8758, %v485, %v8748
        %v8766 = vsel %vm8758, %v8729, %v8749
        %v8775 = vcombine.low %v8759, %v8760
        %v8776 = vcombine.low %v8761, %v8762
        %v8777 = vcombine.low %v8763, %v8764
        %v8778 = vcombine.low %v8765, %v8766
        %8783 = vst [vmem:[%s338] sm:$0xff] %v8775
        %8784 = vst [vmem:[%s338 + $0x8] sm:$0xff] %v8776
        %8785 = vst [vmem:[%s338 + $0x10] sm:$0xff] %v8777
        %8786 = vst [vmem:[%s338 + $0x18] sm:$0xff] %v8778
        %s8787 = sand.u32 %s224, 1
        %s8788 = scalar_lea.sflag [#allocation3], %s8787
        %s8789 = sand.u32 %s224, 1
        %s8790 = smul.addr %s8789, 32
        %s8791 = scalar_lea.vmem [#allocation2], %s8790
        // Predicated region
        $region60: #{tpu_custom_call.1} parent=51 // pred_check
          %p8792 = pneg %p234
        $region61: #{tpu_custom_call.1} parent=51 // pred_check_branch
          %8794 = sbr.rel (%p8792) target = $region63
        $region62: #{tpu_custom_call.1} parent=51 // pred_region
          %s8795 = smul.u32 8, %s27
          %s8797 = ssub.s32 512, 512
          %8798 = vsyncadd %s8788, %s8797
          %s8799 = smul.addr %s26, 16
          %s8800 = sadd.s32 %s8795, %s8799
          %s8801 = smul.addr %s8800, 64
          %s8802 = scalar_lea.hbm %s8, %s8801
          %s8804 = sshll.u32 %s8791, 4
          %s8805 = int_to_ptr.vmem [resolvable:$true] %s8804
          %8807 = dma.vmem_to_hbm [thread:$0]  %s8805, 512, %s8802, %s8788
        $region63: #{tpu_custom_call.1} parent=51 // pred_fallthru
          _
      $region52: #{tpu_custom_call.1} parent=5 // pred_fallthru
        _
      %p8808 = scmp.le.s32.totalorder 2, %s17
      // Predicated region
      $region64: #{tpu_custom_call.1} parent=5 // pred_check
        %p8809 = pneg %p8808
      $region65: #{tpu_custom_call.1} parent=5 // pred_check_branch
        %8811 = sbr.rel (%p8809) target = $region67
      $region66: #{tpu_custom_call.1} parent=5 // pred_region
        %s8812 = ssub.s32 %s17, 2
        // Predicated region
        $region68: #{tpu_custom_call.1} parent=66 // pred_check
          %p8813 = pneg %p240
        $region69: #{tpu_custom_call.1} parent=66 // pred_check_branch
          %8815 = sbr.rel (%p8813) target = $region71
        $region70: #{tpu_custom_call.1} parent=66 // pred_region
          %s8816 = sand.u32 %s225, 1
          %s8817 = scalar_lea.sflag [#allocation3], %s8816
          %s8818 = sand.u32 %s225, 1
          %s8819 = smul.addr %s8818, 32
          %s8820 = scalar_lea.vmem [#allocation2], %s8819
          %8821 = dma.done %s8817, 512
        $region71: #{tpu_custom_call.1} parent=66 // pred_fallthru
          _
      $region67: #{tpu_custom_call.1} parent=5 // pred_fallthru
        _
    $region6: #{tpu_custom_call.1} parent=1 // loop_footer
      %s21 = sadd.s32 1, %s17
    $region7: #{tpu_custom_call.1} parent=1 // loop_footer_branch
      %16 = sbr.rel target = $region3
    $region8: #{tpu_custom_call.1} parent=1 // loop_exit
      _
    %8822 = vsyncpa [#allocation3], 1
    %s8823 = scalar_lea.sflag [#allocation3], 1
    %8824 = vsyncpa %s8823, 1

</llo_original>
